<compile_context>
chip_gen: v7x
topology: tpu7x:2x2x1
jax: 0.10.0
libtpu: 0.0.40
codegen_flags: <defaults>
</compile_context>

<pallas_src>
import functools

import jax
import jax.numpy as jnp
from jax.experimental import pallas as pl
from jax.experimental.pallas import tpu as pltpu

# ----------------------------- settings -------------------------------------
DIM_LATENT = 16
KERNEL_SIZE = 3
PADDING = 1
NUM_HIDDEN = 2
IMG_SHAPE = 16
DIM_HIDDEN = 32
BATCH = 2                 # per-input batch; discriminator concatenates -> 2*BATCH
BN_EPS = 1e-5

_VMEM_SPEC = pl.BlockSpec(memory_space=pltpu.MemorySpace.VMEM)


# ------------------------- fused forward kernel ------------------------------
def _discriminator_kernel(*refs, num_hidden):
    """Whole forward in one kernel.  Only 2-D VMEM tiles, MXU dots + VPU/EUP."""
    it = iter(refs)
    xgt_ref, xtg_ref = next(it), next(it)
    a0_ref, b0_ref = next(it), next(it)
    blocks = [tuple(next(it) for _ in range(6)) for _ in range(num_hidden)]
    wfc_ref, gfc_ref, bfc_ref, wpt_ref, bp_ref = (next(it) for _ in range(5))
    out_ref = next(it)                      # (2B, 1) output
    xcat_ref = next(it)                     # (2B, H*W) VMEM scratch

    b = xgt_ref.shape[0]
    n = 2 * b

    # torch.cat((X_gt, X_target), dim=0) -- concatenated directly in VMEM.
    xcat_ref[0:b, :] = xgt_ref[...]
    xcat_ref[b:n, :] = xtg_ref[...]
    x = xcat_ref[...].astype(jnp.bfloat16)

    # layer 0: Conv2d(1 -> C0, stride 1) as dense unrolled GEMM + bias + ReLU.
    y = jnp.dot(x, a0_ref[...], preferred_element_type=jnp.float32)
    y = jnp.maximum(y + b0_ref[...], 0.0)

    # EncoderBlocks: Conv2d(stride 2) -> BatchNorm2d(batch stats) -> ReLU,
    # fused as GEMM + per-channel epilogue (indicator matmuls S / S^T).
    for a_ref, bias_ref, s_ref, st_ref, gC_ref, bF_ref in blocks:
        y = jnp.dot(y.astype(jnp.bfloat16), a_ref[...],
                    preferred_element_type=jnp.float32) + bias_ref[...]     # (n, C*HW)
        c = s_ref.shape[1]
        hw = s_ref.shape[0] // c
        inv_cnt = 1.0 / float(n * hw)
        # per-channel mean over (N, H, W)
        ch_sum = jnp.dot(y, s_ref[...], preferred_element_type=jnp.float32)     # (n, C)
        mean_c = jnp.sum(ch_sum, axis=0, keepdims=True) * inv_cnt               # (1, C)
        mean_f = jnp.dot(mean_c, st_ref[...],
                         preferred_element_type=jnp.float32)                    # (1, C*HW)
        d = y - mean_f                                                           # bcast over n
        # per-channel biased variance
        sq_sum = jnp.dot(d * d, s_ref[...], preferred_element_type=jnp.float32)  # (n, C)
        var_c = jnp.sum(sq_sum, axis=0, keepdims=True) * inv_cnt                # (1, C)
        # gamma folded into the per-channel scale before expansion
        scale_c = gC_ref[...] * jax.lax.rsqrt(var_c + BN_EPS)                   # (1, C)
        scale_f = jnp.dot(scale_c, st_ref[...],
                          preferred_element_type=jnp.float32)                   # (1, C*HW)
        y = jnp.maximum(d * scale_f + bF_ref[...], 0.0)

    # discriminator_fc: Linear(bias=False) -> BatchNorm1d -> ReLU.
    h = jnp.dot(y.astype(jnp.bfloat16), wfc_ref[...],
                preferred_element_type=jnp.float32)                             # (n, hid)
    mu = jnp.mean(h, axis=0, keepdims=True)
    dh = h - mu
    var = jnp.mean(dh * dh, axis=0, keepdims=True)
    h = jnp.maximum(dh * jax.lax.rsqrt(var + BN_EPS) * gfc_ref[...] + bfc_ref[...], 0.0)

    # discriminator_pred: Linear(+bias) -> Sigmoid (exp on EUP, exact 1/x).
    logits = jnp.sum(h * wpt_ref[...], axis=1, keepdims=True) + bp_ref[...]     # (n, 1)
    out_ref[...] = 1.0 / (1.0 + jnp.exp(-logits))


def discriminator_forward(params, x_gt, x_target):
    """Non-recon forward path: returns auth_pred of shape (2*B, 1)."""
    bsz = x_gt.shape[0]
    n2 = 2 * bsz
    # NCHW flatten (Cin == 1) done once at the kernel boundary.
    xgt = x_gt.reshape(bsz, -1).astype(jnp.float32)
    xtg = x_target.reshape(bsz, -1).astype(jnp.float32)

    inputs = [xgt, xtg, params["A0"], params["bias0"]]
    for li in range(1, NUM_HIDDEN + 1):
        inputs += [params[f"A{li}"], params[f"bias{li}"], params[f"S{li}"],
                   params[f"ST{li}"], params[f"gammaC{li}"], params[f"betaF{li}"]]
    inputs += [params["wfc"], params["gamma_fc"], params["beta_fc"],
               params["wpredT"], params["bpred"]]

    kernel = functools.partial(_discriminator_kernel, num_hidden=NUM_HIDDEN)
    return pl.pallas_call(
        kernel,
        out_shape=jax.ShapeDtypeStruct((n2, 1), jnp.float32),
        in_specs=[_VMEM_SPEC] * len(inputs),
        out_specs=_VMEM_SPEC,
        scratch_shapes=[pltpu.VMEM((n2, xgt.shape[1]), jnp.float32)],
    )(*inputs)


# ------------------- init-time precompute (outside kernel) -------------------
def _unroll_conv(w, h_in, w_in, stride, pad):
    """Dense A with  conv2d(x, w)  ==  x_nchw_flat @ A  (output NCHW-flattened)."""
    c_out, c_in, kh, kw = w.shape
    h_out = (h_in + 2 * pad - kh) // stride + 1
    w_out = (w_in + 2 * pad - kw) // stride + 1
    ci = jnp.arange(c_in).reshape(c_in, 1, 1, 1, 1, 1)
    hi = jnp.arange(h_in).reshape(1, h_in, 1, 1, 1, 1)
    wi = jnp.arange(w_in).reshape(1, 1, w_in, 1, 1, 1)
    co = jnp.arange(c_out).reshape(1, 1, 1, c_out, 1, 1)
    ho = jnp.arange(h_out).reshape(1, 1, 1, 1, h_out, 1)
    wo = jnp.arange(w_out).reshape(1, 1, 1, 1, 1, w_out)
    ki = hi - stride * ho + pad
    kj = wi - stride * wo + pad
    valid = (ki >= 0) & (ki < kh) & (kj >= 0) & (kj < kw)
    vals = w[co, ci, jnp.clip(ki, 0, kh - 1), jnp.clip(kj, 0, kw - 1)]
    a = jnp.where(valid, vals, 0.0)           # (Cin, Hin, Win, Cout, Hout, Wout)
    return a.reshape(c_in * h_in * w_in, c_out * h_out * w_out), h_out, w_out


def init_params(key):
    """Synthetic parameters; conv layers pre-unrolled / BN helpers precomputed."""
    keys = iter(jax.random.split(key, 16))

    # conv channel schedule (mirrors Discriminator.__init__)
    out_ch = DIM_LATENT // 4
    convs = [(1, out_ch)]
    strides = [1]
    for i in range(NUM_HIDDEN):
        in_ch = out_ch
        out_ch = out_ch * 4 if i == 0 else out_ch * 2
        if i == NUM_HIDDEN - 1:
            out_ch //= 2
        convs.append((in_ch, out_ch))
        strides.append(2)

    params = {}
    h = w = IMG_SHAPE
    for li, ((ic, oc), s) in enumerate(zip(convs, strides)):
        wconv = 0.1 * jax.random.normal(
            next(keys), (oc, ic, KERNEL_SIZE, KERNEL_SIZE), jnp.float32)
        bconv = 0.1 * jax.random.normal(next(keys), (oc,), jnp.float32)
        a, h, w = _unroll_conv(wconv, h, w, s, PADDING)
        params[f"A{li}"] = a.astype(jnp.bfloat16)                 # bf16 MXU operand
        params[f"bias{li}"] = jnp.repeat(bconv, h * w).reshape(1, -1)
        if li > 0:  # EncoderBlock carries a BatchNorm2d
            hw = h * w
            s_mat = jnp.repeat(jnp.eye(oc, dtype=jnp.float32), hw, axis=0)  # (oc*hw, oc)
            params[f"S{li}"] = s_mat
            params[f"ST{li}"] = s_mat.T
            params[f"gammaC{li}"] = jnp.ones((1, oc), jnp.float32)
            params[f"betaF{li}"] = jnp.zeros((1, oc * hw), jnp.float32)

    fc_in = out_ch * h * w                     # NCHW flatten == kernel layout
    hid = DIM_HIDDEN // 2
    params["wfc"] = (0.1 * jax.random.normal(next(keys), (fc_in, hid),
                                             jnp.float32)).astype(jnp.bfloat16)
    params["gamma_fc"] = jnp.ones((1, hid), jnp.float32)
    params["beta_fc"] = jnp.zeros((1, hid), jnp.float32)
    params["wpredT"] = 0.1 * jax.random.normal(next(keys), (1, hid), jnp.float32)
    params["bpred"] = 0.1 * jax.random.normal(next(keys), (1, 1), jnp.float32)
    return params


# --------------------- pure-JAX reference (same params) ----------------------
def _reference_forward(params, x_gt, x_target):
    bsz = x_gt.shape[0]
    x = jnp.concatenate([x_gt.reshape(bsz, -1), x_target.reshape(bsz, -1)],
                        axis=0).astype(jnp.float32)
    n = x.shape[0]
    y = jnp.maximum(jnp.dot(x.astype(jnp.bfloat16), params["A0"],
                            preferred_element_type=jnp.float32) + params["bias0"], 0.0)
    for li in range(1, NUM_HIDDEN + 1):
        s_mat = params[f"S{li}"]
        c = s_mat.shape[1]
        hw = s_mat.shape[0] // c
        y = jnp.dot(y.astype(jnp.bfloat16), params[f"A{li}"],
                    preferred_element_type=jnp.float32) + params[f"bias{li}"]
        y3 = y.reshape(n, c, hw)
        mean = jnp.mean(y3, axis=(0, 2), keepdims=True)
        var = jnp.mean((y3 - mean) ** 2, axis=(0, 2), keepdims=True)
        y3 = (y3 - mean) * jax.lax.rsqrt(var + BN_EPS)
        y3 = (y3 * params[f"gammaC{li}"].reshape(1, c, 1)
              + params[f"betaF{li}"].reshape(1, c, hw))
        y = jnp.maximum(y3, 0.0).reshape(n, c * hw)
    h = jnp.dot(y.astype(jnp.bfloat16), params["wfc"], preferred_element_type=jnp.float32)
    mu = jnp.mean(h, axis=0, keepdims=True)
    var = jnp.mean((h - mu) ** 2, axis=0, keepdims=True)
    h = jnp.maximum((h - mu) * jax.lax.rsqrt(var + BN_EPS) * params["gamma_fc"]
                    + params["beta_fc"], 0.0)
    logits = jnp.sum(h * params["wpredT"], axis=1, keepdims=True) + params["bpred"]
    return 1.0 / (1.0 + jnp.exp(-logits))


# --------------------------------- main ---------------------------------------
if __name__ == "__main__":
    key = jax.random.PRNGKey(0)
    k_params, k_gt, k_tgt = jax.random.split(key, 3)

    params = init_params(k_params)
    x_gt = jax.random.normal(k_gt, (BATCH, 1, IMG_SHAPE, IMG_SHAPE), jnp.float32)
    x_target = jax.random.normal(k_tgt, (BATCH, 1, IMG_SHAPE, IMG_SHAPE), jnp.float32)

    fwd = jax.jit(discriminator_forward)
    auth_pred = jax.block_until_ready(fwd(params, x_gt, x_target))

    assert auth_pred.shape == (2 * BATCH, 1)
    assert bool(jnp.all((auth_pred >= 0.0) & (auth_pred <= 1.0)))

    ref = _reference_forward(params, x_gt, x_target)
    assert bool(jnp.allclose(auth_pred, ref, atol=3e-2, rtol=3e-2))

    print("KERNEL_OK")
</pallas_src>

<mosaic_0001>
module attributes {stable_mosaic.version = 11 : i64} {
  func.func @_discriminator_kernel(%arg0: memref<2x256xf32, #tpu.memory_space<vmem>>, %arg1: memref<2x256xf32, #tpu.memory_space<vmem>>, %arg2: memref<256x1024xbf16, #tpu.memory_space<vmem>>, %arg3: memref<1x1024xf32, #tpu.memory_space<vmem>>, %arg4: memref<1024x1024xbf16, #tpu.memory_space<vmem>>, %arg5: memref<1x1024xf32, #tpu.memory_space<vmem>>, %arg6: memref<1024x16xf32, #tpu.memory_space<vmem>>, %arg7: memref<16x1024xf32, #tpu.memory_space<vmem>>, %arg8: memref<1x16xf32, #tpu.memory_space<vmem>>, %arg9: memref<1x1024xf32, #tpu.memory_space<vmem>>, %arg10: memref<1024x256xbf16, #tpu.memory_space<vmem>>, %arg11: memref<1x256xf32, #tpu.memory_space<vmem>>, %arg12: memref<256x16xf32, #tpu.memory_space<vmem>>, %arg13: memref<16x256xf32, #tpu.memory_space<vmem>>, %arg14: memref<1x16xf32, #tpu.memory_space<vmem>>, %arg15: memref<1x256xf32, #tpu.memory_space<vmem>>, %arg16: memref<256x16xbf16, #tpu.memory_space<vmem>>, %arg17: memref<1x16xf32, #tpu.memory_space<vmem>>, %arg18: memref<1x16xf32, #tpu.memory_space<vmem>>, %arg19: memref<1x16xf32, #tpu.memory_space<vmem>>, %arg20: memref<1x1xf32, #tpu.memory_space<vmem>>, %arg21: memref<4x1xf32, #tpu.memory_space<vmem>>, %arg22: memref<4x256xf32, #tpu.memory_space<vmem>>) attributes {dimension_semantics = [], scalar_prefetch = 0 : i64, scratch_operands = 1 : i64, tpu.core_type = #tpu.core_type<tc>} {
    %c0 = arith.constant 0 : index
    %c0_0 = arith.constant 0 : index
    %0 = vector.load %arg0[%c0, %c0_0] : memref<2x256xf32, #tpu.memory_space<vmem>>, vector<2x256xf32>
    %c0_1 = arith.constant 0 : index
    %c0_2 = arith.constant 0 : index
    %1 = vector.load %arg22[%c0_1, %c0_2] : memref<4x256xf32, #tpu.memory_space<vmem>>, vector<2x256xf32>
    tpu.vector_store %arg22[%c0_1, %c0_2], %0 {strides = array<i32>} : memref<4x256xf32, #tpu.memory_space<vmem>>, vector<2x256xf32>,
    %c0_3 = arith.constant 0 : index
    %c0_4 = arith.constant 0 : index
    %2 = vector.load %arg1[%c0_3, %c0_4] : memref<2x256xf32, #tpu.memory_space<vmem>>, vector<2x256xf32>
    %c2 = arith.constant 2 : index
    %c0_5 = arith.constant 0 : index
    %3 = vector.load %arg22[%c2, %c0_5] : memref<4x256xf32, #tpu.memory_space<vmem>>, vector<2x256xf32>
    tpu.vector_store %arg22[%c2, %c0_5], %2 {strides = array<i32>} : memref<4x256xf32, #tpu.memory_space<vmem>>, vector<2x256xf32>,
    %c0_6 = arith.constant 0 : index
    %c0_7 = arith.constant 0 : index
    %4 = vector.load %arg22[%c0_6, %c0_7] : memref<4x256xf32, #tpu.memory_space<vmem>>, vector<4x256xf32>
    %5 = arith.truncf %4 : vector<4x256xf32> to vector<4x256xbf16>
    %c0_8 = arith.constant 0 : index
    %c0_9 = arith.constant 0 : index
    %6 = vector.load %arg2[%c0_8, %c0_9] : memref<256x1024xbf16, #tpu.memory_space<vmem>>, vector<256x1024xbf16>
    %cst = arith.constant dense<0.000000e+00> : vector<4x1024xf32>
    %7 = tpu.matmul %5, %6, %cst {dimension_numbers = #tpu.dot_dimension_numbers<[1], [0], [0], [1], [0, 0, 1, 1], [], []>} : vector<4x256xbf16>, vector<256x1024xbf16>, vector<4x1024xf32> -> vector<4x1024xf32>
    %c0_10 = arith.constant 0 : index
    %c0_11 = arith.constant 0 : index
    %8 = vector.load %arg3[%c0_10, %c0_11] : memref<1x1024xf32, #tpu.memory_space<vmem>>, vector<1x1024xf32>
    %9 = vector.broadcast %8 : vector<1x1024xf32> to vector<4x1024xf32>
    %10 = arith.addf %7, %9 : vector<4x1024xf32>
    %cst_12 = arith.constant 0.000000e+00 : f32
    %11 = vector.broadcast %cst_12 : f32 to vector<4x1024xf32>
    %12 = arith.maximumf %10, %11 : vector<4x1024xf32>
    %13 = arith.truncf %12 : vector<4x1024xf32> to vector<4x1024xbf16>
    %c0_13 = arith.constant 0 : index
    %c0_14 = arith.constant 0 : index
    %14 = vector.load %arg4[%c0_13, %c0_14] : memref<1024x1024xbf16, #tpu.memory_space<vmem>>, vector<1024x1024xbf16>
    %cst_15 = arith.constant dense<0.000000e+00> : vector<4x1024xf32>
    %15 = tpu.matmul %13, %14, %cst_15 {dimension_numbers = #tpu.dot_dimension_numbers<[1], [0], [0], [1], [0, 0, 1, 1], [], []>} : vector<4x1024xbf16>, vector<1024x1024xbf16>, vector<4x1024xf32> -> vector<4x1024xf32>
    %c0_16 = arith.constant 0 : index
    %c0_17 = arith.constant 0 : index
    %16 = vector.load %arg5[%c0_16, %c0_17] : memref<1x1024xf32, #tpu.memory_space<vmem>>, vector<1x1024xf32>
    %17 = vector.broadcast %16 : vector<1x1024xf32> to vector<4x1024xf32>
    %18 = arith.addf %15, %17 : vector<4x1024xf32>
    %c0_18 = arith.constant 0 : index
    %c0_19 = arith.constant 0 : index
    %19 = vector.load %arg6[%c0_18, %c0_19] : memref<1024x16xf32, #tpu.memory_space<vmem>>, vector<1024x16xf32>
    %cst_20 = arith.constant dense<0.000000e+00> : vector<4x16xf32>
    %20 = tpu.matmul %18, %19, %cst_20 {dimension_numbers = #tpu.dot_dimension_numbers<[1], [0], [0], [1], [0, 0, 1, 1], [], []>} : vector<4x1024xf32>, vector<1024x16xf32>, vector<4x16xf32> -> vector<4x16xf32>
    %cst_21 = arith.constant dense<0.000000e+00> : vector<16xf32>
    %21 = vector.multi_reduction <add>, %20, %cst_21 [0] : vector<4x16xf32> to vector<16xf32>
    %22 = vector.shape_cast %21 : vector<16xf32> to vector<1x16xf32>
    %cst_22 = arith.constant 3.906250e-03 : f32
    %23 = vector.broadcast %cst_22 : f32 to vector<1x16xf32>
    %24 = arith.mulf %22, %23 : vector<1x16xf32>
    %c0_23 = arith.constant 0 : index
    %c0_24 = arith.constant 0 : index
    %25 = vector.load %arg7[%c0_23, %c0_24] : memref<16x1024xf32, #tpu.memory_space<vmem>>, vector<16x1024xf32>
    %cst_25 = arith.constant dense<0.000000e+00> : vector<1x1024xf32>
    %26 = tpu.matmul %24, %25, %cst_25 {dimension_numbers = #tpu.dot_dimension_numbers<[1], [0], [0], [1], [0, 0, 1, 1], [], []>} : vector<1x16xf32>, vector<16x1024xf32>, vector<1x1024xf32> -> vector<1x1024xf32>
    %27 = vector.broadcast %26 : vector<1x1024xf32> to vector<4x1024xf32>
    %28 = arith.subf %18, %27 : vector<4x1024xf32>
    %29 = arith.mulf %28, %28 : vector<4x1024xf32>
    %c0_26 = arith.constant 0 : index
    %c0_27 = arith.constant 0 : index
    %30 = vector.load %arg6[%c0_26, %c0_27] : memref<1024x16xf32, #tpu.memory_space<vmem>>, vector<1024x16xf32>
    %cst_28 = arith.constant dense<0.000000e+00> : vector<4x16xf32>
    %31 = tpu.matmul %29, %30, %cst_28 {dimension_numbers = #tpu.dot_dimension_numbers<[1], [0], [0], [1], [0, 0, 1, 1], [], []>} : vector<4x1024xf32>, vector<1024x16xf32>, vector<4x16xf32> -> vector<4x16xf32>
    %cst_29 = arith.constant dense<0.000000e+00> : vector<16xf32>
    %32 = vector.multi_reduction <add>, %31, %cst_29 [0] : vector<4x16xf32> to vector<16xf32>
    %33 = vector.shape_cast %32 : vector<16xf32> to vector<1x16xf32>
    %cst_30 = arith.constant 3.906250e-03 : f32
    %34 = vector.broadcast %cst_30 : f32 to vector<1x16xf32>
    %35 = arith.mulf %33, %34 : vector<1x16xf32>
    %c0_31 = arith.constant 0 : index
    %c0_32 = arith.constant 0 : index
    %36 = vector.load %arg8[%c0_31, %c0_32] : memref<1x16xf32, #tpu.memory_space<vmem>>, vector<1x16xf32>
    %cst_33 = arith.constant 9.99999974E-6 : f32
    %37 = vector.broadcast %cst_33 : f32 to vector<1x16xf32>
    %38 = arith.addf %35, %37 : vector<1x16xf32>
    %39 = math.rsqrt %38 : vector<1x16xf32>
    %40 = arith.mulf %36, %39 : vector<1x16xf32>
    %c0_34 = arith.constant 0 : index
    %c0_35 = arith.constant 0 : index
    %41 = vector.load %arg7[%c0_34, %c0_35] : memref<16x1024xf32, #tpu.memory_space<vmem>>, vector<16x1024xf32>
    %cst_36 = arith.constant dense<0.000000e+00> : vector<1x1024xf32>
    %42 = tpu.matmul %40, %41, %cst_36 {dimension_numbers = #tpu.dot_dimension_numbers<[1], [0], [0], [1], [0, 0, 1, 1], [], []>} : vector<1x16xf32>, vector<16x1024xf32>, vector<1x1024xf32> -> vector<1x1024xf32>
    %43 = vector.broadcast %42 : vector<1x1024xf32> to vector<4x1024xf32>
    %44 = arith.mulf %28, %43 : vector<4x1024xf32>
    %c0_37 = arith.constant 0 : index
    %c0_38 = arith.constant 0 : index
    %45 = vector.load %arg9[%c0_37, %c0_38] : memref<1x1024xf32, #tpu.memory_space<vmem>>, vector<1x1024xf32>
    %46 = vector.broadcast %45 : vector<1x1024xf32> to vector<4x1024xf32>
    %47 = arith.addf %44, %46 : vector<4x1024xf32>
    %cst_39 = arith.constant 0.000000e+00 : f32
    %48 = vector.broadcast %cst_39 : f32 to vector<4x1024xf32>
    %49 = arith.maximumf %47, %48 : vector<4x1024xf32>
    %50 = arith.truncf %49 : vector<4x1024xf32> to vector<4x1024xbf16>
    %c0_40 = arith.constant 0 : index
    %c0_41 = arith.constant 0 : index
    %51 = vector.load %arg10[%c0_40, %c0_41] : memref<1024x256xbf16, #tpu.memory_space<vmem>>, vector<1024x256xbf16>
    %cst_42 = arith.constant dense<0.000000e+00> : vector<4x256xf32>
    %52 = tpu.matmul %50, %51, %cst_42 {dimension_numbers = #tpu.dot_dimension_numbers<[1], [0], [0], [1], [0, 0, 1, 1], [], []>} : vector<4x1024xbf16>, vector<1024x256xbf16>, vector<4x256xf32> -> vector<4x256xf32>
    %c0_43 = arith.constant 0 : index
    %c0_44 = arith.constant 0 : index
    %53 = vector.load %arg11[%c0_43, %c0_44] : memref<1x256xf32, #tpu.memory_space<vmem>>, vector<1x256xf32>
    %54 = vector.broadcast %53 : vector<1x256xf32> to vector<4x256xf32>
    %55 = arith.addf %52, %54 : vector<4x256xf32>
    %c0_45 = arith.constant 0 : index
    %c0_46 = arith.constant 0 : index
    %56 = vector.load %arg12[%c0_45, %c0_46] : memref<256x16xf32, #tpu.memory_space<vmem>>, vector<256x16xf32>
    %cst_47 = arith.constant dense<0.000000e+00> : vector<4x16xf32>
    %57 = tpu.matmul %55, %56, %cst_47 {dimension_numbers = #tpu.dot_dimension_numbers<[1], [0], [0], [1], [0, 0, 1, 1], [], []>} : vector<4x256xf32>, vector<256x16xf32>, vector<4x16xf32> -> vector<4x16xf32>
    %cst_48 = arith.constant dense<0.000000e+00> : vector<16xf32>
    %58 = vector.multi_reduction <add>, %57, %cst_48 [0] : vector<4x16xf32> to vector<16xf32>
    %59 = vector.shape_cast %58 : vector<16xf32> to vector<1x16xf32>
    %cst_49 = arith.constant 1.562500e-02 : f32
    %60 = vector.broadcast %cst_49 : f32 to vector<1x16xf32>
    %61 = arith.mulf %59, %60 : vector<1x16xf32>
    %c0_50 = arith.constant 0 : index
    %c0_51 = arith.constant 0 : index
    %62 = vector.load %arg13[%c0_50, %c0_51] : memref<16x256xf32, #tpu.memory_space<vmem>>, vector<16x256xf32>
    %cst_52 = arith.constant dense<0.000000e+00> : vector<1x256xf32>
    %63 = tpu.matmul %61, %62, %cst_52 {dimension_numbers = #tpu.dot_dimension_numbers<[1], [0], [0], [1], [0, 0, 1, 1], [], []>} : vector<1x16xf32>, vector<16x256xf32>, vector<1x256xf32> -> vector<1x256xf32>
    %64 = vector.broadcast %63 : vector<1x256xf32> to vector<4x256xf32>
    %65 = arith.subf %55, %64 : vector<4x256xf32>
    %66 = arith.mulf %65, %65 : vector<4x256xf32>
    %c0_53 = arith.constant 0 : index
    %c0_54 = arith.constant 0 : index
    %67 = vector.load %arg12[%c0_53, %c0_54] : memref<256x16xf32, #tpu.memory_space<vmem>>, vector<256x16xf32>
    %cst_55 = arith.constant dense<0.000000e+00> : vector<4x16xf32>
    %68 = tpu.matmul %66, %67, %cst_55 {dimension_numbers = #tpu.dot_dimension_numbers<[1], [0], [0], [1], [0, 0, 1, 1], [], []>} : vector<4x256xf32>, vector<256x16xf32>, vector<4x16xf32> -> vector<4x16xf32>
    %cst_56 = arith.constant dense<0.000000e+00> : vector<16xf32>
    %69 = vector.multi_reduction <add>, %68, %cst_56 [0] : vector<4x16xf32> to vector<16xf32>
    %70 = vector.shape_cast %69 : vector<16xf32> to vector<1x16xf32>
    %cst_57 = arith.constant 1.562500e-02 : f32
    %71 = vector.broadcast %cst_57 : f32 to vector<1x16xf32>
    %72 = arith.mulf %70, %71 : vector<1x16xf32>
    %c0_58 = arith.constant 0 : index
    %c0_59 = arith.constant 0 : index
    %73 = vector.load %arg14[%c0_58, %c0_59] : memref<1x16xf32, #tpu.memory_space<vmem>>, vector<1x16xf32>
    %cst_60 = arith.constant 9.99999974E-6 : f32
    %74 = vector.broadcast %cst_60 : f32 to vector<1x16xf32>
    %75 = arith.addf %72, %74 : vector<1x16xf32>
    %76 = math.rsqrt %75 : vector<1x16xf32>
    %77 = arith.mulf %73, %76 : vector<1x16xf32>
    %c0_61 = arith.constant 0 : index
    %c0_62 = arith.constant 0 : index
    %78 = vector.load %arg13[%c0_61, %c0_62] : memref<16x256xf32, #tpu.memory_space<vmem>>, vector<16x256xf32>
    %cst_63 = arith.constant dense<0.000000e+00> : vector<1x256xf32>
    %79 = tpu.matmul %77, %78, %cst_63 {dimension_numbers = #tpu.dot_dimension_numbers<[1], [0], [0], [1], [0, 0, 1, 1], [], []>} : vector<1x16xf32>, vector<16x256xf32>, vector<1x256xf32> -> vector<1x256xf32>
    %80 = vector.broadcast %79 : vector<1x256xf32> to vector<4x256xf32>
    %81 = arith.mulf %65, %80 : vector<4x256xf32>
    %c0_64 = arith.constant 0 : index
    %c0_65 = arith.constant 0 : index
    %82 = vector.load %arg15[%c0_64, %c0_65] : memref<1x256xf32, #tpu.memory_space<vmem>>, vector<1x256xf32>
    %83 = vector.broadcast %82 : vector<1x256xf32> to vector<4x256xf32>
    %84 = arith.addf %81, %83 : vector<4x256xf32>
    %cst_66 = arith.constant 0.000000e+00 : f32
    %85 = vector.broadcast %cst_66 : f32 to vector<4x256xf32>
    %86 = arith.maximumf %84, %85 : vector<4x256xf32>
    %87 = arith.truncf %86 : vector<4x256xf32> to vector<4x256xbf16>
    %c0_67 = arith.constant 0 : index
    %c0_68 = arith.constant 0 : index
    %88 = vector.load %arg16[%c0_67, %c0_68] : memref<256x16xbf16, #tpu.memory_space<vmem>>, vector<256x16xbf16>
    %cst_69 = arith.constant dense<0.000000e+00> : vector<4x16xf32>
    %89 = tpu.matmul %87, %88, %cst_69 {dimension_numbers = #tpu.dot_dimension_numbers<[1], [0], [0], [1], [0, 0, 1, 1], [], []>} : vector<4x256xbf16>, vector<256x16xbf16>, vector<4x16xf32> -> vector<4x16xf32>
    %cst_70 = arith.constant dense<0.000000e+00> : vector<16xf32>
    %90 = vector.multi_reduction <add>, %89, %cst_70 [0] : vector<4x16xf32> to vector<16xf32>
    %91 = vector.shape_cast %90 : vector<16xf32> to vector<1x16xf32>
    %cst_71 = arith.constant 4.000000e+00 : f32
    %92 = vector.broadcast %cst_71 : f32 to vector<1x16xf32>
    %93 = arith.divf %91, %92 : vector<1x16xf32>
    %94 = vector.broadcast %93 : vector<1x16xf32> to vector<4x16xf32>
    %95 = arith.subf %89, %94 : vector<4x16xf32>
    %96 = arith.mulf %95, %95 : vector<4x16xf32>
    %cst_72 = arith.constant dense<0.000000e+00> : vector<16xf32>
    %97 = vector.multi_reduction <add>, %96, %cst_72 [0] : vector<4x16xf32> to vector<16xf32>
    %98 = vector.shape_cast %97 : vector<16xf32> to vector<1x16xf32>
    %cst_73 = arith.constant 4.000000e+00 : f32
    %99 = vector.broadcast %cst_73 : f32 to vector<1x16xf32>
    %100 = arith.divf %98, %99 : vector<1x16xf32>
    %cst_74 = arith.constant 9.99999974E-6 : f32
    %101 = vector.broadcast %cst_74 : f32 to vector<1x16xf32>
    %102 = arith.addf %100, %101 : vector<1x16xf32>
    %103 = math.rsqrt %102 : vector<1x16xf32>
    %104 = vector.broadcast %103 : vector<1x16xf32> to vector<4x16xf32>
    %105 = arith.mulf %95, %104 : vector<4x16xf32>
    %c0_75 = arith.constant 0 : index
    %c0_76 = arith.constant 0 : index
    %106 = vector.load %arg17[%c0_75, %c0_76] : memref<1x16xf32, #tpu.memory_space<vmem>>, vector<1x16xf32>
    %107 = vector.broadcast %106 : vector<1x16xf32> to vector<4x16xf32>
    %108 = arith.mulf %105, %107 : vector<4x16xf32>
    %c0_77 = arith.constant 0 : index
    %c0_78 = arith.constant 0 : index
    %109 = vector.load %arg18[%c0_77, %c0_78] : memref<1x16xf32, #tpu.memory_space<vmem>>, vector<1x16xf32>
    %110 = vector.broadcast %109 : vector<1x16xf32> to vector<4x16xf32>
    %111 = arith.addf %108, %110 : vector<4x16xf32>
    %cst_79 = arith.constant 0.000000e+00 : f32
    %112 = vector.broadcast %cst_79 : f32 to vector<4x16xf32>
    %113 = arith.maximumf %111, %112 : vector<4x16xf32>
    %c0_80 = arith.constant 0 : index
    %c0_81 = arith.constant 0 : index
    %114 = vector.load %arg19[%c0_80, %c0_81] : memref<1x16xf32, #tpu.memory_space<vmem>>, vector<1x16xf32>
    %115 = vector.broadcast %114 : vector<1x16xf32> to vector<4x16xf32>
    %116 = arith.mulf %113, %115 : vector<4x16xf32>
    %cst_82 = arith.constant dense<0.000000e+00> : vector<4xf32>
    %117 = vector.multi_reduction <add>, %116, %cst_82 [1] : vector<4x16xf32> to vector<4xf32>
    %118 = vector.shape_cast %117 : vector<4xf32> to vector<4x1xf32>
    %c0_83 = arith.constant 0 : index
    %c0_84 = arith.constant 0 : index
    %119 = vector.load %arg20[%c0_83, %c0_84] : memref<1x1xf32, #tpu.memory_space<vmem>>, vector<1x1xf32>
    %120 = vector.broadcast %119 : vector<1x1xf32> to vector<4x1xf32>
    %121 = arith.addf %118, %120 : vector<4x1xf32>
    %cst_85 = arith.constant 0.000000e+00 : f32
    %122 = vector.broadcast %cst_85 : f32 to vector<4x1xf32>
    %123 = arith.subf %122, %121 : vector<4x1xf32>
    %124 = math.exp %123 : vector<4x1xf32>
    %cst_86 = arith.constant 1.000000e+00 : f32
    %125 = vector.broadcast %cst_86 : f32 to vector<4x1xf32>
    %126 = arith.addf %125, %124 : vector<4x1xf32>
    %cst_87 = arith.constant 1.000000e+00 : f32
    %127 = vector.broadcast %cst_87 : f32 to vector<4x1xf32>
    %128 = arith.divf %127, %126 : vector<4x1xf32>
    %c0_88 = arith.constant 0 : index
    %c0_89 = arith.constant 0 : index
    %129 = vector.load %arg21[%c0_88, %c0_89] : memref<4x1xf32, #tpu.memory_space<vmem>>, vector<4x1xf32>
    tpu.vector_store %arg21[%c0_88, %c0_89], %128 {strides = array<i32>} : memref<4x1xf32, #tpu.memory_space<vmem>>, vector<4x1xf32>,
    return
  }
}

</mosaic_0001>

<llo_original>
// kernel: discriminator_forward.1
$region0: #{discriminator_forward.1}
  #allocation0 [shape = 'u32[]', space=smem, size = 0x4, offset = 0x4, fixed_abs, tag = 'smem constant byte address 0x4 - core index']
  #allocation1 [shape = 'u32[144,128]{1,0:T(1,128)}', space=vmem, size = 0x12000, scoped, tag = 'internal scratch']
  #allocation2 [shape = 'f32[4,256]{1,0:T(4,128)}', space=vmem, size = 0x1000, scoped, tag = 'scratch operand']
  #allocation3 [shape = 'f32[1,1]{1,0:T(1,128)S(1)}', space=vmem, size = 0x200, scoped, tag = 'scoped memory for discriminator_forward.1']
  %s0 = inlined_call_operand.vmem [shape: f32[2,256], index: 0, kind: input, shape index: {}]
  %s1 = inlined_call_operand.vmem [shape: f32[2,256], index: 1, kind: input, shape index: {}]
  %s2 = inlined_call_operand.hbm [shape: bf16[256,1024], index: 2, kind: input, shape index: {}]
  %s3 = inlined_call_operand.hbm [shape: f32[1,1024], index: 3, kind: input, shape index: {}]
  %s4 = inlined_call_operand.hbm [shape: bf16[1024,1024], index: 4, kind: input, shape index: {}]
  %s5 = inlined_call_operand.hbm [shape: f32[1,1024], index: 5, kind: input, shape index: {}]
  %s6 = inlined_call_operand.vmem [shape: f32[1024,16], index: 6, kind: input, shape index: {}]
  %s7 = inlined_call_operand.hbm [shape: f32[16,1024], index: 7, kind: input, shape index: {}]
  %s8 = inlined_call_operand.hbm [shape: f32[1,16], index: 8, kind: input, shape index: {}]
  %s9 = inlined_call_operand.hbm [shape: f32[1,1024], index: 9, kind: input, shape index: {}]
  %s10 = inlined_call_operand.hbm [shape: bf16[1024,256], index: 10, kind: input, shape index: {}]
  %s11 = inlined_call_operand.hbm [shape: f32[1,256], index: 11, kind: input, shape index: {}]
  %s12 = inlined_call_operand.vmem [shape: f32[256,16], index: 12, kind: input, shape index: {}]
  %s13 = inlined_call_operand.hbm [shape: f32[16,256], index: 13, kind: input, shape index: {}]
  %s14 = inlined_call_operand.hbm [shape: f32[1,16], index: 14, kind: input, shape index: {}]
  %s15 = inlined_call_operand.hbm [shape: f32[1,256], index: 15, kind: input, shape index: {}]
  %s16 = inlined_call_operand.vmem [shape: bf16[256,16], index: 16, kind: input, shape index: {}]
  %s17 = inlined_call_operand.hbm [shape: f32[1,16], index: 17, kind: input, shape index: {}]
  %s18 = inlined_call_operand.hbm [shape: f32[1,16], index: 18, kind: input, shape index: {}]
  %s19 = inlined_call_operand.hbm [shape: f32[1,16], index: 19, kind: input, shape index: {}]
  %s20 = inlined_call_operand.<no memory space> [shape: f32[1,1], index: 20, kind: input, shape index: {}]
  %s21 = inlined_call_operand.vmem [shape: f32[4,1], index: 21, kind: output, shape index: {}]
  %s22 = sld [smem:[#allocation0]]
  $region154: #{discriminator_forward.1} parent=0
    _
  %s24 = ssub.s32 1, %s22
  %s25 = scalar_select 0, %s24, %s22
  %v26 = vstv %s20
  %27 = vst [vmem:[#allocation3] sm:$0x1] %v26
  $region1: #{discriminator_forward.1} parent=0
    #allocation4 [shape = 'u8[524288]{0}', space=vmem, size = 0x80000, scoped, tag = 'input window, operand 2, single buffered']
    #allocation5 [shape = 's32[1]{0}', space=sflag, size = 0x4, scoped, tag = 'scoped memory for discriminator_forward.1']
    #allocation6 [shape = 'u8[4096]{0}', space=vmem, size = 0x1000, scoped, tag = 'input window, operand 3, single buffered']
    #allocation7 [shape = 's32[1]{0}', space=sflag, size = 0x4, scoped, tag = 'scoped memory for discriminator_forward.1']
    #allocation8 [shape = 'u8[2097152]{0}', space=vmem, size = 0x200000, scoped, tag = 'input window, operand 4, single buffered']
    #allocation9 [shape = 'u8[4096]{0}', space=vmem, size = 0x1000, scoped, tag = 'input window, operand 5, single buffered']
    #allocation10 [shape = 's32[1]{0}', space=sflag, size = 0x4, scoped, tag = 'scoped memory for discriminator_forward.1']
    #allocation11 [shape = 'u8[65536]{0}', space=vmem, size = 0x10000, scoped, tag = 'input window, operand 7, single buffered']
    #allocation12 [shape = 'u8[512]{0}', space=vmem, size = 0x400, scoped, tag = 'input window, operand 8, single buffered']
    #allocation13 [shape = 's32[1]{0}', space=sflag, size = 0x4, scoped, tag = 'scoped memory for discriminator_forward.1']
    #allocation14 [shape = 'u8[4096]{0}', space=vmem, size = 0x1000, scoped, tag = 'input window, operand 9, single buffered']
    #allocation15 [shape = 'u8[524288]{0}', space=vmem, size = 0x80000, scoped, tag = 'input window, operand 10, single buffered']
    #allocation16 [shape = 's32[1]{0}', space=sflag, size = 0x4, scoped, tag = 'scoped memory for discriminator_forward.1']
    #allocation17 [shape = 'u8[1024]{0}', space=vmem, size = 0x400, scoped, tag = 'input window, operand 11, single buffered']
    #allocation18 [shape = 'u8[16384]{0}', space=vmem, size = 0x4000, scoped, tag = 'input window, operand 13, single buffered']
    #allocation19 [shape = 's32[1]{0}', space=sflag, size = 0x4, scoped, tag = 'scoped memory for discriminator_forward.1']
    #allocation20 [shape = 'u8[512]{0}', space=vmem, size = 0x400, scoped, tag = 'input window, operand 14, single buffered']
    #allocation21 [shape = 'u8[1024]{0}', space=vmem, size = 0x400, scoped, tag = 'input window, operand 15, single buffered']
    #allocation22 [shape = 's32[1]{0}', space=sflag, size = 0x4, scoped, tag = 'scoped memory for discriminator_forward.1']
    #allocation23 [shape = 'u8[512]{0}', space=vmem, size = 0x400, scoped, tag = 'input window, operand 17, single buffered']
    #allocation24 [shape = 'u8[512]{0}', space=vmem, size = 0x400, scoped, tag = 'input window, operand 18, single buffered']
    #allocation25 [shape = 's32[1]{0}', space=sflag, size = 0x4, scoped, tag = 'scoped memory for discriminator_forward.1']
    #allocation26 [shape = 'u8[512]{0}', space=vmem, size = 0x400, scoped, tag = 'input window, operand 19, single buffered']
    %28 = vsyncpa [#allocation5], 0
    %29 = vsyncpa [#allocation7], 0
    %30 = vsyncpa [#allocation10], 0
    %31 = vsyncpa [#allocation13], 0
    %32 = vsyncpa [#allocation16], 0
    %33 = vsyncpa [#allocation19], 0
    %34 = vsyncpa [#allocation22], 0
    %35 = vsyncpa [#allocation25], 0
    // Predicated region
    $region2: #{discriminator_forward.1} parent=1 // pred_check
      _
    $region3: #{discriminator_forward.1} parent=1 // pred_check_branch
      %37 = sbr.rel (0) target = $region5
    $region4: #{discriminator_forward.1} parent=1 // pred_region
      _
    $region5: #{discriminator_forward.1} parent=1 // pred_fallthru
      _
    // Predicated region
    $region6: #{discriminator_forward.1} parent=1 // pred_check
      _
    $region7: #{discriminator_forward.1} parent=1 // pred_check_branch
      %39 = sbr.rel (0) target = $region9
    $region8: #{discriminator_forward.1} parent=1 // pred_region
      _
    $region9: #{discriminator_forward.1} parent=1 // pred_fallthru
      _
    // Predicated region
    $region10: #{discriminator_forward.1} parent=1 // pred_check
      _
    $region11: #{discriminator_forward.1} parent=1 // pred_check_branch
      %41 = sbr.rel (0) target = $region13
    $region12: #{discriminator_forward.1} parent=1 // pred_region
      %s43 = ssub.s32 16384, 16384
      %44 = vsyncadd [#allocation5], %s43
      %s45 = sshll.u32 [#allocation4], 4
      %s46 = int_to_ptr.vmem [resolvable:$true] %s45
      %51 = dma.hbm_to_vmem [thread:$0]  %s2, 16384, %s46, [#allocation5], 512, 512, 32
    $region13: #{discriminator_forward.1} parent=1 // pred_fallthru
      _
    // Predicated region
    $region14: #{discriminator_forward.1} parent=1 // pred_check
      _
    $region15: #{discriminator_forward.1} parent=1 // pred_check_branch
      %53 = sbr.rel (0) target = $region17
    $region16: #{discriminator_forward.1} parent=1 // pred_region
      %s55 = ssub.s32 128, 128
      %56 = vsyncadd [#allocation7], %s55
      %s58 = sshll.u32 [#allocation6], 4
      %s59 = int_to_ptr.vmem [resolvable:$true] %s58
      %61 = dma.hbm_to_vmem [thread:$0]  %s3, 128, %s59, [#allocation7]
    $region17: #{discriminator_forward.1} parent=1 // pred_fallthru
      _
    // Predicated region
    $region18: #{discriminator_forward.1} parent=1 // pred_check
      _
    $region19: #{discriminator_forward.1} parent=1 // pred_check_branch
      %63 = sbr.rel (0) target = $region21
    $region20: #{discriminator_forward.1} parent=1 // pred_region
      %s65 = ssub.s32 65536, 65536
      %66 = vsyncadd [#allocation7], %s65
      %s67 = sshll.u32 [#allocation8], 4
      %s68 = int_to_ptr.vmem [resolvable:$true] %s67
      %73 = dma.hbm_to_vmem [thread:$0]  %s4, 65536, %s68, [#allocation7], 512, 512, 32
    $region21: #{discriminator_forward.1} parent=1 // pred_fallthru
      _
    // Predicated region
    $region22: #{discriminator_forward.1} parent=1 // pred_check
      _
    $region23: #{discriminator_forward.1} parent=1 // pred_check_branch
      %75 = sbr.rel (0) target = $region25
    $region24: #{discriminator_forward.1} parent=1 // pred_region
      %s77 = ssub.s32 128, 128
      %78 = vsyncadd [#allocation10], %s77
      %s80 = sshll.u32 [#allocation9], 4
      %s81 = int_to_ptr.vmem [resolvable:$true] %s80
      %83 = dma.hbm_to_vmem [thread:$0]  %s5, 128, %s81, [#allocation10]
    $region25: #{discriminator_forward.1} parent=1 // pred_fallthru
      _
    // Predicated region
    $region26: #{discriminator_forward.1} parent=1 // pred_check
      _
    $region27: #{discriminator_forward.1} parent=1 // pred_check_branch
      %85 = sbr.rel (0) target = $region29
    $region28: #{discriminator_forward.1} parent=1 // pred_region
      _
    $region29: #{discriminator_forward.1} parent=1 // pred_fallthru
      _
    // Predicated region
    $region30: #{discriminator_forward.1} parent=1 // pred_check
      _
    $region31: #{discriminator_forward.1} parent=1 // pred_check_branch
      %87 = sbr.rel (0) target = $region33
    $region32: #{discriminator_forward.1} parent=1 // pred_region
      %s89 = ssub.s32 2048, 2048
      %90 = vsyncadd [#allocation10], %s89
      %s91 = sshll.u32 [#allocation11], 4
      %s92 = int_to_ptr.vmem [resolvable:$true] %s91
      %97 = dma.hbm_to_vmem [thread:$0]  %s7, 2048, %s92, [#allocation10], 1024, 1024, 64
    $region33: #{discriminator_forward.1} parent=1 // pred_fallthru
      _
    // Predicated region
    $region34: #{discriminator_forward.1} parent=1 // pred_check
      _
    $region35: #{discriminator_forward.1} parent=1 // pred_check_branch
      %99 = sbr.rel (0) target = $region37
    $region36: #{discriminator_forward.1} parent=1 // pred_region
      %s101 = ssub.s32 16, 16
      %102 = vsyncadd [#allocation13], %s101
      %s104 = sshll.u32 [#allocation12], 4
      %s105 = int_to_ptr.vmem [resolvable:$true] %s104
      %107 = dma.hbm_to_vmem [thread:$0]  %s8, 16, %s105, [#allocation13]
    $region37: #{discriminator_forward.1} parent=1 // pred_fallthru
      _
    // Predicated region
    $region38: #{discriminator_forward.1} parent=1 // pred_check
      _
    $region39: #{discriminator_forward.1} parent=1 // pred_check_branch
      %109 = sbr.rel (0) target = $region41
    $region40: #{discriminator_forward.1} parent=1 // pred_region
      %s111 = ssub.s32 128, 128
      %112 = vsyncadd [#allocation13], %s111
      %s114 = sshll.u32 [#allocation14], 4
      %s115 = int_to_ptr.vmem [resolvable:$true] %s114
      %117 = dma.hbm_to_vmem [thread:$0]  %s9, 128, %s115, [#allocation13]
    $region41: #{discriminator_forward.1} parent=1 // pred_fallthru
      _
    // Predicated region
    $region42: #{discriminator_forward.1} parent=1 // pred_check
      _
    $region43: #{discriminator_forward.1} parent=1 // pred_check_branch
      %119 = sbr.rel (0) target = $region45
    $region44: #{discriminator_forward.1} parent=1 // pred_region
      %s121 = ssub.s32 16384, 16384
      %122 = vsyncadd [#allocation16], %s121
      %s123 = sshll.u32 [#allocation15], 4
      %s124 = int_to_ptr.vmem [resolvable:$true] %s123
      %129 = dma.hbm_to_vmem [thread:$0]  %s10, 16384, %s124, [#allocation16], 128, 128, 8
    $region45: #{discriminator_forward.1} parent=1 // pred_fallthru
      _
    // Predicated region
    $region46: #{discriminator_forward.1} parent=1 // pred_check
      _
    $region47: #{discriminator_forward.1} parent=1 // pred_check_branch
      %131 = sbr.rel (0) target = $region49
    $region48: #{discriminator_forward.1} parent=1 // pred_region
      %s133 = ssub.s32 32, 32
      %134 = vsyncadd [#allocation16], %s133
      %s136 = sshll.u32 [#allocation17], 4
      %s137 = int_to_ptr.vmem [resolvable:$true] %s136
      %139 = dma.hbm_to_vmem [thread:$0]  %s11, 32, %s137, [#allocation16]
    $region49: #{discriminator_forward.1} parent=1 // pred_fallthru
      _
    // Predicated region
    $region50: #{discriminator_forward.1} parent=1 // pred_check
      _
    $region51: #{discriminator_forward.1} parent=1 // pred_check_branch
      %141 = sbr.rel (0) target = $region53
    $region52: #{discriminator_forward.1} parent=1 // pred_region
      _
    $region53: #{discriminator_forward.1} parent=1 // pred_fallthru
      _
    // Predicated region
    $region54: #{discriminator_forward.1} parent=1 // pred_check
      _
    $region55: #{discriminator_forward.1} parent=1 // pred_check_branch
      %143 = sbr.rel (0) target = $region57
    $region56: #{discriminator_forward.1} parent=1 // pred_region
      %s145 = ssub.s32 512, 512
      %146 = vsyncadd [#allocation19], %s145
      %s147 = sshll.u32 [#allocation18], 4
      %s148 = int_to_ptr.vmem [resolvable:$true] %s147
      %153 = dma.hbm_to_vmem [thread:$0]  %s13, 512, %s148, [#allocation19], 256, 256, 16
    $region57: #{discriminator_forward.1} parent=1 // pred_fallthru
      _
    // Predicated region
    $region58: #{discriminator_forward.1} parent=1 // pred_check
      _
    $region59: #{discriminator_forward.1} parent=1 // pred_check_branch
      %155 = sbr.rel (0) target = $region61
    $region60: #{discriminator_forward.1} parent=1 // pred_region
      %s157 = ssub.s32 16, 16
      %158 = vsyncadd [#allocation19], %s157
      %s160 = sshll.u32 [#allocation20], 4
      %s161 = int_to_ptr.vmem [resolvable:$true] %s160
      %163 = dma.hbm_to_vmem [thread:$0]  %s14, 16, %s161, [#allocation19]
    $region61: #{discriminator_forward.1} parent=1 // pred_fallthru
      _
    // Predicated region
    $region62: #{discriminator_forward.1} parent=1 // pred_check
      _
    $region63: #{discriminator_forward.1} parent=1 // pred_check_branch
      %165 = sbr.rel (0) target = $region65
    $region64: #{discriminator_forward.1} parent=1 // pred_region
      %s167 = ssub.s32 32, 32
      %168 = vsyncadd [#allocation22], %s167
      %s170 = sshll.u32 [#allocation21], 4
      %s171 = int_to_ptr.vmem [resolvable:$true] %s170
      %173 = dma.hbm_to_vmem [thread:$0]  %s15, 32, %s171, [#allocation22]
    $region65: #{discriminator_forward.1} parent=1 // pred_fallthru
      _
    // Predicated region
    $region66: #{discriminator_forward.1} parent=1 // pred_check
      _
    $region67: #{discriminator_forward.1} parent=1 // pred_check_branch
      %175 = sbr.rel (0) target = $region69
    $region68: #{discriminator_forward.1} parent=1 // pred_region
      _
    $region69: #{discriminator_forward.1} parent=1 // pred_fallthru
      _
    // Predicated region
    $region70: #{discriminator_forward.1} parent=1 // pred_check
      _
    $region71: #{discriminator_forward.1} parent=1 // pred_check_branch
      %177 = sbr.rel (0) target = $region73
    $region72: #{discriminator_forward.1} parent=1 // pred_region
      %s179 = ssub.s32 16, 16
      %180 = vsyncadd [#allocation22], %s179
      %s182 = sshll.u32 [#allocation23], 4
      %s183 = int_to_ptr.vmem [resolvable:$true] %s182
      %185 = dma.hbm_to_vmem [thread:$0]  %s17, 16, %s183, [#allocation22]
    $region73: #{discriminator_forward.1} parent=1 // pred_fallthru
      _
    // Predicated region
    $region74: #{discriminator_forward.1} parent=1 // pred_check
      _
    $region75: #{discriminator_forward.1} parent=1 // pred_check_branch
      %187 = sbr.rel (0) target = $region77
    $region76: #{discriminator_forward.1} parent=1 // pred_region
      %s189 = ssub.s32 16, 16
      %190 = vsyncadd [#allocation25], %s189
      %s192 = sshll.u32 [#allocation24], 4
      %s193 = int_to_ptr.vmem [resolvable:$true] %s192
      %195 = dma.hbm_to_vmem [thread:$0]  %s18, 16, %s193, [#allocation25]
    $region77: #{discriminator_forward.1} parent=1 // pred_fallthru
      _
    // Predicated region
    $region78: #{discriminator_forward.1} parent=1 // pred_check
      _
    $region79: #{discriminator_forward.1} parent=1 // pred_check_branch
      %197 = sbr.rel (0) target = $region81
    $region80: #{discriminator_forward.1} parent=1 // pred_region
      %s199 = ssub.s32 16, 16
      %200 = vsyncadd [#allocation25], %s199
      %s202 = sshll.u32 [#allocation26], 4
      %s203 = int_to_ptr.vmem [resolvable:$true] %s202
      %205 = dma.hbm_to_vmem [thread:$0]  %s19, 16, %s203, [#allocation25]
    $region81: #{discriminator_forward.1} parent=1 // pred_fallthru
      _
    // Predicated region
    $region82: #{discriminator_forward.1} parent=1 // pred_check
      _
    $region83: #{discriminator_forward.1} parent=1 // pred_check_branch
      %207 = sbr.rel (0) target = $region85
    $region84: #{discriminator_forward.1} parent=1 // pred_region
      _
    $region85: #{discriminator_forward.1} parent=1 // pred_fallthru
      _
    // Predicated region
    $region86: #{discriminator_forward.1} parent=1 // pred_check
      _
    $region87: #{discriminator_forward.1} parent=1 // pred_check_branch
      %209 = sbr.rel (0) target = $region89
    $region88: #{discriminator_forward.1} parent=1 // pred_region
      %210 = dma.done [#allocation5], 16384
    $region89: #{discriminator_forward.1} parent=1 // pred_fallthru
      _
    // Predicated region
    $region90: #{discriminator_forward.1} parent=1 // pred_check
      _
    $region91: #{discriminator_forward.1} parent=1 // pred_check_branch
      %212 = sbr.rel (0) target = $region93
    $region92: #{discriminator_forward.1} parent=1 // pred_region
      %213 = dma.done [#allocation7], 128
    $region93: #{discriminator_forward.1} parent=1 // pred_fallthru
      _
    // Predicated region
    $region94: #{discriminator_forward.1} parent=1 // pred_check
      _
    $region95: #{discriminator_forward.1} parent=1 // pred_check_branch
      %215 = sbr.rel (0) target = $region97
    $region96: #{discriminator_forward.1} parent=1 // pred_region
      %216 = dma.done [#allocation7], 65536
    $region97: #{discriminator_forward.1} parent=1 // pred_fallthru
      _
    // Predicated region
    $region98: #{discriminator_forward.1} parent=1 // pred_check
      _
    $region99: #{discriminator_forward.1} parent=1 // pred_check_branch
      %218 = sbr.rel (0) target = $region101
    $region100: #{discriminator_forward.1} parent=1 // pred_region
      %219 = dma.done [#allocation10], 128
    $region101: #{discriminator_forward.1} parent=1 // pred_fallthru
      _
    // Predicated region
    $region102: #{discriminator_forward.1} parent=1 // pred_check
      _
    $region103: #{discriminator_forward.1} parent=1 // pred_check_branch
      %221 = sbr.rel (0) target = $region105
    $region104: #{discriminator_forward.1} parent=1 // pred_region
      %222 = dma.done [#allocation10], 2048
    $region105: #{discriminator_forward.1} parent=1 // pred_fallthru
      _
    // Predicated region
    $region106: #{discriminator_forward.1} parent=1 // pred_check
      _
    $region107: #{discriminator_forward.1} parent=1 // pred_check_branch
      %224 = sbr.rel (0) target = $region109
    $region108: #{discriminator_forward.1} parent=1 // pred_region
      %225 = dma.done [#allocation13], 16
    $region109: #{discriminator_forward.1} parent=1 // pred_fallthru
      _
    // Predicated region
    $region110: #{discriminator_forward.1} parent=1 // pred_check
      _
    $region111: #{discriminator_forward.1} parent=1 // pred_check_branch
      %227 = sbr.rel (0) target = $region113
    $region112: #{discriminator_forward.1} parent=1 // pred_region
      %228 = dma.done [#allocation13], 128
    $region113: #{discriminator_forward.1} parent=1 // pred_fallthru
      _
    // Predicated region
    $region114: #{discriminator_forward.1} parent=1 // pred_check
      _
    $region115: #{discriminator_forward.1} parent=1 // pred_check_branch
      %230 = sbr.rel (0) target = $region117
    $region116: #{discriminator_forward.1} parent=1 // pred_region
      %231 = dma.done [#allocation16], 16384
    $region117: #{discriminator_forward.1} parent=1 // pred_fallthru
      _
    // Predicated region
    $region118: #{discriminator_forward.1} parent=1 // pred_check
      _
    $region119: #{discriminator_forward.1} parent=1 // pred_check_branch
      %233 = sbr.rel (0) target = $region121
    $region120: #{discriminator_forward.1} parent=1 // pred_region
      %234 = dma.done [#allocation16], 32
    $region121: #{discriminator_forward.1} parent=1 // pred_fallthru
      _
    // Predicated region
    $region122: #{discriminator_forward.1} parent=1 // pred_check
      _
    $region123: #{discriminator_forward.1} parent=1 // pred_check_branch
      %236 = sbr.rel (0) target = $region125
    $region124: #{discriminator_forward.1} parent=1 // pred_region
      %237 = dma.done [#allocation19], 512
    $region125: #{discriminator_forward.1} parent=1 // pred_fallthru
      _
    // Predicated region
    $region126: #{discriminator_forward.1} parent=1 // pred_check
      _
    $region127: #{discriminator_forward.1} parent=1 // pred_check_branch
      %239 = sbr.rel (0) target = $region129
    $region128: #{discriminator_forward.1} parent=1 // pred_region
      %240 = dma.done [#allocation19], 16
    $region129: #{discriminator_forward.1} parent=1 // pred_fallthru
      _
    // Predicated region
    $region130: #{discriminator_forward.1} parent=1 // pred_check
      _
    $region131: #{discriminator_forward.1} parent=1 // pred_check_branch
      %242 = sbr.rel (0) target = $region133
    $region132: #{discriminator_forward.1} parent=1 // pred_region
      %243 = dma.done [#allocation22], 32
    $region133: #{discriminator_forward.1} parent=1 // pred_fallthru
      _
    // Predicated region
    $region134: #{discriminator_forward.1} parent=1 // pred_check
      _
    $region135: #{discriminator_forward.1} parent=1 // pred_check_branch
      %245 = sbr.rel (0) target = $region137
    $region136: #{discriminator_forward.1} parent=1 // pred_region
      %246 = dma.done [#allocation22], 16
    $region137: #{discriminator_forward.1} parent=1 // pred_fallthru
      _
    // Predicated region
    $region138: #{discriminator_forward.1} parent=1 // pred_check
      _
    $region139: #{discriminator_forward.1} parent=1 // pred_check_branch
      %248 = sbr.rel (0) target = $region141
    $region140: #{discriminator_forward.1} parent=1 // pred_region
      %249 = dma.done [#allocation25], 16
    $region141: #{discriminator_forward.1} parent=1 // pred_fallthru
      _
    // Predicated region
    $region142: #{discriminator_forward.1} parent=1 // pred_check
      _
    $region143: #{discriminator_forward.1} parent=1 // pred_check_branch
      %251 = sbr.rel (0) target = $region145
    $region144: #{discriminator_forward.1} parent=1 // pred_region
      %252 = dma.done [#allocation25], 16
    $region145: #{discriminator_forward.1} parent=1 // pred_fallthru
      _
    %v254 = vld [vmem:[%s0] sm:$0xf]
    %v257 = vunpack.c.l.s4 1983009808
    %v258 = vunpack.c.0.s8 %v257
    %v259 = vlaneseq
    %v260 = vshrl.u32 %v259, 7
    %v261 = vsub.s32 %v258, %v260
    %v262 = vrot.slane %v254, %v261
    %264 = vst [vmem:[#allocation2] sm:$0x33] %v262
    %v265 = vld [vmem:[%s1] sm:$0xf]
    %v267 = vcombine.low %v265, %v265
    %v269 = vunpack.c.l.s4 1983009808
    %v270 = vunpack.c.0.s8 %v269
    %v271 = vlaneseq
    %v272 = vshrl.u32 %v271, 7
    %v273 = vsub.s32 %v270, %v272
    %v274 = vrot.slane %v267, %v273
    %276 = vst [vmem:[#allocation2] sm:$0xcc] %v274
    %v277 = vld [vmem:[#allocation2] sm:$0xff]
    %v279 = vcombine.high %v277, %v277
    %v281 = vpack.c.bf16 %v277, %v277
    %v282 = vpack.c.bf16 %v279, %v279
    %v283 = vld [vmem:[#allocation4] sm:$0xff]
    %v284 = vld [vmem:[#allocation4 + $0x8] sm:$0xff]
    %v285 = vld [vmem:[#allocation4 + $0x10] sm:$0xff]
    %v286 = vld [vmem:[#allocation4 + $0x18] sm:$0xff]
    %v287 = vld [vmem:[#allocation4 + $0x20] sm:$0xff]
    %v288 = vld [vmem:[#allocation4 + $0x28] sm:$0xff]
    %v289 = vld [vmem:[#allocation4 + $0x30] sm:$0xff]
    %v290 = vld [vmem:[#allocation4 + $0x38] sm:$0xff]
    %v291 = vld [vmem:[#allocation4 + $0x40] sm:$0xff]
    %v292 = vld [vmem:[#allocation4 + $0x48] sm:$0xff]
    %v293 = vld [vmem:[#allocation4 + $0x50] sm:$0xff]
    %v294 = vld [vmem:[#allocation4 + $0x58] sm:$0xff]
    %v295 = vld [vmem:[#allocation4 + $0x60] sm:$0xff]
    %v296 = vld [vmem:[#allocation4 + $0x68] sm:$0xff]
    %v297 = vld [vmem:[#allocation4 + $0x70] sm:$0xff]
    %v298 = vld [vmem:[#allocation4 + $0x78] sm:$0xff]
    %v299 = vld [vmem:[#allocation4 + $0x80] sm:$0xff]
    %v300 = vld [vmem:[#allocation4 + $0x88] sm:$0xff]
    %v301 = vld [vmem:[#allocation4 + $0x90] sm:$0xff]
    %v302 = vld [vmem:[#allocation4 + $0x98] sm:$0xff]
    %v303 = vld [vmem:[#allocation4 + $0xa0] sm:$0xff]
    %v304 = vld [vmem:[#allocation4 + $0xa8] sm:$0xff]
    %v305 = vld [vmem:[#allocation4 + $0xb0] sm:$0xff]
    %v306 = vld [vmem:[#allocation4 + $0xb8] sm:$0xff]
    %v307 = vld [vmem:[#allocation4 + $0xc0] sm:$0xff]
    %v308 = vld [vmem:[#allocation4 + $0xc8] sm:$0xff]
    %v309 = vld [vmem:[#allocation4 + $0xd0] sm:$0xff]
    %v310 = vld [vmem:[#allocation4 + $0xd8] sm:$0xff]
    %v311 = vld [vmem:[#allocation4 + $0xe0] sm:$0xff]
    %v312 = vld [vmem:[#allocation4 + $0xe8] sm:$0xff]
    %v313 = vld [vmem:[#allocation4 + $0xf0] sm:$0xff]
    %v314 = vld [vmem:[#allocation4 + $0xf8] sm:$0xff]
    %v315 = vld [vmem:[#allocation4 + $0x100] sm:$0xff]
    %v316 = vld [vmem:[#allocation4 + $0x108] sm:$0xff]
    %v317 = vld [vmem:[#allocation4 + $0x110] sm:$0xff]
    %v318 = vld [vmem:[#allocation4 + $0x118] sm:$0xff]
    %v319 = vld [vmem:[#allocation4 + $0x120] sm:$0xff]
    %v320 = vld [vmem:[#allocation4 + $0x128] sm:$0xff]
    %v321 = vld [vmem:[#allocation4 + $0x130] sm:$0xff]
    %v322 = vld [vmem:[#allocation4 + $0x138] sm:$0xff]
    %v323 = vld [vmem:[#allocation4 + $0x140] sm:$0xff]
    %v324 = vld [vmem:[#allocation4 + $0x148] sm:$0xff]
    %v325 = vld [vmem:[#allocation4 + $0x150] sm:$0xff]
    %v326 = vld [vmem:[#allocation4 + $0x158] sm:$0xff]
    %v327 = vld [vmem:[#allocation4 + $0x160] sm:$0xff]
    %v328 = vld [vmem:[#allocation4 + $0x168] sm:$0xff]
    %v329 = vld [vmem:[#allocation4 + $0x170] sm:$0xff]
    %v330 = vld [vmem:[#allocation4 + $0x178] sm:$0xff]
    %v331 = vld [vmem:[#allocation4 + $0x180] sm:$0xff]
    %v332 = vld [vmem:[#allocation4 + $0x188] sm:$0xff]
    %v333 = vld [vmem:[#allocation4 + $0x190] sm:$0xff]
    %v334 = vld [vmem:[#allocation4 + $0x198] sm:$0xff]
    %v335 = vld [vmem:[#allocation4 + $0x1a0] sm:$0xff]
    %v336 = vld [vmem:[#allocation4 + $0x1a8] sm:$0xff]
    %v337 = vld [vmem:[#allocation4 + $0x1b0] sm:$0xff]
    %v338 = vld [vmem:[#allocation4 + $0x1b8] sm:$0xff]
    %v339 = vld [vmem:[#allocation4 + $0x1c0] sm:$0xff]
    %v340 = vld [vmem:[#allocation4 + $0x1c8] sm:$0xff]
    %v341 = vld [vmem:[#allocation4 + $0x1d0] sm:$0xff]
    %v342 = vld [vmem:[#allocation4 + $0x1d8] sm:$0xff]
    %v343 = vld [vmem:[#allocation4 + $0x1e0] sm:$0xff]
    %v344 = vld [vmem:[#allocation4 + $0x1e8] sm:$0xff]
    %v345 = vld [vmem:[#allocation4 + $0x1f0] sm:$0xff]
    %v346 = vld [vmem:[#allocation4 + $0x1f8] sm:$0xff]
    %v347 = vld [vmem:[#allocation4 + $0x200] sm:$0xff]
    %v348 = vld [vmem:[#allocation4 + $0x208] sm:$0xff]
    %v349 = vld [vmem:[#allocation4 + $0x210] sm:$0xff]
    %v350 = vld [vmem:[#allocation4 + $0x218] sm:$0xff]
    %v351 = vld [vmem:[#allocation4 + $0x220] sm:$0xff]
    %v352 = vld [vmem:[#allocation4 + $0x228] sm:$0xff]
    %v353 = vld [vmem:[#allocation4 + $0x230] sm:$0xff]
    %v354 = vld [vmem:[#allocation4 + $0x238] sm:$0xff]
    %v355 = vld [vmem:[#allocation4 + $0x240] sm:$0xff]
    %v356 = vld [vmem:[#allocation4 + $0x248] sm:$0xff]
    %v357 = vld [vmem:[#allocation4 + $0x250] sm:$0xff]
    %v358 = vld [vmem:[#allocation4 + $0x258] sm:$0xff]
    %v359 = vld [vmem:[#allocation4 + $0x260] sm:$0xff]
    %v360 = vld [vmem:[#allocation4 + $0x268] sm:$0xff]
    %v361 = vld [vmem:[#allocation4 + $0x270] sm:$0xff]
    %v362 = vld [vmem:[#allocation4 + $0x278] sm:$0xff]
    %v363 = vld [vmem:[#allocation4 + $0x280] sm:$0xff]
    %v364 = vld [vmem:[#allocation4 + $0x288] sm:$0xff]
    %v365 = vld [vmem:[#allocation4 + $0x290] sm:$0xff]
    %v366 = vld [vmem:[#allocation4 + $0x298] sm:$0xff]
    %v367 = vld [vmem:[#allocation4 + $0x2a0] sm:$0xff]
    %v368 = vld [vmem:[#allocation4 + $0x2a8] sm:$0xff]
    %v369 = vld [vmem:[#allocation4 + $0x2b0] sm:$0xff]
    %v370 = vld [vmem:[#allocation4 + $0x2b8] sm:$0xff]
    %v371 = vld [vmem:[#allocation4 + $0x2c0] sm:$0xff]
    %v372 = vld [vmem:[#allocation4 + $0x2c8] sm:$0xff]
    %v373 = vld [vmem:[#allocation4 + $0x2d0] sm:$0xff]
    %v374 = vld [vmem:[#allocation4 + $0x2d8] sm:$0xff]
    %v375 = vld [vmem:[#allocation4 + $0x2e0] sm:$0xff]
    %v376 = vld [vmem:[#allocation4 + $0x2e8] sm:$0xff]
    %v377 = vld [vmem:[#allocation4 + $0x2f0] sm:$0xff]
    %v378 = vld [vmem:[#allocation4 + $0x2f8] sm:$0xff]
    %v379 = vld [vmem:[#allocation4 + $0x300] sm:$0xff]
    %v380 = vld [vmem:[#allocation4 + $0x308] sm:$0xff]
    %v381 = vld [vmem:[#allocation4 + $0x310] sm:$0xff]
    %v382 = vld [vmem:[#allocation4 + $0x318] sm:$0xff]
    %v383 = vld [vmem:[#allocation4 + $0x320] sm:$0xff]
    %v384 = vld [vmem:[#allocation4 + $0x328] sm:$0xff]
    %v385 = vld [vmem:[#allocation4 + $0x330] sm:$0xff]
    %v386 = vld [vmem:[#allocation4 + $0x338] sm:$0xff]
    %v387 = vld [vmem:[#allocation4 + $0x340] sm:$0xff]
    %v388 = vld [vmem:[#allocation4 + $0x348] sm:$0xff]
    %v389 = vld [vmem:[#allocation4 + $0x350] sm:$0xff]
    %v390 = vld [vmem:[#allocation4 + $0x358] sm:$0xff]
    %v391 = vld [vmem:[#allocation4 + $0x360] sm:$0xff]
    %v392 = vld [vmem:[#allocation4 + $0x368] sm:$0xff]
    %v393 = vld [vmem:[#allocation4 + $0x370] sm:$0xff]
    %v394 = vld [vmem:[#allocation4 + $0x378] sm:$0xff]
    %v395 = vld [vmem:[#allocation4 + $0x380] sm:$0xff]
    %v396 = vld [vmem:[#allocation4 + $0x388] sm:$0xff]
    %v397 = vld [vmem:[#allocation4 + $0x390] sm:$0xff]
    %v398 = vld [vmem:[#allocation4 + $0x398] sm:$0xff]
    %v399 = vld [vmem:[#allocation4 + $0x3a0] sm:$0xff]
    %v400 = vld [vmem:[#allocation4 + $0x3a8] sm:$0xff]
    %v401 = vld [vmem:[#allocation4 + $0x3b0] sm:$0xff]
    %v402 = vld [vmem:[#allocation4 + $0x3b8] sm:$0xff]
    %v403 = vld [vmem:[#allocation4 + $0x3c0] sm:$0xff]
    %v404 = vld [vmem:[#allocation4 + $0x3c8] sm:$0xff]
    %v405 = vld [vmem:[#allocation4 + $0x3d0] sm:$0xff]
    %v406 = vld [vmem:[#allocation4 + $0x3d8] sm:$0xff]
    %v407 = vld [vmem:[#allocation4 + $0x3e0] sm:$0xff]
    %v408 = vld [vmem:[#allocation4 + $0x3e8] sm:$0xff]
    %v409 = vld [vmem:[#allocation4 + $0x3f0] sm:$0xff]
    %v410 = vld [vmem:[#allocation4 + $0x3f8] sm:$0xff]
    %v411 = vld [vmem:[#allocation6] sm:$0xff]
    %v413 = vlaneseq
    %v414 = vshrl.u32 %v413, 7
    %v415 = vsub.s32 0, %v414
    %v416 = vrot.slane %v411, %v415
    %v417 = vlaneseq
    %v418 = vshrl.u32 %v417, 7
    %v419 = vsub.s32 1, %v418
    %v420 = vrot.slane %v411, %v419
    %v421 = vlaneseq
    %v422 = vshrl.u32 %v421, 7
    %v423 = vsub.s32 2, %v422
    %v424 = vrot.slane %v411, %v423
    %v425 = vlaneseq
    %v426 = vshrl.u32 %v425, 7
    %v427 = vsub.s32 3, %v426
    %v428 = vrot.slane %v411, %v427
    %v429 = vlaneseq
    %v430 = vshrl.u32 %v429, 7
    %v431 = vsub.s32 4, %v430
    %v432 = vrot.slane %v411, %v431
    %v433 = vlaneseq
    %v434 = vshrl.u32 %v433, 7
    %v435 = vsub.s32 5, %v434
    %v436 = vrot.slane %v411, %v435
    %v437 = vlaneseq
    %v438 = vshrl.u32 %v437, 7
    %v439 = vsub.s32 6, %v438
    %v440 = vrot.slane %v411, %v439
    %v441 = vlaneseq
    %v442 = vshrl.u32 %v441, 7
    %v443 = vsub.s32 7, %v442
    %v444 = vrot.slane %v411, %v443
    %v581 = vunpack.c.l.b16 %v283
    %v582 = vunpack.c.h.b16 %v283
    %v583 = vunpack.c.l.b16 %v284
    %v584 = vunpack.c.h.b16 %v284
    %v585 = vunpack.c.l.b16 %v285
    %v586 = vunpack.c.h.b16 %v285
    %v587 = vunpack.c.l.b16 %v286
    %v588 = vunpack.c.h.b16 %v286
    %v589 = vunpack.c.l.b16 %v287
    %v590 = vunpack.c.h.b16 %v287
    %v591 = vunpack.c.l.b16 %v288
    %v592 = vunpack.c.h.b16 %v288
    %v593 = vunpack.c.l.b16 %v289
    %v594 = vunpack.c.h.b16 %v289
    %v595 = vunpack.c.l.b16 %v290
    %v596 = vunpack.c.h.b16 %v290
    %v597 = vunpack.c.l.b16 %v291
    %v598 = vunpack.c.h.b16 %v291
    %v599 = vunpack.c.l.b16 %v292
    %v600 = vunpack.c.h.b16 %v292
    %v601 = vunpack.c.l.b16 %v293
    %v602 = vunpack.c.h.b16 %v293
    %v603 = vunpack.c.l.b16 %v294
    %v604 = vunpack.c.h.b16 %v294
    %v605 = vunpack.c.l.b16 %v295
    %v606 = vunpack.c.h.b16 %v295
    %v607 = vunpack.c.l.b16 %v296
    %v608 = vunpack.c.h.b16 %v296
    %v609 = vunpack.c.l.b16 %v297
    %v610 = vunpack.c.h.b16 %v297
    %v611 = vunpack.c.l.b16 %v298
    %v612 = vunpack.c.h.b16 %v298
    %v613 = vunpack.c.l.b16 %v299
    %v614 = vunpack.c.h.b16 %v299
    %v615 = vunpack.c.l.b16 %v300
    %v616 = vunpack.c.h.b16 %v300
    %v617 = vunpack.c.l.b16 %v301
    %v618 = vunpack.c.h.b16 %v301
    %v619 = vunpack.c.l.b16 %v302
    %v620 = vunpack.c.h.b16 %v302
    %v621 = vunpack.c.l.b16 %v303
    %v622 = vunpack.c.h.b16 %v303
    %v623 = vunpack.c.l.b16 %v304
    %v624 = vunpack.c.h.b16 %v304
    %v625 = vunpack.c.l.b16 %v305
    %v626 = vunpack.c.h.b16 %v305
    %v627 = vunpack.c.l.b16 %v306
    %v628 = vunpack.c.h.b16 %v306
    %v629 = vunpack.c.l.b16 %v307
    %v630 = vunpack.c.h.b16 %v307
    %v631 = vunpack.c.l.b16 %v308
    %v632 = vunpack.c.h.b16 %v308
    %v633 = vunpack.c.l.b16 %v309
    %v634 = vunpack.c.h.b16 %v309
    %v635 = vunpack.c.l.b16 %v310
    %v636 = vunpack.c.h.b16 %v310
    %v637 = vunpack.c.l.b16 %v311
    %v638 = vunpack.c.h.b16 %v311
    %v639 = vunpack.c.l.b16 %v312
    %v640 = vunpack.c.h.b16 %v312
    %v641 = vunpack.c.l.b16 %v313
    %v642 = vunpack.c.h.b16 %v313
    %v643 = vunpack.c.l.b16 %v314
    %v644 = vunpack.c.h.b16 %v314
    %v645 = vunpack.c.l.b16 %v315
    %v646 = vunpack.c.h.b16 %v315
    %v647 = vunpack.c.l.b16 %v316
    %v648 = vunpack.c.h.b16 %v316
    %v649 = vunpack.c.l.b16 %v317
    %v650 = vunpack.c.h.b16 %v317
    %v651 = vunpack.c.l.b16 %v318
    %v652 = vunpack.c.h.b16 %v318
    %v653 = vunpack.c.l.b16 %v319
    %v654 = vunpack.c.h.b16 %v319
    %v655 = vunpack.c.l.b16 %v320
    %v656 = vunpack.c.h.b16 %v320
    %v657 = vunpack.c.l.b16 %v321
    %v658 = vunpack.c.h.b16 %v321
    %v659 = vunpack.c.l.b16 %v322
    %v660 = vunpack.c.h.b16 %v322
    %v661 = vunpack.c.l.b16 %v323
    %v662 = vunpack.c.h.b16 %v323
    %v663 = vunpack.c.l.b16 %v324
    %v664 = vunpack.c.h.b16 %v324
    %v665 = vunpack.c.l.b16 %v325
    %v666 = vunpack.c.h.b16 %v325
    %v667 = vunpack.c.l.b16 %v326
    %v668 = vunpack.c.h.b16 %v326
    %v669 = vunpack.c.l.b16 %v327
    %v670 = vunpack.c.h.b16 %v327
    %v671 = vunpack.c.l.b16 %v328
    %v672 = vunpack.c.h.b16 %v328
    %v673 = vunpack.c.l.b16 %v329
    %v674 = vunpack.c.h.b16 %v329
    %v675 = vunpack.c.l.b16 %v330
    %v676 = vunpack.c.h.b16 %v330
    %v677 = vunpack.c.l.b16 %v331
    %v678 = vunpack.c.h.b16 %v331
    %v679 = vunpack.c.l.b16 %v332
    %v680 = vunpack.c.h.b16 %v332
    %v681 = vunpack.c.l.b16 %v333
    %v682 = vunpack.c.h.b16 %v333
    %v683 = vunpack.c.l.b16 %v334
    %v684 = vunpack.c.h.b16 %v334
    %v685 = vunpack.c.l.b16 %v335
    %v686 = vunpack.c.h.b16 %v335
    %v687 = vunpack.c.l.b16 %v336
    %v688 = vunpack.c.h.b16 %v336
    %v689 = vunpack.c.l.b16 %v337
    %v690 = vunpack.c.h.b16 %v337
    %v691 = vunpack.c.l.b16 %v338
    %v692 = vunpack.c.h.b16 %v338
    %v693 = vunpack.c.l.b16 %v339
    %v694 = vunpack.c.h.b16 %v339
    %v695 = vunpack.c.l.b16 %v340
    %v696 = vunpack.c.h.b16 %v340
    %v697 = vunpack.c.l.b16 %v341
    %v698 = vunpack.c.h.b16 %v341
    %v699 = vunpack.c.l.b16 %v342
    %v700 = vunpack.c.h.b16 %v342
    %v701 = vunpack.c.l.b16 %v343
    %v702 = vunpack.c.h.b16 %v343
    %v703 = vunpack.c.l.b16 %v344
    %v704 = vunpack.c.h.b16 %v344
    %v705 = vunpack.c.l.b16 %v345
    %v706 = vunpack.c.h.b16 %v345
    %v707 = vunpack.c.l.b16 %v346
    %v708 = vunpack.c.h.b16 %v346
    %v709 = vunpack.c.l.b16 %v347
    %v710 = vunpack.c.h.b16 %v347
    %v711 = vunpack.c.l.b16 %v348
    %v712 = vunpack.c.h.b16 %v348
    %v713 = vunpack.c.l.b16 %v349
    %v714 = vunpack.c.h.b16 %v349
    %v715 = vunpack.c.l.b16 %v350
    %v716 = vunpack.c.h.b16 %v350
    %v717 = vunpack.c.l.b16 %v351
    %v718 = vunpack.c.h.b16 %v351
    %v719 = vunpack.c.l.b16 %v352
    %v720 = vunpack.c.h.b16 %v352
    %v721 = vunpack.c.l.b16 %v353
    %v722 = vunpack.c.h.b16 %v353
    %v723 = vunpack.c.l.b16 %v354
    %v724 = vunpack.c.h.b16 %v354
    %v725 = vunpack.c.l.b16 %v355
    %v726 = vunpack.c.h.b16 %v355
    %v727 = vunpack.c.l.b16 %v356
    %v728 = vunpack.c.h.b16 %v356
    %v729 = vunpack.c.l.b16 %v357
    %v730 = vunpack.c.h.b16 %v357
    %v731 = vunpack.c.l.b16 %v358
    %v732 = vunpack.c.h.b16 %v358
    %v733 = vunpack.c.l.b16 %v359
    %v734 = vunpack.c.h.b16 %v359
    %v735 = vunpack.c.l.b16 %v360
    %v736 = vunpack.c.h.b16 %v360
    %v737 = vunpack.c.l.b16 %v361
    %v738 = vunpack.c.h.b16 %v361
    %v739 = vunpack.c.l.b16 %v362
    %v740 = vunpack.c.h.b16 %v362
    %v741 = vunpack.c.l.b16 %v363
    %v742 = vunpack.c.h.b16 %v363
    %v743 = vunpack.c.l.b16 %v364
    %v744 = vunpack.c.h.b16 %v364
    %v745 = vunpack.c.l.b16 %v365
    %v746 = vunpack.c.h.b16 %v365
    %v747 = vunpack.c.l.b16 %v366
    %v748 = vunpack.c.h.b16 %v366
    %v749 = vunpack.c.l.b16 %v367
    %v750 = vunpack.c.h.b16 %v367
    %v751 = vunpack.c.l.b16 %v368
    %v752 = vunpack.c.h.b16 %v368
    %v753 = vunpack.c.l.b16 %v369
    %v754 = vunpack.c.h.b16 %v369
    %v755 = vunpack.c.l.b16 %v370
    %v756 = vunpack.c.h.b16 %v370
    %v757 = vunpack.c.l.b16 %v371
    %v758 = vunpack.c.h.b16 %v371
    %v759 = vunpack.c.l.b16 %v372
    %v760 = vunpack.c.h.b16 %v372
    %v761 = vunpack.c.l.b16 %v373
    %v762 = vunpack.c.h.b16 %v373
    %v763 = vunpack.c.l.b16 %v374
    %v764 = vunpack.c.h.b16 %v374
    %v765 = vunpack.c.l.b16 %v375
    %v766 = vunpack.c.h.b16 %v375
    %v767 = vunpack.c.l.b16 %v376
    %v768 = vunpack.c.h.b16 %v376
    %v769 = vunpack.c.l.b16 %v377
    %v770 = vunpack.c.h.b16 %v377
    %v771 = vunpack.c.l.b16 %v378
    %v772 = vunpack.c.h.b16 %v378
    %v773 = vunpack.c.l.b16 %v379
    %v774 = vunpack.c.h.b16 %v379
    %v775 = vunpack.c.l.b16 %v380
    %v776 = vunpack.c.h.b16 %v380
    %v777 = vunpack.c.l.b16 %v381
    %v778 = vunpack.c.h.b16 %v381
    %v779 = vunpack.c.l.b16 %v382
    %v780 = vunpack.c.h.b16 %v382
    %v781 = vunpack.c.l.b16 %v383
    %v782 = vunpack.c.h.b16 %v383
    %v783 = vunpack.c.l.b16 %v384
    %v784 = vunpack.c.h.b16 %v384
    %v785 = vunpack.c.l.b16 %v385
    %v786 = vunpack.c.h.b16 %v385
    %v787 = vunpack.c.l.b16 %v386
    %v788 = vunpack.c.h.b16 %v386
    %v789 = vunpack.c.l.b16 %v387
    %v790 = vunpack.c.h.b16 %v387
    %v791 = vunpack.c.l.b16 %v388
    %v792 = vunpack.c.h.b16 %v388
    %v793 = vunpack.c.l.b16 %v389
    %v794 = vunpack.c.h.b16 %v389
    %v795 = vunpack.c.l.b16 %v390
    %v796 = vunpack.c.h.b16 %v390
    %v797 = vunpack.c.l.b16 %v391
    %v798 = vunpack.c.h.b16 %v391
    %v799 = vunpack.c.l.b16 %v392
    %v800 = vunpack.c.h.b16 %v392
    %v801 = vunpack.c.l.b16 %v393
    %v802 = vunpack.c.h.b16 %v393
    %v803 = vunpack.c.l.b16 %v394
    %v804 = vunpack.c.h.b16 %v394
    %v805 = vunpack.c.l.b16 %v395
    %v806 = vunpack.c.h.b16 %v395
    %v807 = vunpack.c.l.b16 %v396
    %v808 = vunpack.c.h.b16 %v396
    %v809 = vunpack.c.l.b16 %v397
    %v810 = vunpack.c.h.b16 %v397
    %v811 = vunpack.c.l.b16 %v398
    %v812 = vunpack.c.h.b16 %v398
    %v813 = vunpack.c.l.b16 %v399
    %v814 = vunpack.c.h.b16 %v399
    %v815 = vunpack.c.l.b16 %v400
    %v816 = vunpack.c.h.b16 %v400
    %v817 = vunpack.c.l.b16 %v401
    %v818 = vunpack.c.h.b16 %v401
    %v819 = vunpack.c.l.b16 %v402
    %v820 = vunpack.c.h.b16 %v402
    %v821 = vunpack.c.l.b16 %v403
    %v822 = vunpack.c.h.b16 %v403
    %v823 = vunpack.c.l.b16 %v404
    %v824 = vunpack.c.h.b16 %v404
    %v825 = vunpack.c.l.b16 %v405
    %v826 = vunpack.c.h.b16 %v405
    %v827 = vunpack.c.l.b16 %v406
    %v828 = vunpack.c.h.b16 %v406
    %v829 = vunpack.c.l.b16 %v407
    %v830 = vunpack.c.h.b16 %v407
    %v831 = vunpack.c.l.b16 %v408
    %v832 = vunpack.c.h.b16 %v408
    %v833 = vunpack.c.l.b16 %v409
    %v834 = vunpack.c.h.b16 %v409
    %v835 = vunpack.c.l.b16 %v410
    %v836 = vunpack.c.h.b16 %v410
    %v837 = vpack.c.b16 %v589, %v581
    %v838 = vpack.c.b16 %v590, %v582
    %v839 = vpack.c.b16 %v591, %v583
    %v840 = vpack.c.b16 %v592, %v584
    %v841 = vpack.c.b16 %v593, %v585
    %v842 = vpack.c.b16 %v594, %v586
    %v843 = vpack.c.b16 %v595, %v587
    %v844 = vpack.c.b16 %v596, %v588
    %v845 = vpack.c.b16 %v605, %v597
    %v846 = vpack.c.b16 %v606, %v598
    %v847 = vpack.c.b16 %v607, %v599
    %v848 = vpack.c.b16 %v608, %v600
    %v849 = vpack.c.b16 %v609, %v601
    %v850 = vpack.c.b16 %v610, %v602
    %v851 = vpack.c.b16 %v611, %v603
    %v852 = vpack.c.b16 %v612, %v604
    %v853 = vpack.c.b16 %v621, %v613
    %v854 = vpack.c.b16 %v622, %v614
    %v855 = vpack.c.b16 %v623, %v615
    %v856 = vpack.c.b16 %v624, %v616
    %v857 = vpack.c.b16 %v625, %v617
    %v858 = vpack.c.b16 %v626, %v618
    %v859 = vpack.c.b16 %v627, %v619
    %v860 = vpack.c.b16 %v628, %v620
    %v861 = vpack.c.b16 %v637, %v629
    %v862 = vpack.c.b16 %v638, %v630
    %v863 = vpack.c.b16 %v639, %v631
    %v864 = vpack.c.b16 %v640, %v632
    %v865 = vpack.c.b16 %v641, %v633
    %v866 = vpack.c.b16 %v642, %v634
    %v867 = vpack.c.b16 %v643, %v635
    %v868 = vpack.c.b16 %v644, %v636
    %v869 = vpack.c.b16 %v653, %v645
    %v870 = vpack.c.b16 %v654, %v646
    %v871 = vpack.c.b16 %v655, %v647
    %v872 = vpack.c.b16 %v656, %v648
    %v873 = vpack.c.b16 %v657, %v649
    %v874 = vpack.c.b16 %v658, %v650
    %v875 = vpack.c.b16 %v659, %v651
    %v876 = vpack.c.b16 %v660, %v652
    %v877 = vpack.c.b16 %v669, %v661
    %v878 = vpack.c.b16 %v670, %v662
    %v879 = vpack.c.b16 %v671, %v663
    %v880 = vpack.c.b16 %v672, %v664
    %v881 = vpack.c.b16 %v673, %v665
    %v882 = vpack.c.b16 %v674, %v666
    %v883 = vpack.c.b16 %v675, %v667
    %v884 = vpack.c.b16 %v676, %v668
    %v885 = vpack.c.b16 %v685, %v677
    %v886 = vpack.c.b16 %v686, %v678
    %v887 = vpack.c.b16 %v687, %v679
    %v888 = vpack.c.b16 %v688, %v680
    %v889 = vpack.c.b16 %v689, %v681
    %v890 = vpack.c.b16 %v690, %v682
    %v891 = vpack.c.b16 %v691, %v683
    %v892 = vpack.c.b16 %v692, %v684
    %v893 = vpack.c.b16 %v701, %v693
    %v894 = vpack.c.b16 %v702, %v694
    %v895 = vpack.c.b16 %v703, %v695
    %v896 = vpack.c.b16 %v704, %v696
    %v897 = vpack.c.b16 %v705, %v697
    %v898 = vpack.c.b16 %v706, %v698
    %v899 = vpack.c.b16 %v707, %v699
    %v900 = vpack.c.b16 %v708, %v700
    %v901 = vpack.c.b16 %v717, %v709
    %v902 = vpack.c.b16 %v718, %v710
    %v903 = vpack.c.b16 %v719, %v711
    %v904 = vpack.c.b16 %v720, %v712
    %v905 = vpack.c.b16 %v721, %v713
    %v906 = vpack.c.b16 %v722, %v714
    %v907 = vpack.c.b16 %v723, %v715
    %v908 = vpack.c.b16 %v724, %v716
    %v909 = vpack.c.b16 %v733, %v725
    %v910 = vpack.c.b16 %v734, %v726
    %v911 = vpack.c.b16 %v735, %v727
    %v912 = vpack.c.b16 %v736, %v728
    %v913 = vpack.c.b16 %v737, %v729
    %v914 = vpack.c.b16 %v738, %v730
    %v915 = vpack.c.b16 %v739, %v731
    %v916 = vpack.c.b16 %v740, %v732
    %v917 = vpack.c.b16 %v749, %v741
    %v918 = vpack.c.b16 %v750, %v742
    %v919 = vpack.c.b16 %v751, %v743
    %v920 = vpack.c.b16 %v752, %v744
    %v921 = vpack.c.b16 %v753, %v745
    %v922 = vpack.c.b16 %v754, %v746
    %v923 = vpack.c.b16 %v755, %v747
    %v924 = vpack.c.b16 %v756, %v748
    %v925 = vpack.c.b16 %v765, %v757
    %v926 = vpack.c.b16 %v766, %v758
    %v927 = vpack.c.b16 %v767, %v759
    %v928 = vpack.c.b16 %v768, %v760
    %v929 = vpack.c.b16 %v769, %v761
    %v930 = vpack.c.b16 %v770, %v762
    %v931 = vpack.c.b16 %v771, %v763
    %v932 = vpack.c.b16 %v772, %v764
    %v933 = vpack.c.b16 %v781, %v773
    %v934 = vpack.c.b16 %v782, %v774
    %v935 = vpack.c.b16 %v783, %v775
    %v936 = vpack.c.b16 %v784, %v776
    %v937 = vpack.c.b16 %v785, %v777
    %v938 = vpack.c.b16 %v786, %v778
    %v939 = vpack.c.b16 %v787, %v779
    %v940 = vpack.c.b16 %v788, %v780
    %v941 = vpack.c.b16 %v797, %v789
    %v942 = vpack.c.b16 %v798, %v790
    %v943 = vpack.c.b16 %v799, %v791
    %v944 = vpack.c.b16 %v800, %v792
    %v945 = vpack.c.b16 %v801, %v793
    %v946 = vpack.c.b16 %v802, %v794
    %v947 = vpack.c.b16 %v803, %v795
    %v948 = vpack.c.b16 %v804, %v796
    %v949 = vpack.c.b16 %v813, %v805
    %v950 = vpack.c.b16 %v814, %v806
    %v951 = vpack.c.b16 %v815, %v807
    %v952 = vpack.c.b16 %v816, %v808
    %v953 = vpack.c.b16 %v817, %v809
    %v954 = vpack.c.b16 %v818, %v810
    %v955 = vpack.c.b16 %v819, %v811
    %v956 = vpack.c.b16 %v820, %v812
    %v957 = vpack.c.b16 %v829, %v821
    %v958 = vpack.c.b16 %v830, %v822
    %v959 = vpack.c.b16 %v831, %v823
    %v960 = vpack.c.b16 %v832, %v824
    %v961 = vpack.c.b16 %v833, %v825
    %v962 = vpack.c.b16 %v834, %v826
    %v963 = vpack.c.b16 %v835, %v827
    %v964 = vpack.c.b16 %v836, %v828
    %1093 = vmatprep.subr.bf16.mxu0 %v838
    %1094 = vmatpush1.bf16.msra.mxu0 %v837
    %1095 = vmatprep.subr.bf16.mxu0 %v846
    %1096 = vmatpush1.bf16.msra.mxu0 %v845
    %1097 = vmatprep.subr.bf16.mxu0 %v854
    %1098 = vmatpush1.bf16.msra.mxu0 %v853
    %1099 = vmatprep.subr.bf16.mxu0 %v862
    %1100 = vmatpush1.bf16.msra.mxu0 %v861
    %1101 = vmatprep.subr.bf16.mxu0 %v870
    %1102 = vmatpush1.bf16.msra.mxu0 %v869
    %1103 = vmatprep.subr.bf16.mxu0 %v878
    %1104 = vmatpush1.bf16.msra.mxu0 %v877
    %1105 = vmatprep.subr.bf16.mxu0 %v886
    %1106 = vmatpush1.bf16.msra.mxu0 %v885
    %1107 = vmatprep.subr.bf16.mxu0 %v894
    %1108 = vmatpush1.bf16.msra.mxu0 %v893
    %1109 = vmatprep.subr.bf16.mxu0 %v902
    %1110 = vmatpush1.bf16.msra.mxu0 %v901
    %1111 = vmatprep.subr.bf16.mxu0 %v910
    %1112 = vmatpush1.bf16.msra.mxu0 %v909
    %1113 = vmatprep.subr.bf16.mxu0 %v918
    %1114 = vmatpush1.bf16.msra.mxu0 %v917
    %1115 = vmatprep.subr.bf16.mxu0 %v926
    %1116 = vmatpush1.bf16.msra.mxu0 %v925
    %1117 = vmatprep.subr.bf16.mxu0 %v934
    %1118 = vmatpush1.bf16.msra.mxu0 %v933
    %1119 = vmatprep.subr.bf16.mxu0 %v942
    %1120 = vmatpush1.bf16.msra.mxu0 %v941
    %1121 = vmatprep.subr.bf16.mxu0 %v950
    %1122 = vmatpush1.bf16.msra.mxu0 %v949
    %1123 = vmatprep.subr.bf16.mxu0 %v958
    %1124 = vmatpush1.bf16.msra.mxu0 %v957
    %1125 = vmatprep.mubr.bf16.mxu0 %v282
    %1126 = vmatmul.mubr.bf16.gmra.mrb[0].mxu0 %v281
    %v1127 = vpop.f32.mrb[0].mxu0
    %v1128 = vadd.f32 %v416, %v1127
    %v1129 = vpop.f32.mrb[0].mxu0
    %v1130 = vadd.f32 %v420, %v1129
    %v1131 = vpop.f32.mrb[0].mxu0
    %v1132 = vpop.f32.mrb[0].mxu0
    %1133 = vdwg.mxu0
    %1134 = vmatprep.subr.bf16.mxu0 %v840
    %1135 = vmatpush1.bf16.msra.mxu0 %v839
    %1136 = vmatprep.subr.bf16.mxu0 %v848
    %1137 = vmatpush1.bf16.msra.mxu0 %v847
    %1138 = vmatprep.subr.bf16.mxu0 %v856
    %1139 = vmatpush1.bf16.msra.mxu0 %v855
    %1140 = vmatprep.subr.bf16.mxu0 %v864
    %1141 = vmatpush1.bf16.msra.mxu0 %v863
    %1142 = vmatprep.subr.bf16.mxu0 %v872
    %1143 = vmatpush1.bf16.msra.mxu0 %v871
    %1144 = vmatprep.subr.bf16.mxu0 %v880
    %1145 = vmatpush1.bf16.msra.mxu0 %v879
    %1146 = vmatprep.subr.bf16.mxu0 %v888
    %1147 = vmatpush1.bf16.msra.mxu0 %v887
    %1148 = vmatprep.subr.bf16.mxu0 %v896
    %1149 = vmatpush1.bf16.msra.mxu0 %v895
    %1150 = vmatprep.subr.bf16.mxu0 %v904
    %1151 = vmatpush1.bf16.msra.mxu0 %v903
    %1152 = vmatprep.subr.bf16.mxu0 %v912
    %1153 = vmatpush1.bf16.msra.mxu0 %v911
    %1154 = vmatprep.subr.bf16.mxu0 %v920
    %1155 = vmatpush1.bf16.msra.mxu0 %v919
    %1156 = vmatprep.subr.bf16.mxu0 %v928
    %1157 = vmatpush1.bf16.msra.mxu0 %v927
    %1158 = vmatprep.subr.bf16.mxu0 %v936
    %1159 = vmatpush1.bf16.msra.mxu0 %v935
    %1160 = vmatprep.subr.bf16.mxu0 %v944
    %1161 = vmatpush1.bf16.msra.mxu0 %v943
    %1162 = vmatprep.subr.bf16.mxu0 %v952
    %1163 = vmatpush1.bf16.msra.mxu0 %v951
    %1164 = vmatprep.subr.bf16.mxu0 %v960
    %1165 = vmatpush1.bf16.msra.mxu0 %v959
    %1166 = vmatprep.mubr.bf16.mxu0 %v282
    %1167 = vmatmul.mubr.bf16.gmra.mrb[0].mxu0 %v281
    %v1168 = vpop.f32.mrb[0].mxu0
    %v1169 = vadd.f32 %v424, %v1168
    %v1170 = vpop.f32.mrb[0].mxu0
    %v1171 = vadd.f32 %v428, %v1170
    %v1172 = vpop.f32.mrb[0].mxu0
    %v1173 = vpop.f32.mrb[0].mxu0
    %1174 = vdwg.mxu0
    %1175 = vmatprep.subr.bf16.mxu0 %v842
    %1176 = vmatpush1.bf16.msra.mxu0 %v841
    %1177 = vmatprep.subr.bf16.mxu0 %v850
    %1178 = vmatpush1.bf16.msra.mxu0 %v849
    %1179 = vmatprep.subr.bf16.mxu0 %v858
    %1180 = vmatpush1.bf16.msra.mxu0 %v857
    %1181 = vmatprep.subr.bf16.mxu0 %v866
    %1182 = vmatpush1.bf16.msra.mxu0 %v865
    %1183 = vmatprep.subr.bf16.mxu0 %v874
    %1184 = vmatpush1.bf16.msra.mxu0 %v873
    %1185 = vmatprep.subr.bf16.mxu0 %v882
    %1186 = vmatpush1.bf16.msra.mxu0 %v881
    %1187 = vmatprep.subr.bf16.mxu0 %v890
    %1188 = vmatpush1.bf16.msra.mxu0 %v889
    %1189 = vmatprep.subr.bf16.mxu0 %v898
    %1190 = vmatpush1.bf16.msra.mxu0 %v897
    %1191 = vmatprep.subr.bf16.mxu0 %v906
    %1192 = vmatpush1.bf16.msra.mxu0 %v905
    %1193 = vmatprep.subr.bf16.mxu0 %v914
    %1194 = vmatpush1.bf16.msra.mxu0 %v913
    %1195 = vmatprep.subr.bf16.mxu0 %v922
    %1196 = vmatpush1.bf16.msra.mxu0 %v921
    %1197 = vmatprep.subr.bf16.mxu0 %v930
    %1198 = vmatpush1.bf16.msra.mxu0 %v929
    %1199 = vmatprep.subr.bf16.mxu0 %v938
    %1200 = vmatpush1.bf16.msra.mxu0 %v937
    %1201 = vmatprep.subr.bf16.mxu0 %v946
    %1202 = vmatpush1.bf16.msra.mxu0 %v945
    %1203 = vmatprep.subr.bf16.mxu0 %v954
    %1204 = vmatpush1.bf16.msra.mxu0 %v953
    %1205 = vmatprep.subr.bf16.mxu0 %v962
    %1206 = vmatpush1.bf16.msra.mxu0 %v961
    %1207 = vmatprep.mubr.bf16.mxu0 %v282
    %1208 = vmatmul.mubr.bf16.gmra.mrb[0].mxu0 %v281
    %v1209 = vpop.f32.mrb[0].mxu0
    %v1210 = vadd.f32 %v432, %v1209
    %v1211 = vpop.f32.mrb[0].mxu0
    %v1212 = vadd.f32 %v436, %v1211
    %v1213 = vpop.f32.mrb[0].mxu0
    %v1214 = vpop.f32.mrb[0].mxu0
    %1215 = vdwg.mxu0
    %1216 = vmatprep.subr.bf16.mxu0 %v844
    %1217 = vmatpush1.bf16.msra.mxu0 %v843
    %1218 = vmatprep.subr.bf16.mxu0 %v852
    %1219 = vmatpush1.bf16.msra.mxu0 %v851
    %1220 = vmatprep.subr.bf16.mxu0 %v860
    %1221 = vmatpush1.bf16.msra.mxu0 %v859
    %1222 = vmatprep.subr.bf16.mxu0 %v868
    %1223 = vmatpush1.bf16.msra.mxu0 %v867
    %1224 = vmatprep.subr.bf16.mxu0 %v876
    %1225 = vmatpush1.bf16.msra.mxu0 %v875
    %1226 = vmatprep.subr.bf16.mxu0 %v884
    %1227 = vmatpush1.bf16.msra.mxu0 %v883
    %1228 = vmatprep.subr.bf16.mxu0 %v892
    %1229 = vmatpush1.bf16.msra.mxu0 %v891
    %1230 = vmatprep.subr.bf16.mxu0 %v900
    %1231 = vmatpush1.bf16.msra.mxu0 %v899
    %1232 = vmatprep.subr.bf16.mxu0 %v908
    %1233 = vmatpush1.bf16.msra.mxu0 %v907
    %1234 = vmatprep.subr.bf16.mxu0 %v916
    %1235 = vmatpush1.bf16.msra.mxu0 %v915
    %1236 = vmatprep.subr.bf16.mxu0 %v924
    %1237 = vmatpush1.bf16.msra.mxu0 %v923
    %1238 = vmatprep.subr.bf16.mxu0 %v932
    %1239 = vmatpush1.bf16.msra.mxu0 %v931
    %1240 = vmatprep.subr.bf16.mxu0 %v940
    %1241 = vmatpush1.bf16.msra.mxu0 %v939
    %1242 = vmatprep.subr.bf16.mxu0 %v948
    %1243 = vmatpush1.bf16.msra.mxu0 %v947
    %1244 = vmatprep.subr.bf16.mxu0 %v956
    %1245 = vmatpush1.bf16.msra.mxu0 %v955
    %1246 = vmatprep.subr.bf16.mxu0 %v964
    %1247 = vmatpush1.bf16.msra.mxu0 %v963
    %1248 = vmatprep.mubr.bf16.mxu0 %v282
    %1249 = vmatmul.mubr.bf16.gmra.mrb[0].mxu0 %v281
    %v1250 = vpop.f32.mrb[0].mxu0
    %v1251 = vadd.f32 %v440, %v1250
    %v1252 = vpop.f32.mrb[0].mxu0
    %v1253 = vadd.f32 %v444, %v1252
    %v1254 = vpop.f32.mrb[0].mxu0
    %v1255 = vpop.f32.mrb[0].mxu0
    %1256 = vdwg.mxu0
    %v1257 = vmax.f32 %v1128, 0.0
    %v1258 = vmax.f32 %v1130, 0.0
    %v1259 = vmax.f32 %v1169, 0.0
    %v1260 = vmax.f32 %v1171, 0.0
    %v1261 = vmax.f32 %v1210, 0.0
    %v1262 = vmax.f32 %v1212, 0.0
    %v1263 = vmax.f32 %v1251, 0.0
    %v1264 = vmax.f32 %v1253, 0.0
    %v1265 = vpack.c.bf16 %v1257, %v1257
    %v1266 = vpack.c.bf16 %v1258, %v1258
    %v1267 = vpack.c.bf16 %v1259, %v1259
    %v1268 = vpack.c.bf16 %v1260, %v1260
    %v1269 = vpack.c.bf16 %v1261, %v1261
    %v1270 = vpack.c.bf16 %v1262, %v1262
    %v1271 = vpack.c.bf16 %v1263, %v1263
    %v1272 = vpack.c.bf16 %v1264, %v1264
    %v1273 = vld [vmem:[#allocation8] sm:$0xff]
    %v1274 = vld [vmem:[#allocation8 + $0x8] sm:$0xff]
    %v1275 = vld [vmem:[#allocation8 + $0x10] sm:$0xff]
    %v1276 = vld [vmem:[#allocation8 + $0x18] sm:$0xff]
    %v1277 = vld [vmem:[#allocation8 + $0x20] sm:$0xff]
    %v1278 = vld [vmem:[#allocation8 + $0x28] sm:$0xff]
    %v1279 = vld [vmem:[#allocation8 + $0x30] sm:$0xff]
    %v1280 = vld [vmem:[#allocation8 + $0x38] sm:$0xff]
    %v1281 = vld [vmem:[#allocation8 + $0x40] sm:$0xff]
    %v1282 = vld [vmem:[#allocation8 + $0x48] sm:$0xff]
    %v1283 = vld [vmem:[#allocation8 + $0x50] sm:$0xff]
    %v1284 = vld [vmem:[#allocation8 + $0x58] sm:$0xff]
    %v1285 = vld [vmem:[#allocation8 + $0x60] sm:$0xff]
    %v1286 = vld [vmem:[#allocation8 + $0x68] sm:$0xff]
    %v1287 = vld [vmem:[#allocation8 + $0x70] sm:$0xff]
    %v1288 = vld [vmem:[#allocation8 + $0x78] sm:$0xff]
    %v1289 = vld [vmem:[#allocation8 + $0x80] sm:$0xff]
    %v1290 = vld [vmem:[#allocation8 + $0x88] sm:$0xff]
    %v1291 = vld [vmem:[#allocation8 + $0x90] sm:$0xff]
    %v1292 = vld [vmem:[#allocation8 + $0x98] sm:$0xff]
    %v1293 = vld [vmem:[#allocation8 + $0xa0] sm:$0xff]
    %v1294 = vld [vmem:[#allocation8 + $0xa8] sm:$0xff]
    %v1295 = vld [vmem:[#allocation8 + $0xb0] sm:$0xff]
    %v1296 = vld [vmem:[#allocation8 + $0xb8] sm:$0xff]
    %v1297 = vld [vmem:[#allocation8 + $0xc0] sm:$0xff]
    %v1298 = vld [vmem:[#allocation8 + $0xc8] sm:$0xff]
    %v1299 = vld [vmem:[#allocation8 + $0xd0] sm:$0xff]
    %v1300 = vld [vmem:[#allocation8 + $0xd8] sm:$0xff]
    %v1301 = vld [vmem:[#allocation8 + $0xe0] sm:$0xff]
    %v1302 = vld [vmem:[#allocation8 + $0xe8] sm:$0xff]
    %v1303 = vld [vmem:[#allocation8 + $0xf0] sm:$0xff]
    %v1304 = vld [vmem:[#allocation8 + $0xf8] sm:$0xff]
    %v1305 = vld [vmem:[#allocation8 + $0x100] sm:$0xff]
    %v1306 = vld [vmem:[#allocation8 + $0x108] sm:$0xff]
    %v1307 = vld [vmem:[#allocation8 + $0x110] sm:$0xff]
    %v1308 = vld [vmem:[#allocation8 + $0x118] sm:$0xff]
    %v1309 = vld [vmem:[#allocation8 + $0x120] sm:$0xff]
    %v1310 = vld [vmem:[#allocation8 + $0x128] sm:$0xff]
    %v1311 = vld [vmem:[#allocation8 + $0x130] sm:$0xff]
    %v1312 = vld [vmem:[#allocation8 + $0x138] sm:$0xff]
    %v1313 = vld [vmem:[#allocation8 + $0x140] sm:$0xff]
    %v1314 = vld [vmem:[#allocation8 + $0x148] sm:$0xff]
    %v1315 = vld [vmem:[#allocation8 + $0x150] sm:$0xff]
    %v1316 = vld [vmem:[#allocation8 + $0x158] sm:$0xff]
    %v1317 = vld [vmem:[#allocation8 + $0x160] sm:$0xff]
    %v1318 = vld [vmem:[#allocation8 + $0x168] sm:$0xff]
    %v1319 = vld [vmem:[#allocation8 + $0x170] sm:$0xff]
    %v1320 = vld [vmem:[#allocation8 + $0x178] sm:$0xff]
    %v1321 = vld [vmem:[#allocation8 + $0x180] sm:$0xff]
    %v1322 = vld [vmem:[#allocation8 + $0x188] sm:$0xff]
    %v1323 = vld [vmem:[#allocation8 + $0x190] sm:$0xff]
    %v1324 = vld [vmem:[#allocation8 + $0x198] sm:$0xff]
    %v1325 = vld [vmem:[#allocation8 + $0x1a0] sm:$0xff]
    %v1326 = vld [vmem:[#allocation8 + $0x1a8] sm:$0xff]
    %v1327 = vld [vmem:[#allocation8 + $0x1b0] sm:$0xff]
    %v1328 = vld [vmem:[#allocation8 + $0x1b8] sm:$0xff]
    %v1329 = vld [vmem:[#allocation8 + $0x1c0] sm:$0xff]
    %v1330 = vld [vmem:[#allocation8 + $0x1c8] sm:$0xff]
    %v1331 = vld [vmem:[#allocation8 + $0x1d0] sm:$0xff]
    %v1332 = vld [vmem:[#allocation8 + $0x1d8] sm:$0xff]
    %v1333 = vld [vmem:[#allocation8 + $0x1e0] sm:$0xff]
    %v1334 = vld [vmem:[#allocation8 + $0x1e8] sm:$0xff]
    %v1335 = vld [vmem:[#allocation8 + $0x1f0] sm:$0xff]
    %v1336 = vld [vmem:[#allocation8 + $0x1f8] sm:$0xff]
    %v1337 = vld [vmem:[#allocation8 + $0x200] sm:$0xff]
    %v1338 = vld [vmem:[#allocation8 + $0x208] sm:$0xff]
    %v1339 = vld [vmem:[#allocation8 + $0x210] sm:$0xff]
    %v1340 = vld [vmem:[#allocation8 + $0x218] sm:$0xff]
    %v1341 = vld [vmem:[#allocation8 + $0x220] sm:$0xff]
    %v1342 = vld [vmem:[#allocation8 + $0x228] sm:$0xff]
    %v1343 = vld [vmem:[#allocation8 + $0x230] sm:$0xff]
    %v1344 = vld [vmem:[#allocation8 + $0x238] sm:$0xff]
    %v1345 = vld [vmem:[#allocation8 + $0x240] sm:$0xff]
    %v1346 = vld [vmem:[#allocation8 + $0x248] sm:$0xff]
    %v1347 = vld [vmem:[#allocation8 + $0x250] sm:$0xff]
    %v1348 = vld [vmem:[#allocation8 + $0x258] sm:$0xff]
    %v1349 = vld [vmem:[#allocation8 + $0x260] sm:$0xff]
    %v1350 = vld [vmem:[#allocation8 + $0x268] sm:$0xff]
    %v1351 = vld [vmem:[#allocation8 + $0x270] sm:$0xff]
    %v1352 = vld [vmem:[#allocation8 + $0x278] sm:$0xff]
    %v1353 = vld [vmem:[#allocation8 + $0x280] sm:$0xff]
    %v1354 = vld [vmem:[#allocation8 + $0x288] sm:$0xff]
    %v1355 = vld [vmem:[#allocation8 + $0x290] sm:$0xff]
    %v1356 = vld [vmem:[#allocation8 + $0x298] sm:$0xff]
    %v1357 = vld [vmem:[#allocation8 + $0x2a0] sm:$0xff]
    %v1358 = vld [vmem:[#allocation8 + $0x2a8] sm:$0xff]
    %v1359 = vld [vmem:[#allocation8 + $0x2b0] sm:$0xff]
    %v1360 = vld [vmem:[#allocation8 + $0x2b8] sm:$0xff]
    %v1361 = vld [vmem:[#allocation8 + $0x2c0] sm:$0xff]
    %v1362 = vld [vmem:[#allocation8 + $0x2c8] sm:$0xff]
    %v1363 = vld [vmem:[#allocation8 + $0x2d0] sm:$0xff]
    %v1364 = vld [vmem:[#allocation8 + $0x2d8] sm:$0xff]
    %v1365 = vld [vmem:[#allocation8 + $0x2e0] sm:$0xff]
    %v1366 = vld [vmem:[#allocation8 + $0x2e8] sm:$0xff]
    %v1367 = vld [vmem:[#allocation8 + $0x2f0] sm:$0xff]
    %v1368 = vld [vmem:[#allocation8 + $0x2f8] sm:$0xff]
    %v1369 = vld [vmem:[#allocation8 + $0x300] sm:$0xff]
    %v1370 = vld [vmem:[#allocation8 + $0x308] sm:$0xff]
    %v1371 = vld [vmem:[#allocation8 + $0x310] sm:$0xff]
    %v1372 = vld [vmem:[#allocation8 + $0x318] sm:$0xff]
    %v1373 = vld [vmem:[#allocation8 + $0x320] sm:$0xff]
    %v1374 = vld [vmem:[#allocation8 + $0x328] sm:$0xff]
    %v1375 = vld [vmem:[#allocation8 + $0x330] sm:$0xff]
    %v1376 = vld [vmem:[#allocation8 + $0x338] sm:$0xff]
    %v1377 = vld [vmem:[#allocation8 + $0x340] sm:$0xff]
    %v1378 = vld [vmem:[#allocation8 + $0x348] sm:$0xff]
    %v1379 = vld [vmem:[#allocation8 + $0x350] sm:$0xff]
    %v1380 = vld [vmem:[#allocation8 + $0x358] sm:$0xff]
    %v1381 = vld [vmem:[#allocation8 + $0x360] sm:$0xff]
    %v1382 = vld [vmem:[#allocation8 + $0x368] sm:$0xff]
    %v1383 = vld [vmem:[#allocation8 + $0x370] sm:$0xff]
    %v1384 = vld [vmem:[#allocation8 + $0x378] sm:$0xff]
    %v1385 = vld [vmem:[#allocation8 + $0x380] sm:$0xff]
    %v1386 = vld [vmem:[#allocation8 + $0x388] sm:$0xff]
    %v1387 = vld [vmem:[#allocation8 + $0x390] sm:$0xff]
    %v1388 = vld [vmem:[#allocation8 + $0x398] sm:$0xff]
    %v1389 = vld [vmem:[#allocation8 + $0x3a0] sm:$0xff]
    %v1390 = vld [vmem:[#allocation8 + $0x3a8] sm:$0xff]
    %v1391 = vld [vmem:[#allocation8 + $0x3b0] sm:$0xff]
    %v1392 = vld [vmem:[#allocation8 + $0x3b8] sm:$0xff]
    %v1393 = vld [vmem:[#allocation8 + $0x3c0] sm:$0xff]
    %v1394 = vld [vmem:[#allocation8 + $0x3c8] sm:$0xff]
    %v1395 = vld [vmem:[#allocation8 + $0x3d0] sm:$0xff]
    %v1396 = vld [vmem:[#allocation8 + $0x3d8] sm:$0xff]
    %v1397 = vld [vmem:[#allocation8 + $0x3e0] sm:$0xff]
    %v1398 = vld [vmem:[#allocation8 + $0x3e8] sm:$0xff]
    %v1399 = vld [vmem:[#allocation8 + $0x3f0] sm:$0xff]
    %v1400 = vld [vmem:[#allocation8 + $0x3f8] sm:$0xff]
    %v1401 = vld [vmem:[#allocation8 + $0x400] sm:$0xff]
    %v1402 = vld [vmem:[#allocation8 + $0x408] sm:$0xff]
    %v1403 = vld [vmem:[#allocation8 + $0x410] sm:$0xff]
    %v1404 = vld [vmem:[#allocation8 + $0x418] sm:$0xff]
    %v1405 = vld [vmem:[#allocation8 + $0x420] sm:$0xff]
    %v1406 = vld [vmem:[#allocation8 + $0x428] sm:$0xff]
    %v1407 = vld [vmem:[#allocation8 + $0x430] sm:$0xff]
    %v1408 = vld [vmem:[#allocation8 + $0x438] sm:$0xff]
    %v1409 = vld [vmem:[#allocation8 + $0x440] sm:$0xff]
    %v1410 = vld [vmem:[#allocation8 + $0x448] sm:$0xff]
    %v1411 = vld [vmem:[#allocation8 + $0x450] sm:$0xff]
    %v1412 = vld [vmem:[#allocation8 + $0x458] sm:$0xff]
    %v1413 = vld [vmem:[#allocation8 + $0x460] sm:$0xff]
    %v1414 = vld [vmem:[#allocation8 + $0x468] sm:$0xff]
    %v1415 = vld [vmem:[#allocation8 + $0x470] sm:$0xff]
    %v1416 = vld [vmem:[#allocation8 + $0x478] sm:$0xff]
    %v1417 = vld [vmem:[#allocation8 + $0x480] sm:$0xff]
    %v1418 = vld [vmem:[#allocation8 + $0x488] sm:$0xff]
    %v1419 = vld [vmem:[#allocation8 + $0x490] sm:$0xff]
    %v1420 = vld [vmem:[#allocation8 + $0x498] sm:$0xff]
    %v1421 = vld [vmem:[#allocation8 + $0x4a0] sm:$0xff]
    %v1422 = vld [vmem:[#allocation8 + $0x4a8] sm:$0xff]
    %v1423 = vld [vmem:[#allocation8 + $0x4b0] sm:$0xff]
    %v1424 = vld [vmem:[#allocation8 + $0x4b8] sm:$0xff]
    %v1425 = vld [vmem:[#allocation8 + $0x4c0] sm:$0xff]
    %v1426 = vld [vmem:[#allocation8 + $0x4c8] sm:$0xff]
    %v1427 = vld [vmem:[#allocation8 + $0x4d0] sm:$0xff]
    %v1428 = vld [vmem:[#allocation8 + $0x4d8] sm:$0xff]
    %v1429 = vld [vmem:[#allocation8 + $0x4e0] sm:$0xff]
    %v1430 = vld [vmem:[#allocation8 + $0x4e8] sm:$0xff]
    %v1431 = vld [vmem:[#allocation8 + $0x4f0] sm:$0xff]
    %v1432 = vld [vmem:[#allocation8 + $0x4f8] sm:$0xff]
    %v1433 = vld [vmem:[#allocation8 + $0x500] sm:$0xff]
    %v1434 = vld [vmem:[#allocation8 + $0x508] sm:$0xff]
    %v1435 = vld [vmem:[#allocation8 + $0x510] sm:$0xff]
    %v1436 = vld [vmem:[#allocation8 + $0x518] sm:$0xff]
    %v1437 = vld [vmem:[#allocation8 + $0x520] sm:$0xff]
    %v1438 = vld [vmem:[#allocation8 + $0x528] sm:$0xff]
    %v1439 = vld [vmem:[#allocation8 + $0x530] sm:$0xff]
    %v1440 = vld [vmem:[#allocation8 + $0x538] sm:$0xff]
    %v1441 = vld [vmem:[#allocation8 + $0x540] sm:$0xff]
    %v1442 = vld [vmem:[#allocation8 + $0x548] sm:$0xff]
    %v1443 = vld [vmem:[#allocation8 + $0x550] sm:$0xff]
    %v1444 = vld [vmem:[#allocation8 + $0x558] sm:$0xff]
    %v1445 = vld [vmem:[#allocation8 + $0x560] sm:$0xff]
    %v1446 = vld [vmem:[#allocation8 + $0x568] sm:$0xff]
    %v1447 = vld [vmem:[#allocation8 + $0x570] sm:$0xff]
    %v1448 = vld [vmem:[#allocation8 + $0x578] sm:$0xff]
    %v1449 = vld [vmem:[#allocation8 + $0x580] sm:$0xff]
    %v1450 = vld [vmem:[#allocation8 + $0x588] sm:$0xff]
    %v1451 = vld [vmem:[#allocation8 + $0x590] sm:$0xff]
    %v1452 = vld [vmem:[#allocation8 + $0x598] sm:$0xff]
    %v1453 = vld [vmem:[#allocation8 + $0x5a0] sm:$0xff]
    %v1454 = vld [vmem:[#allocation8 + $0x5a8] sm:$0xff]
    %v1455 = vld [vmem:[#allocation8 + $0x5b0] sm:$0xff]
    %v1456 = vld [vmem:[#allocation8 + $0x5b8] sm:$0xff]
    %v1457 = vld [vmem:[#allocation8 + $0x5c0] sm:$0xff]
    %v1458 = vld [vmem:[#allocation8 + $0x5c8] sm:$0xff]
    %v1459 = vld [vmem:[#allocation8 + $0x5d0] sm:$0xff]
    %v1460 = vld [vmem:[#allocation8 + $0x5d8] sm:$0xff]
    %v1461 = vld [vmem:[#allocation8 + $0x5e0] sm:$0xff]
    %v1462 = vld [vmem:[#allocation8 + $0x5e8] sm:$0xff]
    %v1463 = vld [vmem:[#allocation8 + $0x5f0] sm:$0xff]
    %v1464 = vld [vmem:[#allocation8 + $0x5f8] sm:$0xff]
    %v1465 = vld [vmem:[#allocation8 + $0x600] sm:$0xff]
    %v1466 = vld [vmem:[#allocation8 + $0x608] sm:$0xff]
    %v1467 = vld [vmem:[#allocation8 + $0x610] sm:$0xff]
    %v1468 = vld [vmem:[#allocation8 + $0x618] sm:$0xff]
    %v1469 = vld [vmem:[#allocation8 + $0x620] sm:$0xff]
    %v1470 = vld [vmem:[#allocation8 + $0x628] sm:$0xff]
    %v1471 = vld [vmem:[#allocation8 + $0x630] sm:$0xff]
    %v1472 = vld [vmem:[#allocation8 + $0x638] sm:$0xff]
    %v1473 = vld [vmem:[#allocation8 + $0x640] sm:$0xff]
    %v1474 = vld [vmem:[#allocation8 + $0x648] sm:$0xff]
    %v1475 = vld [vmem:[#allocation8 + $0x650] sm:$0xff]
    %v1476 = vld [vmem:[#allocation8 + $0x658] sm:$0xff]
    %v1477 = vld [vmem:[#allocation8 + $0x660] sm:$0xff]
    %v1478 = vld [vmem:[#allocation8 + $0x668] sm:$0xff]
    %v1479 = vld [vmem:[#allocation8 + $0x670] sm:$0xff]
    %v1480 = vld [vmem:[#allocation8 + $0x678] sm:$0xff]
    %v1481 = vld [vmem:[#allocation8 + $0x680] sm:$0xff]
    %v1482 = vld [vmem:[#allocation8 + $0x688] sm:$0xff]
    %v1483 = vld [vmem:[#allocation8 + $0x690] sm:$0xff]
    %v1484 = vld [vmem:[#allocation8 + $0x698] sm:$0xff]
    %v1485 = vld [vmem:[#allocation8 + $0x6a0] sm:$0xff]
    %v1486 = vld [vmem:[#allocation8 + $0x6a8] sm:$0xff]
    %v1487 = vld [vmem:[#allocation8 + $0x6b0] sm:$0xff]
    %v1488 = vld [vmem:[#allocation8 + $0x6b8] sm:$0xff]
    %v1489 = vld [vmem:[#allocation8 + $0x6c0] sm:$0xff]
    %v1490 = vld [vmem:[#allocation8 + $0x6c8] sm:$0xff]
    %v1491 = vld [vmem:[#allocation8 + $0x6d0] sm:$0xff]
    %v1492 = vld [vmem:[#allocation8 + $0x6d8] sm:$0xff]
    %v1493 = vld [vmem:[#allocation8 + $0x6e0] sm:$0xff]
    %v1494 = vld [vmem:[#allocation8 + $0x6e8] sm:$0xff]
    %v1495 = vld [vmem:[#allocation8 + $0x6f0] sm:$0xff]
    %v1496 = vld [vmem:[#allocation8 + $0x6f8] sm:$0xff]
    %v1497 = vld [vmem:[#allocation8 + $0x700] sm:$0xff]
    %v1498 = vld [vmem:[#allocation8 + $0x708] sm:$0xff]
    %v1499 = vld [vmem:[#allocation8 + $0x710] sm:$0xff]
    %v1500 = vld [vmem:[#allocation8 + $0x718] sm:$0xff]
    %v1501 = vld [vmem:[#allocation8 + $0x720] sm:$0xff]
    %v1502 = vld [vmem:[#allocation8 + $0x728] sm:$0xff]
    %v1503 = vld [vmem:[#allocation8 + $0x730] sm:$0xff]
    %v1504 = vld [vmem:[#allocation8 + $0x738] sm:$0xff]
    %v1505 = vld [vmem:[#allocation8 + $0x740] sm:$0xff]
    %v1506 = vld [vmem:[#allocation8 + $0x748] sm:$0xff]
    %v1507 = vld [vmem:[#allocation8 + $0x750] sm:$0xff]
    %v1508 = vld [vmem:[#allocation8 + $0x758] sm:$0xff]
    %v1509 = vld [vmem:[#allocation8 + $0x760] sm:$0xff]
    %v1510 = vld [vmem:[#allocation8 + $0x768] sm:$0xff]
    %v1511 = vld [vmem:[#allocation8 + $0x770] sm:$0xff]
    %v1512 = vld [vmem:[#allocation8 + $0x778] sm:$0xff]
    %v1513 = vld [vmem:[#allocation8 + $0x780] sm:$0xff]
    %v1514 = vld [vmem:[#allocation8 + $0x788] sm:$0xff]
    %v1515 = vld [vmem:[#allocation8 + $0x790] sm:$0xff]
    %v1516 = vld [vmem:[#allocation8 + $0x798] sm:$0xff]
    %v1517 = vld [vmem:[#allocation8 + $0x7a0] sm:$0xff]
    %v1518 = vld [vmem:[#allocation8 + $0x7a8] sm:$0xff]
    %v1519 = vld [vmem:[#allocation8 + $0x7b0] sm:$0xff]
    %v1520 = vld [vmem:[#allocation8 + $0x7b8] sm:$0xff]
    %v1521 = vld [vmem:[#allocation8 + $0x7c0] sm:$0xff]
    %v1522 = vld [vmem:[#allocation8 + $0x7c8] sm:$0xff]
    %v1523 = vld [vmem:[#allocation8 + $0x7d0] sm:$0xff]
    %v1524 = vld [vmem:[#allocation8 + $0x7d8] sm:$0xff]
    %v1525 = vld [vmem:[#allocation8 + $0x7e0] sm:$0xff]
    %v1526 = vld [vmem:[#allocation8 + $0x7e8] sm:$0xff]
    %v1527 = vld [vmem:[#allocation8 + $0x7f0] sm:$0xff]
    %v1528 = vld [vmem:[#allocation8 + $0x7f8] sm:$0xff]
    %v1529 = vld [vmem:[#allocation8 + $0x800] sm:$0xff]
    %v1530 = vld [vmem:[#allocation8 + $0x808] sm:$0xff]
    %v1531 = vld [vmem:[#allocation8 + $0x810] sm:$0xff]
    %v1532 = vld [vmem:[#allocation8 + $0x818] sm:$0xff]
    %v1533 = vld [vmem:[#allocation8 + $0x820] sm:$0xff]
    %v1534 = vld [vmem:[#allocation8 + $0x828] sm:$0xff]
    %v1535 = vld [vmem:[#allocation8 + $0x830] sm:$0xff]
    %v1536 = vld [vmem:[#allocation8 + $0x838] sm:$0xff]
    %v1537 = vld [vmem:[#allocation8 + $0x840] sm:$0xff]
    %v1538 = vld [vmem:[#allocation8 + $0x848] sm:$0xff]
    %v1539 = vld [vmem:[#allocation8 + $0x850] sm:$0xff]
    %v1540 = vld [vmem:[#allocation8 + $0x858] sm:$0xff]
    %v1541 = vld [vmem:[#allocation8 + $0x860] sm:$0xff]
    %v1542 = vld [vmem:[#allocation8 + $0x868] sm:$0xff]
    %v1543 = vld [vmem:[#allocation8 + $0x870] sm:$0xff]
    %v1544 = vld [vmem:[#allocation8 + $0x878] sm:$0xff]
    %v1545 = vld [vmem:[#allocation8 + $0x880] sm:$0xff]
    %v1546 = vld [vmem:[#allocation8 + $0x888] sm:$0xff]
    %v1547 = vld [vmem:[#allocation8 + $0x890] sm:$0xff]
    %v1548 = vld [vmem:[#allocation8 + $0x898] sm:$0xff]
    %v1549 = vld [vmem:[#allocation8 + $0x8a0] sm:$0xff]
    %v1550 = vld [vmem:[#allocation8 + $0x8a8] sm:$0xff]
    %v1551 = vld [vmem:[#allocation8 + $0x8b0] sm:$0xff]
    %v1552 = vld [vmem:[#allocation8 + $0x8b8] sm:$0xff]
    %v1553 = vld [vmem:[#allocation8 + $0x8c0] sm:$0xff]
    %v1554 = vld [vmem:[#allocation8 + $0x8c8] sm:$0xff]
    %v1555 = vld [vmem:[#allocation8 + $0x8d0] sm:$0xff]
    %v1556 = vld [vmem:[#allocation8 + $0x8d8] sm:$0xff]
    %v1557 = vld [vmem:[#allocation8 + $0x8e0] sm:$0xff]
    %v1558 = vld [vmem:[#allocation8 + $0x8e8] sm:$0xff]
    %v1559 = vld [vmem:[#allocation8 + $0x8f0] sm:$0xff]
    %v1560 = vld [vmem:[#allocation8 + $0x8f8] sm:$0xff]
    %v1561 = vld [vmem:[#allocation8 + $0x900] sm:$0xff]
    %v1562 = vld [vmem:[#allocation8 + $0x908] sm:$0xff]
    %v1563 = vld [vmem:[#allocation8 + $0x910] sm:$0xff]
    %v1564 = vld [vmem:[#allocation8 + $0x918] sm:$0xff]
    %v1565 = vld [vmem:[#allocation8 + $0x920] sm:$0xff]
    %v1566 = vld [vmem:[#allocation8 + $0x928] sm:$0xff]
    %v1567 = vld [vmem:[#allocation8 + $0x930] sm:$0xff]
    %v1568 = vld [vmem:[#allocation8 + $0x938] sm:$0xff]
    %v1569 = vld [vmem:[#allocation8 + $0x940] sm:$0xff]
    %v1570 = vld [vmem:[#allocation8 + $0x948] sm:$0xff]
    %v1571 = vld [vmem:[#allocation8 + $0x950] sm:$0xff]
    %v1572 = vld [vmem:[#allocation8 + $0x958] sm:$0xff]
    %v1573 = vld [vmem:[#allocation8 + $0x960] sm:$0xff]
    %v1574 = vld [vmem:[#allocation8 + $0x968] sm:$0xff]
    %v1575 = vld [vmem:[#allocation8 + $0x970] sm:$0xff]
    %v1576 = vld [vmem:[#allocation8 + $0x978] sm:$0xff]
    %v1577 = vld [vmem:[#allocation8 + $0x980] sm:$0xff]
    %v1578 = vld [vmem:[#allocation8 + $0x988] sm:$0xff]
    %v1579 = vld [vmem:[#allocation8 + $0x990] sm:$0xff]
    %v1580 = vld [vmem:[#allocation8 + $0x998] sm:$0xff]
    %v1581 = vld [vmem:[#allocation8 + $0x9a0] sm:$0xff]
    %v1582 = vld [vmem:[#allocation8 + $0x9a8] sm:$0xff]
    %v1583 = vld [vmem:[#allocation8 + $0x9b0] sm:$0xff]
    %v1584 = vld [vmem:[#allocation8 + $0x9b8] sm:$0xff]
    %v1585 = vld [vmem:[#allocation8 + $0x9c0] sm:$0xff]
    %v1586 = vld [vmem:[#allocation8 + $0x9c8] sm:$0xff]
    %v1587 = vld [vmem:[#allocation8 + $0x9d0] sm:$0xff]
    %v1588 = vld [vmem:[#allocation8 + $0x9d8] sm:$0xff]
    %v1589 = vld [vmem:[#allocation8 + $0x9e0] sm:$0xff]
    %v1590 = vld [vmem:[#allocation8 + $0x9e8] sm:$0xff]
    %v1591 = vld [vmem:[#allocation8 + $0x9f0] sm:$0xff]
    %v1592 = vld [vmem:[#allocation8 + $0x9f8] sm:$0xff]
    %v1593 = vld [vmem:[#allocation8 + $0xa00] sm:$0xff]
    %v1594 = vld [vmem:[#allocation8 + $0xa08] sm:$0xff]
    %v1595 = vld [vmem:[#allocation8 + $0xa10] sm:$0xff]
    %v1596 = vld [vmem:[#allocation8 + $0xa18] sm:$0xff]
    %v1597 = vld [vmem:[#allocation8 + $0xa20] sm:$0xff]
    %v1598 = vld [vmem:[#allocation8 + $0xa28] sm:$0xff]
    %v1599 = vld [vmem:[#allocation8 + $0xa30] sm:$0xff]
    %v1600 = vld [vmem:[#allocation8 + $0xa38] sm:$0xff]
    %v1601 = vld [vmem:[#allocation8 + $0xa40] sm:$0xff]
    %v1602 = vld [vmem:[#allocation8 + $0xa48] sm:$0xff]
    %v1603 = vld [vmem:[#allocation8 + $0xa50] sm:$0xff]
    %v1604 = vld [vmem:[#allocation8 + $0xa58] sm:$0xff]
    %v1605 = vld [vmem:[#allocation8 + $0xa60] sm:$0xff]
    %v1606 = vld [vmem:[#allocation8 + $0xa68] sm:$0xff]
    %v1607 = vld [vmem:[#allocation8 + $0xa70] sm:$0xff]
    %v1608 = vld [vmem:[#allocation8 + $0xa78] sm:$0xff]
    %v1609 = vld [vmem:[#allocation8 + $0xa80] sm:$0xff]
    %v1610 = vld [vmem:[#allocation8 + $0xa88] sm:$0xff]
    %v1611 = vld [vmem:[#allocation8 + $0xa90] sm:$0xff]
    %v1612 = vld [vmem:[#allocation8 + $0xa98] sm:$0xff]
    %v1613 = vld [vmem:[#allocation8 + $0xaa0] sm:$0xff]
    %v1614 = vld [vmem:[#allocation8 + $0xaa8] sm:$0xff]
    %v1615 = vld [vmem:[#allocation8 + $0xab0] sm:$0xff]
    %v1616 = vld [vmem:[#allocation8 + $0xab8] sm:$0xff]
    %v1617 = vld [vmem:[#allocation8 + $0xac0] sm:$0xff]
    %v1618 = vld [vmem:[#allocation8 + $0xac8] sm:$0xff]
    %v1619 = vld [vmem:[#allocation8 + $0xad0] sm:$0xff]
    %v1620 = vld [vmem:[#allocation8 + $0xad8] sm:$0xff]
    %v1621 = vld [vmem:[#allocation8 + $0xae0] sm:$0xff]
    %v1622 = vld [vmem:[#allocation8 + $0xae8] sm:$0xff]
    %v1623 = vld [vmem:[#allocation8 + $0xaf0] sm:$0xff]
    %v1624 = vld [vmem:[#allocation8 + $0xaf8] sm:$0xff]
    %v1625 = vld [vmem:[#allocation8 + $0xb00] sm:$0xff]
    %v1626 = vld [vmem:[#allocation8 + $0xb08] sm:$0xff]
    %v1627 = vld [vmem:[#allocation8 + $0xb10] sm:$0xff]
    %v1628 = vld [vmem:[#allocation8 + $0xb18] sm:$0xff]
    %v1629 = vld [vmem:[#allocation8 + $0xb20] sm:$0xff]
    %v1630 = vld [vmem:[#allocation8 + $0xb28] sm:$0xff]
    %v1631 = vld [vmem:[#allocation8 + $0xb30] sm:$0xff]
    %v1632 = vld [vmem:[#allocation8 + $0xb38] sm:$0xff]
    %v1633 = vld [vmem:[#allocation8 + $0xb40] sm:$0xff]
    %v1634 = vld [vmem:[#allocation8 + $0xb48] sm:$0xff]
    %v1635 = vld [vmem:[#allocation8 + $0xb50] sm:$0xff]
    %v1636 = vld [vmem:[#allocation8 + $0xb58] sm:$0xff]
    %v1637 = vld [vmem:[#allocation8 + $0xb60] sm:$0xff]
    %v1638 = vld [vmem:[#allocation8 + $0xb68] sm:$0xff]
    %v1639 = vld [vmem:[#allocation8 + $0xb70] sm:$0xff]
    %v1640 = vld [vmem:[#allocation8 + $0xb78] sm:$0xff]
    %v1641 = vld [vmem:[#allocation8 + $0xb80] sm:$0xff]
    %v1642 = vld [vmem:[#allocation8 + $0xb88] sm:$0xff]
    %v1643 = vld [vmem:[#allocation8 + $0xb90] sm:$0xff]
    %v1644 = vld [vmem:[#allocation8 + $0xb98] sm:$0xff]
    %v1645 = vld [vmem:[#allocation8 + $0xba0] sm:$0xff]
    %v1646 = vld [vmem:[#allocation8 + $0xba8] sm:$0xff]
    %v1647 = vld [vmem:[#allocation8 + $0xbb0] sm:$0xff]
    %v1648 = vld [vmem:[#allocation8 + $0xbb8] sm:$0xff]
    %v1649 = vld [vmem:[#allocation8 + $0xbc0] sm:$0xff]
    %v1650 = vld [vmem:[#allocation8 + $0xbc8] sm:$0xff]
    %v1651 = vld [vmem:[#allocation8 + $0xbd0] sm:$0xff]
    %v1652 = vld [vmem:[#allocation8 + $0xbd8] sm:$0xff]
    %v1653 = vld [vmem:[#allocation8 + $0xbe0] sm:$0xff]
    %v1654 = vld [vmem:[#allocation8 + $0xbe8] sm:$0xff]
    %v1655 = vld [vmem:[#allocation8 + $0xbf0] sm:$0xff]
    %v1656 = vld [vmem:[#allocation8 + $0xbf8] sm:$0xff]
    %v1657 = vld [vmem:[#allocation8 + $0xc00] sm:$0xff]
    %v1658 = vld [vmem:[#allocation8 + $0xc08] sm:$0xff]
    %v1659 = vld [vmem:[#allocation8 + $0xc10] sm:$0xff]
    %v1660 = vld [vmem:[#allocation8 + $0xc18] sm:$0xff]
    %v1661 = vld [vmem:[#allocation8 + $0xc20] sm:$0xff]
    %v1662 = vld [vmem:[#allocation8 + $0xc28] sm:$0xff]
    %v1663 = vld [vmem:[#allocation8 + $0xc30] sm:$0xff]
    %v1664 = vld [vmem:[#allocation8 + $0xc38] sm:$0xff]
    %v1665 = vld [vmem:[#allocation8 + $0xc40] sm:$0xff]
    %v1666 = vld [vmem:[#allocation8 + $0xc48] sm:$0xff]
    %v1667 = vld [vmem:[#allocation8 + $0xc50] sm:$0xff]
    %v1668 = vld [vmem:[#allocation8 + $0xc58] sm:$0xff]
    %v1669 = vld [vmem:[#allocation8 + $0xc60] sm:$0xff]
    %v1670 = vld [vmem:[#allocation8 + $0xc68] sm:$0xff]
    %v1671 = vld [vmem:[#allocation8 + $0xc70] sm:$0xff]
    %v1672 = vld [vmem:[#allocation8 + $0xc78] sm:$0xff]
    %v1673 = vld [vmem:[#allocation8 + $0xc80] sm:$0xff]
    %v1674 = vld [vmem:[#allocation8 + $0xc88] sm:$0xff]
    %v1675 = vld [vmem:[#allocation8 + $0xc90] sm:$0xff]
    %v1676 = vld [vmem:[#allocation8 + $0xc98] sm:$0xff]
    %v1677 = vld [vmem:[#allocation8 + $0xca0] sm:$0xff]
    %v1678 = vld [vmem:[#allocation8 + $0xca8] sm:$0xff]
    %v1679 = vld [vmem:[#allocation8 + $0xcb0] sm:$0xff]
    %v1680 = vld [vmem:[#allocation8 + $0xcb8] sm:$0xff]
    %v1681 = vld [vmem:[#allocation8 + $0xcc0] sm:$0xff]
    %v1682 = vld [vmem:[#allocation8 + $0xcc8] sm:$0xff]
    %v1683 = vld [vmem:[#allocation8 + $0xcd0] sm:$0xff]
    %v1684 = vld [vmem:[#allocation8 + $0xcd8] sm:$0xff]
    %v1685 = vld [vmem:[#allocation8 + $0xce0] sm:$0xff]
    %v1686 = vld [vmem:[#allocation8 + $0xce8] sm:$0xff]
    %v1687 = vld [vmem:[#allocation8 + $0xcf0] sm:$0xff]
    %v1688 = vld [vmem:[#allocation8 + $0xcf8] sm:$0xff]
    %v1689 = vld [vmem:[#allocation8 + $0xd00] sm:$0xff]
    %v1690 = vld [vmem:[#allocation8 + $0xd08] sm:$0xff]
    %v1691 = vld [vmem:[#allocation8 + $0xd10] sm:$0xff]
    %v1692 = vld [vmem:[#allocation8 + $0xd18] sm:$0xff]
    %v1693 = vld [vmem:[#allocation8 + $0xd20] sm:$0xff]
    %v1694 = vld [vmem:[#allocation8 + $0xd28] sm:$0xff]
    %v1695 = vld [vmem:[#allocation8 + $0xd30] sm:$0xff]
    %v1696 = vld [vmem:[#allocation8 + $0xd38] sm:$0xff]
    %v1697 = vld [vmem:[#allocation8 + $0xd40] sm:$0xff]
    %v1698 = vld [vmem:[#allocation8 + $0xd48] sm:$0xff]
    %v1699 = vld [vmem:[#allocation8 + $0xd50] sm:$0xff]
    %v1700 = vld [vmem:[#allocation8 + $0xd58] sm:$0xff]
    %v1701 = vld [vmem:[#allocation8 + $0xd60] sm:$0xff]
    %v1702 = vld [vmem:[#allocation8 + $0xd68] sm:$0xff]
    %v1703 = vld [vmem:[#allocation8 + $0xd70] sm:$0xff]
    %v1704 = vld [vmem:[#allocation8 + $0xd78] sm:$0xff]
    %v1705 = vld [vmem:[#allocation8 + $0xd80] sm:$0xff]
    %v1706 = vld [vmem:[#allocation8 + $0xd88] sm:$0xff]
    %v1707 = vld [vmem:[#allocation8 + $0xd90] sm:$0xff]
    %v1708 = vld [vmem:[#allocation8 + $0xd98] sm:$0xff]
    %v1709 = vld [vmem:[#allocation8 + $0xda0] sm:$0xff]
    %v1710 = vld [vmem:[#allocation8 + $0xda8] sm:$0xff]
    %v1711 = vld [vmem:[#allocation8 + $0xdb0] sm:$0xff]
    %v1712 = vld [vmem:[#allocation8 + $0xdb8] sm:$0xff]
    %v1713 = vld [vmem:[#allocation8 + $0xdc0] sm:$0xff]
    %v1714 = vld [vmem:[#allocation8 + $0xdc8] sm:$0xff]
    %v1715 = vld [vmem:[#allocation8 + $0xdd0] sm:$0xff]
    %v1716 = vld [vmem:[#allocation8 + $0xdd8] sm:$0xff]
    %v1717 = vld [vmem:[#allocation8 + $0xde0] sm:$0xff]
    %v1718 = vld [vmem:[#allocation8 + $0xde8] sm:$0xff]
    %v1719 = vld [vmem:[#allocation8 + $0xdf0] sm:$0xff]
    %v1720 = vld [vmem:[#allocation8 + $0xdf8] sm:$0xff]
    %v1721 = vld [vmem:[#allocation8 + $0xe00] sm:$0xff]
    %v1722 = vld [vmem:[#allocation8 + $0xe08] sm:$0xff]
    %v1723 = vld [vmem:[#allocation8 + $0xe10] sm:$0xff]
    %v1724 = vld [vmem:[#allocation8 + $0xe18] sm:$0xff]
    %v1725 = vld [vmem:[#allocation8 + $0xe20] sm:$0xff]
    %v1726 = vld [vmem:[#allocation8 + $0xe28] sm:$0xff]
    %v1727 = vld [vmem:[#allocation8 + $0xe30] sm:$0xff]
    %v1728 = vld [vmem:[#allocation8 + $0xe38] sm:$0xff]
    %v1729 = vld [vmem:[#allocation8 + $0xe40] sm:$0xff]
    %v1730 = vld [vmem:[#allocation8 + $0xe48] sm:$0xff]
    %v1731 = vld [vmem:[#allocation8 + $0xe50] sm:$0xff]
    %v1732 = vld [vmem:[#allocation8 + $0xe58] sm:$0xff]
    %v1733 = vld [vmem:[#allocation8 + $0xe60] sm:$0xff]
    %v1734 = vld [vmem:[#allocation8 + $0xe68] sm:$0xff]
    %v1735 = vld [vmem:[#allocation8 + $0xe70] sm:$0xff]
    %v1736 = vld [vmem:[#allocation8 + $0xe78] sm:$0xff]
    %v1737 = vld [vmem:[#allocation8 + $0xe80] sm:$0xff]
    %v1738 = vld [vmem:[#allocation8 + $0xe88] sm:$0xff]
    %v1739 = vld [vmem:[#allocation8 + $0xe90] sm:$0xff]
    %v1740 = vld [vmem:[#allocation8 + $0xe98] sm:$0xff]
    %v1741 = vld [vmem:[#allocation8 + $0xea0] sm:$0xff]
    %v1742 = vld [vmem:[#allocation8 + $0xea8] sm:$0xff]
    %v1743 = vld [vmem:[#allocation8 + $0xeb0] sm:$0xff]
    %v1744 = vld [vmem:[#allocation8 + $0xeb8] sm:$0xff]
    %v1745 = vld [vmem:[#allocation8 + $0xec0] sm:$0xff]
    %v1746 = vld [vmem:[#allocation8 + $0xec8] sm:$0xff]
    %v1747 = vld [vmem:[#allocation8 + $0xed0] sm:$0xff]
    %v1748 = vld [vmem:[#allocation8 + $0xed8] sm:$0xff]
    %v1749 = vld [vmem:[#allocation8 + $0xee0] sm:$0xff]
    %v1750 = vld [vmem:[#allocation8 + $0xee8] sm:$0xff]
    %v1751 = vld [vmem:[#allocation8 + $0xef0] sm:$0xff]
    %v1752 = vld [vmem:[#allocation8 + $0xef8] sm:$0xff]
    %v1753 = vld [vmem:[#allocation8 + $0xf00] sm:$0xff]
    %v1754 = vld [vmem:[#allocation8 + $0xf08] sm:$0xff]
    %v1755 = vld [vmem:[#allocation8 + $0xf10] sm:$0xff]
    %v1756 = vld [vmem:[#allocation8 + $0xf18] sm:$0xff]
    %v1757 = vld [vmem:[#allocation8 + $0xf20] sm:$0xff]
    %v1758 = vld [vmem:[#allocation8 + $0xf28] sm:$0xff]
    %v1759 = vld [vmem:[#allocation8 + $0xf30] sm:$0xff]
    %v1760 = vld [vmem:[#allocation8 + $0xf38] sm:$0xff]
    %v1761 = vld [vmem:[#allocation8 + $0xf40] sm:$0xff]
    %v1762 = vld [vmem:[#allocation8 + $0xf48] sm:$0xff]
    %v1763 = vld [vmem:[#allocation8 + $0xf50] sm:$0xff]
    %v1764 = vld [vmem:[#allocation8 + $0xf58] sm:$0xff]
    %v1765 = vld [vmem:[#allocation8 + $0xf60] sm:$0xff]
    %v1766 = vld [vmem:[#allocation8 + $0xf68] sm:$0xff]
    %v1767 = vld [vmem:[#allocation8 + $0xf70] sm:$0xff]
    %v1768 = vld [vmem:[#allocation8 + $0xf78] sm:$0xff]
    %v1769 = vld [vmem:[#allocation8 + $0xf80] sm:$0xff]
    %v1770 = vld [vmem:[#allocation8 + $0xf88] sm:$0xff]
    %v1771 = vld [vmem:[#allocation8 + $0xf90] sm:$0xff]
    %v1772 = vld [vmem:[#allocation8 + $0xf98] sm:$0xff]
    %v1773 = vld [vmem:[#allocation8 + $0xfa0] sm:$0xff]
    %v1774 = vld [vmem:[#allocation8 + $0xfa8] sm:$0xff]
    %v1775 = vld [vmem:[#allocation8 + $0xfb0] sm:$0xff]
    %v1776 = vld [vmem:[#allocation8 + $0xfb8] sm:$0xff]
    %v1777 = vld [vmem:[#allocation8 + $0xfc0] sm:$0xff]
    %v1778 = vld [vmem:[#allocation8 + $0xfc8] sm:$0xff]
    %v1779 = vld [vmem:[#allocation8 + $0xfd0] sm:$0xff]
    %v1780 = vld [vmem:[#allocation8 + $0xfd8] sm:$0xff]
    %v1781 = vld [vmem:[#allocation8 + $0xfe0] sm:$0xff]
    %v1782 = vld [vmem:[#allocation8 + $0xfe8] sm:$0xff]
    %v1783 = vld [vmem:[#allocation8 + $0xff0] sm:$0xff]
    %v1784 = vld [vmem:[#allocation8 + $0xff8] sm:$0xff]
    %v1785 = vld [vmem:[#allocation9] sm:$0xff]
    %v1787 = vlaneseq
    %v1788 = vshrl.u32 %v1787, 7
    %v1789 = vsub.s32 0, %v1788
    %v1790 = vrot.slane %v1785, %v1789
    %v1791 = vlaneseq
    %v1792 = vshrl.u32 %v1791, 7
    %v1793 = vsub.s32 1, %v1792
    %v1794 = vrot.slane %v1785, %v1793
    %v1795 = vlaneseq
    %v1796 = vshrl.u32 %v1795, 7
    %v1797 = vsub.s32 2, %v1796
    %v1798 = vrot.slane %v1785, %v1797
    %v1799 = vlaneseq
    %v1800 = vshrl.u32 %v1799, 7
    %v1801 = vsub.s32 3, %v1800
    %v1802 = vrot.slane %v1785, %v1801
    %v1803 = vlaneseq
    %v1804 = vshrl.u32 %v1803, 7
    %v1805 = vsub.s32 4, %v1804
    %v1806 = vrot.slane %v1785, %v1805
    %v1807 = vlaneseq
    %v1808 = vshrl.u32 %v1807, 7
    %v1809 = vsub.s32 5, %v1808
    %v1810 = vrot.slane %v1785, %v1809
    %v1811 = vlaneseq
    %v1812 = vshrl.u32 %v1811, 7
    %v1813 = vsub.s32 6, %v1812
    %v1814 = vrot.slane %v1785, %v1813
    %v1815 = vlaneseq
    %v1816 = vshrl.u32 %v1815, 7
    %v1817 = vsub.s32 7, %v1816
    %v1818 = vrot.slane %v1785, %v1817
    %v2339 = vunpack.c.l.b16 %v1273
    %v2340 = vunpack.c.h.b16 %v1273
    %v2341 = vunpack.c.l.b16 %v1274
    %v2342 = vunpack.c.h.b16 %v1274
    %v2343 = vunpack.c.l.b16 %v1275
    %v2344 = vunpack.c.h.b16 %v1275
    %v2345 = vunpack.c.l.b16 %v1276
    %v2346 = vunpack.c.h.b16 %v1276
    %v2347 = vunpack.c.l.b16 %v1277
    %v2348 = vunpack.c.h.b16 %v1277
    %v2349 = vunpack.c.l.b16 %v1278
    %v2350 = vunpack.c.h.b16 %v1278
    %v2351 = vunpack.c.l.b16 %v1279
    %v2352 = vunpack.c.h.b16 %v1279
    %v2353 = vunpack.c.l.b16 %v1280
    %v2354 = vunpack.c.h.b16 %v1280
    %v2355 = vunpack.c.l.b16 %v1281
    %v2356 = vunpack.c.h.b16 %v1281
    %v2357 = vunpack.c.l.b16 %v1282
    %v2358 = vunpack.c.h.b16 %v1282
    %v2359 = vunpack.c.l.b16 %v1283
    %v2360 = vunpack.c.h.b16 %v1283
    %v2361 = vunpack.c.l.b16 %v1284
    %v2362 = vunpack.c.h.b16 %v1284
    %v2363 = vunpack.c.l.b16 %v1285
    %v2364 = vunpack.c.h.b16 %v1285
    %v2365 = vunpack.c.l.b16 %v1286
    %v2366 = vunpack.c.h.b16 %v1286
    %v2367 = vunpack.c.l.b16 %v1287
    %v2368 = vunpack.c.h.b16 %v1287
    %v2369 = vunpack.c.l.b16 %v1288
    %v2370 = vunpack.c.h.b16 %v1288
    %v2371 = vunpack.c.l.b16 %v1289
    %v2372 = vunpack.c.h.b16 %v1289
    %v2373 = vunpack.c.l.b16 %v1290
    %v2374 = vunpack.c.h.b16 %v1290
    %v2375 = vunpack.c.l.b16 %v1291
    %v2376 = vunpack.c.h.b16 %v1291
    %v2377 = vunpack.c.l.b16 %v1292
    %v2378 = vunpack.c.h.b16 %v1292
    %v2379 = vunpack.c.l.b16 %v1293
    %v2380 = vunpack.c.h.b16 %v1293
    %v2381 = vunpack.c.l.b16 %v1294
    %v2382 = vunpack.c.h.b16 %v1294
    %v2383 = vunpack.c.l.b16 %v1295
    %v2384 = vunpack.c.h.b16 %v1295
    %v2385 = vunpack.c.l.b16 %v1296
    %v2386 = vunpack.c.h.b16 %v1296
    %v2387 = vunpack.c.l.b16 %v1297
    %v2388 = vunpack.c.h.b16 %v1297
    %v2389 = vunpack.c.l.b16 %v1298
    %v2390 = vunpack.c.h.b16 %v1298
    %v2391 = vunpack.c.l.b16 %v1299
    %v2392 = vunpack.c.h.b16 %v1299
    %v2393 = vunpack.c.l.b16 %v1300
    %v2394 = vunpack.c.h.b16 %v1300
    %v2395 = vunpack.c.l.b16 %v1301
    %v2396 = vunpack.c.h.b16 %v1301
    %v2397 = vunpack.c.l.b16 %v1302
    %v2398 = vunpack.c.h.b16 %v1302
    %v2399 = vunpack.c.l.b16 %v1303
    %v2400 = vunpack.c.h.b16 %v1303
    %v2401 = vunpack.c.l.b16 %v1304
    %v2402 = vunpack.c.h.b16 %v1304
    %v2403 = vunpack.c.l.b16 %v1305
    %v2404 = vunpack.c.h.b16 %v1305
    %v2405 = vunpack.c.l.b16 %v1306
    %v2406 = vunpack.c.h.b16 %v1306
    %v2407 = vunpack.c.l.b16 %v1307
    %v2408 = vunpack.c.h.b16 %v1307
    %v2409 = vunpack.c.l.b16 %v1308
    %v2410 = vunpack.c.h.b16 %v1308
    %v2411 = vunpack.c.l.b16 %v1309
    %v2412 = vunpack.c.h.b16 %v1309
    %v2413 = vunpack.c.l.b16 %v1310
    %v2414 = vunpack.c.h.b16 %v1310
    %v2415 = vunpack.c.l.b16 %v1311
    %v2416 = vunpack.c.h.b16 %v1311
    %v2417 = vunpack.c.l.b16 %v1312
    %v2418 = vunpack.c.h.b16 %v1312
    %v2419 = vunpack.c.l.b16 %v1313
    %v2420 = vunpack.c.h.b16 %v1313
    %v2421 = vunpack.c.l.b16 %v1314
    %v2422 = vunpack.c.h.b16 %v1314
    %v2423 = vunpack.c.l.b16 %v1315
    %v2424 = vunpack.c.h.b16 %v1315
    %v2425 = vunpack.c.l.b16 %v1316
    %v2426 = vunpack.c.h.b16 %v1316
    %v2427 = vunpack.c.l.b16 %v1317
    %v2428 = vunpack.c.h.b16 %v1317
    %v2429 = vunpack.c.l.b16 %v1318
    %v2430 = vunpack.c.h.b16 %v1318
    %v2431 = vunpack.c.l.b16 %v1319
    %v2432 = vunpack.c.h.b16 %v1319
    %v2433 = vunpack.c.l.b16 %v1320
    %v2434 = vunpack.c.h.b16 %v1320
    %v2435 = vunpack.c.l.b16 %v1321
    %v2436 = vunpack.c.h.b16 %v1321
    %v2437 = vunpack.c.l.b16 %v1322
    %v2438 = vunpack.c.h.b16 %v1322
    %v2439 = vunpack.c.l.b16 %v1323
    %v2440 = vunpack.c.h.b16 %v1323
    %v2441 = vunpack.c.l.b16 %v1324
    %v2442 = vunpack.c.h.b16 %v1324
    %v2443 = vunpack.c.l.b16 %v1325
    %v2444 = vunpack.c.h.b16 %v1325
    %v2445 = vunpack.c.l.b16 %v1326
    %v2446 = vunpack.c.h.b16 %v1326
    %v2447 = vunpack.c.l.b16 %v1327
    %v2448 = vunpack.c.h.b16 %v1327
    %v2449 = vunpack.c.l.b16 %v1328
    %v2450 = vunpack.c.h.b16 %v1328
    %v2451 = vunpack.c.l.b16 %v1329
    %v2452 = vunpack.c.h.b16 %v1329
    %v2453 = vunpack.c.l.b16 %v1330
    %v2454 = vunpack.c.h.b16 %v1330
    %v2455 = vunpack.c.l.b16 %v1331
    %v2456 = vunpack.c.h.b16 %v1331
    %v2457 = vunpack.c.l.b16 %v1332
    %v2458 = vunpack.c.h.b16 %v1332
    %v2459 = vunpack.c.l.b16 %v1333
    %v2460 = vunpack.c.h.b16 %v1333
    %v2461 = vunpack.c.l.b16 %v1334
    %v2462 = vunpack.c.h.b16 %v1334
    %v2463 = vunpack.c.l.b16 %v1335
    %v2464 = vunpack.c.h.b16 %v1335
    %v2465 = vunpack.c.l.b16 %v1336
    %v2466 = vunpack.c.h.b16 %v1336
    %v2467 = vunpack.c.l.b16 %v1337
    %v2468 = vunpack.c.h.b16 %v1337
    %v2469 = vunpack.c.l.b16 %v1338
    %v2470 = vunpack.c.h.b16 %v1338
    %v2471 = vunpack.c.l.b16 %v1339
    %v2472 = vunpack.c.h.b16 %v1339
    %v2473 = vunpack.c.l.b16 %v1340
    %v2474 = vunpack.c.h.b16 %v1340
    %v2475 = vunpack.c.l.b16 %v1341
    %v2476 = vunpack.c.h.b16 %v1341
    %v2477 = vunpack.c.l.b16 %v1342
    %v2478 = vunpack.c.h.b16 %v1342
    %v2479 = vunpack.c.l.b16 %v1343
    %v2480 = vunpack.c.h.b16 %v1343
    %v2481 = vunpack.c.l.b16 %v1344
    %v2482 = vunpack.c.h.b16 %v1344
    %v2483 = vunpack.c.l.b16 %v1345
    %v2484 = vunpack.c.h.b16 %v1345
    %v2485 = vunpack.c.l.b16 %v1346
    %v2486 = vunpack.c.h.b16 %v1346
    %v2487 = vunpack.c.l.b16 %v1347
    %v2488 = vunpack.c.h.b16 %v1347
    %v2489 = vunpack.c.l.b16 %v1348
    %v2490 = vunpack.c.h.b16 %v1348
    %v2491 = vunpack.c.l.b16 %v1349
    %v2492 = vunpack.c.h.b16 %v1349
    %v2493 = vunpack.c.l.b16 %v1350
    %v2494 = vunpack.c.h.b16 %v1350
    %v2495 = vunpack.c.l.b16 %v1351
    %v2496 = vunpack.c.h.b16 %v1351
    %v2497 = vunpack.c.l.b16 %v1352
    %v2498 = vunpack.c.h.b16 %v1352
    %v2499 = vunpack.c.l.b16 %v1353
    %v2500 = vunpack.c.h.b16 %v1353
    %v2501 = vunpack.c.l.b16 %v1354
    %v2502 = vunpack.c.h.b16 %v1354
    %v2503 = vunpack.c.l.b16 %v1355
    %v2504 = vunpack.c.h.b16 %v1355
    %v2505 = vunpack.c.l.b16 %v1356
    %v2506 = vunpack.c.h.b16 %v1356
    %v2507 = vunpack.c.l.b16 %v1357
    %v2508 = vunpack.c.h.b16 %v1357
    %v2509 = vunpack.c.l.b16 %v1358
    %v2510 = vunpack.c.h.b16 %v1358
    %v2511 = vunpack.c.l.b16 %v1359
    %v2512 = vunpack.c.h.b16 %v1359
    %v2513 = vunpack.c.l.b16 %v1360
    %v2514 = vunpack.c.h.b16 %v1360
    %v2515 = vunpack.c.l.b16 %v1361
    %v2516 = vunpack.c.h.b16 %v1361
    %v2517 = vunpack.c.l.b16 %v1362
    %v2518 = vunpack.c.h.b16 %v1362
    %v2519 = vunpack.c.l.b16 %v1363
    %v2520 = vunpack.c.h.b16 %v1363
    %v2521 = vunpack.c.l.b16 %v1364
    %v2522 = vunpack.c.h.b16 %v1364
    %v2523 = vunpack.c.l.b16 %v1365
    %v2524 = vunpack.c.h.b16 %v1365
    %v2525 = vunpack.c.l.b16 %v1366
    %v2526 = vunpack.c.h.b16 %v1366
    %v2527 = vunpack.c.l.b16 %v1367
    %v2528 = vunpack.c.h.b16 %v1367
    %v2529 = vunpack.c.l.b16 %v1368
    %v2530 = vunpack.c.h.b16 %v1368
    %v2531 = vunpack.c.l.b16 %v1369
    %v2532 = vunpack.c.h.b16 %v1369
    %v2533 = vunpack.c.l.b16 %v1370
    %v2534 = vunpack.c.h.b16 %v1370
    %v2535 = vunpack.c.l.b16 %v1371
    %v2536 = vunpack.c.h.b16 %v1371
    %v2537 = vunpack.c.l.b16 %v1372
    %v2538 = vunpack.c.h.b16 %v1372
    %v2539 = vunpack.c.l.b16 %v1373
    %v2540 = vunpack.c.h.b16 %v1373
    %v2541 = vunpack.c.l.b16 %v1374
    %v2542 = vunpack.c.h.b16 %v1374
    %v2543 = vunpack.c.l.b16 %v1375
    %v2544 = vunpack.c.h.b16 %v1375
    %v2545 = vunpack.c.l.b16 %v1376
    %v2546 = vunpack.c.h.b16 %v1376
    %v2547 = vunpack.c.l.b16 %v1377
    %v2548 = vunpack.c.h.b16 %v1377
    %v2549 = vunpack.c.l.b16 %v1378
    %v2550 = vunpack.c.h.b16 %v1378
    %v2551 = vunpack.c.l.b16 %v1379
    %v2552 = vunpack.c.h.b16 %v1379
    %v2553 = vunpack.c.l.b16 %v1380
    %v2554 = vunpack.c.h.b16 %v1380
    %v2555 = vunpack.c.l.b16 %v1381
    %v2556 = vunpack.c.h.b16 %v1381
    %v2557 = vunpack.c.l.b16 %v1382
    %v2558 = vunpack.c.h.b16 %v1382
    %v2559 = vunpack.c.l.b16 %v1383
    %v2560 = vunpack.c.h.b16 %v1383
    %v2561 = vunpack.c.l.b16 %v1384
    %v2562 = vunpack.c.h.b16 %v1384
    %v2563 = vunpack.c.l.b16 %v1385
    %v2564 = vunpack.c.h.b16 %v1385
    %v2565 = vunpack.c.l.b16 %v1386
    %v2566 = vunpack.c.h.b16 %v1386
    %v2567 = vunpack.c.l.b16 %v1387
    %v2568 = vunpack.c.h.b16 %v1387
    %v2569 = vunpack.c.l.b16 %v1388
    %v2570 = vunpack.c.h.b16 %v1388
    %v2571 = vunpack.c.l.b16 %v1389
    %v2572 = vunpack.c.h.b16 %v1389
    %v2573 = vunpack.c.l.b16 %v1390
    %v2574 = vunpack.c.h.b16 %v1390
    %v2575 = vunpack.c.l.b16 %v1391
    %v2576 = vunpack.c.h.b16 %v1391
    %v2577 = vunpack.c.l.b16 %v1392
    %v2578 = vunpack.c.h.b16 %v1392
    %v2579 = vunpack.c.l.b16 %v1393
    %v2580 = vunpack.c.h.b16 %v1393
    %v2581 = vunpack.c.l.b16 %v1394
    %v2582 = vunpack.c.h.b16 %v1394
    %v2583 = vunpack.c.l.b16 %v1395
    %v2584 = vunpack.c.h.b16 %v1395
    %v2585 = vunpack.c.l.b16 %v1396
    %v2586 = vunpack.c.h.b16 %v1396
    %v2587 = vunpack.c.l.b16 %v1397
    %v2588 = vunpack.c.h.b16 %v1397
    %v2589 = vunpack.c.l.b16 %v1398
    %v2590 = vunpack.c.h.b16 %v1398
    %v2591 = vunpack.c.l.b16 %v1399
    %v2592 = vunpack.c.h.b16 %v1399
    %v2593 = vunpack.c.l.b16 %v1400
    %v2594 = vunpack.c.h.b16 %v1400
    %v2595 = vunpack.c.l.b16 %v1401
    %v2596 = vunpack.c.h.b16 %v1401
    %v2597 = vunpack.c.l.b16 %v1402
    %v2598 = vunpack.c.h.b16 %v1402
    %v2599 = vunpack.c.l.b16 %v1403
    %v2600 = vunpack.c.h.b16 %v1403
    %v2601 = vunpack.c.l.b16 %v1404
    %v2602 = vunpack.c.h.b16 %v1404
    %v2603 = vunpack.c.l.b16 %v1405
    %v2604 = vunpack.c.h.b16 %v1405
    %v2605 = vunpack.c.l.b16 %v1406
    %v2606 = vunpack.c.h.b16 %v1406
    %v2607 = vunpack.c.l.b16 %v1407
    %v2608 = vunpack.c.h.b16 %v1407
    %v2609 = vunpack.c.l.b16 %v1408
    %v2610 = vunpack.c.h.b16 %v1408
    %v2611 = vunpack.c.l.b16 %v1409
    %v2612 = vunpack.c.h.b16 %v1409
    %v2613 = vunpack.c.l.b16 %v1410
    %v2614 = vunpack.c.h.b16 %v1410
    %v2615 = vunpack.c.l.b16 %v1411
    %v2616 = vunpack.c.h.b16 %v1411
    %v2617 = vunpack.c.l.b16 %v1412
    %v2618 = vunpack.c.h.b16 %v1412
    %v2619 = vunpack.c.l.b16 %v1413
    %v2620 = vunpack.c.h.b16 %v1413
    %v2621 = vunpack.c.l.b16 %v1414
    %v2622 = vunpack.c.h.b16 %v1414
    %v2623 = vunpack.c.l.b16 %v1415
    %v2624 = vunpack.c.h.b16 %v1415
    %v2625 = vunpack.c.l.b16 %v1416
    %v2626 = vunpack.c.h.b16 %v1416
    %v2627 = vunpack.c.l.b16 %v1417
    %v2628 = vunpack.c.h.b16 %v1417
    %v2629 = vunpack.c.l.b16 %v1418
    %v2630 = vunpack.c.h.b16 %v1418
    %v2631 = vunpack.c.l.b16 %v1419
    %v2632 = vunpack.c.h.b16 %v1419
    %v2633 = vunpack.c.l.b16 %v1420
    %v2634 = vunpack.c.h.b16 %v1420
    %v2635 = vunpack.c.l.b16 %v1421
    %v2636 = vunpack.c.h.b16 %v1421
    %v2637 = vunpack.c.l.b16 %v1422
    %v2638 = vunpack.c.h.b16 %v1422
    %v2639 = vunpack.c.l.b16 %v1423
    %v2640 = vunpack.c.h.b16 %v1423
    %v2641 = vunpack.c.l.b16 %v1424
    %v2642 = vunpack.c.h.b16 %v1424
    %v2643 = vunpack.c.l.b16 %v1425
    %v2644 = vunpack.c.h.b16 %v1425
    %v2645 = vunpack.c.l.b16 %v1426
    %v2646 = vunpack.c.h.b16 %v1426
    %v2647 = vunpack.c.l.b16 %v1427
    %v2648 = vunpack.c.h.b16 %v1427
    %v2649 = vunpack.c.l.b16 %v1428
    %v2650 = vunpack.c.h.b16 %v1428
    %v2651 = vunpack.c.l.b16 %v1429
    %v2652 = vunpack.c.h.b16 %v1429
    %v2653 = vunpack.c.l.b16 %v1430
    %v2654 = vunpack.c.h.b16 %v1430
    %v2655 = vunpack.c.l.b16 %v1431
    %v2656 = vunpack.c.h.b16 %v1431
    %v2657 = vunpack.c.l.b16 %v1432
    %v2658 = vunpack.c.h.b16 %v1432
    %v2659 = vunpack.c.l.b16 %v1433
    %v2660 = vunpack.c.h.b16 %v1433
    %v2661 = vunpack.c.l.b16 %v1434
    %v2662 = vunpack.c.h.b16 %v1434
    %v2663 = vunpack.c.l.b16 %v1435
    %v2664 = vunpack.c.h.b16 %v1435
    %v2665 = vunpack.c.l.b16 %v1436
    %v2666 = vunpack.c.h.b16 %v1436
    %v2667 = vunpack.c.l.b16 %v1437
    %v2668 = vunpack.c.h.b16 %v1437
    %v2669 = vunpack.c.l.b16 %v1438
    %v2670 = vunpack.c.h.b16 %v1438
    %v2671 = vunpack.c.l.b16 %v1439
    %v2672 = vunpack.c.h.b16 %v1439
    %v2673 = vunpack.c.l.b16 %v1440
    %v2674 = vunpack.c.h.b16 %v1440
    %v2675 = vunpack.c.l.b16 %v1441
    %v2676 = vunpack.c.h.b16 %v1441
    %v2677 = vunpack.c.l.b16 %v1442
    %v2678 = vunpack.c.h.b16 %v1442
    %v2679 = vunpack.c.l.b16 %v1443
    %v2680 = vunpack.c.h.b16 %v1443
    %v2681 = vunpack.c.l.b16 %v1444
    %v2682 = vunpack.c.h.b16 %v1444
    %v2683 = vunpack.c.l.b16 %v1445
    %v2684 = vunpack.c.h.b16 %v1445
    %v2685 = vunpack.c.l.b16 %v1446
    %v2686 = vunpack.c.h.b16 %v1446
    %v2687 = vunpack.c.l.b16 %v1447
    %v2688 = vunpack.c.h.b16 %v1447
    %v2689 = vunpack.c.l.b16 %v1448
    %v2690 = vunpack.c.h.b16 %v1448
    %v2691 = vunpack.c.l.b16 %v1449
    %v2692 = vunpack.c.h.b16 %v1449
    %v2693 = vunpack.c.l.b16 %v1450
    %v2694 = vunpack.c.h.b16 %v1450
    %v2695 = vunpack.c.l.b16 %v1451
    %v2696 = vunpack.c.h.b16 %v1451
    %v2697 = vunpack.c.l.b16 %v1452
    %v2698 = vunpack.c.h.b16 %v1452
    %v2699 = vunpack.c.l.b16 %v1453
    %v2700 = vunpack.c.h.b16 %v1453
    %v2701 = vunpack.c.l.b16 %v1454
    %v2702 = vunpack.c.h.b16 %v1454
    %v2703 = vunpack.c.l.b16 %v1455
    %v2704 = vunpack.c.h.b16 %v1455
    %v2705 = vunpack.c.l.b16 %v1456
    %v2706 = vunpack.c.h.b16 %v1456
    %v2707 = vunpack.c.l.b16 %v1457
    %v2708 = vunpack.c.h.b16 %v1457
    %v2709 = vunpack.c.l.b16 %v1458
    %v2710 = vunpack.c.h.b16 %v1458
    %v2711 = vunpack.c.l.b16 %v1459
    %v2712 = vunpack.c.h.b16 %v1459
    %v2713 = vunpack.c.l.b16 %v1460
    %v2714 = vunpack.c.h.b16 %v1460
    %v2715 = vunpack.c.l.b16 %v1461
    %v2716 = vunpack.c.h.b16 %v1461
    %v2717 = vunpack.c.l.b16 %v1462
    %v2718 = vunpack.c.h.b16 %v1462
    %v2719 = vunpack.c.l.b16 %v1463
    %v2720 = vunpack.c.h.b16 %v1463
    %v2721 = vunpack.c.l.b16 %v1464
    %v2722 = vunpack.c.h.b16 %v1464
    %v2723 = vunpack.c.l.b16 %v1465
    %v2724 = vunpack.c.h.b16 %v1465
    %v2725 = vunpack.c.l.b16 %v1466
    %v2726 = vunpack.c.h.b16 %v1466
    %v2727 = vunpack.c.l.b16 %v1467
    %v2728 = vunpack.c.h.b16 %v1467
    %v2729 = vunpack.c.l.b16 %v1468
    %v2730 = vunpack.c.h.b16 %v1468
    %v2731 = vunpack.c.l.b16 %v1469
    %v2732 = vunpack.c.h.b16 %v1469
    %v2733 = vunpack.c.l.b16 %v1470
    %v2734 = vunpack.c.h.b16 %v1470
    %v2735 = vunpack.c.l.b16 %v1471
    %v2736 = vunpack.c.h.b16 %v1471
    %v2737 = vunpack.c.l.b16 %v1472
    %v2738 = vunpack.c.h.b16 %v1472
    %v2739 = vunpack.c.l.b16 %v1473
    %v2740 = vunpack.c.h.b16 %v1473
    %v2741 = vunpack.c.l.b16 %v1474
    %v2742 = vunpack.c.h.b16 %v1474
    %v2743 = vunpack.c.l.b16 %v1475
    %v2744 = vunpack.c.h.b16 %v1475
    %v2745 = vunpack.c.l.b16 %v1476
    %v2746 = vunpack.c.h.b16 %v1476
    %v2747 = vunpack.c.l.b16 %v1477
    %v2748 = vunpack.c.h.b16 %v1477
    %v2749 = vunpack.c.l.b16 %v1478
    %v2750 = vunpack.c.h.b16 %v1478
    %v2751 = vunpack.c.l.b16 %v1479
    %v2752 = vunpack.c.h.b16 %v1479
    %v2753 = vunpack.c.l.b16 %v1480
    %v2754 = vunpack.c.h.b16 %v1480
    %v2755 = vunpack.c.l.b16 %v1481
    %v2756 = vunpack.c.h.b16 %v1481
    %v2757 = vunpack.c.l.b16 %v1482
    %v2758 = vunpack.c.h.b16 %v1482
    %v2759 = vunpack.c.l.b16 %v1483
    %v2760 = vunpack.c.h.b16 %v1483
    %v2761 = vunpack.c.l.b16 %v1484
    %v2762 = vunpack.c.h.b16 %v1484
    %v2763 = vunpack.c.l.b16 %v1485
    %v2764 = vunpack.c.h.b16 %v1485
    %v2765 = vunpack.c.l.b16 %v1486
    %v2766 = vunpack.c.h.b16 %v1486
    %v2767 = vunpack.c.l.b16 %v1487
    %v2768 = vunpack.c.h.b16 %v1487
    %v2769 = vunpack.c.l.b16 %v1488
    %v2770 = vunpack.c.h.b16 %v1488
    %v2771 = vunpack.c.l.b16 %v1489
    %v2772 = vunpack.c.h.b16 %v1489
    %v2773 = vunpack.c.l.b16 %v1490
    %v2774 = vunpack.c.h.b16 %v1490
    %v2775 = vunpack.c.l.b16 %v1491
    %v2776 = vunpack.c.h.b16 %v1491
    %v2777 = vunpack.c.l.b16 %v1492
    %v2778 = vunpack.c.h.b16 %v1492
    %v2779 = vunpack.c.l.b16 %v1493
    %v2780 = vunpack.c.h.b16 %v1493
    %v2781 = vunpack.c.l.b16 %v1494
    %v2782 = vunpack.c.h.b16 %v1494
    %v2783 = vunpack.c.l.b16 %v1495
    %v2784 = vunpack.c.h.b16 %v1495
    %v2785 = vunpack.c.l.b16 %v1496
    %v2786 = vunpack.c.h.b16 %v1496
    %v2787 = vunpack.c.l.b16 %v1497
    %v2788 = vunpack.c.h.b16 %v1497
    %v2789 = vunpack.c.l.b16 %v1498
    %v2790 = vunpack.c.h.b16 %v1498
    %v2791 = vunpack.c.l.b16 %v1499
    %v2792 = vunpack.c.h.b16 %v1499
    %v2793 = vunpack.c.l.b16 %v1500
    %v2794 = vunpack.c.h.b16 %v1500
    %v2795 = vunpack.c.l.b16 %v1501
    %v2796 = vunpack.c.h.b16 %v1501
    %v2797 = vunpack.c.l.b16 %v1502
    %v2798 = vunpack.c.h.b16 %v1502
    %v2799 = vunpack.c.l.b16 %v1503
    %v2800 = vunpack.c.h.b16 %v1503
    %v2801 = vunpack.c.l.b16 %v1504
    %v2802 = vunpack.c.h.b16 %v1504
    %v2803 = vunpack.c.l.b16 %v1505
    %v2804 = vunpack.c.h.b16 %v1505
    %v2805 = vunpack.c.l.b16 %v1506
    %v2806 = vunpack.c.h.b16 %v1506
    %v2807 = vunpack.c.l.b16 %v1507
    %v2808 = vunpack.c.h.b16 %v1507
    %v2809 = vunpack.c.l.b16 %v1508
    %v2810 = vunpack.c.h.b16 %v1508
    %v2811 = vunpack.c.l.b16 %v1509
    %v2812 = vunpack.c.h.b16 %v1509
    %v2813 = vunpack.c.l.b16 %v1510
    %v2814 = vunpack.c.h.b16 %v1510
    %v2815 = vunpack.c.l.b16 %v1511
    %v2816 = vunpack.c.h.b16 %v1511
    %v2817 = vunpack.c.l.b16 %v1512
    %v2818 = vunpack.c.h.b16 %v1512
    %v2819 = vunpack.c.l.b16 %v1513
    %v2820 = vunpack.c.h.b16 %v1513
    %v2821 = vunpack.c.l.b16 %v1514
    %v2822 = vunpack.c.h.b16 %v1514
    %v2823 = vunpack.c.l.b16 %v1515
    %v2824 = vunpack.c.h.b16 %v1515
    %v2825 = vunpack.c.l.b16 %v1516
    %v2826 = vunpack.c.h.b16 %v1516
    %v2827 = vunpack.c.l.b16 %v1517
    %v2828 = vunpack.c.h.b16 %v1517
    %v2829 = vunpack.c.l.b16 %v1518
    %v2830 = vunpack.c.h.b16 %v1518
    %v2831 = vunpack.c.l.b16 %v1519
    %v2832 = vunpack.c.h.b16 %v1519
    %v2833 = vunpack.c.l.b16 %v1520
    %v2834 = vunpack.c.h.b16 %v1520
    %v2835 = vunpack.c.l.b16 %v1521
    %v2836 = vunpack.c.h.b16 %v1521
    %v2837 = vunpack.c.l.b16 %v1522
    %v2838 = vunpack.c.h.b16 %v1522
    %v2839 = vunpack.c.l.b16 %v1523
    %v2840 = vunpack.c.h.b16 %v1523
    %v2841 = vunpack.c.l.b16 %v1524
    %v2842 = vunpack.c.h.b16 %v1524
    %v2843 = vunpack.c.l.b16 %v1525
    %v2844 = vunpack.c.h.b16 %v1525
    %v2845 = vunpack.c.l.b16 %v1526
    %v2846 = vunpack.c.h.b16 %v1526
    %v2847 = vunpack.c.l.b16 %v1527
    %v2848 = vunpack.c.h.b16 %v1527
    %v2849 = vunpack.c.l.b16 %v1528
    %v2850 = vunpack.c.h.b16 %v1528
    %v2851 = vunpack.c.l.b16 %v1529
    %v2852 = vunpack.c.h.b16 %v1529
    %v2853 = vunpack.c.l.b16 %v1530
    %v2854 = vunpack.c.h.b16 %v1530
    %v2855 = vunpack.c.l.b16 %v1531
    %v2856 = vunpack.c.h.b16 %v1531
    %v2857 = vunpack.c.l.b16 %v1532
    %v2858 = vunpack.c.h.b16 %v1532
    %v2859 = vunpack.c.l.b16 %v1533
    %v2860 = vunpack.c.h.b16 %v1533
    %v2861 = vunpack.c.l.b16 %v1534
    %v2862 = vunpack.c.h.b16 %v1534
    %v2863 = vunpack.c.l.b16 %v1535
    %v2864 = vunpack.c.h.b16 %v1535
    %v2865 = vunpack.c.l.b16 %v1536
    %v2866 = vunpack.c.h.b16 %v1536
    %v2867 = vunpack.c.l.b16 %v1537
    %v2868 = vunpack.c.h.b16 %v1537
    %v2869 = vunpack.c.l.b16 %v1538
    %v2870 = vunpack.c.h.b16 %v1538
    %v2871 = vunpack.c.l.b16 %v1539
    %v2872 = vunpack.c.h.b16 %v1539
    %v2873 = vunpack.c.l.b16 %v1540
    %v2874 = vunpack.c.h.b16 %v1540
    %v2875 = vunpack.c.l.b16 %v1541
    %v2876 = vunpack.c.h.b16 %v1541
    %v2877 = vunpack.c.l.b16 %v1542
    %v2878 = vunpack.c.h.b16 %v1542
    %v2879 = vunpack.c.l.b16 %v1543
    %v2880 = vunpack.c.h.b16 %v1543
    %v2881 = vunpack.c.l.b16 %v1544
    %v2882 = vunpack.c.h.b16 %v1544
    %v2883 = vunpack.c.l.b16 %v1545
    %v2884 = vunpack.c.h.b16 %v1545
    %v2885 = vunpack.c.l.b16 %v1546
    %v2886 = vunpack.c.h.b16 %v1546
    %v2887 = vunpack.c.l.b16 %v1547
    %v2888 = vunpack.c.h.b16 %v1547
    %v2889 = vunpack.c.l.b16 %v1548
    %v2890 = vunpack.c.h.b16 %v1548
    %v2891 = vunpack.c.l.b16 %v1549
    %v2892 = vunpack.c.h.b16 %v1549
    %v2893 = vunpack.c.l.b16 %v1550
    %v2894 = vunpack.c.h.b16 %v1550
    %v2895 = vunpack.c.l.b16 %v1551
    %v2896 = vunpack.c.h.b16 %v1551
    %v2897 = vunpack.c.l.b16 %v1552
    %v2898 = vunpack.c.h.b16 %v1552
    %v2899 = vunpack.c.l.b16 %v1553
    %v2900 = vunpack.c.h.b16 %v1553
    %v2901 = vunpack.c.l.b16 %v1554
    %v2902 = vunpack.c.h.b16 %v1554
    %v2903 = vunpack.c.l.b16 %v1555
    %v2904 = vunpack.c.h.b16 %v1555
    %v2905 = vunpack.c.l.b16 %v1556
    %v2906 = vunpack.c.h.b16 %v1556
    %v2907 = vunpack.c.l.b16 %v1557
    %v2908 = vunpack.c.h.b16 %v1557
    %v2909 = vunpack.c.l.b16 %v1558
    %v2910 = vunpack.c.h.b16 %v1558
    %v2911 = vunpack.c.l.b16 %v1559
    %v2912 = vunpack.c.h.b16 %v1559
    %v2913 = vunpack.c.l.b16 %v1560
    %v2914 = vunpack.c.h.b16 %v1560
    %v2915 = vunpack.c.l.b16 %v1561
    %v2916 = vunpack.c.h.b16 %v1561
    %v2917 = vunpack.c.l.b16 %v1562
    %v2918 = vunpack.c.h.b16 %v1562
    %v2919 = vunpack.c.l.b16 %v1563
    %v2920 = vunpack.c.h.b16 %v1563
    %v2921 = vunpack.c.l.b16 %v1564
    %v2922 = vunpack.c.h.b16 %v1564
    %v2923 = vunpack.c.l.b16 %v1565
    %v2924 = vunpack.c.h.b16 %v1565
    %v2925 = vunpack.c.l.b16 %v1566
    %v2926 = vunpack.c.h.b16 %v1566
    %v2927 = vunpack.c.l.b16 %v1567
    %v2928 = vunpack.c.h.b16 %v1567
    %v2929 = vunpack.c.l.b16 %v1568
    %v2930 = vunpack.c.h.b16 %v1568
    %v2931 = vunpack.c.l.b16 %v1569
    %v2932 = vunpack.c.h.b16 %v1569
    %v2933 = vunpack.c.l.b16 %v1570
    %v2934 = vunpack.c.h.b16 %v1570
    %v2935 = vunpack.c.l.b16 %v1571
    %v2936 = vunpack.c.h.b16 %v1571
    %v2937 = vunpack.c.l.b16 %v1572
    %v2938 = vunpack.c.h.b16 %v1572
    %v2939 = vunpack.c.l.b16 %v1573
    %v2940 = vunpack.c.h.b16 %v1573
    %v2941 = vunpack.c.l.b16 %v1574
    %v2942 = vunpack.c.h.b16 %v1574
    %v2943 = vunpack.c.l.b16 %v1575
    %v2944 = vunpack.c.h.b16 %v1575
    %v2945 = vunpack.c.l.b16 %v1576
    %v2946 = vunpack.c.h.b16 %v1576
    %v2947 = vunpack.c.l.b16 %v1577
    %v2948 = vunpack.c.h.b16 %v1577
    %v2949 = vunpack.c.l.b16 %v1578
    %v2950 = vunpack.c.h.b16 %v1578
    %v2951 = vunpack.c.l.b16 %v1579
    %v2952 = vunpack.c.h.b16 %v1579
    %v2953 = vunpack.c.l.b16 %v1580
    %v2954 = vunpack.c.h.b16 %v1580
    %v2955 = vunpack.c.l.b16 %v1581
    %v2956 = vunpack.c.h.b16 %v1581
    %v2957 = vunpack.c.l.b16 %v1582
    %v2958 = vunpack.c.h.b16 %v1582
    %v2959 = vunpack.c.l.b16 %v1583
    %v2960 = vunpack.c.h.b16 %v1583
    %v2961 = vunpack.c.l.b16 %v1584
    %v2962 = vunpack.c.h.b16 %v1584
    %v2963 = vunpack.c.l.b16 %v1585
    %v2964 = vunpack.c.h.b16 %v1585
    %v2965 = vunpack.c.l.b16 %v1586
    %v2966 = vunpack.c.h.b16 %v1586
    %v2967 = vunpack.c.l.b16 %v1587
    %v2968 = vunpack.c.h.b16 %v1587
    %v2969 = vunpack.c.l.b16 %v1588
    %v2970 = vunpack.c.h.b16 %v1588
    %v2971 = vunpack.c.l.b16 %v1589
    %v2972 = vunpack.c.h.b16 %v1589
    %v2973 = vunpack.c.l.b16 %v1590
    %v2974 = vunpack.c.h.b16 %v1590
    %v2975 = vunpack.c.l.b16 %v1591
    %v2976 = vunpack.c.h.b16 %v1591
    %v2977 = vunpack.c.l.b16 %v1592
    %v2978 = vunpack.c.h.b16 %v1592
    %v2979 = vunpack.c.l.b16 %v1593
    %v2980 = vunpack.c.h.b16 %v1593
    %v2981 = vunpack.c.l.b16 %v1594
    %v2982 = vunpack.c.h.b16 %v1594
    %v2983 = vunpack.c.l.b16 %v1595
    %v2984 = vunpack.c.h.b16 %v1595
    %v2985 = vunpack.c.l.b16 %v1596
    %v2986 = vunpack.c.h.b16 %v1596
    %v2987 = vunpack.c.l.b16 %v1597
    %v2988 = vunpack.c.h.b16 %v1597
    %v2989 = vunpack.c.l.b16 %v1598
    %v2990 = vunpack.c.h.b16 %v1598
    %v2991 = vunpack.c.l.b16 %v1599
    %v2992 = vunpack.c.h.b16 %v1599
    %v2993 = vunpack.c.l.b16 %v1600
    %v2994 = vunpack.c.h.b16 %v1600
    %v2995 = vunpack.c.l.b16 %v1601
    %v2996 = vunpack.c.h.b16 %v1601
    %v2997 = vunpack.c.l.b16 %v1602
    %v2998 = vunpack.c.h.b16 %v1602
    %v2999 = vunpack.c.l.b16 %v1603
    %v3000 = vunpack.c.h.b16 %v1603
    %v3001 = vunpack.c.l.b16 %v1604
    %v3002 = vunpack.c.h.b16 %v1604
    %v3003 = vunpack.c.l.b16 %v1605
    %v3004 = vunpack.c.h.b16 %v1605
    %v3005 = vunpack.c.l.b16 %v1606
    %v3006 = vunpack.c.h.b16 %v1606
    %v3007 = vunpack.c.l.b16 %v1607
    %v3008 = vunpack.c.h.b16 %v1607
    %v3009 = vunpack.c.l.b16 %v1608
    %v3010 = vunpack.c.h.b16 %v1608
    %v3011 = vunpack.c.l.b16 %v1609
    %v3012 = vunpack.c.h.b16 %v1609
    %v3013 = vunpack.c.l.b16 %v1610
    %v3014 = vunpack.c.h.b16 %v1610
    %v3015 = vunpack.c.l.b16 %v1611
    %v3016 = vunpack.c.h.b16 %v1611
    %v3017 = vunpack.c.l.b16 %v1612
    %v3018 = vunpack.c.h.b16 %v1612
    %v3019 = vunpack.c.l.b16 %v1613
    %v3020 = vunpack.c.h.b16 %v1613
    %v3021 = vunpack.c.l.b16 %v1614
    %v3022 = vunpack.c.h.b16 %v1614
    %v3023 = vunpack.c.l.b16 %v1615
    %v3024 = vunpack.c.h.b16 %v1615
    %v3025 = vunpack.c.l.b16 %v1616
    %v3026 = vunpack.c.h.b16 %v1616
    %v3027 = vunpack.c.l.b16 %v1617
    %v3028 = vunpack.c.h.b16 %v1617
    %v3029 = vunpack.c.l.b16 %v1618
    %v3030 = vunpack.c.h.b16 %v1618
    %v3031 = vunpack.c.l.b16 %v1619
    %v3032 = vunpack.c.h.b16 %v1619
    %v3033 = vunpack.c.l.b16 %v1620
    %v3034 = vunpack.c.h.b16 %v1620
    %v3035 = vunpack.c.l.b16 %v1621
    %v3036 = vunpack.c.h.b16 %v1621
    %v3037 = vunpack.c.l.b16 %v1622
    %v3038 = vunpack.c.h.b16 %v1622
    %v3039 = vunpack.c.l.b16 %v1623
    %v3040 = vunpack.c.h.b16 %v1623
    %v3041 = vunpack.c.l.b16 %v1624
    %v3042 = vunpack.c.h.b16 %v1624
    %v3043 = vunpack.c.l.b16 %v1625
    %v3044 = vunpack.c.h.b16 %v1625
    %v3045 = vunpack.c.l.b16 %v1626
    %v3046 = vunpack.c.h.b16 %v1626
    %v3047 = vunpack.c.l.b16 %v1627
    %v3048 = vunpack.c.h.b16 %v1627
    %v3049 = vunpack.c.l.b16 %v1628
    %v3050 = vunpack.c.h.b16 %v1628
    %v3051 = vunpack.c.l.b16 %v1629
    %v3052 = vunpack.c.h.b16 %v1629
    %v3053 = vunpack.c.l.b16 %v1630
    %v3054 = vunpack.c.h.b16 %v1630
    %v3055 = vunpack.c.l.b16 %v1631
    %v3056 = vunpack.c.h.b16 %v1631
    %v3057 = vunpack.c.l.b16 %v1632
    %v3058 = vunpack.c.h.b16 %v1632
    %v3059 = vunpack.c.l.b16 %v1633
    %v3060 = vunpack.c.h.b16 %v1633
    %v3061 = vunpack.c.l.b16 %v1634
    %v3062 = vunpack.c.h.b16 %v1634
    %v3063 = vunpack.c.l.b16 %v1635
    %v3064 = vunpack.c.h.b16 %v1635
    %v3065 = vunpack.c.l.b16 %v1636
    %v3066 = vunpack.c.h.b16 %v1636
    %v3067 = vunpack.c.l.b16 %v1637
    %v3068 = vunpack.c.h.b16 %v1637
    %v3069 = vunpack.c.l.b16 %v1638
    %v3070 = vunpack.c.h.b16 %v1638
    %v3071 = vunpack.c.l.b16 %v1639
    %v3072 = vunpack.c.h.b16 %v1639
    %v3073 = vunpack.c.l.b16 %v1640
    %v3074 = vunpack.c.h.b16 %v1640
    %v3075 = vunpack.c.l.b16 %v1641
    %v3076 = vunpack.c.h.b16 %v1641
    %v3077 = vunpack.c.l.b16 %v1642
    %v3078 = vunpack.c.h.b16 %v1642
    %v3079 = vunpack.c.l.b16 %v1643
    %v3080 = vunpack.c.h.b16 %v1643
    %v3081 = vunpack.c.l.b16 %v1644
    %v3082 = vunpack.c.h.b16 %v1644
    %v3083 = vunpack.c.l.b16 %v1645
    %v3084 = vunpack.c.h.b16 %v1645
    %v3085 = vunpack.c.l.b16 %v1646
    %v3086 = vunpack.c.h.b16 %v1646
    %v3087 = vunpack.c.l.b16 %v1647
    %v3088 = vunpack.c.h.b16 %v1647
    %v3089 = vunpack.c.l.b16 %v1648
    %v3090 = vunpack.c.h.b16 %v1648
    %v3091 = vunpack.c.l.b16 %v1649
    %v3092 = vunpack.c.h.b16 %v1649
    %v3093 = vunpack.c.l.b16 %v1650
    %v3094 = vunpack.c.h.b16 %v1650
    %v3095 = vunpack.c.l.b16 %v1651
    %v3096 = vunpack.c.h.b16 %v1651
    %v3097 = vunpack.c.l.b16 %v1652
    %v3098 = vunpack.c.h.b16 %v1652
    %v3099 = vunpack.c.l.b16 %v1653
    %v3100 = vunpack.c.h.b16 %v1653
    %v3101 = vunpack.c.l.b16 %v1654
    %v3102 = vunpack.c.h.b16 %v1654
    %v3103 = vunpack.c.l.b16 %v1655
    %v3104 = vunpack.c.h.b16 %v1655
    %v3105 = vunpack.c.l.b16 %v1656
    %v3106 = vunpack.c.h.b16 %v1656
    %v3107 = vunpack.c.l.b16 %v1657
    %v3108 = vunpack.c.h.b16 %v1657
    %v3109 = vunpack.c.l.b16 %v1658
    %v3110 = vunpack.c.h.b16 %v1658
    %v3111 = vunpack.c.l.b16 %v1659
    %v3112 = vunpack.c.h.b16 %v1659
    %v3113 = vunpack.c.l.b16 %v1660
    %v3114 = vunpack.c.h.b16 %v1660
    %v3115 = vunpack.c.l.b16 %v1661
    %v3116 = vunpack.c.h.b16 %v1661
    %v3117 = vunpack.c.l.b16 %v1662
    %v3118 = vunpack.c.h.b16 %v1662
    %v3119 = vunpack.c.l.b16 %v1663
    %v3120 = vunpack.c.h.b16 %v1663
    %v3121 = vunpack.c.l.b16 %v1664
    %v3122 = vunpack.c.h.b16 %v1664
    %v3123 = vunpack.c.l.b16 %v1665
    %v3124 = vunpack.c.h.b16 %v1665
    %v3125 = vunpack.c.l.b16 %v1666
    %v3126 = vunpack.c.h.b16 %v1666
    %v3127 = vunpack.c.l.b16 %v1667
    %v3128 = vunpack.c.h.b16 %v1667
    %v3129 = vunpack.c.l.b16 %v1668
    %v3130 = vunpack.c.h.b16 %v1668
    %v3131 = vunpack.c.l.b16 %v1669
    %v3132 = vunpack.c.h.b16 %v1669
    %v3133 = vunpack.c.l.b16 %v1670
    %v3134 = vunpack.c.h.b16 %v1670
    %v3135 = vunpack.c.l.b16 %v1671
    %v3136 = vunpack.c.h.b16 %v1671
    %v3137 = vunpack.c.l.b16 %v1672
    %v3138 = vunpack.c.h.b16 %v1672
    %v3139 = vunpack.c.l.b16 %v1673
    %v3140 = vunpack.c.h.b16 %v1673
    %v3141 = vunpack.c.l.b16 %v1674
    %v3142 = vunpack.c.h.b16 %v1674
    %v3143 = vunpack.c.l.b16 %v1675
    %v3144 = vunpack.c.h.b16 %v1675
    %v3145 = vunpack.c.l.b16 %v1676
    %v3146 = vunpack.c.h.b16 %v1676
    %v3147 = vunpack.c.l.b16 %v1677
    %v3148 = vunpack.c.h.b16 %v1677
    %v3149 = vunpack.c.l.b16 %v1678
    %v3150 = vunpack.c.h.b16 %v1678
    %v3151 = vunpack.c.l.b16 %v1679
    %v3152 = vunpack.c.h.b16 %v1679
    %v3153 = vunpack.c.l.b16 %v1680
    %v3154 = vunpack.c.h.b16 %v1680
    %v3155 = vunpack.c.l.b16 %v1681
    %v3156 = vunpack.c.h.b16 %v1681
    %v3157 = vunpack.c.l.b16 %v1682
    %v3158 = vunpack.c.h.b16 %v1682
    %v3159 = vunpack.c.l.b16 %v1683
    %v3160 = vunpack.c.h.b16 %v1683
    %v3161 = vunpack.c.l.b16 %v1684
    %v3162 = vunpack.c.h.b16 %v1684
    %v3163 = vunpack.c.l.b16 %v1685
    %v3164 = vunpack.c.h.b16 %v1685
    %v3165 = vunpack.c.l.b16 %v1686
    %v3166 = vunpack.c.h.b16 %v1686
    %v3167 = vunpack.c.l.b16 %v1687
    %v3168 = vunpack.c.h.b16 %v1687
    %v3169 = vunpack.c.l.b16 %v1688
    %v3170 = vunpack.c.h.b16 %v1688
    %v3171 = vunpack.c.l.b16 %v1689
    %v3172 = vunpack.c.h.b16 %v1689
    %v3173 = vunpack.c.l.b16 %v1690
    %v3174 = vunpack.c.h.b16 %v1690
    %v3175 = vunpack.c.l.b16 %v1691
    %v3176 = vunpack.c.h.b16 %v1691
    %v3177 = vunpack.c.l.b16 %v1692
    %v3178 = vunpack.c.h.b16 %v1692
    %v3179 = vunpack.c.l.b16 %v1693
    %v3180 = vunpack.c.h.b16 %v1693
    %v3181 = vunpack.c.l.b16 %v1694
    %v3182 = vunpack.c.h.b16 %v1694
    %v3183 = vunpack.c.l.b16 %v1695
    %v3184 = vunpack.c.h.b16 %v1695
    %v3185 = vunpack.c.l.b16 %v1696
    %v3186 = vunpack.c.h.b16 %v1696
    %v3187 = vunpack.c.l.b16 %v1697
    %v3188 = vunpack.c.h.b16 %v1697
    %v3189 = vunpack.c.l.b16 %v1698
    %v3190 = vunpack.c.h.b16 %v1698
    %v3191 = vunpack.c.l.b16 %v1699
    %v3192 = vunpack.c.h.b16 %v1699
    %v3193 = vunpack.c.l.b16 %v1700
    %v3194 = vunpack.c.h.b16 %v1700
    %v3195 = vunpack.c.l.b16 %v1701
    %v3196 = vunpack.c.h.b16 %v1701
    %v3197 = vunpack.c.l.b16 %v1702
    %v3198 = vunpack.c.h.b16 %v1702
    %v3199 = vunpack.c.l.b16 %v1703
    %v3200 = vunpack.c.h.b16 %v1703
    %v3201 = vunpack.c.l.b16 %v1704
    %v3202 = vunpack.c.h.b16 %v1704
    %v3203 = vunpack.c.l.b16 %v1705
    %v3204 = vunpack.c.h.b16 %v1705
    %v3205 = vunpack.c.l.b16 %v1706
    %v3206 = vunpack.c.h.b16 %v1706
    %v3207 = vunpack.c.l.b16 %v1707
    %v3208 = vunpack.c.h.b16 %v1707
    %v3209 = vunpack.c.l.b16 %v1708
    %v3210 = vunpack.c.h.b16 %v1708
    %v3211 = vunpack.c.l.b16 %v1709
    %v3212 = vunpack.c.h.b16 %v1709
    %v3213 = vunpack.c.l.b16 %v1710
    %v3214 = vunpack.c.h.b16 %v1710
    %v3215 = vunpack.c.l.b16 %v1711
    %v3216 = vunpack.c.h.b16 %v1711
    %v3217 = vunpack.c.l.b16 %v1712
    %v3218 = vunpack.c.h.b16 %v1712
    %v3219 = vunpack.c.l.b16 %v1713
    %v3220 = vunpack.c.h.b16 %v1713
    %v3221 = vunpack.c.l.b16 %v1714
    %v3222 = vunpack.c.h.b16 %v1714
    %v3223 = vunpack.c.l.b16 %v1715
    %v3224 = vunpack.c.h.b16 %v1715
    %v3225 = vunpack.c.l.b16 %v1716
    %v3226 = vunpack.c.h.b16 %v1716
    %v3227 = vunpack.c.l.b16 %v1717
    %v3228 = vunpack.c.h.b16 %v1717
    %v3229 = vunpack.c.l.b16 %v1718
    %v3230 = vunpack.c.h.b16 %v1718
    %v3231 = vunpack.c.l.b16 %v1719
    %v3232 = vunpack.c.h.b16 %v1719
    %v3233 = vunpack.c.l.b16 %v1720
    %v3234 = vunpack.c.h.b16 %v1720
    %v3235 = vunpack.c.l.b16 %v1721
    %v3236 = vunpack.c.h.b16 %v1721
    %v3237 = vunpack.c.l.b16 %v1722
    %v3238 = vunpack.c.h.b16 %v1722
    %v3239 = vunpack.c.l.b16 %v1723
    %v3240 = vunpack.c.h.b16 %v1723
    %v3241 = vunpack.c.l.b16 %v1724
    %v3242 = vunpack.c.h.b16 %v1724
    %v3243 = vunpack.c.l.b16 %v1725
    %v3244 = vunpack.c.h.b16 %v1725
    %v3245 = vunpack.c.l.b16 %v1726
    %v3246 = vunpack.c.h.b16 %v1726
    %v3247 = vunpack.c.l.b16 %v1727
    %v3248 = vunpack.c.h.b16 %v1727
    %v3249 = vunpack.c.l.b16 %v1728
    %v3250 = vunpack.c.h.b16 %v1728
    %v3251 = vunpack.c.l.b16 %v1729
    %v3252 = vunpack.c.h.b16 %v1729
    %v3253 = vunpack.c.l.b16 %v1730
    %v3254 = vunpack.c.h.b16 %v1730
    %v3255 = vunpack.c.l.b16 %v1731
    %v3256 = vunpack.c.h.b16 %v1731
    %v3257 = vunpack.c.l.b16 %v1732
    %v3258 = vunpack.c.h.b16 %v1732
    %v3259 = vunpack.c.l.b16 %v1733
    %v3260 = vunpack.c.h.b16 %v1733
    %v3261 = vunpack.c.l.b16 %v1734
    %v3262 = vunpack.c.h.b16 %v1734
    %v3263 = vunpack.c.l.b16 %v1735
    %v3264 = vunpack.c.h.b16 %v1735
    %v3265 = vunpack.c.l.b16 %v1736
    %v3266 = vunpack.c.h.b16 %v1736
    %v3267 = vunpack.c.l.b16 %v1737
    %v3268 = vunpack.c.h.b16 %v1737
    %v3269 = vunpack.c.l.b16 %v1738
    %v3270 = vunpack.c.h.b16 %v1738
    %v3271 = vunpack.c.l.b16 %v1739
    %v3272 = vunpack.c.h.b16 %v1739
    %v3273 = vunpack.c.l.b16 %v1740
    %v3274 = vunpack.c.h.b16 %v1740
    %v3275 = vunpack.c.l.b16 %v1741
    %v3276 = vunpack.c.h.b16 %v1741
    %v3277 = vunpack.c.l.b16 %v1742
    %v3278 = vunpack.c.h.b16 %v1742
    %v3279 = vunpack.c.l.b16 %v1743
    %v3280 = vunpack.c.h.b16 %v1743
    %v3281 = vunpack.c.l.b16 %v1744
    %v3282 = vunpack.c.h.b16 %v1744
    %v3283 = vunpack.c.l.b16 %v1745
    %v3284 = vunpack.c.h.b16 %v1745
    %v3285 = vunpack.c.l.b16 %v1746
    %v3286 = vunpack.c.h.b16 %v1746
    %v3287 = vunpack.c.l.b16 %v1747
    %v3288 = vunpack.c.h.b16 %v1747
    %v3289 = vunpack.c.l.b16 %v1748
    %v3290 = vunpack.c.h.b16 %v1748
    %v3291 = vunpack.c.l.b16 %v1749
    %v3292 = vunpack.c.h.b16 %v1749
    %v3293 = vunpack.c.l.b16 %v1750
    %v3294 = vunpack.c.h.b16 %v1750
    %v3295 = vunpack.c.l.b16 %v1751
    %v3296 = vunpack.c.h.b16 %v1751
    %v3297 = vunpack.c.l.b16 %v1752
    %v3298 = vunpack.c.h.b16 %v1752
    %v3299 = vunpack.c.l.b16 %v1753
    %v3300 = vunpack.c.h.b16 %v1753
    %v3301 = vunpack.c.l.b16 %v1754
    %v3302 = vunpack.c.h.b16 %v1754
    %v3303 = vunpack.c.l.b16 %v1755
    %v3304 = vunpack.c.h.b16 %v1755
    %v3305 = vunpack.c.l.b16 %v1756
    %v3306 = vunpack.c.h.b16 %v1756
    %v3307 = vunpack.c.l.b16 %v1757
    %v3308 = vunpack.c.h.b16 %v1757
    %v3309 = vunpack.c.l.b16 %v1758
    %v3310 = vunpack.c.h.b16 %v1758
    %v3311 = vunpack.c.l.b16 %v1759
    %v3312 = vunpack.c.h.b16 %v1759
    %v3313 = vunpack.c.l.b16 %v1760
    %v3314 = vunpack.c.h.b16 %v1760
    %v3315 = vunpack.c.l.b16 %v1761
    %v3316 = vunpack.c.h.b16 %v1761
    %v3317 = vunpack.c.l.b16 %v1762
    %v3318 = vunpack.c.h.b16 %v1762
    %v3319 = vunpack.c.l.b16 %v1763
    %v3320 = vunpack.c.h.b16 %v1763
    %v3321 = vunpack.c.l.b16 %v1764
    %v3322 = vunpack.c.h.b16 %v1764
    %v3323 = vunpack.c.l.b16 %v1765
    %v3324 = vunpack.c.h.b16 %v1765
    %v3325 = vunpack.c.l.b16 %v1766
    %v3326 = vunpack.c.h.b16 %v1766
    %v3327 = vunpack.c.l.b16 %v1767
    %v3328 = vunpack.c.h.b16 %v1767
    %v3329 = vunpack.c.l.b16 %v1768
    %v3330 = vunpack.c.h.b16 %v1768
    %v3331 = vunpack.c.l.b16 %v1769
    %v3332 = vunpack.c.h.b16 %v1769
    %v3333 = vunpack.c.l.b16 %v1770
    %v3334 = vunpack.c.h.b16 %v1770
    %v3335 = vunpack.c.l.b16 %v1771
    %v3336 = vunpack.c.h.b16 %v1771
    %v3337 = vunpack.c.l.b16 %v1772
    %v3338 = vunpack.c.h.b16 %v1772
    %v3339 = vunpack.c.l.b16 %v1773
    %v3340 = vunpack.c.h.b16 %v1773
    %v3341 = vunpack.c.l.b16 %v1774
    %v3342 = vunpack.c.h.b16 %v1774
    %v3343 = vunpack.c.l.b16 %v1775
    %v3344 = vunpack.c.h.b16 %v1775
    %v3345 = vunpack.c.l.b16 %v1776
    %v3346 = vunpack.c.h.b16 %v1776
    %v3347 = vunpack.c.l.b16 %v1777
    %v3348 = vunpack.c.h.b16 %v1777
    %v3349 = vunpack.c.l.b16 %v1778
    %v3350 = vunpack.c.h.b16 %v1778
    %v3351 = vunpack.c.l.b16 %v1779
    %v3352 = vunpack.c.h.b16 %v1779
    %v3353 = vunpack.c.l.b16 %v1780
    %v3354 = vunpack.c.h.b16 %v1780
    %v3355 = vunpack.c.l.b16 %v1781
    %v3356 = vunpack.c.h.b16 %v1781
    %v3357 = vunpack.c.l.b16 %v1782
    %v3358 = vunpack.c.h.b16 %v1782
    %v3359 = vunpack.c.l.b16 %v1783
    %v3360 = vunpack.c.h.b16 %v1783
    %v3361 = vunpack.c.l.b16 %v1784
    %v3362 = vunpack.c.h.b16 %v1784
    %v3363 = vpack.c.b16 %v2347, %v2339
    %v3364 = vpack.c.b16 %v2348, %v2340
    %v3365 = vpack.c.b16 %v2349, %v2341
    %v3366 = vpack.c.b16 %v2350, %v2342
    %v3367 = vpack.c.b16 %v2351, %v2343
    %v3368 = vpack.c.b16 %v2352, %v2344
    %v3369 = vpack.c.b16 %v2353, %v2345
    %v3370 = vpack.c.b16 %v2354, %v2346
    %v3371 = vpack.c.b16 %v2363, %v2355
    %v3372 = vpack.c.b16 %v2364, %v2356
    %v3373 = vpack.c.b16 %v2365, %v2357
    %v3374 = vpack.c.b16 %v2366, %v2358
    %v3375 = vpack.c.b16 %v2367, %v2359
    %v3376 = vpack.c.b16 %v2368, %v2360
    %v3377 = vpack.c.b16 %v2369, %v2361
    %v3378 = vpack.c.b16 %v2370, %v2362
    %v3379 = vpack.c.b16 %v2379, %v2371
    %v3380 = vpack.c.b16 %v2380, %v2372
    %v3381 = vpack.c.b16 %v2381, %v2373
    %v3382 = vpack.c.b16 %v2382, %v2374
    %v3383 = vpack.c.b16 %v2383, %v2375
    %v3384 = vpack.c.b16 %v2384, %v2376
    %v3385 = vpack.c.b16 %v2385, %v2377
    %v3386 = vpack.c.b16 %v2386, %v2378
    %v3387 = vpack.c.b16 %v2395, %v2387
    %v3388 = vpack.c.b16 %v2396, %v2388
    %v3389 = vpack.c.b16 %v2397, %v2389
    %v3390 = vpack.c.b16 %v2398, %v2390
    %v3391 = vpack.c.b16 %v2399, %v2391
    %v3392 = vpack.c.b16 %v2400, %v2392
    %v3393 = vpack.c.b16 %v2401, %v2393
    %v3394 = vpack.c.b16 %v2402, %v2394
    %v3395 = vpack.c.b16 %v2411, %v2403
    %v3396 = vpack.c.b16 %v2412, %v2404
    %v3397 = vpack.c.b16 %v2413, %v2405
    %v3398 = vpack.c.b16 %v2414, %v2406
    %v3399 = vpack.c.b16 %v2415, %v2407
    %v3400 = vpack.c.b16 %v2416, %v2408
    %v3401 = vpack.c.b16 %v2417, %v2409
    %v3402 = vpack.c.b16 %v2418, %v2410
    %v3403 = vpack.c.b16 %v2427, %v2419
    %v3404 = vpack.c.b16 %v2428, %v2420
    %v3405 = vpack.c.b16 %v2429, %v2421
    %v3406 = vpack.c.b16 %v2430, %v2422
    %v3407 = vpack.c.b16 %v2431, %v2423
    %v3408 = vpack.c.b16 %v2432, %v2424
    %v3409 = vpack.c.b16 %v2433, %v2425
    %v3410 = vpack.c.b16 %v2434, %v2426
    %v3411 = vpack.c.b16 %v2443, %v2435
    %v3412 = vpack.c.b16 %v2444, %v2436
    %v3413 = vpack.c.b16 %v2445, %v2437
    %v3414 = vpack.c.b16 %v2446, %v2438
    %v3415 = vpack.c.b16 %v2447, %v2439
    %v3416 = vpack.c.b16 %v2448, %v2440
    %v3417 = vpack.c.b16 %v2449, %v2441
    %v3418 = vpack.c.b16 %v2450, %v2442
    %v3419 = vpack.c.b16 %v2459, %v2451
    %v3420 = vpack.c.b16 %v2460, %v2452
    %v3421 = vpack.c.b16 %v2461, %v2453
    %v3422 = vpack.c.b16 %v2462, %v2454
    %v3423 = vpack.c.b16 %v2463, %v2455
    %v3424 = vpack.c.b16 %v2464, %v2456
    %v3425 = vpack.c.b16 %v2465, %v2457
    %v3426 = vpack.c.b16 %v2466, %v2458
    %v3427 = vpack.c.b16 %v2475, %v2467
    %v3428 = vpack.c.b16 %v2476, %v2468
    %v3429 = vpack.c.b16 %v2477, %v2469
    %v3430 = vpack.c.b16 %v2478, %v2470
    %v3431 = vpack.c.b16 %v2479, %v2471
    %v3432 = vpack.c.b16 %v2480, %v2472
    %v3433 = vpack.c.b16 %v2481, %v2473
    %v3434 = vpack.c.b16 %v2482, %v2474
    %v3435 = vpack.c.b16 %v2491, %v2483
    %v3436 = vpack.c.b16 %v2492, %v2484
    %v3437 = vpack.c.b16 %v2493, %v2485
    %v3438 = vpack.c.b16 %v2494, %v2486
    %v3439 = vpack.c.b16 %v2495, %v2487
    %v3440 = vpack.c.b16 %v2496, %v2488
    %v3441 = vpack.c.b16 %v2497, %v2489
    %v3442 = vpack.c.b16 %v2498, %v2490
    %v3443 = vpack.c.b16 %v2507, %v2499
    %v3444 = vpack.c.b16 %v2508, %v2500
    %v3445 = vpack.c.b16 %v2509, %v2501
    %v3446 = vpack.c.b16 %v2510, %v2502
    %v3447 = vpack.c.b16 %v2511, %v2503
    %v3448 = vpack.c.b16 %v2512, %v2504
    %v3449 = vpack.c.b16 %v2513, %v2505
    %v3450 = vpack.c.b16 %v2514, %v2506
    %v3451 = vpack.c.b16 %v2523, %v2515
    %v3452 = vpack.c.b16 %v2524, %v2516
    %v3453 = vpack.c.b16 %v2525, %v2517
    %v3454 = vpack.c.b16 %v2526, %v2518
    %v3455 = vpack.c.b16 %v2527, %v2519
    %v3456 = vpack.c.b16 %v2528, %v2520
    %v3457 = vpack.c.b16 %v2529, %v2521
    %v3458 = vpack.c.b16 %v2530, %v2522
    %v3459 = vpack.c.b16 %v2539, %v2531
    %v3460 = vpack.c.b16 %v2540, %v2532
    %v3461 = vpack.c.b16 %v2541, %v2533
    %v3462 = vpack.c.b16 %v2542, %v2534
    %v3463 = vpack.c.b16 %v2543, %v2535
    %v3464 = vpack.c.b16 %v2544, %v2536
    %v3465 = vpack.c.b16 %v2545, %v2537
    %v3466 = vpack.c.b16 %v2546, %v2538
    %v3467 = vpack.c.b16 %v2555, %v2547
    %v3468 = vpack.c.b16 %v2556, %v2548
    %v3469 = vpack.c.b16 %v2557, %v2549
    %v3470 = vpack.c.b16 %v2558, %v2550
    %v3471 = vpack.c.b16 %v2559, %v2551
    %v3472 = vpack.c.b16 %v2560, %v2552
    %v3473 = vpack.c.b16 %v2561, %v2553
    %v3474 = vpack.c.b16 %v2562, %v2554
    %v3475 = vpack.c.b16 %v2571, %v2563
    %v3476 = vpack.c.b16 %v2572, %v2564
    %v3477 = vpack.c.b16 %v2573, %v2565
    %v3478 = vpack.c.b16 %v2574, %v2566
    %v3479 = vpack.c.b16 %v2575, %v2567
    %v3480 = vpack.c.b16 %v2576, %v2568
    %v3481 = vpack.c.b16 %v2577, %v2569
    %v3482 = vpack.c.b16 %v2578, %v2570
    %v3483 = vpack.c.b16 %v2587, %v2579
    %v3484 = vpack.c.b16 %v2588, %v2580
    %v3485 = vpack.c.b16 %v2589, %v2581
    %v3486 = vpack.c.b16 %v2590, %v2582
    %v3487 = vpack.c.b16 %v2591, %v2583
    %v3488 = vpack.c.b16 %v2592, %v2584
    %v3489 = vpack.c.b16 %v2593, %v2585
    %v3490 = vpack.c.b16 %v2594, %v2586
    %v3491 = vpack.c.b16 %v2603, %v2595
    %v3492 = vpack.c.b16 %v2604, %v2596
    %v3493 = vpack.c.b16 %v2605, %v2597
    %v3494 = vpack.c.b16 %v2606, %v2598
    %v3495 = vpack.c.b16 %v2607, %v2599
    %v3496 = vpack.c.b16 %v2608, %v2600
    %v3497 = vpack.c.b16 %v2609, %v2601
    %v3498 = vpack.c.b16 %v2610, %v2602
    %v3499 = vpack.c.b16 %v2619, %v2611
    %v3500 = vpack.c.b16 %v2620, %v2612
    %v3501 = vpack.c.b16 %v2621, %v2613
    %v3502 = vpack.c.b16 %v2622, %v2614
    %v3503 = vpack.c.b16 %v2623, %v2615
    %v3504 = vpack.c.b16 %v2624, %v2616
    %v3505 = vpack.c.b16 %v2625, %v2617
    %v3506 = vpack.c.b16 %v2626, %v2618
    %v3507 = vpack.c.b16 %v2635, %v2627
    %v3508 = vpack.c.b16 %v2636, %v2628
    %v3509 = vpack.c.b16 %v2637, %v2629
    %v3510 = vpack.c.b16 %v2638, %v2630
    %v3511 = vpack.c.b16 %v2639, %v2631
    %v3512 = vpack.c.b16 %v2640, %v2632
    %v3513 = vpack.c.b16 %v2641, %v2633
    %v3514 = vpack.c.b16 %v2642, %v2634
    %v3515 = vpack.c.b16 %v2651, %v2643
    %v3516 = vpack.c.b16 %v2652, %v2644
    %v3517 = vpack.c.b16 %v2653, %v2645
    %v3518 = vpack.c.b16 %v2654, %v2646
    %v3519 = vpack.c.b16 %v2655, %v2647
    %v3520 = vpack.c.b16 %v2656, %v2648
    %v3521 = vpack.c.b16 %v2657, %v2649
    %v3522 = vpack.c.b16 %v2658, %v2650
    %v3523 = vpack.c.b16 %v2667, %v2659
    %v3524 = vpack.c.b16 %v2668, %v2660
    %v3525 = vpack.c.b16 %v2669, %v2661
    %v3526 = vpack.c.b16 %v2670, %v2662
    %v3527 = vpack.c.b16 %v2671, %v2663
    %v3528 = vpack.c.b16 %v2672, %v2664
    %v3529 = vpack.c.b16 %v2673, %v2665
    %v3530 = vpack.c.b16 %v2674, %v2666
    %v3531 = vpack.c.b16 %v2683, %v2675
    %v3532 = vpack.c.b16 %v2684, %v2676
    %v3533 = vpack.c.b16 %v2685, %v2677
    %v3534 = vpack.c.b16 %v2686, %v2678
    %v3535 = vpack.c.b16 %v2687, %v2679
    %v3536 = vpack.c.b16 %v2688, %v2680
    %v3537 = vpack.c.b16 %v2689, %v2681
    %v3538 = vpack.c.b16 %v2690, %v2682
    %v3539 = vpack.c.b16 %v2699, %v2691
    %v3540 = vpack.c.b16 %v2700, %v2692
    %v3541 = vpack.c.b16 %v2701, %v2693
    %v3542 = vpack.c.b16 %v2702, %v2694
    %v3543 = vpack.c.b16 %v2703, %v2695
    %v3544 = vpack.c.b16 %v2704, %v2696
    %v3545 = vpack.c.b16 %v2705, %v2697
    %v3546 = vpack.c.b16 %v2706, %v2698
    %v3547 = vpack.c.b16 %v2715, %v2707
    %v3548 = vpack.c.b16 %v2716, %v2708
    %v3549 = vpack.c.b16 %v2717, %v2709
    %v3550 = vpack.c.b16 %v2718, %v2710
    %v3551 = vpack.c.b16 %v2719, %v2711
    %v3552 = vpack.c.b16 %v2720, %v2712
    %v3553 = vpack.c.b16 %v2721, %v2713
    %v3554 = vpack.c.b16 %v2722, %v2714
    %v3555 = vpack.c.b16 %v2731, %v2723
    %v3556 = vpack.c.b16 %v2732, %v2724
    %v3557 = vpack.c.b16 %v2733, %v2725
    %v3558 = vpack.c.b16 %v2734, %v2726
    %v3559 = vpack.c.b16 %v2735, %v2727
    %v3560 = vpack.c.b16 %v2736, %v2728
    %v3561 = vpack.c.b16 %v2737, %v2729
    %v3562 = vpack.c.b16 %v2738, %v2730
    %v3563 = vpack.c.b16 %v2747, %v2739
    %v3564 = vpack.c.b16 %v2748, %v2740
    %v3565 = vpack.c.b16 %v2749, %v2741
    %v3566 = vpack.c.b16 %v2750, %v2742
    %v3567 = vpack.c.b16 %v2751, %v2743
    %v3568 = vpack.c.b16 %v2752, %v2744
    %v3569 = vpack.c.b16 %v2753, %v2745
    %v3570 = vpack.c.b16 %v2754, %v2746
    %v3571 = vpack.c.b16 %v2763, %v2755
    %v3572 = vpack.c.b16 %v2764, %v2756
    %v3573 = vpack.c.b16 %v2765, %v2757
    %v3574 = vpack.c.b16 %v2766, %v2758
    %v3575 = vpack.c.b16 %v2767, %v2759
    %v3576 = vpack.c.b16 %v2768, %v2760
    %v3577 = vpack.c.b16 %v2769, %v2761
    %v3578 = vpack.c.b16 %v2770, %v2762
    %v3579 = vpack.c.b16 %v2779, %v2771
    %v3580 = vpack.c.b16 %v2780, %v2772
    %v3581 = vpack.c.b16 %v2781, %v2773
    %v3582 = vpack.c.b16 %v2782, %v2774
    %v3583 = vpack.c.b16 %v2783, %v2775
    %v3584 = vpack.c.b16 %v2784, %v2776
    %v3585 = vpack.c.b16 %v2785, %v2777
    %v3586 = vpack.c.b16 %v2786, %v2778
    %v3587 = vpack.c.b16 %v2795, %v2787
    %v3588 = vpack.c.b16 %v2796, %v2788
    %v3589 = vpack.c.b16 %v2797, %v2789
    %v3590 = vpack.c.b16 %v2798, %v2790
    %v3591 = vpack.c.b16 %v2799, %v2791
    %v3592 = vpack.c.b16 %v2800, %v2792
    %v3593 = vpack.c.b16 %v2801, %v2793
    %v3594 = vpack.c.b16 %v2802, %v2794
    %v3595 = vpack.c.b16 %v2811, %v2803
    %v3596 = vpack.c.b16 %v2812, %v2804
    %v3597 = vpack.c.b16 %v2813, %v2805
    %v3598 = vpack.c.b16 %v2814, %v2806
    %v3599 = vpack.c.b16 %v2815, %v2807
    %v3600 = vpack.c.b16 %v2816, %v2808
    %v3601 = vpack.c.b16 %v2817, %v2809
    %v3602 = vpack.c.b16 %v2818, %v2810
    %v3603 = vpack.c.b16 %v2827, %v2819
    %v3604 = vpack.c.b16 %v2828, %v2820
    %v3605 = vpack.c.b16 %v2829, %v2821
    %v3606 = vpack.c.b16 %v2830, %v2822
    %v3607 = vpack.c.b16 %v2831, %v2823
    %v3608 = vpack.c.b16 %v2832, %v2824
    %v3609 = vpack.c.b16 %v2833, %v2825
    %v3610 = vpack.c.b16 %v2834, %v2826
    %v3611 = vpack.c.b16 %v2843, %v2835
    %v3612 = vpack.c.b16 %v2844, %v2836
    %v3613 = vpack.c.b16 %v2845, %v2837
    %v3614 = vpack.c.b16 %v2846, %v2838
    %v3615 = vpack.c.b16 %v2847, %v2839
    %v3616 = vpack.c.b16 %v2848, %v2840
    %v3617 = vpack.c.b16 %v2849, %v2841
    %v3618 = vpack.c.b16 %v2850, %v2842
    %v3619 = vpack.c.b16 %v2859, %v2851
    %v3620 = vpack.c.b16 %v2860, %v2852
    %v3621 = vpack.c.b16 %v2861, %v2853
    %v3622 = vpack.c.b16 %v2862, %v2854
    %v3623 = vpack.c.b16 %v2863, %v2855
    %v3624 = vpack.c.b16 %v2864, %v2856
    %v3625 = vpack.c.b16 %v2865, %v2857
    %v3626 = vpack.c.b16 %v2866, %v2858
    %v3627 = vpack.c.b16 %v2875, %v2867
    %v3628 = vpack.c.b16 %v2876, %v2868
    %v3629 = vpack.c.b16 %v2877, %v2869
    %v3630 = vpack.c.b16 %v2878, %v2870
    %v3631 = vpack.c.b16 %v2879, %v2871
    %v3632 = vpack.c.b16 %v2880, %v2872
    %v3633 = vpack.c.b16 %v2881, %v2873
    %v3634 = vpack.c.b16 %v2882, %v2874
    %v3635 = vpack.c.b16 %v2891, %v2883
    %v3636 = vpack.c.b16 %v2892, %v2884
    %v3637 = vpack.c.b16 %v2893, %v2885
    %v3638 = vpack.c.b16 %v2894, %v2886
    %v3639 = vpack.c.b16 %v2895, %v2887
    %v3640 = vpack.c.b16 %v2896, %v2888
    %v3641 = vpack.c.b16 %v2897, %v2889
    %v3642 = vpack.c.b16 %v2898, %v2890
    %v3643 = vpack.c.b16 %v2907, %v2899
    %v3644 = vpack.c.b16 %v2908, %v2900
    %v3645 = vpack.c.b16 %v2909, %v2901
    %v3646 = vpack.c.b16 %v2910, %v2902
    %v3647 = vpack.c.b16 %v2911, %v2903
    %v3648 = vpack.c.b16 %v2912, %v2904
    %v3649 = vpack.c.b16 %v2913, %v2905
    %v3650 = vpack.c.b16 %v2914, %v2906
    %v3651 = vpack.c.b16 %v2923, %v2915
    %v3652 = vpack.c.b16 %v2924, %v2916
    %v3653 = vpack.c.b16 %v2925, %v2917
    %v3654 = vpack.c.b16 %v2926, %v2918
    %v3655 = vpack.c.b16 %v2927, %v2919
    %v3656 = vpack.c.b16 %v2928, %v2920
    %v3657 = vpack.c.b16 %v2929, %v2921
    %v3658 = vpack.c.b16 %v2930, %v2922
    %v3659 = vpack.c.b16 %v2939, %v2931
    %v3660 = vpack.c.b16 %v2940, %v2932
    %v3661 = vpack.c.b16 %v2941, %v2933
    %v3662 = vpack.c.b16 %v2942, %v2934
    %v3663 = vpack.c.b16 %v2943, %v2935
    %v3664 = vpack.c.b16 %v2944, %v2936
    %v3665 = vpack.c.b16 %v2945, %v2937
    %v3666 = vpack.c.b16 %v2946, %v2938
    %v3667 = vpack.c.b16 %v2955, %v2947
    %v3668 = vpack.c.b16 %v2956, %v2948
    %v3669 = vpack.c.b16 %v2957, %v2949
    %v3670 = vpack.c.b16 %v2958, %v2950
    %v3671 = vpack.c.b16 %v2959, %v2951
    %v3672 = vpack.c.b16 %v2960, %v2952
    %v3673 = vpack.c.b16 %v2961, %v2953
    %v3674 = vpack.c.b16 %v2962, %v2954
    %v3675 = vpack.c.b16 %v2971, %v2963
    %v3676 = vpack.c.b16 %v2972, %v2964
    %v3677 = vpack.c.b16 %v2973, %v2965
    %v3678 = vpack.c.b16 %v2974, %v2966
    %v3679 = vpack.c.b16 %v2975, %v2967
    %v3680 = vpack.c.b16 %v2976, %v2968
    %v3681 = vpack.c.b16 %v2977, %v2969
    %v3682 = vpack.c.b16 %v2978, %v2970
    %v3683 = vpack.c.b16 %v2987, %v2979
    %v3684 = vpack.c.b16 %v2988, %v2980
    %v3685 = vpack.c.b16 %v2989, %v2981
    %v3686 = vpack.c.b16 %v2990, %v2982
    %v3687 = vpack.c.b16 %v2991, %v2983
    %v3688 = vpack.c.b16 %v2992, %v2984
    %v3689 = vpack.c.b16 %v2993, %v2985
    %v3690 = vpack.c.b16 %v2994, %v2986
    %v3691 = vpack.c.b16 %v3003, %v2995
    %v3692 = vpack.c.b16 %v3004, %v2996
    %v3693 = vpack.c.b16 %v3005, %v2997
    %v3694 = vpack.c.b16 %v3006, %v2998
    %v3695 = vpack.c.b16 %v3007, %v2999
    %v3696 = vpack.c.b16 %v3008, %v3000
    %v3697 = vpack.c.b16 %v3009, %v3001
    %v3698 = vpack.c.b16 %v3010, %v3002
    %v3699 = vpack.c.b16 %v3019, %v3011
    %v3700 = vpack.c.b16 %v3020, %v3012
    %v3701 = vpack.c.b16 %v3021, %v3013
    %v3702 = vpack.c.b16 %v3022, %v3014
    %v3703 = vpack.c.b16 %v3023, %v3015
    %v3704 = vpack.c.b16 %v3024, %v3016
    %v3705 = vpack.c.b16 %v3025, %v3017
    %v3706 = vpack.c.b16 %v3026, %v3018
    %v3707 = vpack.c.b16 %v3035, %v3027
    %v3708 = vpack.c.b16 %v3036, %v3028
    %v3709 = vpack.c.b16 %v3037, %v3029
    %v3710 = vpack.c.b16 %v3038, %v3030
    %v3711 = vpack.c.b16 %v3039, %v3031
    %v3712 = vpack.c.b16 %v3040, %v3032
    %v3713 = vpack.c.b16 %v3041, %v3033
    %v3714 = vpack.c.b16 %v3042, %v3034
    %v3715 = vpack.c.b16 %v3051, %v3043
    %v3716 = vpack.c.b16 %v3052, %v3044
    %v3717 = vpack.c.b16 %v3053, %v3045
    %v3718 = vpack.c.b16 %v3054, %v3046
    %v3719 = vpack.c.b16 %v3055, %v3047
    %v3720 = vpack.c.b16 %v3056, %v3048
    %v3721 = vpack.c.b16 %v3057, %v3049
    %v3722 = vpack.c.b16 %v3058, %v3050
    %v3723 = vpack.c.b16 %v3067, %v3059
    %v3724 = vpack.c.b16 %v3068, %v3060
    %v3725 = vpack.c.b16 %v3069, %v3061
    %v3726 = vpack.c.b16 %v3070, %v3062
    %v3727 = vpack.c.b16 %v3071, %v3063
    %v3728 = vpack.c.b16 %v3072, %v3064
    %v3729 = vpack.c.b16 %v3073, %v3065
    %v3730 = vpack.c.b16 %v3074, %v3066
    %v3731 = vpack.c.b16 %v3083, %v3075
    %v3732 = vpack.c.b16 %v3084, %v3076
    %v3733 = vpack.c.b16 %v3085, %v3077
    %v3734 = vpack.c.b16 %v3086, %v3078
    %v3735 = vpack.c.b16 %v3087, %v3079
    %v3736 = vpack.c.b16 %v3088, %v3080
    %v3737 = vpack.c.b16 %v3089, %v3081
    %v3738 = vpack.c.b16 %v3090, %v3082
    %v3739 = vpack.c.b16 %v3099, %v3091
    %v3740 = vpack.c.b16 %v3100, %v3092
    %v3741 = vpack.c.b16 %v3101, %v3093
    %v3742 = vpack.c.b16 %v3102, %v3094
    %v3743 = vpack.c.b16 %v3103, %v3095
    %v3744 = vpack.c.b16 %v3104, %v3096
    %v3745 = vpack.c.b16 %v3105, %v3097
    %v3746 = vpack.c.b16 %v3106, %v3098
    %v3747 = vpack.c.b16 %v3115, %v3107
    %v3748 = vpack.c.b16 %v3116, %v3108
    %v3749 = vpack.c.b16 %v3117, %v3109
    %v3750 = vpack.c.b16 %v3118, %v3110
    %v3751 = vpack.c.b16 %v3119, %v3111
    %v3752 = vpack.c.b16 %v3120, %v3112
    %v3753 = vpack.c.b16 %v3121, %v3113
    %v3754 = vpack.c.b16 %v3122, %v3114
    %v3755 = vpack.c.b16 %v3131, %v3123
    %v3756 = vpack.c.b16 %v3132, %v3124
    %v3757 = vpack.c.b16 %v3133, %v3125
    %v3758 = vpack.c.b16 %v3134, %v3126
    %v3759 = vpack.c.b16 %v3135, %v3127
    %v3760 = vpack.c.b16 %v3136, %v3128
    %v3761 = vpack.c.b16 %v3137, %v3129
    %v3762 = vpack.c.b16 %v3138, %v3130
    %v3763 = vpack.c.b16 %v3147, %v3139
    %v3764 = vpack.c.b16 %v3148, %v3140
    %v3765 = vpack.c.b16 %v3149, %v3141
    %v3766 = vpack.c.b16 %v3150, %v3142
    %v3767 = vpack.c.b16 %v3151, %v3143
    %v3768 = vpack.c.b16 %v3152, %v3144
    %v3769 = vpack.c.b16 %v3153, %v3145
    %v3770 = vpack.c.b16 %v3154, %v3146
    %v3771 = vpack.c.b16 %v3163, %v3155
    %v3772 = vpack.c.b16 %v3164, %v3156
    %v3773 = vpack.c.b16 %v3165, %v3157
    %v3774 = vpack.c.b16 %v3166, %v3158
    %v3775 = vpack.c.b16 %v3167, %v3159
    %v3776 = vpack.c.b16 %v3168, %v3160
    %v3777 = vpack.c.b16 %v3169, %v3161
    %v3778 = vpack.c.b16 %v3170, %v3162
    %v3779 = vpack.c.b16 %v3179, %v3171
    %v3780 = vpack.c.b16 %v3180, %v3172
    %v3781 = vpack.c.b16 %v3181, %v3173
    %v3782 = vpack.c.b16 %v3182, %v3174
    %v3783 = vpack.c.b16 %v3183, %v3175
    %v3784 = vpack.c.b16 %v3184, %v3176
    %v3785 = vpack.c.b16 %v3185, %v3177
    %v3786 = vpack.c.b16 %v3186, %v3178
    %v3787 = vpack.c.b16 %v3195, %v3187
    %v3788 = vpack.c.b16 %v3196, %v3188
    %v3789 = vpack.c.b16 %v3197, %v3189
    %v3790 = vpack.c.b16 %v3198, %v3190
    %v3791 = vpack.c.b16 %v3199, %v3191
    %v3792 = vpack.c.b16 %v3200, %v3192
    %v3793 = vpack.c.b16 %v3201, %v3193
    %v3794 = vpack.c.b16 %v3202, %v3194
    %v3795 = vpack.c.b16 %v3211, %v3203
    %v3796 = vpack.c.b16 %v3212, %v3204
    %v3797 = vpack.c.b16 %v3213, %v3205
    %v3798 = vpack.c.b16 %v3214, %v3206
    %v3799 = vpack.c.b16 %v3215, %v3207
    %v3800 = vpack.c.b16 %v3216, %v3208
    %v3801 = vpack.c.b16 %v3217, %v3209
    %v3802 = vpack.c.b16 %v3218, %v3210
    %v3803 = vpack.c.b16 %v3227, %v3219
    %v3804 = vpack.c.b16 %v3228, %v3220
    %v3805 = vpack.c.b16 %v3229, %v3221
    %v3806 = vpack.c.b16 %v3230, %v3222
    %v3807 = vpack.c.b16 %v3231, %v3223
    %v3808 = vpack.c.b16 %v3232, %v3224
    %v3809 = vpack.c.b16 %v3233, %v3225
    %v3810 = vpack.c.b16 %v3234, %v3226
    %v3811 = vpack.c.b16 %v3243, %v3235
    %v3812 = vpack.c.b16 %v3244, %v3236
    %v3813 = vpack.c.b16 %v3245, %v3237
    %v3814 = vpack.c.b16 %v3246, %v3238
    %v3815 = vpack.c.b16 %v3247, %v3239
    %v3816 = vpack.c.b16 %v3248, %v3240
    %v3817 = vpack.c.b16 %v3249, %v3241
    %v3818 = vpack.c.b16 %v3250, %v3242
    %v3819 = vpack.c.b16 %v3259, %v3251
    %v3820 = vpack.c.b16 %v3260, %v3252
    %v3821 = vpack.c.b16 %v3261, %v3253
    %v3822 = vpack.c.b16 %v3262, %v3254
    %v3823 = vpack.c.b16 %v3263, %v3255
    %v3824 = vpack.c.b16 %v3264, %v3256
    %v3825 = vpack.c.b16 %v3265, %v3257
    %v3826 = vpack.c.b16 %v3266, %v3258
    %v3827 = vpack.c.b16 %v3275, %v3267
    %v3828 = vpack.c.b16 %v3276, %v3268
    %v3829 = vpack.c.b16 %v3277, %v3269
    %v3830 = vpack.c.b16 %v3278, %v3270
    %v3831 = vpack.c.b16 %v3279, %v3271
    %v3832 = vpack.c.b16 %v3280, %v3272
    %v3833 = vpack.c.b16 %v3281, %v3273
    %v3834 = vpack.c.b16 %v3282, %v3274
    %v3835 = vpack.c.b16 %v3291, %v3283
    %v3836 = vpack.c.b16 %v3292, %v3284
    %v3837 = vpack.c.b16 %v3293, %v3285
    %v3838 = vpack.c.b16 %v3294, %v3286
    %v3839 = vpack.c.b16 %v3295, %v3287
    %v3840 = vpack.c.b16 %v3296, %v3288
    %v3841 = vpack.c.b16 %v3297, %v3289
    %v3842 = vpack.c.b16 %v3298, %v3290
    %v3843 = vpack.c.b16 %v3307, %v3299
    %v3844 = vpack.c.b16 %v3308, %v3300
    %v3845 = vpack.c.b16 %v3309, %v3301
    %v3846 = vpack.c.b16 %v3310, %v3302
    %v3847 = vpack.c.b16 %v3311, %v3303
    %v3848 = vpack.c.b16 %v3312, %v3304
    %v3849 = vpack.c.b16 %v3313, %v3305
    %v3850 = vpack.c.b16 %v3314, %v3306
    %v3851 = vpack.c.b16 %v3323, %v3315
    %v3852 = vpack.c.b16 %v3324, %v3316
    %v3853 = vpack.c.b16 %v3325, %v3317
    %v3854 = vpack.c.b16 %v3326, %v3318
    %v3855 = vpack.c.b16 %v3327, %v3319
    %v3856 = vpack.c.b16 %v3328, %v3320
    %v3857 = vpack.c.b16 %v3329, %v3321
    %v3858 = vpack.c.b16 %v3330, %v3322
    %v3859 = vpack.c.b16 %v3339, %v3331
    %v3860 = vpack.c.b16 %v3340, %v3332
    %v3861 = vpack.c.b16 %v3341, %v3333
    %v3862 = vpack.c.b16 %v3342, %v3334
    %v3863 = vpack.c.b16 %v3343, %v3335
    %v3864 = vpack.c.b16 %v3344, %v3336
    %v3865 = vpack.c.b16 %v3345, %v3337
    %v3866 = vpack.c.b16 %v3346, %v3338
    %v3867 = vpack.c.b16 %v3355, %v3347
    %v3868 = vpack.c.b16 %v3356, %v3348
    %v3869 = vpack.c.b16 %v3357, %v3349
    %v3870 = vpack.c.b16 %v3358, %v3350
    %v3871 = vpack.c.b16 %v3359, %v3351
    %v3872 = vpack.c.b16 %v3360, %v3352
    %v3873 = vpack.c.b16 %v3361, %v3353
    %v3874 = vpack.c.b16 %v3362, %v3354
    %4387 = vmatprep.subr.bf16.mxu0 %v3364
    %4388 = vmatpush1.bf16.msra.mxu0 %v3363
    %4389 = vmatprep.subr.bf16.mxu0 %v3372
    %4390 = vmatpush1.bf16.msra.mxu0 %v3371
    %4391 = vmatprep.subr.bf16.mxu0 %v3380
    %4392 = vmatpush1.bf16.msra.mxu0 %v3379
    %4393 = vmatprep.subr.bf16.mxu0 %v3388
    %4394 = vmatpush1.bf16.msra.mxu0 %v3387
    %4395 = vmatprep.subr.bf16.mxu0 %v3396
    %4396 = vmatpush1.bf16.msra.mxu0 %v3395
    %4397 = vmatprep.subr.bf16.mxu0 %v3404
    %4398 = vmatpush1.bf16.msra.mxu0 %v3403
    %4399 = vmatprep.subr.bf16.mxu0 %v3412
    %4400 = vmatpush1.bf16.msra.mxu0 %v3411
    %4401 = vmatprep.subr.bf16.mxu0 %v3420
    %4402 = vmatpush1.bf16.msra.mxu0 %v3419
    %4403 = vmatprep.subr.bf16.mxu0 %v3428
    %4404 = vmatpush1.bf16.msra.mxu0 %v3427
    %4405 = vmatprep.subr.bf16.mxu0 %v3436
    %4406 = vmatpush1.bf16.msra.mxu0 %v3435
    %4407 = vmatprep.subr.bf16.mxu0 %v3444
    %4408 = vmatpush1.bf16.msra.mxu0 %v3443
    %4409 = vmatprep.subr.bf16.mxu0 %v3452
    %4410 = vmatpush1.bf16.msra.mxu0 %v3451
    %4411 = vmatprep.subr.bf16.mxu0 %v3460
    %4412 = vmatpush1.bf16.msra.mxu0 %v3459
    %4413 = vmatprep.subr.bf16.mxu0 %v3468
    %4414 = vmatpush1.bf16.msra.mxu0 %v3467
    %4415 = vmatprep.subr.bf16.mxu0 %v3476
    %4416 = vmatpush1.bf16.msra.mxu0 %v3475
    %4417 = vmatprep.subr.bf16.mxu0 %v3484
    %4418 = vmatpush1.bf16.msra.mxu0 %v3483
    %4419 = vmatprep.mubr.bf16.mxu0 %v1266
    %4420 = vmatmul.mubr.bf16.gmra.mrb[0].mxu0 %v1265
    %v4421 = vpop.f32.mrb[0].mxu0
    %v4422 = vadd.f32 %v1790, %v4421
    %v4423 = vpop.f32.mrb[0].mxu0
    %v4424 = vadd.f32 %v1794, %v4423
    %v4425 = vpop.f32.mrb[0].mxu0
    %v4426 = vpop.f32.mrb[0].mxu0
    %4427 = vdwg.mxu0
    %4428 = vmatprep.subr.bf16.mxu0 %v3492
    %4429 = vmatpush1.bf16.msra.mxu0 %v3491
    %4430 = vmatprep.subr.bf16.mxu0 %v3500
    %4431 = vmatpush1.bf16.msra.mxu0 %v3499
    %4432 = vmatprep.subr.bf16.mxu0 %v3508
    %4433 = vmatpush1.bf16.msra.mxu0 %v3507
    %4434 = vmatprep.subr.bf16.mxu0 %v3516
    %4435 = vmatpush1.bf16.msra.mxu0 %v3515
    %4436 = vmatprep.subr.bf16.mxu0 %v3524
    %4437 = vmatpush1.bf16.msra.mxu0 %v3523
    %4438 = vmatprep.subr.bf16.mxu0 %v3532
    %4439 = vmatpush1.bf16.msra.mxu0 %v3531
    %4440 = vmatprep.subr.bf16.mxu0 %v3540
    %4441 = vmatpush1.bf16.msra.mxu0 %v3539
    %4442 = vmatprep.subr.bf16.mxu0 %v3548
    %4443 = vmatpush1.bf16.msra.mxu0 %v3547
    %4444 = vmatprep.subr.bf16.mxu0 %v3556
    %4445 = vmatpush1.bf16.msra.mxu0 %v3555
    %4446 = vmatprep.subr.bf16.mxu0 %v3564
    %4447 = vmatpush1.bf16.msra.mxu0 %v3563
    %4448 = vmatprep.subr.bf16.mxu0 %v3572
    %4449 = vmatpush1.bf16.msra.mxu0 %v3571
    %4450 = vmatprep.subr.bf16.mxu0 %v3580
    %4451 = vmatpush1.bf16.msra.mxu0 %v3579
    %4452 = vmatprep.subr.bf16.mxu0 %v3588
    %4453 = vmatpush1.bf16.msra.mxu0 %v3587
    %4454 = vmatprep.subr.bf16.mxu0 %v3596
    %4455 = vmatpush1.bf16.msra.mxu0 %v3595
    %4456 = vmatprep.subr.bf16.mxu0 %v3604
    %4457 = vmatpush1.bf16.msra.mxu0 %v3603
    %4458 = vmatprep.subr.bf16.mxu0 %v3612
    %4459 = vmatpush1.bf16.msra.mxu0 %v3611
    %4460 = vmatprep.mubr.bf16.mxu0 %v1268
    %4461 = vmatmul.mubr.bf16.gmra.mrb[0].mxu0 %v1267
    %v4462 = vpop.f32.mrb[0].mxu0
    %v4463 = vadd.f32 %v4422, %v4462
    %v4464 = vpop.f32.mrb[0].mxu0
    %v4465 = vadd.f32 %v4424, %v4464
    %v4466 = vpop.f32.mrb[0].mxu0
    %v4467 = vpop.f32.mrb[0].mxu0
    %4468 = vdwg.mxu0
    %4469 = vmatprep.subr.bf16.mxu0 %v3620
    %4470 = vmatpush1.bf16.msra.mxu0 %v3619
    %4471 = vmatprep.subr.bf16.mxu0 %v3628
    %4472 = vmatpush1.bf16.msra.mxu0 %v3627
    %4473 = vmatprep.subr.bf16.mxu0 %v3636
    %4474 = vmatpush1.bf16.msra.mxu0 %v3635
    %4475 = vmatprep.subr.bf16.mxu0 %v3644
    %4476 = vmatpush1.bf16.msra.mxu0 %v3643
    %4477 = vmatprep.subr.bf16.mxu0 %v3652
    %4478 = vmatpush1.bf16.msra.mxu0 %v3651
    %4479 = vmatprep.subr.bf16.mxu0 %v3660
    %4480 = vmatpush1.bf16.msra.mxu0 %v3659
    %4481 = vmatprep.subr.bf16.mxu0 %v3668
    %4482 = vmatpush1.bf16.msra.mxu0 %v3667
    %4483 = vmatprep.subr.bf16.mxu0 %v3676
    %4484 = vmatpush1.bf16.msra.mxu0 %v3675
    %4485 = vmatprep.subr.bf16.mxu0 %v3684
    %4486 = vmatpush1.bf16.msra.mxu0 %v3683
    %4487 = vmatprep.subr.bf16.mxu0 %v3692
    %4488 = vmatpush1.bf16.msra.mxu0 %v3691
    %4489 = vmatprep.subr.bf16.mxu0 %v3700
    %4490 = vmatpush1.bf16.msra.mxu0 %v3699
    %4491 = vmatprep.subr.bf16.mxu0 %v3708
    %4492 = vmatpush1.bf16.msra.mxu0 %v3707
    %4493 = vmatprep.subr.bf16.mxu0 %v3716
    %4494 = vmatpush1.bf16.msra.mxu0 %v3715
    %4495 = vmatprep.subr.bf16.mxu0 %v3724
    %4496 = vmatpush1.bf16.msra.mxu0 %v3723
    %4497 = vmatprep.subr.bf16.mxu0 %v3732
    %4498 = vmatpush1.bf16.msra.mxu0 %v3731
    %4499 = vmatprep.subr.bf16.mxu0 %v3740
    %4500 = vmatpush1.bf16.msra.mxu0 %v3739
    %4501 = vmatprep.mubr.bf16.mxu0 %v1270
    %4502 = vmatmul.mubr.bf16.gmra.mrb[0].mxu0 %v1269
    %v4503 = vpop.f32.mrb[0].mxu0
    %v4504 = vadd.f32 %v4463, %v4503
    %v4505 = vpop.f32.mrb[0].mxu0
    %v4506 = vadd.f32 %v4465, %v4505
    %v4507 = vpop.f32.mrb[0].mxu0
    %v4508 = vpop.f32.mrb[0].mxu0
    %4509 = vdwg.mxu0
    %4510 = vmatprep.subr.bf16.mxu0 %v3748
    %4511 = vmatpush1.bf16.msra.mxu0 %v3747
    %4512 = vmatprep.subr.bf16.mxu0 %v3756
    %4513 = vmatpush1.bf16.msra.mxu0 %v3755
    %4514 = vmatprep.subr.bf16.mxu0 %v3764
    %4515 = vmatpush1.bf16.msra.mxu0 %v3763
    %4516 = vmatprep.subr.bf16.mxu0 %v3772
    %4517 = vmatpush1.bf16.msra.mxu0 %v3771
    %4518 = vmatprep.subr.bf16.mxu0 %v3780
    %4519 = vmatpush1.bf16.msra.mxu0 %v3779
    %4520 = vmatprep.subr.bf16.mxu0 %v3788
    %4521 = vmatpush1.bf16.msra.mxu0 %v3787
    %4522 = vmatprep.subr.bf16.mxu0 %v3796
    %4523 = vmatpush1.bf16.msra.mxu0 %v3795
    %4524 = vmatprep.subr.bf16.mxu0 %v3804
    %4525 = vmatpush1.bf16.msra.mxu0 %v3803
    %4526 = vmatprep.subr.bf16.mxu0 %v3812
    %4527 = vmatpush1.bf16.msra.mxu0 %v3811
    %4528 = vmatprep.subr.bf16.mxu0 %v3820
    %4529 = vmatpush1.bf16.msra.mxu0 %v3819
    %4530 = vmatprep.subr.bf16.mxu0 %v3828
    %4531 = vmatpush1.bf16.msra.mxu0 %v3827
    %4532 = vmatprep.subr.bf16.mxu0 %v3836
    %4533 = vmatpush1.bf16.msra.mxu0 %v3835
    %4534 = vmatprep.subr.bf16.mxu0 %v3844
    %4535 = vmatpush1.bf16.msra.mxu0 %v3843
    %4536 = vmatprep.subr.bf16.mxu0 %v3852
    %4537 = vmatpush1.bf16.msra.mxu0 %v3851
    %4538 = vmatprep.subr.bf16.mxu0 %v3860
    %4539 = vmatpush1.bf16.msra.mxu0 %v3859
    %4540 = vmatprep.subr.bf16.mxu0 %v3868
    %4541 = vmatpush1.bf16.msra.mxu0 %v3867
    %4542 = vmatprep.mubr.bf16.mxu0 %v1272
    %4543 = vmatmul.mubr.bf16.gmra.mrb[0].mxu0 %v1271
    %v4544 = vpop.f32.mrb[0].mxu0
    %v4545 = vadd.f32 %v4504, %v4544
    %v4546 = vpop.f32.mrb[0].mxu0
    %v4547 = vadd.f32 %v4506, %v4546
    %v4548 = vpop.f32.mrb[0].mxu0
    %v4549 = vpop.f32.mrb[0].mxu0
    %4550 = vdwg.mxu0
    %4551 = vmatprep.subr.bf16.mxu0 %v3366
    %4552 = vmatpush1.bf16.msra.mxu0 %v3365
    %4553 = vmatprep.subr.bf16.mxu0 %v3374
    %4554 = vmatpush1.bf16.msra.mxu0 %v3373
    %4555 = vmatprep.subr.bf16.mxu0 %v3382
    %4556 = vmatpush1.bf16.msra.mxu0 %v3381
    %4557 = vmatprep.subr.bf16.mxu0 %v3390
    %4558 = vmatpush1.bf16.msra.mxu0 %v3389
    %4559 = vmatprep.subr.bf16.mxu0 %v3398
    %4560 = vmatpush1.bf16.msra.mxu0 %v3397
    %4561 = vmatprep.subr.bf16.mxu0 %v3406
    %4562 = vmatpush1.bf16.msra.mxu0 %v3405
    %4563 = vmatprep.subr.bf16.mxu0 %v3414
    %4564 = vmatpush1.bf16.msra.mxu0 %v3413
    %4565 = vmatprep.subr.bf16.mxu0 %v3422
    %4566 = vmatpush1.bf16.msra.mxu0 %v3421
    %4567 = vmatprep.subr.bf16.mxu0 %v3430
    %4568 = vmatpush1.bf16.msra.mxu0 %v3429
    %4569 = vmatprep.subr.bf16.mxu0 %v3438
    %4570 = vmatpush1.bf16.msra.mxu0 %v3437
    %4571 = vmatprep.subr.bf16.mxu0 %v3446
    %4572 = vmatpush1.bf16.msra.mxu0 %v3445
    %4573 = vmatprep.subr.bf16.mxu0 %v3454
    %4574 = vmatpush1.bf16.msra.mxu0 %v3453
    %4575 = vmatprep.subr.bf16.mxu0 %v3462
    %4576 = vmatpush1.bf16.msra.mxu0 %v3461
    %4577 = vmatprep.subr.bf16.mxu0 %v3470
    %4578 = vmatpush1.bf16.msra.mxu0 %v3469
    %4579 = vmatprep.subr.bf16.mxu0 %v3478
    %4580 = vmatpush1.bf16.msra.mxu0 %v3477
    %4581 = vmatprep.subr.bf16.mxu0 %v3486
    %4582 = vmatpush1.bf16.msra.mxu0 %v3485
    %4583 = vmatprep.mubr.bf16.mxu0 %v1266
    %4584 = vmatmul.mubr.bf16.gmra.mrb[0].mxu0 %v1265
    %v4585 = vpop.f32.mrb[0].mxu0
    %v4586 = vadd.f32 %v1798, %v4585
    %v4587 = vpop.f32.mrb[0].mxu0
    %v4588 = vadd.f32 %v1802, %v4587
    %v4589 = vpop.f32.mrb[0].mxu0
    %v4590 = vpop.f32.mrb[0].mxu0
    %4591 = vdwg.mxu0
    %4592 = vmatprep.subr.bf16.mxu0 %v3494
    %4593 = vmatpush1.bf16.msra.mxu0 %v3493
    %4594 = vmatprep.subr.bf16.mxu0 %v3502
    %4595 = vmatpush1.bf16.msra.mxu0 %v3501
    %4596 = vmatprep.subr.bf16.mxu0 %v3510
    %4597 = vmatpush1.bf16.msra.mxu0 %v3509
    %4598 = vmatprep.subr.bf16.mxu0 %v3518
    %4599 = vmatpush1.bf16.msra.mxu0 %v3517
    %4600 = vmatprep.subr.bf16.mxu0 %v3526
    %4601 = vmatpush1.bf16.msra.mxu0 %v3525
    %4602 = vmatprep.subr.bf16.mxu0 %v3534
    %4603 = vmatpush1.bf16.msra.mxu0 %v3533
    %4604 = vmatprep.subr.bf16.mxu0 %v3542
    %4605 = vmatpush1.bf16.msra.mxu0 %v3541
    %4606 = vmatprep.subr.bf16.mxu0 %v3550
    %4607 = vmatpush1.bf16.msra.mxu0 %v3549
    %4608 = vmatprep.subr.bf16.mxu0 %v3558
    %4609 = vmatpush1.bf16.msra.mxu0 %v3557
    %4610 = vmatprep.subr.bf16.mxu0 %v3566
    %4611 = vmatpush1.bf16.msra.mxu0 %v3565
    %4612 = vmatprep.subr.bf16.mxu0 %v3574
    %4613 = vmatpush1.bf16.msra.mxu0 %v3573
    %4614 = vmatprep.subr.bf16.mxu0 %v3582
    %4615 = vmatpush1.bf16.msra.mxu0 %v3581
    %4616 = vmatprep.subr.bf16.mxu0 %v3590
    %4617 = vmatpush1.bf16.msra.mxu0 %v3589
    %4618 = vmatprep.subr.bf16.mxu0 %v3598
    %4619 = vmatpush1.bf16.msra.mxu0 %v3597
    %4620 = vmatprep.subr.bf16.mxu0 %v3606
    %4621 = vmatpush1.bf16.msra.mxu0 %v3605
    %4622 = vmatprep.subr.bf16.mxu0 %v3614
    %4623 = vmatpush1.bf16.msra.mxu0 %v3613
    %4624 = vmatprep.mubr.bf16.mxu0 %v1268
    %4625 = vmatmul.mubr.bf16.gmra.mrb[0].mxu0 %v1267
    %v4626 = vpop.f32.mrb[0].mxu0
    %v4627 = vadd.f32 %v4586, %v4626
    %v4628 = vpop.f32.mrb[0].mxu0
    %v4629 = vadd.f32 %v4588, %v4628
    %v4630 = vpop.f32.mrb[0].mxu0
    %v4631 = vpop.f32.mrb[0].mxu0
    %4632 = vdwg.mxu0
    %4633 = vmatprep.subr.bf16.mxu0 %v3622
    %4634 = vmatpush1.bf16.msra.mxu0 %v3621
    %4635 = vmatprep.subr.bf16.mxu0 %v3630
    %4636 = vmatpush1.bf16.msra.mxu0 %v3629
    %4637 = vmatprep.subr.bf16.mxu0 %v3638
    %4638 = vmatpush1.bf16.msra.mxu0 %v3637
    %4639 = vmatprep.subr.bf16.mxu0 %v3646
    %4640 = vmatpush1.bf16.msra.mxu0 %v3645
    %4641 = vmatprep.subr.bf16.mxu0 %v3654
    %4642 = vmatpush1.bf16.msra.mxu0 %v3653
    %4643 = vmatprep.subr.bf16.mxu0 %v3662
    %4644 = vmatpush1.bf16.msra.mxu0 %v3661
    %4645 = vmatprep.subr.bf16.mxu0 %v3670
    %4646 = vmatpush1.bf16.msra.mxu0 %v3669
    %4647 = vmatprep.subr.bf16.mxu0 %v3678
    %4648 = vmatpush1.bf16.msra.mxu0 %v3677
    %4649 = vmatprep.subr.bf16.mxu0 %v3686
    %4650 = vmatpush1.bf16.msra.mxu0 %v3685
    %4651 = vmatprep.subr.bf16.mxu0 %v3694
    %4652 = vmatpush1.bf16.msra.mxu0 %v3693
    %4653 = vmatprep.subr.bf16.mxu0 %v3702
    %4654 = vmatpush1.bf16.msra.mxu0 %v3701
    %4655 = vmatprep.subr.bf16.mxu0 %v3710
    %4656 = vmatpush1.bf16.msra.mxu0 %v3709
    %4657 = vmatprep.subr.bf16.mxu0 %v3718
    %4658 = vmatpush1.bf16.msra.mxu0 %v3717
    %4659 = vmatprep.subr.bf16.mxu0 %v3726
    %4660 = vmatpush1.bf16.msra.mxu0 %v3725
    %4661 = vmatprep.subr.bf16.mxu0 %v3734
    %4662 = vmatpush1.bf16.msra.mxu0 %v3733
    %4663 = vmatprep.subr.bf16.mxu0 %v3742
    %4664 = vmatpush1.bf16.msra.mxu0 %v3741
    %4665 = vmatprep.mubr.bf16.mxu0 %v1270
    %4666 = vmatmul.mubr.bf16.gmra.mrb[0].mxu0 %v1269
    %v4667 = vpop.f32.mrb[0].mxu0
    %v4668 = vadd.f32 %v4627, %v4667
    %v4669 = vpop.f32.mrb[0].mxu0
    %v4670 = vadd.f32 %v4629, %v4669
    %v4671 = vpop.f32.mrb[0].mxu0
    %v4672 = vpop.f32.mrb[0].mxu0
    %4673 = vdwg.mxu0
    %4674 = vmatprep.subr.bf16.mxu0 %v3750
    %4675 = vmatpush1.bf16.msra.mxu0 %v3749
    %4676 = vmatprep.subr.bf16.mxu0 %v3758
    %4677 = vmatpush1.bf16.msra.mxu0 %v3757
    %4678 = vmatprep.subr.bf16.mxu0 %v3766
    %4679 = vmatpush1.bf16.msra.mxu0 %v3765
    %4680 = vmatprep.subr.bf16.mxu0 %v3774
    %4681 = vmatpush1.bf16.msra.mxu0 %v3773
    %4682 = vmatprep.subr.bf16.mxu0 %v3782
    %4683 = vmatpush1.bf16.msra.mxu0 %v3781
    %4684 = vmatprep.subr.bf16.mxu0 %v3790
    %4685 = vmatpush1.bf16.msra.mxu0 %v3789
    %4686 = vmatprep.subr.bf16.mxu0 %v3798
    %4687 = vmatpush1.bf16.msra.mxu0 %v3797
    %4688 = vmatprep.subr.bf16.mxu0 %v3806
    %4689 = vmatpush1.bf16.msra.mxu0 %v3805
    %4690 = vmatprep.subr.bf16.mxu0 %v3814
    %4691 = vmatpush1.bf16.msra.mxu0 %v3813
    %4692 = vmatprep.subr.bf16.mxu0 %v3822
    %4693 = vmatpush1.bf16.msra.mxu0 %v3821
    %4694 = vmatprep.subr.bf16.mxu0 %v3830
    %4695 = vmatpush1.bf16.msra.mxu0 %v3829
    %4696 = vmatprep.subr.bf16.mxu0 %v3838
    %4697 = vmatpush1.bf16.msra.mxu0 %v3837
    %4698 = vmatprep.subr.bf16.mxu0 %v3846
    %4699 = vmatpush1.bf16.msra.mxu0 %v3845
    %4700 = vmatprep.subr.bf16.mxu0 %v3854
    %4701 = vmatpush1.bf16.msra.mxu0 %v3853
    %4702 = vmatprep.subr.bf16.mxu0 %v3862
    %4703 = vmatpush1.bf16.msra.mxu0 %v3861
    %4704 = vmatprep.subr.bf16.mxu0 %v3870
    %4705 = vmatpush1.bf16.msra.mxu0 %v3869
    %4706 = vmatprep.mubr.bf16.mxu0 %v1272
    %4707 = vmatmul.mubr.bf16.gmra.mrb[0].mxu0 %v1271
    %v4708 = vpop.f32.mrb[0].mxu0
    %v4709 = vadd.f32 %v4668, %v4708
    %v4710 = vpop.f32.mrb[0].mxu0
    %v4711 = vadd.f32 %v4670, %v4710
    %v4712 = vpop.f32.mrb[0].mxu0
    %v4713 = vpop.f32.mrb[0].mxu0
    %4714 = vdwg.mxu0
    %4715 = vmatprep.subr.bf16.mxu0 %v3368
    %4716 = vmatpush1.bf16.msra.mxu0 %v3367
    %4717 = vmatprep.subr.bf16.mxu0 %v3376
    %4718 = vmatpush1.bf16.msra.mxu0 %v3375
    %4719 = vmatprep.subr.bf16.mxu0 %v3384
    %4720 = vmatpush1.bf16.msra.mxu0 %v3383
    %4721 = vmatprep.subr.bf16.mxu0 %v3392
    %4722 = vmatpush1.bf16.msra.mxu0 %v3391
    %4723 = vmatprep.subr.bf16.mxu0 %v3400
    %4724 = vmatpush1.bf16.msra.mxu0 %v3399
    %4725 = vmatprep.subr.bf16.mxu0 %v3408
    %4726 = vmatpush1.bf16.msra.mxu0 %v3407
    %4727 = vmatprep.subr.bf16.mxu0 %v3416
    %4728 = vmatpush1.bf16.msra.mxu0 %v3415
    %4729 = vmatprep.subr.bf16.mxu0 %v3424
    %4730 = vmatpush1.bf16.msra.mxu0 %v3423
    %4731 = vmatprep.subr.bf16.mxu0 %v3432
    %4732 = vmatpush1.bf16.msra.mxu0 %v3431
    %4733 = vmatprep.subr.bf16.mxu0 %v3440
    %4734 = vmatpush1.bf16.msra.mxu0 %v3439
    %4735 = vmatprep.subr.bf16.mxu0 %v3448
    %4736 = vmatpush1.bf16.msra.mxu0 %v3447
    %4737 = vmatprep.subr.bf16.mxu0 %v3456
    %4738 = vmatpush1.bf16.msra.mxu0 %v3455
    %4739 = vmatprep.subr.bf16.mxu0 %v3464
    %4740 = vmatpush1.bf16.msra.mxu0 %v3463
    %4741 = vmatprep.subr.bf16.mxu0 %v3472
    %4742 = vmatpush1.bf16.msra.mxu0 %v3471
    %4743 = vmatprep.subr.bf16.mxu0 %v3480
    %4744 = vmatpush1.bf16.msra.mxu0 %v3479
    %4745 = vmatprep.subr.bf16.mxu0 %v3488
    %4746 = vmatpush1.bf16.msra.mxu0 %v3487
    %4747 = vmatprep.mubr.bf16.mxu0 %v1266
    %4748 = vmatmul.mubr.bf16.gmra.mrb[0].mxu0 %v1265
    %v4749 = vpop.f32.mrb[0].mxu0
    %v4750 = vadd.f32 %v1806, %v4749
    %v4751 = vpop.f32.mrb[0].mxu0
    %v4752 = vadd.f32 %v1810, %v4751
    %v4753 = vpop.f32.mrb[0].mxu0
    %v4754 = vpop.f32.mrb[0].mxu0
    %4755 = vdwg.mxu0
    %4756 = vmatprep.subr.bf16.mxu0 %v3496
    %4757 = vmatpush1.bf16.msra.mxu0 %v3495
    %4758 = vmatprep.subr.bf16.mxu0 %v3504
    %4759 = vmatpush1.bf16.msra.mxu0 %v3503
    %4760 = vmatprep.subr.bf16.mxu0 %v3512
    %4761 = vmatpush1.bf16.msra.mxu0 %v3511
    %4762 = vmatprep.subr.bf16.mxu0 %v3520
    %4763 = vmatpush1.bf16.msra.mxu0 %v3519
    %4764 = vmatprep.subr.bf16.mxu0 %v3528
    %4765 = vmatpush1.bf16.msra.mxu0 %v3527
    %4766 = vmatprep.subr.bf16.mxu0 %v3536
    %4767 = vmatpush1.bf16.msra.mxu0 %v3535
    %4768 = vmatprep.subr.bf16.mxu0 %v3544
    %4769 = vmatpush1.bf16.msra.mxu0 %v3543
    %4770 = vmatprep.subr.bf16.mxu0 %v3552
    %4771 = vmatpush1.bf16.msra.mxu0 %v3551
    %4772 = vmatprep.subr.bf16.mxu0 %v3560
    %4773 = vmatpush1.bf16.msra.mxu0 %v3559
    %4774 = vmatprep.subr.bf16.mxu0 %v3568
    %4775 = vmatpush1.bf16.msra.mxu0 %v3567
    %4776 = vmatprep.subr.bf16.mxu0 %v3576
    %4777 = vmatpush1.bf16.msra.mxu0 %v3575
    %4778 = vmatprep.subr.bf16.mxu0 %v3584
    %4779 = vmatpush1.bf16.msra.mxu0 %v3583
    %4780 = vmatprep.subr.bf16.mxu0 %v3592
    %4781 = vmatpush1.bf16.msra.mxu0 %v3591
    %4782 = vmatprep.subr.bf16.mxu0 %v3600
    %4783 = vmatpush1.bf16.msra.mxu0 %v3599
    %4784 = vmatprep.subr.bf16.mxu0 %v3608
    %4785 = vmatpush1.bf16.msra.mxu0 %v3607
    %4786 = vmatprep.subr.bf16.mxu0 %v3616
    %4787 = vmatpush1.bf16.msra.mxu0 %v3615
    %4788 = vmatprep.mubr.bf16.mxu0 %v1268
    %4789 = vmatmul.mubr.bf16.gmra.mrb[0].mxu0 %v1267
    %v4790 = vpop.f32.mrb[0].mxu0
    %v4791 = vadd.f32 %v4750, %v4790
    %v4792 = vpop.f32.mrb[0].mxu0
    %v4793 = vadd.f32 %v4752, %v4792
    %v4794 = vpop.f32.mrb[0].mxu0
    %v4795 = vpop.f32.mrb[0].mxu0
    %4796 = vdwg.mxu0
    %4797 = vmatprep.subr.bf16.mxu0 %v3624
    %4798 = vmatpush1.bf16.msra.mxu0 %v3623
    %4799 = vmatprep.subr.bf16.mxu0 %v3632
    %4800 = vmatpush1.bf16.msra.mxu0 %v3631
    %4801 = vmatprep.subr.bf16.mxu0 %v3640
    %4802 = vmatpush1.bf16.msra.mxu0 %v3639
    %4803 = vmatprep.subr.bf16.mxu0 %v3648
    %4804 = vmatpush1.bf16.msra.mxu0 %v3647
    %4805 = vmatprep.subr.bf16.mxu0 %v3656
    %4806 = vmatpush1.bf16.msra.mxu0 %v3655
    %4807 = vmatprep.subr.bf16.mxu0 %v3664
    %4808 = vmatpush1.bf16.msra.mxu0 %v3663
    %4809 = vmatprep.subr.bf16.mxu0 %v3672
    %4810 = vmatpush1.bf16.msra.mxu0 %v3671
    %4811 = vmatprep.subr.bf16.mxu0 %v3680
    %4812 = vmatpush1.bf16.msra.mxu0 %v3679
    %4813 = vmatprep.subr.bf16.mxu0 %v3688
    %4814 = vmatpush1.bf16.msra.mxu0 %v3687
    %4815 = vmatprep.subr.bf16.mxu0 %v3696
    %4816 = vmatpush1.bf16.msra.mxu0 %v3695
    %4817 = vmatprep.subr.bf16.mxu0 %v3704
    %4818 = vmatpush1.bf16.msra.mxu0 %v3703
    %4819 = vmatprep.subr.bf16.mxu0 %v3712
    %4820 = vmatpush1.bf16.msra.mxu0 %v3711
    %4821 = vmatprep.subr.bf16.mxu0 %v3720
    %4822 = vmatpush1.bf16.msra.mxu0 %v3719
    %4823 = vmatprep.subr.bf16.mxu0 %v3728
    %4824 = vmatpush1.bf16.msra.mxu0 %v3727
    %4825 = vmatprep.subr.bf16.mxu0 %v3736
    %4826 = vmatpush1.bf16.msra.mxu0 %v3735
    %4827 = vmatprep.subr.bf16.mxu0 %v3744
    %4828 = vmatpush1.bf16.msra.mxu0 %v3743
    %4829 = vmatprep.mubr.bf16.mxu0 %v1270
    %4830 = vmatmul.mubr.bf16.gmra.mrb[0].mxu0 %v1269
    %v4831 = vpop.f32.mrb[0].mxu0
    %v4832 = vadd.f32 %v4791, %v4831
    %v4833 = vpop.f32.mrb[0].mxu0
    %v4834 = vadd.f32 %v4793, %v4833
    %v4835 = vpop.f32.mrb[0].mxu0
    %v4836 = vpop.f32.mrb[0].mxu0
    %4837 = vdwg.mxu0
    %4838 = vmatprep.subr.bf16.mxu0 %v3752
    %4839 = vmatpush1.bf16.msra.mxu0 %v3751
    %4840 = vmatprep.subr.bf16.mxu0 %v3760
    %4841 = vmatpush1.bf16.msra.mxu0 %v3759
    %4842 = vmatprep.subr.bf16.mxu0 %v3768
    %4843 = vmatpush1.bf16.msra.mxu0 %v3767
    %4844 = vmatprep.subr.bf16.mxu0 %v3776
    %4845 = vmatpush1.bf16.msra.mxu0 %v3775
    %4846 = vmatprep.subr.bf16.mxu0 %v3784
    %4847 = vmatpush1.bf16.msra.mxu0 %v3783
    %4848 = vmatprep.subr.bf16.mxu0 %v3792
    %4849 = vmatpush1.bf16.msra.mxu0 %v3791
    %4850 = vmatprep.subr.bf16.mxu0 %v3800
    %4851 = vmatpush1.bf16.msra.mxu0 %v3799
    %4852 = vmatprep.subr.bf16.mxu0 %v3808
    %4853 = vmatpush1.bf16.msra.mxu0 %v3807
    %4854 = vmatprep.subr.bf16.mxu0 %v3816
    %4855 = vmatpush1.bf16.msra.mxu0 %v3815
    %4856 = vmatprep.subr.bf16.mxu0 %v3824
    %4857 = vmatpush1.bf16.msra.mxu0 %v3823
    %4858 = vmatprep.subr.bf16.mxu0 %v3832
    %4859 = vmatpush1.bf16.msra.mxu0 %v3831
    %4860 = vmatprep.subr.bf16.mxu0 %v3840
    %4861 = vmatpush1.bf16.msra.mxu0 %v3839
    %4862 = vmatprep.subr.bf16.mxu0 %v3848
    %4863 = vmatpush1.bf16.msra.mxu0 %v3847
    %4864 = vmatprep.subr.bf16.mxu0 %v3856
    %4865 = vmatpush1.bf16.msra.mxu0 %v3855
    %4866 = vmatprep.subr.bf16.mxu0 %v3864
    %4867 = vmatpush1.bf16.msra.mxu0 %v3863
    %4868 = vmatprep.subr.bf16.mxu0 %v3872
    %4869 = vmatpush1.bf16.msra.mxu0 %v3871
    %4870 = vmatprep.mubr.bf16.mxu0 %v1272
    %4871 = vmatmul.mubr.bf16.gmra.mrb[0].mxu0 %v1271
    %v4872 = vpop.f32.mrb[0].mxu0
    %v4873 = vadd.f32 %v4832, %v4872
    %v4874 = vpop.f32.mrb[0].mxu0
    %v4875 = vadd.f32 %v4834, %v4874
    %v4876 = vpop.f32.mrb[0].mxu0
    %v4877 = vpop.f32.mrb[0].mxu0
    %4878 = vdwg.mxu0
    %4879 = vmatprep.subr.bf16.mxu0 %v3370
    %4880 = vmatpush1.bf16.msra.mxu0 %v3369
    %4881 = vmatprep.subr.bf16.mxu0 %v3378
    %4882 = vmatpush1.bf16.msra.mxu0 %v3377
    %4883 = vmatprep.subr.bf16.mxu0 %v3386
    %4884 = vmatpush1.bf16.msra.mxu0 %v3385
    %4885 = vmatprep.subr.bf16.mxu0 %v3394
    %4886 = vmatpush1.bf16.msra.mxu0 %v3393
    %4887 = vmatprep.subr.bf16.mxu0 %v3402
    %4888 = vmatpush1.bf16.msra.mxu0 %v3401
    %4889 = vmatprep.subr.bf16.mxu0 %v3410
    %4890 = vmatpush1.bf16.msra.mxu0 %v3409
    %4891 = vmatprep.subr.bf16.mxu0 %v3418
    %4892 = vmatpush1.bf16.msra.mxu0 %v3417
    %4893 = vmatprep.subr.bf16.mxu0 %v3426
    %4894 = vmatpush1.bf16.msra.mxu0 %v3425
    %4895 = vmatprep.subr.bf16.mxu0 %v3434
    %4896 = vmatpush1.bf16.msra.mxu0 %v3433
    %4897 = vmatprep.subr.bf16.mxu0 %v3442
    %4898 = vmatpush1.bf16.msra.mxu0 %v3441
    %4899 = vmatprep.subr.bf16.mxu0 %v3450
    %4900 = vmatpush1.bf16.msra.mxu0 %v3449
    %4901 = vmatprep.subr.bf16.mxu0 %v3458
    %4902 = vmatpush1.bf16.msra.mxu0 %v3457
    %4903 = vmatprep.subr.bf16.mxu0 %v3466
    %4904 = vmatpush1.bf16.msra.mxu0 %v3465
    %4905 = vmatprep.subr.bf16.mxu0 %v3474
    %4906 = vmatpush1.bf16.msra.mxu0 %v3473
    %4907 = vmatprep.subr.bf16.mxu0 %v3482
    %4908 = vmatpush1.bf16.msra.mxu0 %v3481
    %4909 = vmatprep.subr.bf16.mxu0 %v3490
    %4910 = vmatpush1.bf16.msra.mxu0 %v3489
    %4911 = vmatprep.mubr.bf16.mxu0 %v1266
    %4912 = vmatmul.mubr.bf16.gmra.mrb[0].mxu0 %v1265
    %v4913 = vpop.f32.mrb[0].mxu0
    %v4914 = vadd.f32 %v1814, %v4913
    %v4915 = vpop.f32.mrb[0].mxu0
    %v4916 = vadd.f32 %v1818, %v4915
    %v4917 = vpop.f32.mrb[0].mxu0
    %v4918 = vpop.f32.mrb[0].mxu0
    %4919 = vdwg.mxu0
    %4920 = vmatprep.subr.bf16.mxu0 %v3498
    %4921 = vmatpush1.bf16.msra.mxu0 %v3497
    %4922 = vmatprep.subr.bf16.mxu0 %v3506
    %4923 = vmatpush1.bf16.msra.mxu0 %v3505
    %4924 = vmatprep.subr.bf16.mxu0 %v3514
    %4925 = vmatpush1.bf16.msra.mxu0 %v3513
    %4926 = vmatprep.subr.bf16.mxu0 %v3522
    %4927 = vmatpush1.bf16.msra.mxu0 %v3521
    %4928 = vmatprep.subr.bf16.mxu0 %v3530
    %4929 = vmatpush1.bf16.msra.mxu0 %v3529
    %4930 = vmatprep.subr.bf16.mxu0 %v3538
    %4931 = vmatpush1.bf16.msra.mxu0 %v3537
    %4932 = vmatprep.subr.bf16.mxu0 %v3546
    %4933 = vmatpush1.bf16.msra.mxu0 %v3545
    %4934 = vmatprep.subr.bf16.mxu0 %v3554
    %4935 = vmatpush1.bf16.msra.mxu0 %v3553
    %4936 = vmatprep.subr.bf16.mxu0 %v3562
    %4937 = vmatpush1.bf16.msra.mxu0 %v3561
    %4938 = vmatprep.subr.bf16.mxu0 %v3570
    %4939 = vmatpush1.bf16.msra.mxu0 %v3569
    %4940 = vmatprep.subr.bf16.mxu0 %v3578
    %4941 = vmatpush1.bf16.msra.mxu0 %v3577
    %4942 = vmatprep.subr.bf16.mxu0 %v3586
    %4943 = vmatpush1.bf16.msra.mxu0 %v3585
    %4944 = vmatprep.subr.bf16.mxu0 %v3594
    %4945 = vmatpush1.bf16.msra.mxu0 %v3593
    %4946 = vmatprep.subr.bf16.mxu0 %v3602
    %4947 = vmatpush1.bf16.msra.mxu0 %v3601
    %4948 = vmatprep.subr.bf16.mxu0 %v3610
    %4949 = vmatpush1.bf16.msra.mxu0 %v3609
    %4950 = vmatprep.subr.bf16.mxu0 %v3618
    %4951 = vmatpush1.bf16.msra.mxu0 %v3617
    %4952 = vmatprep.mubr.bf16.mxu0 %v1268
    %4953 = vmatmul.mubr.bf16.gmra.mrb[0].mxu0 %v1267
    %v4954 = vpop.f32.mrb[0].mxu0
    %v4955 = vadd.f32 %v4914, %v4954
    %v4956 = vpop.f32.mrb[0].mxu0
    %v4957 = vadd.f32 %v4916, %v4956
    %v4958 = vpop.f32.mrb[0].mxu0
    %v4959 = vpop.f32.mrb[0].mxu0
    %4960 = vdwg.mxu0
    %4961 = vmatprep.subr.bf16.mxu0 %v3626
    %4962 = vmatpush1.bf16.msra.mxu0 %v3625
    %4963 = vmatprep.subr.bf16.mxu0 %v3634
    %4964 = vmatpush1.bf16.msra.mxu0 %v3633
    %4965 = vmatprep.subr.bf16.mxu0 %v3642
    %4966 = vmatpush1.bf16.msra.mxu0 %v3641
    %4967 = vmatprep.subr.bf16.mxu0 %v3650
    %4968 = vmatpush1.bf16.msra.mxu0 %v3649
    %4969 = vmatprep.subr.bf16.mxu0 %v3658
    %4970 = vmatpush1.bf16.msra.mxu0 %v3657
    %4971 = vmatprep.subr.bf16.mxu0 %v3666
    %4972 = vmatpush1.bf16.msra.mxu0 %v3665
    %4973 = vmatprep.subr.bf16.mxu0 %v3674
    %4974 = vmatpush1.bf16.msra.mxu0 %v3673
    %4975 = vmatprep.subr.bf16.mxu0 %v3682
    %4976 = vmatpush1.bf16.msra.mxu0 %v3681
    %4977 = vmatprep.subr.bf16.mxu0 %v3690
    %4978 = vmatpush1.bf16.msra.mxu0 %v3689
    %4979 = vmatprep.subr.bf16.mxu0 %v3698
    %4980 = vmatpush1.bf16.msra.mxu0 %v3697
    %4981 = vmatprep.subr.bf16.mxu0 %v3706
    %4982 = vmatpush1.bf16.msra.mxu0 %v3705
    %4983 = vmatprep.subr.bf16.mxu0 %v3714
    %4984 = vmatpush1.bf16.msra.mxu0 %v3713
    %4985 = vmatprep.subr.bf16.mxu0 %v3722
    %4986 = vmatpush1.bf16.msra.mxu0 %v3721
    %4987 = vmatprep.subr.bf16.mxu0 %v3730
    %4988 = vmatpush1.bf16.msra.mxu0 %v3729
    %4989 = vmatprep.subr.bf16.mxu0 %v3738
    %4990 = vmatpush1.bf16.msra.mxu0 %v3737
    %4991 = vmatprep.subr.bf16.mxu0 %v3746
    %4992 = vmatpush1.bf16.msra.mxu0 %v3745
    %4993 = vmatprep.mubr.bf16.mxu0 %v1270
    %4994 = vmatmul.mubr.bf16.gmra.mrb[0].mxu0 %v1269
    %v4995 = vpop.f32.mrb[0].mxu0
    %v4996 = vadd.f32 %v4955, %v4995
    %v4997 = vpop.f32.mrb[0].mxu0
    %v4998 = vadd.f32 %v4957, %v4997
    %v4999 = vpop.f32.mrb[0].mxu0
    %v5000 = vpop.f32.mrb[0].mxu0
    %5001 = vdwg.mxu0
    %5002 = vmatprep.subr.bf16.mxu0 %v3754
    %5003 = vmatpush1.bf16.msra.mxu0 %v3753
    %5004 = vmatprep.subr.bf16.mxu0 %v3762
    %5005 = vmatpush1.bf16.msra.mxu0 %v3761
    %5006 = vmatprep.subr.bf16.mxu0 %v3770
    %5007 = vmatpush1.bf16.msra.mxu0 %v3769
    %5008 = vmatprep.subr.bf16.mxu0 %v3778
    %5009 = vmatpush1.bf16.msra.mxu0 %v3777
    %5010 = vmatprep.subr.bf16.mxu0 %v3786
    %5011 = vmatpush1.bf16.msra.mxu0 %v3785
    %5012 = vmatprep.subr.bf16.mxu0 %v3794
    %5013 = vmatpush1.bf16.msra.mxu0 %v3793
    %5014 = vmatprep.subr.bf16.mxu0 %v3802
    %5015 = vmatpush1.bf16.msra.mxu0 %v3801
    %5016 = vmatprep.subr.bf16.mxu0 %v3810
    %5017 = vmatpush1.bf16.msra.mxu0 %v3809
    %5018 = vmatprep.subr.bf16.mxu0 %v3818
    %5019 = vmatpush1.bf16.msra.mxu0 %v3817
    %5020 = vmatprep.subr.bf16.mxu0 %v3826
    %5021 = vmatpush1.bf16.msra.mxu0 %v3825
    %5022 = vmatprep.subr.bf16.mxu0 %v3834
    %5023 = vmatpush1.bf16.msra.mxu0 %v3833
    %5024 = vmatprep.subr.bf16.mxu0 %v3842
    %5025 = vmatpush1.bf16.msra.mxu0 %v3841
    %5026 = vmatprep.subr.bf16.mxu0 %v3850
    %5027 = vmatpush1.bf16.msra.mxu0 %v3849
    %5028 = vmatprep.subr.bf16.mxu0 %v3858
    %5029 = vmatpush1.bf16.msra.mxu0 %v3857
    %5030 = vmatprep.subr.bf16.mxu0 %v3866
    %5031 = vmatpush1.bf16.msra.mxu0 %v3865
    %5032 = vmatprep.subr.bf16.mxu0 %v3874
    %5033 = vmatpush1.bf16.msra.mxu0 %v3873
    %5034 = vmatprep.mubr.bf16.mxu0 %v1272
    %5035 = vmatmul.mubr.bf16.gmra.mrb[0].mxu0 %v1271
    %v5036 = vpop.f32.mrb[0].mxu0
    %v5037 = vadd.f32 %v4996, %v5036
    %v5038 = vpop.f32.mrb[0].mxu0
    %v5039 = vadd.f32 %v4998, %v5038
    %v5040 = vpop.f32.mrb[0].mxu0
    %v5041 = vpop.f32.mrb[0].mxu0
    %5042 = vdwg.mxu0
    %v5043 = vld [vmem:[%s6] sm:$0xff]
    %v5044 = vld [vmem:[%s6 + $0x8] sm:$0xff]
    %v5045 = vld [vmem:[%s6 + $0x10] sm:$0xff]
    %v5046 = vld [vmem:[%s6 + $0x18] sm:$0xff]
    %v5047 = vld [vmem:[%s6 + $0x20] sm:$0xff]
    %v5048 = vld [vmem:[%s6 + $0x28] sm:$0xff]
    %v5049 = vld [vmem:[%s6 + $0x30] sm:$0xff]
    %v5050 = vld [vmem:[%s6 + $0x38] sm:$0xff]
    %v5051 = vld [vmem:[%s6 + $0x40] sm:$0xff]
    %v5052 = vld [vmem:[%s6 + $0x48] sm:$0xff]
    %v5053 = vld [vmem:[%s6 + $0x50] sm:$0xff]
    %v5054 = vld [vmem:[%s6 + $0x58] sm:$0xff]
    %v5055 = vld [vmem:[%s6 + $0x60] sm:$0xff]
    %v5056 = vld [vmem:[%s6 + $0x68] sm:$0xff]
    %v5057 = vld [vmem:[%s6 + $0x70] sm:$0xff]
    %v5058 = vld [vmem:[%s6 + $0x78] sm:$0xff]
    %v5059 = vld [vmem:[%s6 + $0x80] sm:$0xff]
    %v5060 = vld [vmem:[%s6 + $0x88] sm:$0xff]
    %v5061 = vld [vmem:[%s6 + $0x90] sm:$0xff]
    %v5062 = vld [vmem:[%s6 + $0x98] sm:$0xff]
    %v5063 = vld [vmem:[%s6 + $0xa0] sm:$0xff]
    %v5064 = vld [vmem:[%s6 + $0xa8] sm:$0xff]
    %v5065 = vld [vmem:[%s6 + $0xb0] sm:$0xff]
    %v5066 = vld [vmem:[%s6 + $0xb8] sm:$0xff]
    %v5067 = vld [vmem:[%s6 + $0xc0] sm:$0xff]
    %v5068 = vld [vmem:[%s6 + $0xc8] sm:$0xff]
    %v5069 = vld [vmem:[%s6 + $0xd0] sm:$0xff]
    %v5070 = vld [vmem:[%s6 + $0xd8] sm:$0xff]
    %v5071 = vld [vmem:[%s6 + $0xe0] sm:$0xff]
    %v5072 = vld [vmem:[%s6 + $0xe8] sm:$0xff]
    %v5073 = vld [vmem:[%s6 + $0xf0] sm:$0xff]
    %v5074 = vld [vmem:[%s6 + $0xf8] sm:$0xff]
    %v5075 = vld [vmem:[%s6 + $0x100] sm:$0xff]
    %v5076 = vld [vmem:[%s6 + $0x108] sm:$0xff]
    %v5077 = vld [vmem:[%s6 + $0x110] sm:$0xff]
    %v5078 = vld [vmem:[%s6 + $0x118] sm:$0xff]
    %v5079 = vld [vmem:[%s6 + $0x120] sm:$0xff]
    %v5080 = vld [vmem:[%s6 + $0x128] sm:$0xff]
    %v5081 = vld [vmem:[%s6 + $0x130] sm:$0xff]
    %v5082 = vld [vmem:[%s6 + $0x138] sm:$0xff]
    %v5083 = vld [vmem:[%s6 + $0x140] sm:$0xff]
    %v5084 = vld [vmem:[%s6 + $0x148] sm:$0xff]
    %v5085 = vld [vmem:[%s6 + $0x150] sm:$0xff]
    %v5086 = vld [vmem:[%s6 + $0x158] sm:$0xff]
    %v5087 = vld [vmem:[%s6 + $0x160] sm:$0xff]
    %v5088 = vld [vmem:[%s6 + $0x168] sm:$0xff]
    %v5089 = vld [vmem:[%s6 + $0x170] sm:$0xff]
    %v5090 = vld [vmem:[%s6 + $0x178] sm:$0xff]
    %v5091 = vld [vmem:[%s6 + $0x180] sm:$0xff]
    %v5092 = vld [vmem:[%s6 + $0x188] sm:$0xff]
    %v5093 = vld [vmem:[%s6 + $0x190] sm:$0xff]
    %v5094 = vld [vmem:[%s6 + $0x198] sm:$0xff]
    %v5095 = vld [vmem:[%s6 + $0x1a0] sm:$0xff]
    %v5096 = vld [vmem:[%s6 + $0x1a8] sm:$0xff]
    %v5097 = vld [vmem:[%s6 + $0x1b0] sm:$0xff]
    %v5098 = vld [vmem:[%s6 + $0x1b8] sm:$0xff]
    %v5099 = vld [vmem:[%s6 + $0x1c0] sm:$0xff]
    %v5100 = vld [vmem:[%s6 + $0x1c8] sm:$0xff]
    %v5101 = vld [vmem:[%s6 + $0x1d0] sm:$0xff]
    %v5102 = vld [vmem:[%s6 + $0x1d8] sm:$0xff]
    %v5103 = vld [vmem:[%s6 + $0x1e0] sm:$0xff]
    %v5104 = vld [vmem:[%s6 + $0x1e8] sm:$0xff]
    %v5105 = vld [vmem:[%s6 + $0x1f0] sm:$0xff]
    %v5106 = vld [vmem:[%s6 + $0x1f8] sm:$0xff]
    %v5107 = vld [vmem:[%s6 + $0x200] sm:$0xff]
    %v5108 = vld [vmem:[%s6 + $0x208] sm:$0xff]
    %v5109 = vld [vmem:[%s6 + $0x210] sm:$0xff]
    %v5110 = vld [vmem:[%s6 + $0x218] sm:$0xff]
    %v5111 = vld [vmem:[%s6 + $0x220] sm:$0xff]
    %v5112 = vld [vmem:[%s6 + $0x228] sm:$0xff]
    %v5113 = vld [vmem:[%s6 + $0x230] sm:$0xff]
    %v5114 = vld [vmem:[%s6 + $0x238] sm:$0xff]
    %v5115 = vld [vmem:[%s6 + $0x240] sm:$0xff]
    %v5116 = vld [vmem:[%s6 + $0x248] sm:$0xff]
    %v5117 = vld [vmem:[%s6 + $0x250] sm:$0xff]
    %v5118 = vld [vmem:[%s6 + $0x258] sm:$0xff]
    %v5119 = vld [vmem:[%s6 + $0x260] sm:$0xff]
    %v5120 = vld [vmem:[%s6 + $0x268] sm:$0xff]
    %v5121 = vld [vmem:[%s6 + $0x270] sm:$0xff]
    %v5122 = vld [vmem:[%s6 + $0x278] sm:$0xff]
    %v5123 = vld [vmem:[%s6 + $0x280] sm:$0xff]
    %v5124 = vld [vmem:[%s6 + $0x288] sm:$0xff]
    %v5125 = vld [vmem:[%s6 + $0x290] sm:$0xff]
    %v5126 = vld [vmem:[%s6 + $0x298] sm:$0xff]
    %v5127 = vld [vmem:[%s6 + $0x2a0] sm:$0xff]
    %v5128 = vld [vmem:[%s6 + $0x2a8] sm:$0xff]
    %v5129 = vld [vmem:[%s6 + $0x2b0] sm:$0xff]
    %v5130 = vld [vmem:[%s6 + $0x2b8] sm:$0xff]
    %v5131 = vld [vmem:[%s6 + $0x2c0] sm:$0xff]
    %v5132 = vld [vmem:[%s6 + $0x2c8] sm:$0xff]
    %v5133 = vld [vmem:[%s6 + $0x2d0] sm:$0xff]
    %v5134 = vld [vmem:[%s6 + $0x2d8] sm:$0xff]
    %v5135 = vld [vmem:[%s6 + $0x2e0] sm:$0xff]
    %v5136 = vld [vmem:[%s6 + $0x2e8] sm:$0xff]
    %v5137 = vld [vmem:[%s6 + $0x2f0] sm:$0xff]
    %v5138 = vld [vmem:[%s6 + $0x2f8] sm:$0xff]
    %v5139 = vld [vmem:[%s6 + $0x300] sm:$0xff]
    %v5140 = vld [vmem:[%s6 + $0x308] sm:$0xff]
    %v5141 = vld [vmem:[%s6 + $0x310] sm:$0xff]
    %v5142 = vld [vmem:[%s6 + $0x318] sm:$0xff]
    %v5143 = vld [vmem:[%s6 + $0x320] sm:$0xff]
    %v5144 = vld [vmem:[%s6 + $0x328] sm:$0xff]
    %v5145 = vld [vmem:[%s6 + $0x330] sm:$0xff]
    %v5146 = vld [vmem:[%s6 + $0x338] sm:$0xff]
    %v5147 = vld [vmem:[%s6 + $0x340] sm:$0xff]
    %v5148 = vld [vmem:[%s6 + $0x348] sm:$0xff]
    %v5149 = vld [vmem:[%s6 + $0x350] sm:$0xff]
    %v5150 = vld [vmem:[%s6 + $0x358] sm:$0xff]
    %v5151 = vld [vmem:[%s6 + $0x360] sm:$0xff]
    %v5152 = vld [vmem:[%s6 + $0x368] sm:$0xff]
    %v5153 = vld [vmem:[%s6 + $0x370] sm:$0xff]
    %v5154 = vld [vmem:[%s6 + $0x378] sm:$0xff]
    %v5155 = vld [vmem:[%s6 + $0x380] sm:$0xff]
    %v5156 = vld [vmem:[%s6 + $0x388] sm:$0xff]
    %v5157 = vld [vmem:[%s6 + $0x390] sm:$0xff]
    %v5158 = vld [vmem:[%s6 + $0x398] sm:$0xff]
    %v5159 = vld [vmem:[%s6 + $0x3a0] sm:$0xff]
    %v5160 = vld [vmem:[%s6 + $0x3a8] sm:$0xff]
    %v5161 = vld [vmem:[%s6 + $0x3b0] sm:$0xff]
    %v5162 = vld [vmem:[%s6 + $0x3b8] sm:$0xff]
    %v5163 = vld [vmem:[%s6 + $0x3c0] sm:$0xff]
    %v5164 = vld [vmem:[%s6 + $0x3c8] sm:$0xff]
    %v5165 = vld [vmem:[%s6 + $0x3d0] sm:$0xff]
    %v5166 = vld [vmem:[%s6 + $0x3d8] sm:$0xff]
    %v5167 = vld [vmem:[%s6 + $0x3e0] sm:$0xff]
    %v5168 = vld [vmem:[%s6 + $0x3e8] sm:$0xff]
    %v5169 = vld [vmem:[%s6 + $0x3f0] sm:$0xff]
    %v5170 = vld [vmem:[%s6 + $0x3f8] sm:$0xff]
    %5171 = vmatprep.subr.mxu0 0.0
    %5172 = vmatpush1.msra.mxu0 %v5043
    %5173 = vmatprep.subr.mxu0 0.0
    %5174 = vmatpush1.msra.mxu0 %v5044
    %5175 = vmatprep.subr.mxu0 0.0
    %5176 = vmatpush1.msra.mxu0 %v5045
    %5177 = vmatprep.subr.mxu0 0.0
    %5178 = vmatpush1.msra.mxu0 %v5046
    %5179 = vmatprep.subr.mxu0 0.0
    %5180 = vmatpush1.msra.mxu0 %v5047
    %5181 = vmatprep.subr.mxu0 0.0
    %5182 = vmatpush1.msra.mxu0 %v5048
    %5183 = vmatprep.subr.mxu0 0.0
    %5184 = vmatpush1.msra.mxu0 %v5049
    %5185 = vmatprep.subr.mxu0 0.0
    %5186 = vmatpush1.msra.mxu0 %v5050
    %5187 = vmatprep.subr.mxu0 0.0
    %5188 = vmatpush1.msra.mxu0 %v5051
    %5189 = vmatprep.subr.mxu0 0.0
    %5190 = vmatpush1.msra.mxu0 %v5052
    %5191 = vmatprep.subr.mxu0 0.0
    %5192 = vmatpush1.msra.mxu0 %v5053
    %5193 = vmatprep.subr.mxu0 0.0
    %5194 = vmatpush1.msra.mxu0 %v5054
    %5195 = vmatprep.subr.mxu0 0.0
    %5196 = vmatpush1.msra.mxu0 %v5055
    %5197 = vmatprep.subr.mxu0 0.0
    %5198 = vmatpush1.msra.mxu0 %v5056
    %5199 = vmatprep.subr.mxu0 0.0
    %5200 = vmatpush1.msra.mxu0 %v5057
    %5201 = vmatprep.subr.mxu0 0.0
    %5202 = vmatpush1.msra.mxu0 %v5058
    %5203 = vmatprep.subr.mxu0 0.0
    %5204 = vmatpush1.msra.mxu0 %v5059
    %5205 = vmatprep.subr.mxu0 0.0
    %5206 = vmatpush1.msra.mxu0 %v5060
    %5207 = vmatprep.subr.mxu0 0.0
    %5208 = vmatpush1.msra.mxu0 %v5061
    %5209 = vmatprep.subr.mxu0 0.0
    %5210 = vmatpush1.msra.mxu0 %v5062
    %5211 = vmatprep.subr.mxu0 0.0
    %5212 = vmatpush1.msra.mxu0 %v5063
    %5213 = vmatprep.subr.mxu0 0.0
    %5214 = vmatpush1.msra.mxu0 %v5064
    %5215 = vmatprep.subr.mxu0 0.0
    %5216 = vmatpush1.msra.mxu0 %v5065
    %5217 = vmatprep.subr.mxu0 0.0
    %5218 = vmatpush1.msra.mxu0 %v5066
    %5219 = vmatprep.subr.mxu0 0.0
    %5220 = vmatpush1.msra.mxu0 %v5067
    %5221 = vmatprep.subr.mxu0 0.0
    %5222 = vmatpush1.msra.mxu0 %v5068
    %5223 = vmatprep.subr.mxu0 0.0
    %5224 = vmatpush1.msra.mxu0 %v5069
    %5225 = vmatprep.subr.mxu0 0.0
    %5226 = vmatpush1.msra.mxu0 %v5070
    %5227 = vmatprep.subr.mxu0 0.0
    %5228 = vmatpush1.msra.mxu0 %v5071
    %5229 = vmatprep.subr.mxu0 0.0
    %5230 = vmatpush1.msra.mxu0 %v5072
    %5231 = vmatprep.subr.mxu0 0.0
    %5232 = vmatpush1.msra.mxu0 %v5073
    %5233 = vmatprep.subr.mxu0 0.0
    %5234 = vmatpush1.msra.mxu0 %v5074
    %5235 = vmatprep.mubr.f32.mxu0 %v4547
    %5236 = vmatmul.mubr.f32.gmra.mrb[0].mxu0 %v4545
    %v5237 = vpop.f32.mrb[0].mxu0
    %v5238 = vadd.f32 0.0, %v5237
    %v5239 = vpop.f32.mrb[0].mxu0
    %5240 = vdwg.mxu0
    %5241 = vmatprep.subr.mxu0 0.0
    %5242 = vmatpush1.msra.mxu0 %v5075
    %5243 = vmatprep.subr.mxu0 0.0
    %5244 = vmatpush1.msra.mxu0 %v5076
    %5245 = vmatprep.subr.mxu0 0.0
    %5246 = vmatpush1.msra.mxu0 %v5077
    %5247 = vmatprep.subr.mxu0 0.0
    %5248 = vmatpush1.msra.mxu0 %v5078
    %5249 = vmatprep.subr.mxu0 0.0
    %5250 = vmatpush1.msra.mxu0 %v5079
    %5251 = vmatprep.subr.mxu0 0.0
    %5252 = vmatpush1.msra.mxu0 %v5080
    %5253 = vmatprep.subr.mxu0 0.0
    %5254 = vmatpush1.msra.mxu0 %v5081
    %5255 = vmatprep.subr.mxu0 0.0
    %5256 = vmatpush1.msra.mxu0 %v5082
    %5257 = vmatprep.subr.mxu0 0.0
    %5258 = vmatpush1.msra.mxu0 %v5083
    %5259 = vmatprep.subr.mxu0 0.0
    %5260 = vmatpush1.msra.mxu0 %v5084
    %5261 = vmatprep.subr.mxu0 0.0
    %5262 = vmatpush1.msra.mxu0 %v5085
    %5263 = vmatprep.subr.mxu0 0.0
    %5264 = vmatpush1.msra.mxu0 %v5086
    %5265 = vmatprep.subr.mxu0 0.0
    %5266 = vmatpush1.msra.mxu0 %v5087
    %5267 = vmatprep.subr.mxu0 0.0
    %5268 = vmatpush1.msra.mxu0 %v5088
    %5269 = vmatprep.subr.mxu0 0.0
    %5270 = vmatpush1.msra.mxu0 %v5089
    %5271 = vmatprep.subr.mxu0 0.0
    %5272 = vmatpush1.msra.mxu0 %v5090
    %5273 = vmatprep.subr.mxu0 0.0
    %5274 = vmatpush1.msra.mxu0 %v5091
    %5275 = vmatprep.subr.mxu0 0.0
    %5276 = vmatpush1.msra.mxu0 %v5092
    %5277 = vmatprep.subr.mxu0 0.0
    %5278 = vmatpush1.msra.mxu0 %v5093
    %5279 = vmatprep.subr.mxu0 0.0
    %5280 = vmatpush1.msra.mxu0 %v5094
    %5281 = vmatprep.subr.mxu0 0.0
    %5282 = vmatpush1.msra.mxu0 %v5095
    %5283 = vmatprep.subr.mxu0 0.0
    %5284 = vmatpush1.msra.mxu0 %v5096
    %5285 = vmatprep.subr.mxu0 0.0
    %5286 = vmatpush1.msra.mxu0 %v5097
    %5287 = vmatprep.subr.mxu0 0.0
    %5288 = vmatpush1.msra.mxu0 %v5098
    %5289 = vmatprep.subr.mxu0 0.0
    %5290 = vmatpush1.msra.mxu0 %v5099
    %5291 = vmatprep.subr.mxu0 0.0
    %5292 = vmatpush1.msra.mxu0 %v5100
    %5293 = vmatprep.subr.mxu0 0.0
    %5294 = vmatpush1.msra.mxu0 %v5101
    %5295 = vmatprep.subr.mxu0 0.0
    %5296 = vmatpush1.msra.mxu0 %v5102
    %5297 = vmatprep.subr.mxu0 0.0
    %5298 = vmatpush1.msra.mxu0 %v5103
    %5299 = vmatprep.subr.mxu0 0.0
    %5300 = vmatpush1.msra.mxu0 %v5104
    %5301 = vmatprep.subr.mxu0 0.0
    %5302 = vmatpush1.msra.mxu0 %v5105
    %5303 = vmatprep.subr.mxu0 0.0
    %5304 = vmatpush1.msra.mxu0 %v5106
    %5305 = vmatprep.mubr.f32.mxu0 %v4711
    %5306 = vmatmul.mubr.f32.gmra.mrb[0].mxu0 %v4709
    %v5307 = vpop.f32.mrb[0].mxu0
    %v5308 = vadd.f32 %v5238, %v5307
    %v5309 = vpop.f32.mrb[0].mxu0
    %5310 = vdwg.mxu0
    %5311 = vmatprep.subr.mxu0 0.0
    %5312 = vmatpush1.msra.mxu0 %v5107
    %5313 = vmatprep.subr.mxu0 0.0
    %5314 = vmatpush1.msra.mxu0 %v5108
    %5315 = vmatprep.subr.mxu0 0.0
    %5316 = vmatpush1.msra.mxu0 %v5109
    %5317 = vmatprep.subr.mxu0 0.0
    %5318 = vmatpush1.msra.mxu0 %v5110
    %5319 = vmatprep.subr.mxu0 0.0
    %5320 = vmatpush1.msra.mxu0 %v5111
    %5321 = vmatprep.subr.mxu0 0.0
    %5322 = vmatpush1.msra.mxu0 %v5112
    %5323 = vmatprep.subr.mxu0 0.0
    %5324 = vmatpush1.msra.mxu0 %v5113
    %5325 = vmatprep.subr.mxu0 0.0
    %5326 = vmatpush1.msra.mxu0 %v5114
    %5327 = vmatprep.subr.mxu0 0.0
    %5328 = vmatpush1.msra.mxu0 %v5115
    %5329 = vmatprep.subr.mxu0 0.0
    %5330 = vmatpush1.msra.mxu0 %v5116
    %5331 = vmatprep.subr.mxu0 0.0
    %5332 = vmatpush1.msra.mxu0 %v5117
    %5333 = vmatprep.subr.mxu0 0.0
    %5334 = vmatpush1.msra.mxu0 %v5118
    %5335 = vmatprep.subr.mxu0 0.0
    %5336 = vmatpush1.msra.mxu0 %v5119
    %5337 = vmatprep.subr.mxu0 0.0
    %5338 = vmatpush1.msra.mxu0 %v5120
    %5339 = vmatprep.subr.mxu0 0.0
    %5340 = vmatpush1.msra.mxu0 %v5121
    %5341 = vmatprep.subr.mxu0 0.0
    %5342 = vmatpush1.msra.mxu0 %v5122
    %5343 = vmatprep.subr.mxu0 0.0
    %5344 = vmatpush1.msra.mxu0 %v5123
    %5345 = vmatprep.subr.mxu0 0.0
    %5346 = vmatpush1.msra.mxu0 %v5124
    %5347 = vmatprep.subr.mxu0 0.0
    %5348 = vmatpush1.msra.mxu0 %v5125
    %5349 = vmatprep.subr.mxu0 0.0
    %5350 = vmatpush1.msra.mxu0 %v5126
    %5351 = vmatprep.subr.mxu0 0.0
    %5352 = vmatpush1.msra.mxu0 %v5127
    %5353 = vmatprep.subr.mxu0 0.0
    %5354 = vmatpush1.msra.mxu0 %v5128
    %5355 = vmatprep.subr.mxu0 0.0
    %5356 = vmatpush1.msra.mxu0 %v5129
    %5357 = vmatprep.subr.mxu0 0.0
    %5358 = vmatpush1.msra.mxu0 %v5130
    %5359 = vmatprep.subr.mxu0 0.0
    %5360 = vmatpush1.msra.mxu0 %v5131
    %5361 = vmatprep.subr.mxu0 0.0
    %5362 = vmatpush1.msra.mxu0 %v5132
    %5363 = vmatprep.subr.mxu0 0.0
    %5364 = vmatpush1.msra.mxu0 %v5133
    %5365 = vmatprep.subr.mxu0 0.0
    %5366 = vmatpush1.msra.mxu0 %v5134
    %5367 = vmatprep.subr.mxu0 0.0
    %5368 = vmatpush1.msra.mxu0 %v5135
    %5369 = vmatprep.subr.mxu0 0.0
    %5370 = vmatpush1.msra.mxu0 %v5136
    %5371 = vmatprep.subr.mxu0 0.0
    %5372 = vmatpush1.msra.mxu0 %v5137
    %5373 = vmatprep.subr.mxu0 0.0
    %5374 = vmatpush1.msra.mxu0 %v5138
    %5375 = vmatprep.mubr.f32.mxu0 %v4875
    %5376 = vmatmul.mubr.f32.gmra.mrb[0].mxu0 %v4873
    %v5377 = vpop.f32.mrb[0].mxu0
    %v5378 = vadd.f32 %v5308, %v5377
    %v5379 = vpop.f32.mrb[0].mxu0
    %5380 = vdwg.mxu0
    %5381 = vmatprep.subr.mxu0 0.0
    %5382 = vmatpush1.msra.mxu0 %v5139
    %5383 = vmatprep.subr.mxu0 0.0
    %5384 = vmatpush1.msra.mxu0 %v5140
    %5385 = vmatprep.subr.mxu0 0.0
    %5386 = vmatpush1.msra.mxu0 %v5141
    %5387 = vmatprep.subr.mxu0 0.0
    %5388 = vmatpush1.msra.mxu0 %v5142
    %5389 = vmatprep.subr.mxu0 0.0
    %5390 = vmatpush1.msra.mxu0 %v5143
    %5391 = vmatprep.subr.mxu0 0.0
    %5392 = vmatpush1.msra.mxu0 %v5144
    %5393 = vmatprep.subr.mxu0 0.0
    %5394 = vmatpush1.msra.mxu0 %v5145
    %5395 = vmatprep.subr.mxu0 0.0
    %5396 = vmatpush1.msra.mxu0 %v5146
    %5397 = vmatprep.subr.mxu0 0.0
    %5398 = vmatpush1.msra.mxu0 %v5147
    %5399 = vmatprep.subr.mxu0 0.0
    %5400 = vmatpush1.msra.mxu0 %v5148
    %5401 = vmatprep.subr.mxu0 0.0
    %5402 = vmatpush1.msra.mxu0 %v5149
    %5403 = vmatprep.subr.mxu0 0.0
    %5404 = vmatpush1.msra.mxu0 %v5150
    %5405 = vmatprep.subr.mxu0 0.0
    %5406 = vmatpush1.msra.mxu0 %v5151
    %5407 = vmatprep.subr.mxu0 0.0
    %5408 = vmatpush1.msra.mxu0 %v5152
    %5409 = vmatprep.subr.mxu0 0.0
    %5410 = vmatpush1.msra.mxu0 %v5153
    %5411 = vmatprep.subr.mxu0 0.0
    %5412 = vmatpush1.msra.mxu0 %v5154
    %5413 = vmatprep.subr.mxu0 0.0
    %5414 = vmatpush1.msra.mxu0 %v5155
    %5415 = vmatprep.subr.mxu0 0.0
    %5416 = vmatpush1.msra.mxu0 %v5156
    %5417 = vmatprep.subr.mxu0 0.0
    %5418 = vmatpush1.msra.mxu0 %v5157
    %5419 = vmatprep.subr.mxu0 0.0
    %5420 = vmatpush1.msra.mxu0 %v5158
    %5421 = vmatprep.subr.mxu0 0.0
    %5422 = vmatpush1.msra.mxu0 %v5159
    %5423 = vmatprep.subr.mxu0 0.0
    %5424 = vmatpush1.msra.mxu0 %v5160
    %5425 = vmatprep.subr.mxu0 0.0
    %5426 = vmatpush1.msra.mxu0 %v5161
    %5427 = vmatprep.subr.mxu0 0.0
    %5428 = vmatpush1.msra.mxu0 %v5162
    %5429 = vmatprep.subr.mxu0 0.0
    %5430 = vmatpush1.msra.mxu0 %v5163
    %5431 = vmatprep.subr.mxu0 0.0
    %5432 = vmatpush1.msra.mxu0 %v5164
    %5433 = vmatprep.subr.mxu0 0.0
    %5434 = vmatpush1.msra.mxu0 %v5165
    %5435 = vmatprep.subr.mxu0 0.0
    %5436 = vmatpush1.msra.mxu0 %v5166
    %5437 = vmatprep.subr.mxu0 0.0
    %5438 = vmatpush1.msra.mxu0 %v5167
    %5439 = vmatprep.subr.mxu0 0.0
    %5440 = vmatpush1.msra.mxu0 %v5168
    %5441 = vmatprep.subr.mxu0 0.0
    %5442 = vmatpush1.msra.mxu0 %v5169
    %5443 = vmatprep.subr.mxu0 0.0
    %5444 = vmatpush1.msra.mxu0 %v5170
    %5445 = vmatprep.mubr.f32.mxu0 %v5039
    %5446 = vmatmul.mubr.f32.gmra.mrb[0].mxu0 %v5037
    %v5447 = vpop.f32.mrb[0].mxu0
    %v5448 = vadd.f32 %v5378, %v5447
    %v5449 = vpop.f32.mrb[0].mxu0
    %5450 = vdwg.mxu0
    %vm5451 = vcmask 125952
    %v5452 = vsel %vm5451, %v5448, 0.0
    %v5453 = vrot.slane %v5452, 4
    %v5454 = vadd.f32 %v5452, %v5453
    %v5455 = vrot.slane %v5454, 2
    %v5456 = vadd.f32 %v5454, %v5455
    %v5457 = vrot.slane %v5456, 1
    %v5458 = vadd.f32 %v5456, %v5457
    %v5459 = vmul.f32 %v5458, 0.00390625
    %v5460 = vld [vmem:[#allocation11] sm:$0xff]
    %v5461 = vld [vmem:[#allocation11 + $0x8] sm:$0xff]
    %v5462 = vld [vmem:[#allocation11 + $0x10] sm:$0xff]
    %v5463 = vld [vmem:[#allocation11 + $0x18] sm:$0xff]
    %v5464 = vld [vmem:[#allocation11 + $0x20] sm:$0xff]
    %v5465 = vld [vmem:[#allocation11 + $0x28] sm:$0xff]
    %v5466 = vld [vmem:[#allocation11 + $0x30] sm:$0xff]
    %v5467 = vld [vmem:[#allocation11 + $0x38] sm:$0xff]
    %v5468 = vld [vmem:[#allocation11 + $0x40] sm:$0xff]
    %v5469 = vld [vmem:[#allocation11 + $0x48] sm:$0xff]
    %v5470 = vld [vmem:[#allocation11 + $0x50] sm:$0xff]
    %v5471 = vld [vmem:[#allocation11 + $0x58] sm:$0xff]
    %v5472 = vld [vmem:[#allocation11 + $0x60] sm:$0xff]
    %v5473 = vld [vmem:[#allocation11 + $0x68] sm:$0xff]
    %v5474 = vld [vmem:[#allocation11 + $0x70] sm:$0xff]
    %v5475 = vld [vmem:[#allocation11 + $0x78] sm:$0xff]
    %vm5476 = vcmask 130048
    %v5478 = vsel %vm5476, %v5459, 0
    %5480 = vmatprep.subr.mxu0 %v5461
    %5481 = vmatpush1.msra.mxu0 %v5460
    %5482 = vmatprep.subr.mxu0 %v5469
    %5483 = vmatpush1.msra.mxu0 %v5468
    %5484 = vmatprep.subr.mxu0 0.0
    %5485 = vmatpush1.msra.mxu0 0.0
    %5486 = vmatprep.subr.mxu0 0.0
    %5487 = vmatpush1.msra.mxu0 0.0
    %5488 = vmatprep.subr.mxu0 0.0
    %5489 = vmatpush1.msra.mxu0 0.0
    %5490 = vmatprep.subr.mxu0 0.0
    %5491 = vmatpush1.msra.mxu0 0.0
    %5492 = vmatprep.subr.mxu0 0.0
    %5493 = vmatpush1.msra.mxu0 0.0
    %5494 = vmatprep.subr.mxu0 0.0
    %5495 = vmatpush1.msra.mxu0 0.0
    %5496 = vmatprep.subr.mxu0 0.0
    %5497 = vmatpush1.msra.mxu0 0.0
    %5498 = vmatprep.subr.mxu0 0.0
    %5499 = vmatpush1.msra.mxu0 0.0
    %5500 = vmatprep.subr.mxu0 0.0
    %5501 = vmatpush1.msra.mxu0 0.0
    %5502 = vmatprep.subr.mxu0 0.0
    %5503 = vmatpush1.msra.mxu0 0.0
    %5504 = vmatprep.subr.mxu0 0.0
    %5505 = vmatpush1.msra.mxu0 0.0
    %5506 = vmatprep.subr.mxu0 0.0
    %5507 = vmatpush1.msra.mxu0 0.0
    %5508 = vmatprep.subr.mxu0 0.0
    %5509 = vmatpush1.msra.mxu0 0.0
    %5510 = vmatprep.subr.mxu0 0.0
    %5511 = vmatpush1.msra.mxu0 0.0
    %5512 = vmatprep.subr.mxu0 0.0
    %5513 = vmatpush1.msra.mxu0 0.0
    %5514 = vmatprep.subr.mxu0 0.0
    %5515 = vmatpush1.msra.mxu0 0.0
    %5516 = vmatprep.subr.mxu0 0.0
    %5517 = vmatpush1.msra.mxu0 0.0
    %5518 = vmatprep.subr.mxu0 0.0
    %5519 = vmatpush1.msra.mxu0 0.0
    %5520 = vmatprep.subr.mxu0 0.0
    %5521 = vmatpush1.msra.mxu0 0.0
    %5522 = vmatprep.subr.mxu0 0.0
    %5523 = vmatpush1.msra.mxu0 0.0
    %5524 = vmatprep.subr.mxu0 0.0
    %5525 = vmatpush1.msra.mxu0 0.0
    %5526 = vmatprep.subr.mxu0 0.0
    %5527 = vmatpush1.msra.mxu0 0.0
    %5528 = vmatprep.subr.mxu0 0.0
    %5529 = vmatpush1.msra.mxu0 0.0
    %5530 = vmatprep.subr.mxu0 0.0
    %5531 = vmatpush1.msra.mxu0 0.0
    %5532 = vmatprep.subr.mxu0 0.0
    %5533 = vmatpush1.msra.mxu0 0.0
    %5534 = vmatprep.subr.mxu0 0.0
    %5535 = vmatpush1.msra.mxu0 0.0
    %5536 = vmatprep.subr.mxu0 0.0
    %5537 = vmatpush1.msra.mxu0 0.0
    %5538 = vmatprep.subr.mxu0 0.0
    %5539 = vmatpush1.msra.mxu0 0.0
    %5540 = vmatprep.subr.mxu0 0.0
    %5541 = vmatpush1.msra.mxu0 0.0
    %5542 = vmatprep.subr.mxu0 0.0
    %5543 = vmatpush1.msra.mxu0 0.0
    %5544 = vmatprep.mubr.f32.mxu0 0.0
    %5545 = vmatmul.mubr.f32.gmra.mrb[0].mxu0 %v5478
    %v5546 = vpop.f32.mrb[0].mxu0
    %v5547 = vadd.f32 0.0, %v5546
    %v5548 = vpop.f32.mrb[0].mxu0
    %v5549 = vadd.f32 0.0, %v5548
    %5550 = vdwg.mxu0
    %5551 = vmatprep.subr.mxu0 %v5463
    %5552 = vmatpush1.msra.mxu0 %v5462
    %5553 = vmatprep.subr.mxu0 %v5471
    %5554 = vmatpush1.msra.mxu0 %v5470
    %5555 = vmatprep.subr.mxu0 0.0
    %5556 = vmatpush1.msra.mxu0 0.0
    %5557 = vmatprep.subr.mxu0 0.0
    %5558 = vmatpush1.msra.mxu0 0.0
    %5559 = vmatprep.subr.mxu0 0.0
    %5560 = vmatpush1.msra.mxu0 0.0
    %5561 = vmatprep.subr.mxu0 0.0
    %5562 = vmatpush1.msra.mxu0 0.0
    %5563 = vmatprep.subr.mxu0 0.0
    %5564 = vmatpush1.msra.mxu0 0.0
    %5565 = vmatprep.subr.mxu0 0.0
    %5566 = vmatpush1.msra.mxu0 0.0
    %5567 = vmatprep.subr.mxu0 0.0
    %5568 = vmatpush1.msra.mxu0 0.0
    %5569 = vmatprep.subr.mxu0 0.0
    %5570 = vmatpush1.msra.mxu0 0.0
    %5571 = vmatprep.subr.mxu0 0.0
    %5572 = vmatpush1.msra.mxu0 0.0
    %5573 = vmatprep.subr.mxu0 0.0
    %5574 = vmatpush1.msra.mxu0 0.0
    %5575 = vmatprep.subr.mxu0 0.0
    %5576 = vmatpush1.msra.mxu0 0.0
    %5577 = vmatprep.subr.mxu0 0.0
    %5578 = vmatpush1.msra.mxu0 0.0
    %5579 = vmatprep.subr.mxu0 0.0
    %5580 = vmatpush1.msra.mxu0 0.0
    %5581 = vmatprep.subr.mxu0 0.0
    %5582 = vmatpush1.msra.mxu0 0.0
    %5583 = vmatprep.subr.mxu0 0.0
    %5584 = vmatpush1.msra.mxu0 0.0
    %5585 = vmatprep.subr.mxu0 0.0
    %5586 = vmatpush1.msra.mxu0 0.0
    %5587 = vmatprep.subr.mxu0 0.0
    %5588 = vmatpush1.msra.mxu0 0.0
    %5589 = vmatprep.subr.mxu0 0.0
    %5590 = vmatpush1.msra.mxu0 0.0
    %5591 = vmatprep.subr.mxu0 0.0
    %5592 = vmatpush1.msra.mxu0 0.0
    %5593 = vmatprep.subr.mxu0 0.0
    %5594 = vmatpush1.msra.mxu0 0.0
    %5595 = vmatprep.subr.mxu0 0.0
    %5596 = vmatpush1.msra.mxu0 0.0
    %5597 = vmatprep.subr.mxu0 0.0
    %5598 = vmatpush1.msra.mxu0 0.0
    %5599 = vmatprep.subr.mxu0 0.0
    %5600 = vmatpush1.msra.mxu0 0.0
    %5601 = vmatprep.subr.mxu0 0.0
    %5602 = vmatpush1.msra.mxu0 0.0
    %5603 = vmatprep.subr.mxu0 0.0
    %5604 = vmatpush1.msra.mxu0 0.0
    %5605 = vmatprep.subr.mxu0 0.0
    %5606 = vmatpush1.msra.mxu0 0.0
    %5607 = vmatprep.subr.mxu0 0.0
    %5608 = vmatpush1.msra.mxu0 0.0
    %5609 = vmatprep.subr.mxu0 0.0
    %5610 = vmatpush1.msra.mxu0 0.0
    %5611 = vmatprep.subr.mxu0 0.0
    %5612 = vmatpush1.msra.mxu0 0.0
    %5613 = vmatprep.subr.mxu0 0.0
    %5614 = vmatpush1.msra.mxu0 0.0
    %5615 = vmatprep.mubr.f32.mxu0 0.0
    %5616 = vmatmul.mubr.f32.gmra.mrb[0].mxu0 %v5478
    %v5617 = vpop.f32.mrb[0].mxu0
    %v5618 = vadd.f32 0.0, %v5617
    %v5619 = vpop.f32.mrb[0].mxu0
    %v5620 = vadd.f32 0.0, %v5619
    %5621 = vdwg.mxu0
    %5622 = vmatprep.subr.mxu0 %v5465
    %5623 = vmatpush1.msra.mxu0 %v5464
    %5624 = vmatprep.subr.mxu0 %v5473
    %5625 = vmatpush1.msra.mxu0 %v5472
    %5626 = vmatprep.subr.mxu0 0.0
    %5627 = vmatpush1.msra.mxu0 0.0
    %5628 = vmatprep.subr.mxu0 0.0
    %5629 = vmatpush1.msra.mxu0 0.0
    %5630 = vmatprep.subr.mxu0 0.0
    %5631 = vmatpush1.msra.mxu0 0.0
    %5632 = vmatprep.subr.mxu0 0.0
    %5633 = vmatpush1.msra.mxu0 0.0
    %5634 = vmatprep.subr.mxu0 0.0
    %5635 = vmatpush1.msra.mxu0 0.0
    %5636 = vmatprep.subr.mxu0 0.0
    %5637 = vmatpush1.msra.mxu0 0.0
    %5638 = vmatprep.subr.mxu0 0.0
    %5639 = vmatpush1.msra.mxu0 0.0
    %5640 = vmatprep.subr.mxu0 0.0
    %5641 = vmatpush1.msra.mxu0 0.0
    %5642 = vmatprep.subr.mxu0 0.0
    %5643 = vmatpush1.msra.mxu0 0.0
    %5644 = vmatprep.subr.mxu0 0.0
    %5645 = vmatpush1.msra.mxu0 0.0
    %5646 = vmatprep.subr.mxu0 0.0
    %5647 = vmatpush1.msra.mxu0 0.0
    %5648 = vmatprep.subr.mxu0 0.0
    %5649 = vmatpush1.msra.mxu0 0.0
    %5650 = vmatprep.subr.mxu0 0.0
    %5651 = vmatpush1.msra.mxu0 0.0
    %5652 = vmatprep.subr.mxu0 0.0
    %5653 = vmatpush1.msra.mxu0 0.0
    %5654 = vmatprep.subr.mxu0 0.0
    %5655 = vmatpush1.msra.mxu0 0.0
    %5656 = vmatprep.subr.mxu0 0.0
    %5657 = vmatpush1.msra.mxu0 0.0
    %5658 = vmatprep.subr.mxu0 0.0
    %5659 = vmatpush1.msra.mxu0 0.0
    %5660 = vmatprep.subr.mxu0 0.0
    %5661 = vmatpush1.msra.mxu0 0.0
    %5662 = vmatprep.subr.mxu0 0.0
    %5663 = vmatpush1.msra.mxu0 0.0
    %5664 = vmatprep.subr.mxu0 0.0
    %5665 = vmatpush1.msra.mxu0 0.0
    %5666 = vmatprep.subr.mxu0 0.0
    %5667 = vmatpush1.msra.mxu0 0.0
    %5668 = vmatprep.subr.mxu0 0.0
    %5669 = vmatpush1.msra.mxu0 0.0
    %5670 = vmatprep.subr.mxu0 0.0
    %5671 = vmatpush1.msra.mxu0 0.0
    %5672 = vmatprep.subr.mxu0 0.0
    %5673 = vmatpush1.msra.mxu0 0.0
    %5674 = vmatprep.subr.mxu0 0.0
    %5675 = vmatpush1.msra.mxu0 0.0
    %5676 = vmatprep.subr.mxu0 0.0
    %5677 = vmatpush1.msra.mxu0 0.0
    %5678 = vmatprep.subr.mxu0 0.0
    %5679 = vmatpush1.msra.mxu0 0.0
    %5680 = vmatprep.subr.mxu0 0.0
    %5681 = vmatpush1.msra.mxu0 0.0
    %5682 = vmatprep.subr.mxu0 0.0
    %5683 = vmatpush1.msra.mxu0 0.0
    %5684 = vmatprep.subr.mxu0 0.0
    %5685 = vmatpush1.msra.mxu0 0.0
    %5686 = vmatprep.mubr.f32.mxu0 0.0
    %5687 = vmatmul.mubr.f32.gmra.mrb[0].mxu0 %v5478
    %v5688 = vpop.f32.mrb[0].mxu0
    %v5689 = vadd.f32 0.0, %v5688
    %v5690 = vpop.f32.mrb[0].mxu0
    %v5691 = vadd.f32 0.0, %v5690
    %5692 = vdwg.mxu0
    %5693 = vmatprep.subr.mxu0 %v5467
    %5694 = vmatpush1.msra.mxu0 %v5466
    %5695 = vmatprep.subr.mxu0 %v5475
    %5696 = vmatpush1.msra.mxu0 %v5474
    %5697 = vmatprep.subr.mxu0 0.0
    %5698 = vmatpush1.msra.mxu0 0.0
    %5699 = vmatprep.subr.mxu0 0.0
    %5700 = vmatpush1.msra.mxu0 0.0
    %5701 = vmatprep.subr.mxu0 0.0
    %5702 = vmatpush1.msra.mxu0 0.0
    %5703 = vmatprep.subr.mxu0 0.0
    %5704 = vmatpush1.msra.mxu0 0.0
    %5705 = vmatprep.subr.mxu0 0.0
    %5706 = vmatpush1.msra.mxu0 0.0
    %5707 = vmatprep.subr.mxu0 0.0
    %5708 = vmatpush1.msra.mxu0 0.0
    %5709 = vmatprep.subr.mxu0 0.0
    %5710 = vmatpush1.msra.mxu0 0.0
    %5711 = vmatprep.subr.mxu0 0.0
    %5712 = vmatpush1.msra.mxu0 0.0
    %5713 = vmatprep.subr.mxu0 0.0
    %5714 = vmatpush1.msra.mxu0 0.0
    %5715 = vmatprep.subr.mxu0 0.0
    %5716 = vmatpush1.msra.mxu0 0.0
    %5717 = vmatprep.subr.mxu0 0.0
    %5718 = vmatpush1.msra.mxu0 0.0
    %5719 = vmatprep.subr.mxu0 0.0
    %5720 = vmatpush1.msra.mxu0 0.0
    %5721 = vmatprep.subr.mxu0 0.0
    %5722 = vmatpush1.msra.mxu0 0.0
    %5723 = vmatprep.subr.mxu0 0.0
    %5724 = vmatpush1.msra.mxu0 0.0
    %5725 = vmatprep.subr.mxu0 0.0
    %5726 = vmatpush1.msra.mxu0 0.0
    %5727 = vmatprep.subr.mxu0 0.0
    %5728 = vmatpush1.msra.mxu0 0.0
    %5729 = vmatprep.subr.mxu0 0.0
    %5730 = vmatpush1.msra.mxu0 0.0
    %5731 = vmatprep.subr.mxu0 0.0
    %5732 = vmatpush1.msra.mxu0 0.0
    %5733 = vmatprep.subr.mxu0 0.0
    %5734 = vmatpush1.msra.mxu0 0.0
    %5735 = vmatprep.subr.mxu0 0.0
    %5736 = vmatpush1.msra.mxu0 0.0
    %5737 = vmatprep.subr.mxu0 0.0
    %5738 = vmatpush1.msra.mxu0 0.0
    %5739 = vmatprep.subr.mxu0 0.0
    %5740 = vmatpush1.msra.mxu0 0.0
    %5741 = vmatprep.subr.mxu0 0.0
    %5742 = vmatpush1.msra.mxu0 0.0
    %5743 = vmatprep.subr.mxu0 0.0
    %5744 = vmatpush1.msra.mxu0 0.0
    %5745 = vmatprep.subr.mxu0 0.0
    %5746 = vmatpush1.msra.mxu0 0.0
    %5747 = vmatprep.subr.mxu0 0.0
    %5748 = vmatpush1.msra.mxu0 0.0
    %5749 = vmatprep.subr.mxu0 0.0
    %5750 = vmatpush1.msra.mxu0 0.0
    %5751 = vmatprep.subr.mxu0 0.0
    %5752 = vmatpush1.msra.mxu0 0.0
    %5753 = vmatprep.subr.mxu0 0.0
    %5754 = vmatpush1.msra.mxu0 0.0
    %5755 = vmatprep.subr.mxu0 0.0
    %5756 = vmatpush1.msra.mxu0 0.0
    %5757 = vmatprep.mubr.f32.mxu0 0.0
    %5758 = vmatmul.mubr.f32.gmra.mrb[0].mxu0 %v5478
    %v5759 = vpop.f32.mrb[0].mxu0
    %v5760 = vadd.f32 0.0, %v5759
    %v5761 = vpop.f32.mrb[0].mxu0
    %v5762 = vadd.f32 0.0, %v5761
    %5763 = vdwg.mxu0
    %v5764 = vlaneseq
    %v5765 = vshrl.u32 %v5764, 7
    %v5766 = vsub.s32 0, %v5765
    %v5767 = vrot.slane %v5547, %v5766
    %v5768 = vlaneseq
    %v5769 = vshrl.u32 %v5768, 7
    %v5770 = vsub.s32 0, %v5769
    %v5771 = vrot.slane %v5549, %v5770
    %v5772 = vlaneseq
    %v5773 = vshrl.u32 %v5772, 7
    %v5774 = vsub.s32 0, %v5773
    %v5775 = vrot.slane %v5618, %v5774
    %v5776 = vlaneseq
    %v5777 = vshrl.u32 %v5776, 7
    %v5778 = vsub.s32 0, %v5777
    %v5779 = vrot.slane %v5620, %v5778
    %v5780 = vlaneseq
    %v5781 = vshrl.u32 %v5780, 7
    %v5782 = vsub.s32 0, %v5781
    %v5783 = vrot.slane %v5689, %v5782
    %v5784 = vlaneseq
    %v5785 = vshrl.u32 %v5784, 7
    %v5786 = vsub.s32 0, %v5785
    %v5787 = vrot.slane %v5691, %v5786
    %v5788 = vlaneseq
    %v5789 = vshrl.u32 %v5788, 7
    %v5790 = vsub.s32 0, %v5789
    %v5791 = vrot.slane %v5760, %v5790
    %v5792 = vlaneseq
    %v5793 = vshrl.u32 %v5792, 7
    %v5794 = vsub.s32 0, %v5793
    %v5795 = vrot.slane %v5762, %v5794
    %v5796 = vsub.f32 %v4545, %v5767
    %v5797 = vsub.f32 %v4547, %v5771
    %v5798 = vsub.f32 %v4709, %v5775
    %v5799 = vsub.f32 %v4711, %v5779
    %v5800 = vsub.f32 %v4873, %v5783
    %v5801 = vsub.f32 %v4875, %v5787
    %v5802 = vsub.f32 %v5037, %v5791
    %v5803 = vsub.f32 %v5039, %v5795
    %v5804 = vmul.f32 %v5796, %v5796
    %v5805 = vmul.f32 %v5797, %v5797
    %v5806 = vmul.f32 %v5798, %v5798
    %v5807 = vmul.f32 %v5799, %v5799
    %v5808 = vmul.f32 %v5800, %v5800
    %v5809 = vmul.f32 %v5801, %v5801
    %v5810 = vmul.f32 %v5802, %v5802
    %v5811 = vmul.f32 %v5803, %v5803
    %5812 = vmatprep.subr.mxu0 0.0
    %5813 = vmatpush1.msra.mxu0 %v5043
    %5814 = vmatprep.subr.mxu0 0.0
    %5815 = vmatpush1.msra.mxu0 %v5044
    %5816 = vmatprep.subr.mxu0 0.0
    %5817 = vmatpush1.msra.mxu0 %v5045
    %5818 = vmatprep.subr.mxu0 0.0
    %5819 = vmatpush1.msra.mxu0 %v5046
    %5820 = vmatprep.subr.mxu0 0.0
    %5821 = vmatpush1.msra.mxu0 %v5047
    %5822 = vmatprep.subr.mxu0 0.0
    %5823 = vmatpush1.msra.mxu0 %v5048
    %5824 = vmatprep.subr.mxu0 0.0
    %5825 = vmatpush1.msra.mxu0 %v5049
    %5826 = vmatprep.subr.mxu0 0.0
    %5827 = vmatpush1.msra.mxu0 %v5050
    %5828 = vmatprep.subr.mxu0 0.0
    %5829 = vmatpush1.msra.mxu0 %v5051
    %5830 = vmatprep.subr.mxu0 0.0
    %5831 = vmatpush1.msra.mxu0 %v5052
    %5832 = vmatprep.subr.mxu0 0.0
    %5833 = vmatpush1.msra.mxu0 %v5053
    %5834 = vmatprep.subr.mxu0 0.0
    %5835 = vmatpush1.msra.mxu0 %v5054
    %5836 = vmatprep.subr.mxu0 0.0
    %5837 = vmatpush1.msra.mxu0 %v5055
    %5838 = vmatprep.subr.mxu0 0.0
    %5839 = vmatpush1.msra.mxu0 %v5056
    %5840 = vmatprep.subr.mxu0 0.0
    %5841 = vmatpush1.msra.mxu0 %v5057
    %5842 = vmatprep.subr.mxu0 0.0
    %5843 = vmatpush1.msra.mxu0 %v5058
    %5844 = vmatprep.subr.mxu0 0.0
    %5845 = vmatpush1.msra.mxu0 %v5059
    %5846 = vmatprep.subr.mxu0 0.0
    %5847 = vmatpush1.msra.mxu0 %v5060
    %5848 = vmatprep.subr.mxu0 0.0
    %5849 = vmatpush1.msra.mxu0 %v5061
    %5850 = vmatprep.subr.mxu0 0.0
    %5851 = vmatpush1.msra.mxu0 %v5062
    %5852 = vmatprep.subr.mxu0 0.0
    %5853 = vmatpush1.msra.mxu0 %v5063
    %5854 = vmatprep.subr.mxu0 0.0
    %5855 = vmatpush1.msra.mxu0 %v5064
    %5856 = vmatprep.subr.mxu0 0.0
    %5857 = vmatpush1.msra.mxu0 %v5065
    %5858 = vmatprep.subr.mxu0 0.0
    %5859 = vmatpush1.msra.mxu0 %v5066
    %5860 = vmatprep.subr.mxu0 0.0
    %5861 = vmatpush1.msra.mxu0 %v5067
    %5862 = vmatprep.subr.mxu0 0.0
    %5863 = vmatpush1.msra.mxu0 %v5068
    %5864 = vmatprep.subr.mxu0 0.0
    %5865 = vmatpush1.msra.mxu0 %v5069
    %5866 = vmatprep.subr.mxu0 0.0
    %5867 = vmatpush1.msra.mxu0 %v5070
    %5868 = vmatprep.subr.mxu0 0.0
    %5869 = vmatpush1.msra.mxu0 %v5071
    %5870 = vmatprep.subr.mxu0 0.0
    %5871 = vmatpush1.msra.mxu0 %v5072
    %5872 = vmatprep.subr.mxu0 0.0
    %5873 = vmatpush1.msra.mxu0 %v5073
    %5874 = vmatprep.subr.mxu0 0.0
    %5875 = vmatpush1.msra.mxu0 %v5074
    %5876 = vmatprep.mubr.f32.mxu0 %v5805
    %5877 = vmatmul.mubr.f32.gmra.mrb[0].mxu0 %v5804
    %v5878 = vpop.f32.mrb[0].mxu0
    %v5879 = vadd.f32 0.0, %v5878
    %v5880 = vpop.f32.mrb[0].mxu0
    %5881 = vdwg.mxu0
    %5882 = vmatprep.subr.mxu0 0.0
    %5883 = vmatpush1.msra.mxu0 %v5075
    %5884 = vmatprep.subr.mxu0 0.0
    %5885 = vmatpush1.msra.mxu0 %v5076
    %5886 = vmatprep.subr.mxu0 0.0
    %5887 = vmatpush1.msra.mxu0 %v5077
    %5888 = vmatprep.subr.mxu0 0.0
    %5889 = vmatpush1.msra.mxu0 %v5078
    %5890 = vmatprep.subr.mxu0 0.0
    %5891 = vmatpush1.msra.mxu0 %v5079
    %5892 = vmatprep.subr.mxu0 0.0
    %5893 = vmatpush1.msra.mxu0 %v5080
    %5894 = vmatprep.subr.mxu0 0.0
    %5895 = vmatpush1.msra.mxu0 %v5081
    %5896 = vmatprep.subr.mxu0 0.0
    %5897 = vmatpush1.msra.mxu0 %v5082
    %5898 = vmatprep.subr.mxu0 0.0
    %5899 = vmatpush1.msra.mxu0 %v5083
    %5900 = vmatprep.subr.mxu0 0.0
    %5901 = vmatpush1.msra.mxu0 %v5084
    %5902 = vmatprep.subr.mxu0 0.0
    %5903 = vmatpush1.msra.mxu0 %v5085
    %5904 = vmatprep.subr.mxu0 0.0
    %5905 = vmatpush1.msra.mxu0 %v5086
    %5906 = vmatprep.subr.mxu0 0.0
    %5907 = vmatpush1.msra.mxu0 %v5087
    %5908 = vmatprep.subr.mxu0 0.0
    %5909 = vmatpush1.msra.mxu0 %v5088
    %5910 = vmatprep.subr.mxu0 0.0
    %5911 = vmatpush1.msra.mxu0 %v5089
    %5912 = vmatprep.subr.mxu0 0.0
    %5913 = vmatpush1.msra.mxu0 %v5090
    %5914 = vmatprep.subr.mxu0 0.0
    %5915 = vmatpush1.msra.mxu0 %v5091
    %5916 = vmatprep.subr.mxu0 0.0
    %5917 = vmatpush1.msra.mxu0 %v5092
    %5918 = vmatprep.subr.mxu0 0.0
    %5919 = vmatpush1.msra.mxu0 %v5093
    %5920 = vmatprep.subr.mxu0 0.0
    %5921 = vmatpush1.msra.mxu0 %v5094
    %5922 = vmatprep.subr.mxu0 0.0
    %5923 = vmatpush1.msra.mxu0 %v5095
    %5924 = vmatprep.subr.mxu0 0.0
    %5925 = vmatpush1.msra.mxu0 %v5096
    %5926 = vmatprep.subr.mxu0 0.0
    %5927 = vmatpush1.msra.mxu0 %v5097
    %5928 = vmatprep.subr.mxu0 0.0
    %5929 = vmatpush1.msra.mxu0 %v5098
    %5930 = vmatprep.subr.mxu0 0.0
    %5931 = vmatpush1.msra.mxu0 %v5099
    %5932 = vmatprep.subr.mxu0 0.0
    %5933 = vmatpush1.msra.mxu0 %v5100
    %5934 = vmatprep.subr.mxu0 0.0
    %5935 = vmatpush1.msra.mxu0 %v5101
    %5936 = vmatprep.subr.mxu0 0.0
    %5937 = vmatpush1.msra.mxu0 %v5102
    %5938 = vmatprep.subr.mxu0 0.0
    %5939 = vmatpush1.msra.mxu0 %v5103
    %5940 = vmatprep.subr.mxu0 0.0
    %5941 = vmatpush1.msra.mxu0 %v5104
    %5942 = vmatprep.subr.mxu0 0.0
    %5943 = vmatpush1.msra.mxu0 %v5105
    %5944 = vmatprep.subr.mxu0 0.0
    %5945 = vmatpush1.msra.mxu0 %v5106
    %5946 = vmatprep.mubr.f32.mxu0 %v5807
    %5947 = vmatmul.mubr.f32.gmra.mrb[0].mxu0 %v5806
    %v5948 = vpop.f32.mrb[0].mxu0
    %v5949 = vadd.f32 %v5879, %v5948
    %v5950 = vpop.f32.mrb[0].mxu0
    %5951 = vdwg.mxu0
    %5952 = vmatprep.subr.mxu0 0.0
    %5953 = vmatpush1.msra.mxu0 %v5107
    %5954 = vmatprep.subr.mxu0 0.0
    %5955 = vmatpush1.msra.mxu0 %v5108
    %5956 = vmatprep.subr.mxu0 0.0
    %5957 = vmatpush1.msra.mxu0 %v5109
    %5958 = vmatprep.subr.mxu0 0.0
    %5959 = vmatpush1.msra.mxu0 %v5110
    %5960 = vmatprep.subr.mxu0 0.0
    %5961 = vmatpush1.msra.mxu0 %v5111
    %5962 = vmatprep.subr.mxu0 0.0
    %5963 = vmatpush1.msra.mxu0 %v5112
    %5964 = vmatprep.subr.mxu0 0.0
    %5965 = vmatpush1.msra.mxu0 %v5113
    %5966 = vmatprep.subr.mxu0 0.0
    %5967 = vmatpush1.msra.mxu0 %v5114
    %5968 = vmatprep.subr.mxu0 0.0
    %5969 = vmatpush1.msra.mxu0 %v5115
    %5970 = vmatprep.subr.mxu0 0.0
    %5971 = vmatpush1.msra.mxu0 %v5116
    %5972 = vmatprep.subr.mxu0 0.0
    %5973 = vmatpush1.msra.mxu0 %v5117
    %5974 = vmatprep.subr.mxu0 0.0
    %5975 = vmatpush1.msra.mxu0 %v5118
    %5976 = vmatprep.subr.mxu0 0.0
    %5977 = vmatpush1.msra.mxu0 %v5119
    %5978 = vmatprep.subr.mxu0 0.0
    %5979 = vmatpush1.msra.mxu0 %v5120
    %5980 = vmatprep.subr.mxu0 0.0
    %5981 = vmatpush1.msra.mxu0 %v5121
    %5982 = vmatprep.subr.mxu0 0.0
    %5983 = vmatpush1.msra.mxu0 %v5122
    %5984 = vmatprep.subr.mxu0 0.0
    %5985 = vmatpush1.msra.mxu0 %v5123
    %5986 = vmatprep.subr.mxu0 0.0
    %5987 = vmatpush1.msra.mxu0 %v5124
    %5988 = vmatprep.subr.mxu0 0.0
    %5989 = vmatpush1.msra.mxu0 %v5125
    %5990 = vmatprep.subr.mxu0 0.0
    %5991 = vmatpush1.msra.mxu0 %v5126
    %5992 = vmatprep.subr.mxu0 0.0
    %5993 = vmatpush1.msra.mxu0 %v5127
    %5994 = vmatprep.subr.mxu0 0.0
    %5995 = vmatpush1.msra.mxu0 %v5128
    %5996 = vmatprep.subr.mxu0 0.0
    %5997 = vmatpush1.msra.mxu0 %v5129
    %5998 = vmatprep.subr.mxu0 0.0
    %5999 = vmatpush1.msra.mxu0 %v5130
    %6000 = vmatprep.subr.mxu0 0.0
    %6001 = vmatpush1.msra.mxu0 %v5131
    %6002 = vmatprep.subr.mxu0 0.0
    %6003 = vmatpush1.msra.mxu0 %v5132
    %6004 = vmatprep.subr.mxu0 0.0
    %6005 = vmatpush1.msra.mxu0 %v5133
    %6006 = vmatprep.subr.mxu0 0.0
    %6007 = vmatpush1.msra.mxu0 %v5134
    %6008 = vmatprep.subr.mxu0 0.0
    %6009 = vmatpush1.msra.mxu0 %v5135
    %6010 = vmatprep.subr.mxu0 0.0
    %6011 = vmatpush1.msra.mxu0 %v5136
    %6012 = vmatprep.subr.mxu0 0.0
    %6013 = vmatpush1.msra.mxu0 %v5137
    %6014 = vmatprep.subr.mxu0 0.0
    %6015 = vmatpush1.msra.mxu0 %v5138
    %6016 = vmatprep.mubr.f32.mxu0 %v5809
    %6017 = vmatmul.mubr.f32.gmra.mrb[0].mxu0 %v5808
    %v6018 = vpop.f32.mrb[0].mxu0
    %v6019 = vadd.f32 %v5949, %v6018
    %v6020 = vpop.f32.mrb[0].mxu0
    %6021 = vdwg.mxu0
    %6022 = vmatprep.subr.mxu0 0.0
    %6023 = vmatpush1.msra.mxu0 %v5139
    %6024 = vmatprep.subr.mxu0 0.0
    %6025 = vmatpush1.msra.mxu0 %v5140
    %6026 = vmatprep.subr.mxu0 0.0
    %6027 = vmatpush1.msra.mxu0 %v5141
    %6028 = vmatprep.subr.mxu0 0.0
    %6029 = vmatpush1.msra.mxu0 %v5142
    %6030 = vmatprep.subr.mxu0 0.0
    %6031 = vmatpush1.msra.mxu0 %v5143
    %6032 = vmatprep.subr.mxu0 0.0
    %6033 = vmatpush1.msra.mxu0 %v5144
    %6034 = vmatprep.subr.mxu0 0.0
    %6035 = vmatpush1.msra.mxu0 %v5145
    %6036 = vmatprep.subr.mxu0 0.0
    %6037 = vmatpush1.msra.mxu0 %v5146
    %6038 = vmatprep.subr.mxu0 0.0
    %6039 = vmatpush1.msra.mxu0 %v5147
    %6040 = vmatprep.subr.mxu0 0.0
    %6041 = vmatpush1.msra.mxu0 %v5148
    %6042 = vmatprep.subr.mxu0 0.0
    %6043 = vmatpush1.msra.mxu0 %v5149
    %6044 = vmatprep.subr.mxu0 0.0
    %6045 = vmatpush1.msra.mxu0 %v5150
    %6046 = vmatprep.subr.mxu0 0.0
    %6047 = vmatpush1.msra.mxu0 %v5151
    %6048 = vmatprep.subr.mxu0 0.0
    %6049 = vmatpush1.msra.mxu0 %v5152
    %6050 = vmatprep.subr.mxu0 0.0
    %6051 = vmatpush1.msra.mxu0 %v5153
    %6052 = vmatprep.subr.mxu0 0.0
    %6053 = vmatpush1.msra.mxu0 %v5154
    %6054 = vmatprep.subr.mxu0 0.0
    %6055 = vmatpush1.msra.mxu0 %v5155
    %6056 = vmatprep.subr.mxu0 0.0
    %6057 = vmatpush1.msra.mxu0 %v5156
    %6058 = vmatprep.subr.mxu0 0.0
    %6059 = vmatpush1.msra.mxu0 %v5157
    %6060 = vmatprep.subr.mxu0 0.0
    %6061 = vmatpush1.msra.mxu0 %v5158
    %6062 = vmatprep.subr.mxu0 0.0
    %6063 = vmatpush1.msra.mxu0 %v5159
    %6064 = vmatprep.subr.mxu0 0.0
    %6065 = vmatpush1.msra.mxu0 %v5160
    %6066 = vmatprep.subr.mxu0 0.0
    %6067 = vmatpush1.msra.mxu0 %v5161
    %6068 = vmatprep.subr.mxu0 0.0
    %6069 = vmatpush1.msra.mxu0 %v5162
    %6070 = vmatprep.subr.mxu0 0.0
    %6071 = vmatpush1.msra.mxu0 %v5163
    %6072 = vmatprep.subr.mxu0 0.0
    %6073 = vmatpush1.msra.mxu0 %v5164
    %6074 = vmatprep.subr.mxu0 0.0
    %6075 = vmatpush1.msra.mxu0 %v5165
    %6076 = vmatprep.subr.mxu0 0.0
    %6077 = vmatpush1.msra.mxu0 %v5166
    %6078 = vmatprep.subr.mxu0 0.0
    %6079 = vmatpush1.msra.mxu0 %v5167
    %6080 = vmatprep.subr.mxu0 0.0
    %6081 = vmatpush1.msra.mxu0 %v5168
    %6082 = vmatprep.subr.mxu0 0.0
    %6083 = vmatpush1.msra.mxu0 %v5169
    %6084 = vmatprep.subr.mxu0 0.0
    %6085 = vmatpush1.msra.mxu0 %v5170
    %6086 = vmatprep.mubr.f32.mxu0 %v5811
    %6087 = vmatmul.mubr.f32.gmra.mrb[0].mxu0 %v5810
    %v6088 = vpop.f32.mrb[0].mxu0
    %v6089 = vadd.f32 %v6019, %v6088
    %v6090 = vpop.f32.mrb[0].mxu0
    %6091 = vdwg.mxu0
    %v6092 = vsel %vm5451, %v6089, 0.0
    %v6093 = vrot.slane %v6092, 4
    %v6094 = vadd.f32 %v6092, %v6093
    %v6095 = vrot.slane %v6094, 2
    %v6096 = vadd.f32 %v6094, %v6095
    %v6097 = vrot.slane %v6096, 1
    %v6098 = vadd.f32 %v6096, %v6097
    %v6099 = vmul.f32 %v6098, 0.00390625
    %v6100 = vld [vmem:[#allocation12] sm:$0x1]
    %v6101 = vadd.f32 %v6099, 1e-05
    %v6102 = vrsqrt.pop %v6101
    %v6103 = vmul.f32 %v6100, %v6102
    %v6105 = vsel %vm5476, %v6103, 0
    %6107 = vmatprep.subr.mxu0 %v5461
    %6108 = vmatpush1.msra.mxu0 %v5460
    %6109 = vmatprep.subr.mxu0 %v5469
    %6110 = vmatpush1.msra.mxu0 %v5468
    %6111 = vmatprep.subr.mxu0 0.0
    %6112 = vmatpush1.msra.mxu0 0.0
    %6113 = vmatprep.subr.mxu0 0.0
    %6114 = vmatpush1.msra.mxu0 0.0
    %6115 = vmatprep.subr.mxu0 0.0
    %6116 = vmatpush1.msra.mxu0 0.0
    %6117 = vmatprep.subr.mxu0 0.0
    %6118 = vmatpush1.msra.mxu0 0.0
    %6119 = vmatprep.subr.mxu0 0.0
    %6120 = vmatpush1.msra.mxu0 0.0
    %6121 = vmatprep.subr.mxu0 0.0
    %6122 = vmatpush1.msra.mxu0 0.0
    %6123 = vmatprep.subr.mxu0 0.0
    %6124 = vmatpush1.msra.mxu0 0.0
    %6125 = vmatprep.subr.mxu0 0.0
    %6126 = vmatpush1.msra.mxu0 0.0
    %6127 = vmatprep.subr.mxu0 0.0
    %6128 = vmatpush1.msra.mxu0 0.0
    %6129 = vmatprep.subr.mxu0 0.0
    %6130 = vmatpush1.msra.mxu0 0.0
    %6131 = vmatprep.subr.mxu0 0.0
    %6132 = vmatpush1.msra.mxu0 0.0
    %6133 = vmatprep.subr.mxu0 0.0
    %6134 = vmatpush1.msra.mxu0 0.0
    %6135 = vmatprep.subr.mxu0 0.0
    %6136 = vmatpush1.msra.mxu0 0.0
    %6137 = vmatprep.subr.mxu0 0.0
    %6138 = vmatpush1.msra.mxu0 0.0
    %6139 = vmatprep.subr.mxu0 0.0
    %6140 = vmatpush1.msra.mxu0 0.0
    %6141 = vmatprep.subr.mxu0 0.0
    %6142 = vmatpush1.msra.mxu0 0.0
    %6143 = vmatprep.subr.mxu0 0.0
    %6144 = vmatpush1.msra.mxu0 0.0
    %6145 = vmatprep.subr.mxu0 0.0
    %6146 = vmatpush1.msra.mxu0 0.0
    %6147 = vmatprep.subr.mxu0 0.0
    %6148 = vmatpush1.msra.mxu0 0.0
    %6149 = vmatprep.subr.mxu0 0.0
    %6150 = vmatpush1.msra.mxu0 0.0
    %6151 = vmatprep.subr.mxu0 0.0
    %6152 = vmatpush1.msra.mxu0 0.0
    %6153 = vmatprep.subr.mxu0 0.0
    %6154 = vmatpush1.msra.mxu0 0.0
    %6155 = vmatprep.subr.mxu0 0.0
    %6156 = vmatpush1.msra.mxu0 0.0
    %6157 = vmatprep.subr.mxu0 0.0
    %6158 = vmatpush1.msra.mxu0 0.0
    %6159 = vmatprep.subr.mxu0 0.0
    %6160 = vmatpush1.msra.mxu0 0.0
    %6161 = vmatprep.subr.mxu0 0.0
    %6162 = vmatpush1.msra.mxu0 0.0
    %6163 = vmatprep.subr.mxu0 0.0
    %6164 = vmatpush1.msra.mxu0 0.0
    %6165 = vmatprep.subr.mxu0 0.0
    %6166 = vmatpush1.msra.mxu0 0.0
    %6167 = vmatprep.subr.mxu0 0.0
    %6168 = vmatpush1.msra.mxu0 0.0
    %6169 = vmatprep.subr.mxu0 0.0
    %6170 = vmatpush1.msra.mxu0 0.0
    %6171 = vmatprep.mubr.f32.mxu0 0.0
    %6172 = vmatmul.mubr.f32.gmra.mrb[0].mxu0 %v6105
    %v6173 = vpop.f32.mrb[0].mxu0
    %v6174 = vadd.f32 0.0, %v6173
    %v6175 = vpop.f32.mrb[0].mxu0
    %v6176 = vadd.f32 0.0, %v6175
    %6177 = vdwg.mxu0
    %6178 = vmatprep.subr.mxu0 %v5463
    %6179 = vmatpush1.msra.mxu0 %v5462
    %6180 = vmatprep.subr.mxu0 %v5471
    %6181 = vmatpush1.msra.mxu0 %v5470
    %6182 = vmatprep.subr.mxu0 0.0
    %6183 = vmatpush1.msra.mxu0 0.0
    %6184 = vmatprep.subr.mxu0 0.0
    %6185 = vmatpush1.msra.mxu0 0.0
    %6186 = vmatprep.subr.mxu0 0.0
    %6187 = vmatpush1.msra.mxu0 0.0
    %6188 = vmatprep.subr.mxu0 0.0
    %6189 = vmatpush1.msra.mxu0 0.0
    %6190 = vmatprep.subr.mxu0 0.0
    %6191 = vmatpush1.msra.mxu0 0.0
    %6192 = vmatprep.subr.mxu0 0.0
    %6193 = vmatpush1.msra.mxu0 0.0
    %6194 = vmatprep.subr.mxu0 0.0
    %6195 = vmatpush1.msra.mxu0 0.0
    %6196 = vmatprep.subr.mxu0 0.0
    %6197 = vmatpush1.msra.mxu0 0.0
    %6198 = vmatprep.subr.mxu0 0.0
    %6199 = vmatpush1.msra.mxu0 0.0
    %6200 = vmatprep.subr.mxu0 0.0
    %6201 = vmatpush1.msra.mxu0 0.0
    %6202 = vmatprep.subr.mxu0 0.0
    %6203 = vmatpush1.msra.mxu0 0.0
    %6204 = vmatprep.subr.mxu0 0.0
    %6205 = vmatpush1.msra.mxu0 0.0
    %6206 = vmatprep.subr.mxu0 0.0
    %6207 = vmatpush1.msra.mxu0 0.0
    %6208 = vmatprep.subr.mxu0 0.0
    %6209 = vmatpush1.msra.mxu0 0.0
    %6210 = vmatprep.subr.mxu0 0.0
    %6211 = vmatpush1.msra.mxu0 0.0
    %6212 = vmatprep.subr.mxu0 0.0
    %6213 = vmatpush1.msra.mxu0 0.0
    %6214 = vmatprep.subr.mxu0 0.0
    %6215 = vmatpush1.msra.mxu0 0.0
    %6216 = vmatprep.subr.mxu0 0.0
    %6217 = vmatpush1.msra.mxu0 0.0
    %6218 = vmatprep.subr.mxu0 0.0
    %6219 = vmatpush1.msra.mxu0 0.0
    %6220 = vmatprep.subr.mxu0 0.0
    %6221 = vmatpush1.msra.mxu0 0.0
    %6222 = vmatprep.subr.mxu0 0.0
    %6223 = vmatpush1.msra.mxu0 0.0
    %6224 = vmatprep.subr.mxu0 0.0
    %6225 = vmatpush1.msra.mxu0 0.0
    %6226 = vmatprep.subr.mxu0 0.0
    %6227 = vmatpush1.msra.mxu0 0.0
    %6228 = vmatprep.subr.mxu0 0.0
    %6229 = vmatpush1.msra.mxu0 0.0
    %6230 = vmatprep.subr.mxu0 0.0
    %6231 = vmatpush1.msra.mxu0 0.0
    %6232 = vmatprep.subr.mxu0 0.0
    %6233 = vmatpush1.msra.mxu0 0.0
    %6234 = vmatprep.subr.mxu0 0.0
    %6235 = vmatpush1.msra.mxu0 0.0
    %6236 = vmatprep.subr.mxu0 0.0
    %6237 = vmatpush1.msra.mxu0 0.0
    %6238 = vmatprep.subr.mxu0 0.0
    %6239 = vmatpush1.msra.mxu0 0.0
    %6240 = vmatprep.subr.mxu0 0.0
    %6241 = vmatpush1.msra.mxu0 0.0
    %6242 = vmatprep.mubr.f32.mxu0 0.0
    %6243 = vmatmul.mubr.f32.gmra.mrb[0].mxu0 %v6105
    %v6244 = vpop.f32.mrb[0].mxu0
    %v6245 = vadd.f32 0.0, %v6244
    %v6246 = vpop.f32.mrb[0].mxu0
    %v6247 = vadd.f32 0.0, %v6246
    %6248 = vdwg.mxu0
    %6249 = vmatprep.subr.mxu0 %v5465
    %6250 = vmatpush1.msra.mxu0 %v5464
    %6251 = vmatprep.subr.mxu0 %v5473
    %6252 = vmatpush1.msra.mxu0 %v5472
    %6253 = vmatprep.subr.mxu0 0.0
    %6254 = vmatpush1.msra.mxu0 0.0
    %6255 = vmatprep.subr.mxu0 0.0
    %6256 = vmatpush1.msra.mxu0 0.0
    %6257 = vmatprep.subr.mxu0 0.0
    %6258 = vmatpush1.msra.mxu0 0.0
    %6259 = vmatprep.subr.mxu0 0.0
    %6260 = vmatpush1.msra.mxu0 0.0
    %6261 = vmatprep.subr.mxu0 0.0
    %6262 = vmatpush1.msra.mxu0 0.0
    %6263 = vmatprep.subr.mxu0 0.0
    %6264 = vmatpush1.msra.mxu0 0.0
    %6265 = vmatprep.subr.mxu0 0.0
    %6266 = vmatpush1.msra.mxu0 0.0
    %6267 = vmatprep.subr.mxu0 0.0
    %6268 = vmatpush1.msra.mxu0 0.0
    %6269 = vmatprep.subr.mxu0 0.0
    %6270 = vmatpush1.msra.mxu0 0.0
    %6271 = vmatprep.subr.mxu0 0.0
    %6272 = vmatpush1.msra.mxu0 0.0
    %6273 = vmatprep.subr.mxu0 0.0
    %6274 = vmatpush1.msra.mxu0 0.0
    %6275 = vmatprep.subr.mxu0 0.0
    %6276 = vmatpush1.msra.mxu0 0.0
    %6277 = vmatprep.subr.mxu0 0.0
    %6278 = vmatpush1.msra.mxu0 0.0
    %6279 = vmatprep.subr.mxu0 0.0
    %6280 = vmatpush1.msra.mxu0 0.0
    %6281 = vmatprep.subr.mxu0 0.0
    %6282 = vmatpush1.msra.mxu0 0.0
    %6283 = vmatprep.subr.mxu0 0.0
    %6284 = vmatpush1.msra.mxu0 0.0
    %6285 = vmatprep.subr.mxu0 0.0
    %6286 = vmatpush1.msra.mxu0 0.0
    %6287 = vmatprep.subr.mxu0 0.0
    %6288 = vmatpush1.msra.mxu0 0.0
    %6289 = vmatprep.subr.mxu0 0.0
    %6290 = vmatpush1.msra.mxu0 0.0
    %6291 = vmatprep.subr.mxu0 0.0
    %6292 = vmatpush1.msra.mxu0 0.0
    %6293 = vmatprep.subr.mxu0 0.0
    %6294 = vmatpush1.msra.mxu0 0.0
    %6295 = vmatprep.subr.mxu0 0.0
    %6296 = vmatpush1.msra.mxu0 0.0
    %6297 = vmatprep.subr.mxu0 0.0
    %6298 = vmatpush1.msra.mxu0 0.0
    %6299 = vmatprep.subr.mxu0 0.0
    %6300 = vmatpush1.msra.mxu0 0.0
    %6301 = vmatprep.subr.mxu0 0.0
    %6302 = vmatpush1.msra.mxu0 0.0
    %6303 = vmatprep.subr.mxu0 0.0
    %6304 = vmatpush1.msra.mxu0 0.0
    %6305 = vmatprep.subr.mxu0 0.0
    %6306 = vmatpush1.msra.mxu0 0.0
    %6307 = vmatprep.subr.mxu0 0.0
    %6308 = vmatpush1.msra.mxu0 0.0
    %6309 = vmatprep.subr.mxu0 0.0
    %6310 = vmatpush1.msra.mxu0 0.0
    %6311 = vmatprep.subr.mxu0 0.0
    %6312 = vmatpush1.msra.mxu0 0.0
    %6313 = vmatprep.mubr.f32.mxu0 0.0
    %6314 = vmatmul.mubr.f32.gmra.mrb[0].mxu0 %v6105
    %v6315 = vpop.f32.mrb[0].mxu0
    %v6316 = vadd.f32 0.0, %v6315
    %v6317 = vpop.f32.mrb[0].mxu0
    %v6318 = vadd.f32 0.0, %v6317
    %6319 = vdwg.mxu0
    %6320 = vmatprep.subr.mxu0 %v5467
    %6321 = vmatpush1.msra.mxu0 %v5466
    %6322 = vmatprep.subr.mxu0 %v5475
    %6323 = vmatpush1.msra.mxu0 %v5474
    %6324 = vmatprep.subr.mxu0 0.0
    %6325 = vmatpush1.msra.mxu0 0.0
    %6326 = vmatprep.subr.mxu0 0.0
    %6327 = vmatpush1.msra.mxu0 0.0
    %6328 = vmatprep.subr.mxu0 0.0
    %6329 = vmatpush1.msra.mxu0 0.0
    %6330 = vmatprep.subr.mxu0 0.0
    %6331 = vmatpush1.msra.mxu0 0.0
    %6332 = vmatprep.subr.mxu0 0.0
    %6333 = vmatpush1.msra.mxu0 0.0
    %6334 = vmatprep.subr.mxu0 0.0
    %6335 = vmatpush1.msra.mxu0 0.0
    %6336 = vmatprep.subr.mxu0 0.0
    %6337 = vmatpush1.msra.mxu0 0.0
    %6338 = vmatprep.subr.mxu0 0.0
    %6339 = vmatpush1.msra.mxu0 0.0
    %6340 = vmatprep.subr.mxu0 0.0
    %6341 = vmatpush1.msra.mxu0 0.0
    %6342 = vmatprep.subr.mxu0 0.0
    %6343 = vmatpush1.msra.mxu0 0.0
    %6344 = vmatprep.subr.mxu0 0.0
    %6345 = vmatpush1.msra.mxu0 0.0
    %6346 = vmatprep.subr.mxu0 0.0
    %6347 = vmatpush1.msra.mxu0 0.0
    %6348 = vmatprep.subr.mxu0 0.0
    %6349 = vmatpush1.msra.mxu0 0.0
    %6350 = vmatprep.subr.mxu0 0.0
    %6351 = vmatpush1.msra.mxu0 0.0
    %6352 = vmatprep.subr.mxu0 0.0
    %6353 = vmatpush1.msra.mxu0 0.0
    %6354 = vmatprep.subr.mxu0 0.0
    %6355 = vmatpush1.msra.mxu0 0.0
    %6356 = vmatprep.subr.mxu0 0.0
    %6357 = vmatpush1.msra.mxu0 0.0
    %6358 = vmatprep.subr.mxu0 0.0
    %6359 = vmatpush1.msra.mxu0 0.0
    %6360 = vmatprep.subr.mxu0 0.0
    %6361 = vmatpush1.msra.mxu0 0.0
    %6362 = vmatprep.subr.mxu0 0.0
    %6363 = vmatpush1.msra.mxu0 0.0
    %6364 = vmatprep.subr.mxu0 0.0
    %6365 = vmatpush1.msra.mxu0 0.0
    %6366 = vmatprep.subr.mxu0 0.0
    %6367 = vmatpush1.msra.mxu0 0.0
    %6368 = vmatprep.subr.mxu0 0.0
    %6369 = vmatpush1.msra.mxu0 0.0
    %6370 = vmatprep.subr.mxu0 0.0
    %6371 = vmatpush1.msra.mxu0 0.0
    %6372 = vmatprep.subr.mxu0 0.0
    %6373 = vmatpush1.msra.mxu0 0.0
    %6374 = vmatprep.subr.mxu0 0.0
    %6375 = vmatpush1.msra.mxu0 0.0
    %6376 = vmatprep.subr.mxu0 0.0
    %6377 = vmatpush1.msra.mxu0 0.0
    %6378 = vmatprep.subr.mxu0 0.0
    %6379 = vmatpush1.msra.mxu0 0.0
    %6380 = vmatprep.subr.mxu0 0.0
    %6381 = vmatpush1.msra.mxu0 0.0
    %6382 = vmatprep.subr.mxu0 0.0
    %6383 = vmatpush1.msra.mxu0 0.0
    %6384 = vmatprep.mubr.f32.mxu0 0.0
    %6385 = vmatmul.mubr.f32.gmra.mrb[0].mxu0 %v6105
    %v6386 = vpop.f32.mrb[0].mxu0
    %v6387 = vadd.f32 0.0, %v6386
    %v6388 = vpop.f32.mrb[0].mxu0
    %v6389 = vadd.f32 0.0, %v6388
    %6390 = vdwg.mxu0
    %v6391 = vlaneseq
    %v6392 = vshrl.u32 %v6391, 7
    %v6393 = vsub.s32 0, %v6392
    %v6394 = vrot.slane %v6174, %v6393
    %v6395 = vlaneseq
    %v6396 = vshrl.u32 %v6395, 7
    %v6397 = vsub.s32 0, %v6396
    %v6398 = vrot.slane %v6176, %v6397
    %v6399 = vlaneseq
    %v6400 = vshrl.u32 %v6399, 7
    %v6401 = vsub.s32 0, %v6400
    %v6402 = vrot.slane %v6245, %v6401
    %v6403 = vlaneseq
    %v6404 = vshrl.u32 %v6403, 7
    %v6405 = vsub.s32 0, %v6404
    %v6406 = vrot.slane %v6247, %v6405
    %v6407 = vlaneseq
    %v6408 = vshrl.u32 %v6407, 7
    %v6409 = vsub.s32 0, %v6408
    %v6410 = vrot.slane %v6316, %v6409
    %v6411 = vlaneseq
    %v6412 = vshrl.u32 %v6411, 7
    %v6413 = vsub.s32 0, %v6412
    %v6414 = vrot.slane %v6318, %v6413
    %v6415 = vlaneseq
    %v6416 = vshrl.u32 %v6415, 7
    %v6417 = vsub.s32 0, %v6416
    %v6418 = vrot.slane %v6387, %v6417
    %v6419 = vlaneseq
    %v6420 = vshrl.u32 %v6419, 7
    %v6421 = vsub.s32 0, %v6420
    %v6422 = vrot.slane %v6389, %v6421
    %v6423 = vmul.f32 %v5796, %v6394
    %v6424 = vmul.f32 %v5797, %v6398
    %v6425 = vmul.f32 %v5798, %v6402
    %v6426 = vmul.f32 %v5799, %v6406
    %v6427 = vmul.f32 %v5800, %v6410
    %v6428 = vmul.f32 %v5801, %v6414
    %v6429 = vmul.f32 %v5802, %v6418
    %v6430 = vmul.f32 %v5803, %v6422
    %v6431 = vld [vmem:[#allocation14] sm:$0xff]
    %v6433 = vlaneseq
    %v6434 = vshrl.u32 %v6433, 7
    %v6435 = vsub.s32 0, %v6434
    %v6436 = vrot.slane %v6431, %v6435
    %v6437 = vlaneseq
    %v6438 = vshrl.u32 %v6437, 7
    %v6439 = vsub.s32 1, %v6438
    %v6440 = vrot.slane %v6431, %v6439
    %v6441 = vlaneseq
    %v6442 = vshrl.u32 %v6441, 7
    %v6443 = vsub.s32 2, %v6442
    %v6444 = vrot.slane %v6431, %v6443
    %v6445 = vlaneseq
    %v6446 = vshrl.u32 %v6445, 7
    %v6447 = vsub.s32 3, %v6446
    %v6448 = vrot.slane %v6431, %v6447
    %v6449 = vlaneseq
    %v6450 = vshrl.u32 %v6449, 7
    %v6451 = vsub.s32 4, %v6450
    %v6452 = vrot.slane %v6431, %v6451
    %v6453 = vlaneseq
    %v6454 = vshrl.u32 %v6453, 7
    %v6455 = vsub.s32 5, %v6454
    %v6456 = vrot.slane %v6431, %v6455
    %v6457 = vlaneseq
    %v6458 = vshrl.u32 %v6457, 7
    %v6459 = vsub.s32 6, %v6458
    %v6460 = vrot.slane %v6431, %v6459
    %v6461 = vlaneseq
    %v6462 = vshrl.u32 %v6461, 7
    %v6463 = vsub.s32 7, %v6462
    %v6464 = vrot.slane %v6431, %v6463
    %v6473 = vadd.f32 %v6423, %v6436
    %v6474 = vadd.f32 %v6424, %v6440
    %v6475 = vadd.f32 %v6425, %v6444
    %v6476 = vadd.f32 %v6426, %v6448
    %v6477 = vadd.f32 %v6427, %v6452
    %v6478 = vadd.f32 %v6428, %v6456
    %v6479 = vadd.f32 %v6429, %v6460
    %v6480 = vadd.f32 %v6430, %v6464
    %v6481 = vmax.f32 %v6473, 0.0
    %v6482 = vmax.f32 %v6474, 0.0
    %v6483 = vmax.f32 %v6475, 0.0
    %v6484 = vmax.f32 %v6476, 0.0
    %v6485 = vmax.f32 %v6477, 0.0
    %v6486 = vmax.f32 %v6478, 0.0
    %v6487 = vmax.f32 %v6479, 0.0
    %v6488 = vmax.f32 %v6480, 0.0
    %v6489 = vpack.c.bf16 %v6481, %v6481
    %v6490 = vpack.c.bf16 %v6482, %v6482
    %v6491 = vpack.c.bf16 %v6483, %v6483
    %v6492 = vpack.c.bf16 %v6484, %v6484
    %v6493 = vpack.c.bf16 %v6485, %v6485
    %v6494 = vpack.c.bf16 %v6486, %v6486
    %v6495 = vpack.c.bf16 %v6487, %v6487
    %v6496 = vpack.c.bf16 %v6488, %v6488
    %v6497 = vld [vmem:[#allocation15] sm:$0xff]
    %v6498 = vld [vmem:[#allocation15 + $0x8] sm:$0xff]
    %v6499 = vld [vmem:[#allocation15 + $0x10] sm:$0xff]
    %v6500 = vld [vmem:[#allocation15 + $0x18] sm:$0xff]
    %v6501 = vld [vmem:[#allocation15 + $0x20] sm:$0xff]
    %v6502 = vld [vmem:[#allocation15 + $0x28] sm:$0xff]
    %v6503 = vld [vmem:[#allocation15 + $0x30] sm:$0xff]
    %v6504 = vld [vmem:[#allocation15 + $0x38] sm:$0xff]
    %v6505 = vld [vmem:[#allocation15 + $0x40] sm:$0xff]
    %v6506 = vld [vmem:[#allocation15 + $0x48] sm:$0xff]
    %v6507 = vld [vmem:[#allocation15 + $0x50] sm:$0xff]
    %v6508 = vld [vmem:[#allocation15 + $0x58] sm:$0xff]
    %v6509 = vld [vmem:[#allocation15 + $0x60] sm:$0xff]
    %v6510 = vld [vmem:[#allocation15 + $0x68] sm:$0xff]
    %v6511 = vld [vmem:[#allocation15 + $0x70] sm:$0xff]
    %v6512 = vld [vmem:[#allocation15 + $0x78] sm:$0xff]
    %v6513 = vld [vmem:[#allocation15 + $0x80] sm:$0xff]
    %v6514 = vld [vmem:[#allocation15 + $0x88] sm:$0xff]
    %v6515 = vld [vmem:[#allocation15 + $0x90] sm:$0xff]
    %v6516 = vld [vmem:[#allocation15 + $0x98] sm:$0xff]
    %v6517 = vld [vmem:[#allocation15 + $0xa0] sm:$0xff]
    %v6518 = vld [vmem:[#allocation15 + $0xa8] sm:$0xff]
    %v6519 = vld [vmem:[#allocation15 + $0xb0] sm:$0xff]
    %v6520 = vld [vmem:[#allocation15 + $0xb8] sm:$0xff]
    %v6521 = vld [vmem:[#allocation15 + $0xc0] sm:$0xff]
    %v6522 = vld [vmem:[#allocation15 + $0xc8] sm:$0xff]
    %v6523 = vld [vmem:[#allocation15 + $0xd0] sm:$0xff]
    %v6524 = vld [vmem:[#allocation15 + $0xd8] sm:$0xff]
    %v6525 = vld [vmem:[#allocation15 + $0xe0] sm:$0xff]
    %v6526 = vld [vmem:[#allocation15 + $0xe8] sm:$0xff]
    %v6527 = vld [vmem:[#allocation15 + $0xf0] sm:$0xff]
    %v6528 = vld [vmem:[#allocation15 + $0xf8] sm:$0xff]
    %v6529 = vld [vmem:[#allocation15 + $0x100] sm:$0xff]
    %v6530 = vld [vmem:[#allocation15 + $0x108] sm:$0xff]
    %v6531 = vld [vmem:[#allocation15 + $0x110] sm:$0xff]
    %v6532 = vld [vmem:[#allocation15 + $0x118] sm:$0xff]
    %v6533 = vld [vmem:[#allocation15 + $0x120] sm:$0xff]
    %v6534 = vld [vmem:[#allocation15 + $0x128] sm:$0xff]
    %v6535 = vld [vmem:[#allocation15 + $0x130] sm:$0xff]
    %v6536 = vld [vmem:[#allocation15 + $0x138] sm:$0xff]
    %v6537 = vld [vmem:[#allocation15 + $0x140] sm:$0xff]
    %v6538 = vld [vmem:[#allocation15 + $0x148] sm:$0xff]
    %v6539 = vld [vmem:[#allocation15 + $0x150] sm:$0xff]
    %v6540 = vld [vmem:[#allocation15 + $0x158] sm:$0xff]
    %v6541 = vld [vmem:[#allocation15 + $0x160] sm:$0xff]
    %v6542 = vld [vmem:[#allocation15 + $0x168] sm:$0xff]
    %v6543 = vld [vmem:[#allocation15 + $0x170] sm:$0xff]
    %v6544 = vld [vmem:[#allocation15 + $0x178] sm:$0xff]
    %v6545 = vld [vmem:[#allocation15 + $0x180] sm:$0xff]
    %v6546 = vld [vmem:[#allocation15 + $0x188] sm:$0xff]
    %v6547 = vld [vmem:[#allocation15 + $0x190] sm:$0xff]
    %v6548 = vld [vmem:[#allocation15 + $0x198] sm:$0xff]
    %v6549 = vld [vmem:[#allocation15 + $0x1a0] sm:$0xff]
    %v6550 = vld [vmem:[#allocation15 + $0x1a8] sm:$0xff]
    %v6551 = vld [vmem:[#allocation15 + $0x1b0] sm:$0xff]
    %v6552 = vld [vmem:[#allocation15 + $0x1b8] sm:$0xff]
    %v6553 = vld [vmem:[#allocation15 + $0x1c0] sm:$0xff]
    %v6554 = vld [vmem:[#allocation15 + $0x1c8] sm:$0xff]
    %v6555 = vld [vmem:[#allocation15 + $0x1d0] sm:$0xff]
    %v6556 = vld [vmem:[#allocation15 + $0x1d8] sm:$0xff]
    %v6557 = vld [vmem:[#allocation15 + $0x1e0] sm:$0xff]
    %v6558 = vld [vmem:[#allocation15 + $0x1e8] sm:$0xff]
    %v6559 = vld [vmem:[#allocation15 + $0x1f0] sm:$0xff]
    %v6560 = vld [vmem:[#allocation15 + $0x1f8] sm:$0xff]
    %v6561 = vld [vmem:[#allocation15 + $0x200] sm:$0xff]
    %v6562 = vld [vmem:[#allocation15 + $0x208] sm:$0xff]
    %v6563 = vld [vmem:[#allocation15 + $0x210] sm:$0xff]
    %v6564 = vld [vmem:[#allocation15 + $0x218] sm:$0xff]
    %v6565 = vld [vmem:[#allocation15 + $0x220] sm:$0xff]
    %v6566 = vld [vmem:[#allocation15 + $0x228] sm:$0xff]
    %v6567 = vld [vmem:[#allocation15 + $0x230] sm:$0xff]
    %v6568 = vld [vmem:[#allocation15 + $0x238] sm:$0xff]
    %v6569 = vld [vmem:[#allocation15 + $0x240] sm:$0xff]
    %v6570 = vld [vmem:[#allocation15 + $0x248] sm:$0xff]
    %v6571 = vld [vmem:[#allocation15 + $0x250] sm:$0xff]
    %v6572 = vld [vmem:[#allocation15 + $0x258] sm:$0xff]
    %v6573 = vld [vmem:[#allocation15 + $0x260] sm:$0xff]
    %v6574 = vld [vmem:[#allocation15 + $0x268] sm:$0xff]
    %v6575 = vld [vmem:[#allocation15 + $0x270] sm:$0xff]
    %v6576 = vld [vmem:[#allocation15 + $0x278] sm:$0xff]
    %v6577 = vld [vmem:[#allocation15 + $0x280] sm:$0xff]
    %v6578 = vld [vmem:[#allocation15 + $0x288] sm:$0xff]
    %v6579 = vld [vmem:[#allocation15 + $0x290] sm:$0xff]
    %v6580 = vld [vmem:[#allocation15 + $0x298] sm:$0xff]
    %v6581 = vld [vmem:[#allocation15 + $0x2a0] sm:$0xff]
    %v6582 = vld [vmem:[#allocation15 + $0x2a8] sm:$0xff]
    %v6583 = vld [vmem:[#allocation15 + $0x2b0] sm:$0xff]
    %v6584 = vld [vmem:[#allocation15 + $0x2b8] sm:$0xff]
    %v6585 = vld [vmem:[#allocation15 + $0x2c0] sm:$0xff]
    %v6586 = vld [vmem:[#allocation15 + $0x2c8] sm:$0xff]
    %v6587 = vld [vmem:[#allocation15 + $0x2d0] sm:$0xff]
    %v6588 = vld [vmem:[#allocation15 + $0x2d8] sm:$0xff]
    %v6589 = vld [vmem:[#allocation15 + $0x2e0] sm:$0xff]
    %v6590 = vld [vmem:[#allocation15 + $0x2e8] sm:$0xff]
    %v6591 = vld [vmem:[#allocation15 + $0x2f0] sm:$0xff]
    %v6592 = vld [vmem:[#allocation15 + $0x2f8] sm:$0xff]
    %v6593 = vld [vmem:[#allocation15 + $0x300] sm:$0xff]
    %v6594 = vld [vmem:[#allocation15 + $0x308] sm:$0xff]
    %v6595 = vld [vmem:[#allocation15 + $0x310] sm:$0xff]
    %v6596 = vld [vmem:[#allocation15 + $0x318] sm:$0xff]
    %v6597 = vld [vmem:[#allocation15 + $0x320] sm:$0xff]
    %v6598 = vld [vmem:[#allocation15 + $0x328] sm:$0xff]
    %v6599 = vld [vmem:[#allocation15 + $0x330] sm:$0xff]
    %v6600 = vld [vmem:[#allocation15 + $0x338] sm:$0xff]
    %v6601 = vld [vmem:[#allocation15 + $0x340] sm:$0xff]
    %v6602 = vld [vmem:[#allocation15 + $0x348] sm:$0xff]
    %v6603 = vld [vmem:[#allocation15 + $0x350] sm:$0xff]
    %v6604 = vld [vmem:[#allocation15 + $0x358] sm:$0xff]
    %v6605 = vld [vmem:[#allocation15 + $0x360] sm:$0xff]
    %v6606 = vld [vmem:[#allocation15 + $0x368] sm:$0xff]
    %v6607 = vld [vmem:[#allocation15 + $0x370] sm:$0xff]
    %v6608 = vld [vmem:[#allocation15 + $0x378] sm:$0xff]
    %v6609 = vld [vmem:[#allocation15 + $0x380] sm:$0xff]
    %v6610 = vld [vmem:[#allocation15 + $0x388] sm:$0xff]
    %v6611 = vld [vmem:[#allocation15 + $0x390] sm:$0xff]
    %v6612 = vld [vmem:[#allocation15 + $0x398] sm:$0xff]
    %v6613 = vld [vmem:[#allocation15 + $0x3a0] sm:$0xff]
    %v6614 = vld [vmem:[#allocation15 + $0x3a8] sm:$0xff]
    %v6615 = vld [vmem:[#allocation15 + $0x3b0] sm:$0xff]
    %v6616 = vld [vmem:[#allocation15 + $0x3b8] sm:$0xff]
    %v6617 = vld [vmem:[#allocation15 + $0x3c0] sm:$0xff]
    %v6618 = vld [vmem:[#allocation15 + $0x3c8] sm:$0xff]
    %v6619 = vld [vmem:[#allocation15 + $0x3d0] sm:$0xff]
    %v6620 = vld [vmem:[#allocation15 + $0x3d8] sm:$0xff]
    %v6621 = vld [vmem:[#allocation15 + $0x3e0] sm:$0xff]
    %v6622 = vld [vmem:[#allocation15 + $0x3e8] sm:$0xff]
    %v6623 = vld [vmem:[#allocation15 + $0x3f0] sm:$0xff]
    %v6624 = vld [vmem:[#allocation15 + $0x3f8] sm:$0xff]
    %v6625 = vld [vmem:[#allocation17] sm:$0x3]
    %v6627 = vlaneseq
    %v6628 = vshrl.u32 %v6627, 7
    %v6629 = vsub.s32 0, %v6628
    %v6630 = vrot.slane %v6625, %v6629
    %v6631 = vlaneseq
    %v6632 = vshrl.u32 %v6631, 7
    %v6633 = vsub.s32 1, %v6632
    %v6634 = vrot.slane %v6625, %v6633
    %v6765 = vunpack.c.l.b16 %v6497
    %v6766 = vunpack.c.h.b16 %v6497
    %v6767 = vunpack.c.l.b16 %v6498
    %v6768 = vunpack.c.h.b16 %v6498
    %v6769 = vunpack.c.l.b16 %v6499
    %v6770 = vunpack.c.h.b16 %v6499
    %v6771 = vunpack.c.l.b16 %v6500
    %v6772 = vunpack.c.h.b16 %v6500
    %v6773 = vunpack.c.l.b16 %v6501
    %v6774 = vunpack.c.h.b16 %v6501
    %v6775 = vunpack.c.l.b16 %v6502
    %v6776 = vunpack.c.h.b16 %v6502
    %v6777 = vunpack.c.l.b16 %v6503
    %v6778 = vunpack.c.h.b16 %v6503
    %v6779 = vunpack.c.l.b16 %v6504
    %v6780 = vunpack.c.h.b16 %v6504
    %v6781 = vunpack.c.l.b16 %v6505
    %v6782 = vunpack.c.h.b16 %v6505
    %v6783 = vunpack.c.l.b16 %v6506
    %v6784 = vunpack.c.h.b16 %v6506
    %v6785 = vunpack.c.l.b16 %v6507
    %v6786 = vunpack.c.h.b16 %v6507
    %v6787 = vunpack.c.l.b16 %v6508
    %v6788 = vunpack.c.h.b16 %v6508
    %v6789 = vunpack.c.l.b16 %v6509
    %v6790 = vunpack.c.h.b16 %v6509
    %v6791 = vunpack.c.l.b16 %v6510
    %v6792 = vunpack.c.h.b16 %v6510
    %v6793 = vunpack.c.l.b16 %v6511
    %v6794 = vunpack.c.h.b16 %v6511
    %v6795 = vunpack.c.l.b16 %v6512
    %v6796 = vunpack.c.h.b16 %v6512
    %v6797 = vunpack.c.l.b16 %v6513
    %v6798 = vunpack.c.h.b16 %v6513
    %v6799 = vunpack.c.l.b16 %v6514
    %v6800 = vunpack.c.h.b16 %v6514
    %v6801 = vunpack.c.l.b16 %v6515
    %v6802 = vunpack.c.h.b16 %v6515
    %v6803 = vunpack.c.l.b16 %v6516
    %v6804 = vunpack.c.h.b16 %v6516
    %v6805 = vunpack.c.l.b16 %v6517
    %v6806 = vunpack.c.h.b16 %v6517
    %v6807 = vunpack.c.l.b16 %v6518
    %v6808 = vunpack.c.h.b16 %v6518
    %v6809 = vunpack.c.l.b16 %v6519
    %v6810 = vunpack.c.h.b16 %v6519
    %v6811 = vunpack.c.l.b16 %v6520
    %v6812 = vunpack.c.h.b16 %v6520
    %v6813 = vunpack.c.l.b16 %v6521
    %v6814 = vunpack.c.h.b16 %v6521
    %v6815 = vunpack.c.l.b16 %v6522
    %v6816 = vunpack.c.h.b16 %v6522
    %v6817 = vunpack.c.l.b16 %v6523
    %v6818 = vunpack.c.h.b16 %v6523
    %v6819 = vunpack.c.l.b16 %v6524
    %v6820 = vunpack.c.h.b16 %v6524
    %v6821 = vunpack.c.l.b16 %v6525
    %v6822 = vunpack.c.h.b16 %v6525
    %v6823 = vunpack.c.l.b16 %v6526
    %v6824 = vunpack.c.h.b16 %v6526
    %v6825 = vunpack.c.l.b16 %v6527
    %v6826 = vunpack.c.h.b16 %v6527
    %v6827 = vunpack.c.l.b16 %v6528
    %v6828 = vunpack.c.h.b16 %v6528
    %v6829 = vunpack.c.l.b16 %v6529
    %v6830 = vunpack.c.h.b16 %v6529
    %v6831 = vunpack.c.l.b16 %v6530
    %v6832 = vunpack.c.h.b16 %v6530
    %v6833 = vunpack.c.l.b16 %v6531
    %v6834 = vunpack.c.h.b16 %v6531
    %v6835 = vunpack.c.l.b16 %v6532
    %v6836 = vunpack.c.h.b16 %v6532
    %v6837 = vunpack.c.l.b16 %v6533
    %v6838 = vunpack.c.h.b16 %v6533
    %v6839 = vunpack.c.l.b16 %v6534
    %v6840 = vunpack.c.h.b16 %v6534
    %v6841 = vunpack.c.l.b16 %v6535
    %v6842 = vunpack.c.h.b16 %v6535
    %v6843 = vunpack.c.l.b16 %v6536
    %v6844 = vunpack.c.h.b16 %v6536
    %v6845 = vunpack.c.l.b16 %v6537
    %v6846 = vunpack.c.h.b16 %v6537
    %v6847 = vunpack.c.l.b16 %v6538
    %v6848 = vunpack.c.h.b16 %v6538
    %v6849 = vunpack.c.l.b16 %v6539
    %v6850 = vunpack.c.h.b16 %v6539
    %v6851 = vunpack.c.l.b16 %v6540
    %v6852 = vunpack.c.h.b16 %v6540
    %v6853 = vunpack.c.l.b16 %v6541
    %v6854 = vunpack.c.h.b16 %v6541
    %v6855 = vunpack.c.l.b16 %v6542
    %v6856 = vunpack.c.h.b16 %v6542
    %v6857 = vunpack.c.l.b16 %v6543
    %v6858 = vunpack.c.h.b16 %v6543
    %v6859 = vunpack.c.l.b16 %v6544
    %v6860 = vunpack.c.h.b16 %v6544
    %v6861 = vunpack.c.l.b16 %v6545
    %v6862 = vunpack.c.h.b16 %v6545
    %v6863 = vunpack.c.l.b16 %v6546
    %v6864 = vunpack.c.h.b16 %v6546
    %v6865 = vunpack.c.l.b16 %v6547
    %v6866 = vunpack.c.h.b16 %v6547
    %v6867 = vunpack.c.l.b16 %v6548
    %v6868 = vunpack.c.h.b16 %v6548
    %v6869 = vunpack.c.l.b16 %v6549
    %v6870 = vunpack.c.h.b16 %v6549
    %v6871 = vunpack.c.l.b16 %v6550
    %v6872 = vunpack.c.h.b16 %v6550
    %v6873 = vunpack.c.l.b16 %v6551
    %v6874 = vunpack.c.h.b16 %v6551
    %v6875 = vunpack.c.l.b16 %v6552
    %v6876 = vunpack.c.h.b16 %v6552
    %v6877 = vunpack.c.l.b16 %v6553
    %v6878 = vunpack.c.h.b16 %v6553
    %v6879 = vunpack.c.l.b16 %v6554
    %v6880 = vunpack.c.h.b16 %v6554
    %v6881 = vunpack.c.l.b16 %v6555
    %v6882 = vunpack.c.h.b16 %v6555
    %v6883 = vunpack.c.l.b16 %v6556
    %v6884 = vunpack.c.h.b16 %v6556
    %v6885 = vunpack.c.l.b16 %v6557
    %v6886 = vunpack.c.h.b16 %v6557
    %v6887 = vunpack.c.l.b16 %v6558
    %v6888 = vunpack.c.h.b16 %v6558
    %v6889 = vunpack.c.l.b16 %v6559
    %v6890 = vunpack.c.h.b16 %v6559
    %v6891 = vunpack.c.l.b16 %v6560
    %v6892 = vunpack.c.h.b16 %v6560
    %v6893 = vunpack.c.l.b16 %v6561
    %v6894 = vunpack.c.h.b16 %v6561
    %v6895 = vunpack.c.l.b16 %v6562
    %v6896 = vunpack.c.h.b16 %v6562
    %v6897 = vunpack.c.l.b16 %v6563
    %v6898 = vunpack.c.h.b16 %v6563
    %v6899 = vunpack.c.l.b16 %v6564
    %v6900 = vunpack.c.h.b16 %v6564
    %v6901 = vunpack.c.l.b16 %v6565
    %v6902 = vunpack.c.h.b16 %v6565
    %v6903 = vunpack.c.l.b16 %v6566
    %v6904 = vunpack.c.h.b16 %v6566
    %v6905 = vunpack.c.l.b16 %v6567
    %v6906 = vunpack.c.h.b16 %v6567
    %v6907 = vunpack.c.l.b16 %v6568
    %v6908 = vunpack.c.h.b16 %v6568
    %v6909 = vunpack.c.l.b16 %v6569
    %v6910 = vunpack.c.h.b16 %v6569
    %v6911 = vunpack.c.l.b16 %v6570
    %v6912 = vunpack.c.h.b16 %v6570
    %v6913 = vunpack.c.l.b16 %v6571
    %v6914 = vunpack.c.h.b16 %v6571
    %v6915 = vunpack.c.l.b16 %v6572
    %v6916 = vunpack.c.h.b16 %v6572
    %v6917 = vunpack.c.l.b16 %v6573
    %v6918 = vunpack.c.h.b16 %v6573
    %v6919 = vunpack.c.l.b16 %v6574
    %v6920 = vunpack.c.h.b16 %v6574
    %v6921 = vunpack.c.l.b16 %v6575
    %v6922 = vunpack.c.h.b16 %v6575
    %v6923 = vunpack.c.l.b16 %v6576
    %v6924 = vunpack.c.h.b16 %v6576
    %v6925 = vunpack.c.l.b16 %v6577
    %v6926 = vunpack.c.h.b16 %v6577
    %v6927 = vunpack.c.l.b16 %v6578
    %v6928 = vunpack.c.h.b16 %v6578
    %v6929 = vunpack.c.l.b16 %v6579
    %v6930 = vunpack.c.h.b16 %v6579
    %v6931 = vunpack.c.l.b16 %v6580
    %v6932 = vunpack.c.h.b16 %v6580
    %v6933 = vunpack.c.l.b16 %v6581
    %v6934 = vunpack.c.h.b16 %v6581
    %v6935 = vunpack.c.l.b16 %v6582
    %v6936 = vunpack.c.h.b16 %v6582
    %v6937 = vunpack.c.l.b16 %v6583
    %v6938 = vunpack.c.h.b16 %v6583
    %v6939 = vunpack.c.l.b16 %v6584
    %v6940 = vunpack.c.h.b16 %v6584
    %v6941 = vunpack.c.l.b16 %v6585
    %v6942 = vunpack.c.h.b16 %v6585
    %v6943 = vunpack.c.l.b16 %v6586
    %v6944 = vunpack.c.h.b16 %v6586
    %v6945 = vunpack.c.l.b16 %v6587
    %v6946 = vunpack.c.h.b16 %v6587
    %v6947 = vunpack.c.l.b16 %v6588
    %v6948 = vunpack.c.h.b16 %v6588
    %v6949 = vunpack.c.l.b16 %v6589
    %v6950 = vunpack.c.h.b16 %v6589
    %v6951 = vunpack.c.l.b16 %v6590
    %v6952 = vunpack.c.h.b16 %v6590
    %v6953 = vunpack.c.l.b16 %v6591
    %v6954 = vunpack.c.h.b16 %v6591
    %v6955 = vunpack.c.l.b16 %v6592
    %v6956 = vunpack.c.h.b16 %v6592
    %v6957 = vunpack.c.l.b16 %v6593
    %v6958 = vunpack.c.h.b16 %v6593
    %v6959 = vunpack.c.l.b16 %v6594
    %v6960 = vunpack.c.h.b16 %v6594
    %v6961 = vunpack.c.l.b16 %v6595
    %v6962 = vunpack.c.h.b16 %v6595
    %v6963 = vunpack.c.l.b16 %v6596
    %v6964 = vunpack.c.h.b16 %v6596
    %v6965 = vunpack.c.l.b16 %v6597
    %v6966 = vunpack.c.h.b16 %v6597
    %v6967 = vunpack.c.l.b16 %v6598
    %v6968 = vunpack.c.h.b16 %v6598
    %v6969 = vunpack.c.l.b16 %v6599
    %v6970 = vunpack.c.h.b16 %v6599
    %v6971 = vunpack.c.l.b16 %v6600
    %v6972 = vunpack.c.h.b16 %v6600
    %v6973 = vunpack.c.l.b16 %v6601
    %v6974 = vunpack.c.h.b16 %v6601
    %v6975 = vunpack.c.l.b16 %v6602
    %v6976 = vunpack.c.h.b16 %v6602
    %v6977 = vunpack.c.l.b16 %v6603
    %v6978 = vunpack.c.h.b16 %v6603
    %v6979 = vunpack.c.l.b16 %v6604
    %v6980 = vunpack.c.h.b16 %v6604
    %v6981 = vunpack.c.l.b16 %v6605
    %v6982 = vunpack.c.h.b16 %v6605
    %v6983 = vunpack.c.l.b16 %v6606
    %v6984 = vunpack.c.h.b16 %v6606
    %v6985 = vunpack.c.l.b16 %v6607
    %v6986 = vunpack.c.h.b16 %v6607
    %v6987 = vunpack.c.l.b16 %v6608
    %v6988 = vunpack.c.h.b16 %v6608
    %v6989 = vunpack.c.l.b16 %v6609
    %v6990 = vunpack.c.h.b16 %v6609
    %v6991 = vunpack.c.l.b16 %v6610
    %v6992 = vunpack.c.h.b16 %v6610
    %v6993 = vunpack.c.l.b16 %v6611
    %v6994 = vunpack.c.h.b16 %v6611
    %v6995 = vunpack.c.l.b16 %v6612
    %v6996 = vunpack.c.h.b16 %v6612
    %v6997 = vunpack.c.l.b16 %v6613
    %v6998 = vunpack.c.h.b16 %v6613
    %v6999 = vunpack.c.l.b16 %v6614
    %v7000 = vunpack.c.h.b16 %v6614
    %v7001 = vunpack.c.l.b16 %v6615
    %v7002 = vunpack.c.h.b16 %v6615
    %v7003 = vunpack.c.l.b16 %v6616
    %v7004 = vunpack.c.h.b16 %v6616
    %v7005 = vunpack.c.l.b16 %v6617
    %v7006 = vunpack.c.h.b16 %v6617
    %v7007 = vunpack.c.l.b16 %v6618
    %v7008 = vunpack.c.h.b16 %v6618
    %v7009 = vunpack.c.l.b16 %v6619
    %v7010 = vunpack.c.h.b16 %v6619
    %v7011 = vunpack.c.l.b16 %v6620
    %v7012 = vunpack.c.h.b16 %v6620
    %v7013 = vunpack.c.l.b16 %v6621
    %v7014 = vunpack.c.h.b16 %v6621
    %v7015 = vunpack.c.l.b16 %v6622
    %v7016 = vunpack.c.h.b16 %v6622
    %v7017 = vunpack.c.l.b16 %v6623
    %v7018 = vunpack.c.h.b16 %v6623
    %v7019 = vunpack.c.l.b16 %v6624
    %v7020 = vunpack.c.h.b16 %v6624
    %v7021 = vpack.c.b16 %v6767, %v6765
    %v7022 = vpack.c.b16 %v6768, %v6766
    %v7023 = vpack.c.b16 %v6771, %v6769
    %v7024 = vpack.c.b16 %v6772, %v6770
    %v7025 = vpack.c.b16 %v6775, %v6773
    %v7026 = vpack.c.b16 %v6776, %v6774
    %v7027 = vpack.c.b16 %v6779, %v6777
    %v7028 = vpack.c.b16 %v6780, %v6778
    %v7029 = vpack.c.b16 %v6783, %v6781
    %v7030 = vpack.c.b16 %v6784, %v6782
    %v7031 = vpack.c.b16 %v6787, %v6785
    %v7032 = vpack.c.b16 %v6788, %v6786
    %v7033 = vpack.c.b16 %v6791, %v6789
    %v7034 = vpack.c.b16 %v6792, %v6790
    %v7035 = vpack.c.b16 %v6795, %v6793
    %v7036 = vpack.c.b16 %v6796, %v6794
    %v7037 = vpack.c.b16 %v6799, %v6797
    %v7038 = vpack.c.b16 %v6800, %v6798
    %v7039 = vpack.c.b16 %v6803, %v6801
    %v7040 = vpack.c.b16 %v6804, %v6802
    %v7041 = vpack.c.b16 %v6807, %v6805
    %v7042 = vpack.c.b16 %v6808, %v6806
    %v7043 = vpack.c.b16 %v6811, %v6809
    %v7044 = vpack.c.b16 %v6812, %v6810
    %v7045 = vpack.c.b16 %v6815, %v6813
    %v7046 = vpack.c.b16 %v6816, %v6814
    %v7047 = vpack.c.b16 %v6819, %v6817
    %v7048 = vpack.c.b16 %v6820, %v6818
    %v7049 = vpack.c.b16 %v6823, %v6821
    %v7050 = vpack.c.b16 %v6824, %v6822
    %v7051 = vpack.c.b16 %v6827, %v6825
    %v7052 = vpack.c.b16 %v6828, %v6826
    %v7053 = vpack.c.b16 %v6831, %v6829
    %v7054 = vpack.c.b16 %v6832, %v6830
    %v7055 = vpack.c.b16 %v6835, %v6833
    %v7056 = vpack.c.b16 %v6836, %v6834
    %v7057 = vpack.c.b16 %v6839, %v6837
    %v7058 = vpack.c.b16 %v6840, %v6838
    %v7059 = vpack.c.b16 %v6843, %v6841
    %v7060 = vpack.c.b16 %v6844, %v6842
    %v7061 = vpack.c.b16 %v6847, %v6845
    %v7062 = vpack.c.b16 %v6848, %v6846
    %v7063 = vpack.c.b16 %v6851, %v6849
    %v7064 = vpack.c.b16 %v6852, %v6850
    %v7065 = vpack.c.b16 %v6855, %v6853
    %v7066 = vpack.c.b16 %v6856, %v6854
    %v7067 = vpack.c.b16 %v6859, %v6857
    %v7068 = vpack.c.b16 %v6860, %v6858
    %v7069 = vpack.c.b16 %v6863, %v6861
    %v7070 = vpack.c.b16 %v6864, %v6862
    %v7071 = vpack.c.b16 %v6867, %v6865
    %v7072 = vpack.c.b16 %v6868, %v6866
    %v7073 = vpack.c.b16 %v6871, %v6869
    %v7074 = vpack.c.b16 %v6872, %v6870
    %v7075 = vpack.c.b16 %v6875, %v6873
    %v7076 = vpack.c.b16 %v6876, %v6874
    %v7077 = vpack.c.b16 %v6879, %v6877
    %v7078 = vpack.c.b16 %v6880, %v6878
    %v7079 = vpack.c.b16 %v6883, %v6881
    %v7080 = vpack.c.b16 %v6884, %v6882
    %v7081 = vpack.c.b16 %v6887, %v6885
    %v7082 = vpack.c.b16 %v6888, %v6886
    %v7083 = vpack.c.b16 %v6891, %v6889
    %v7084 = vpack.c.b16 %v6892, %v6890
    %v7085 = vpack.c.b16 %v6895, %v6893
    %v7086 = vpack.c.b16 %v6896, %v6894
    %v7087 = vpack.c.b16 %v6899, %v6897
    %v7088 = vpack.c.b16 %v6900, %v6898
    %v7089 = vpack.c.b16 %v6903, %v6901
    %v7090 = vpack.c.b16 %v6904, %v6902
    %v7091 = vpack.c.b16 %v6907, %v6905
    %v7092 = vpack.c.b16 %v6908, %v6906
    %v7093 = vpack.c.b16 %v6911, %v6909
    %v7094 = vpack.c.b16 %v6912, %v6910
    %v7095 = vpack.c.b16 %v6915, %v6913
    %v7096 = vpack.c.b16 %v6916, %v6914
    %v7097 = vpack.c.b16 %v6919, %v6917
    %v7098 = vpack.c.b16 %v6920, %v6918
    %v7099 = vpack.c.b16 %v6923, %v6921
    %v7100 = vpack.c.b16 %v6924, %v6922
    %v7101 = vpack.c.b16 %v6927, %v6925
    %v7102 = vpack.c.b16 %v6928, %v6926
    %v7103 = vpack.c.b16 %v6931, %v6929
    %v7104 = vpack.c.b16 %v6932, %v6930
    %v7105 = vpack.c.b16 %v6935, %v6933
    %v7106 = vpack.c.b16 %v6936, %v6934
    %v7107 = vpack.c.b16 %v6939, %v6937
    %v7108 = vpack.c.b16 %v6940, %v6938
    %v7109 = vpack.c.b16 %v6943, %v6941
    %v7110 = vpack.c.b16 %v6944, %v6942
    %v7111 = vpack.c.b16 %v6947, %v6945
    %v7112 = vpack.c.b16 %v6948, %v6946
    %v7113 = vpack.c.b16 %v6951, %v6949
    %v7114 = vpack.c.b16 %v6952, %v6950
    %v7115 = vpack.c.b16 %v6955, %v6953
    %v7116 = vpack.c.b16 %v6956, %v6954
    %v7117 = vpack.c.b16 %v6959, %v6957
    %v7118 = vpack.c.b16 %v6960, %v6958
    %v7119 = vpack.c.b16 %v6963, %v6961
    %v7120 = vpack.c.b16 %v6964, %v6962
    %v7121 = vpack.c.b16 %v6967, %v6965
    %v7122 = vpack.c.b16 %v6968, %v6966
    %v7123 = vpack.c.b16 %v6971, %v6969
    %v7124 = vpack.c.b16 %v6972, %v6970
    %v7125 = vpack.c.b16 %v6975, %v6973
    %v7126 = vpack.c.b16 %v6976, %v6974
    %v7127 = vpack.c.b16 %v6979, %v6977
    %v7128 = vpack.c.b16 %v6980, %v6978
    %v7129 = vpack.c.b16 %v6983, %v6981
    %v7130 = vpack.c.b16 %v6984, %v6982
    %v7131 = vpack.c.b16 %v6987, %v6985
    %v7132 = vpack.c.b16 %v6988, %v6986
    %v7133 = vpack.c.b16 %v6991, %v6989
    %v7134 = vpack.c.b16 %v6992, %v6990
    %v7135 = vpack.c.b16 %v6995, %v6993
    %v7136 = vpack.c.b16 %v6996, %v6994
    %v7137 = vpack.c.b16 %v6999, %v6997
    %v7138 = vpack.c.b16 %v7000, %v6998
    %v7139 = vpack.c.b16 %v7003, %v7001
    %v7140 = vpack.c.b16 %v7004, %v7002
    %v7141 = vpack.c.b16 %v7007, %v7005
    %v7142 = vpack.c.b16 %v7008, %v7006
    %v7143 = vpack.c.b16 %v7011, %v7009
    %v7144 = vpack.c.b16 %v7012, %v7010
    %v7145 = vpack.c.b16 %v7015, %v7013
    %v7146 = vpack.c.b16 %v7016, %v7014
    %v7147 = vpack.c.b16 %v7019, %v7017
    %v7148 = vpack.c.b16 %v7020, %v7018
    %7277 = vmatprep.subr.bf16.mxu0 %v7022
    %7278 = vmatpush1.bf16.msra.mxu0 %v7021
    %7279 = vmatprep.subr.bf16.mxu0 %v7024
    %7280 = vmatpush1.bf16.msra.mxu0 %v7023
    %7281 = vmatprep.subr.bf16.mxu0 %v7026
    %7282 = vmatpush1.bf16.msra.mxu0 %v7025
    %7283 = vmatprep.subr.bf16.mxu0 %v7028
    %7284 = vmatpush1.bf16.msra.mxu0 %v7027
    %7285 = vmatprep.subr.bf16.mxu0 %v7030
    %7286 = vmatpush1.bf16.msra.mxu0 %v7029
    %7287 = vmatprep.subr.bf16.mxu0 %v7032
    %7288 = vmatpush1.bf16.msra.mxu0 %v7031
    %7289 = vmatprep.subr.bf16.mxu0 %v7034
    %7290 = vmatpush1.bf16.msra.mxu0 %v7033
    %7291 = vmatprep.subr.bf16.mxu0 %v7036
    %7292 = vmatpush1.bf16.msra.mxu0 %v7035
    %7293 = vmatprep.subr.bf16.mxu0 %v7038
    %7294 = vmatpush1.bf16.msra.mxu0 %v7037
    %7295 = vmatprep.subr.bf16.mxu0 %v7040
    %7296 = vmatpush1.bf16.msra.mxu0 %v7039
    %7297 = vmatprep.subr.bf16.mxu0 %v7042
    %7298 = vmatpush1.bf16.msra.mxu0 %v7041
    %7299 = vmatprep.subr.bf16.mxu0 %v7044
    %7300 = vmatpush1.bf16.msra.mxu0 %v7043
    %7301 = vmatprep.subr.bf16.mxu0 %v7046
    %7302 = vmatpush1.bf16.msra.mxu0 %v7045
    %7303 = vmatprep.subr.bf16.mxu0 %v7048
    %7304 = vmatpush1.bf16.msra.mxu0 %v7047
    %7305 = vmatprep.subr.bf16.mxu0 %v7050
    %7306 = vmatpush1.bf16.msra.mxu0 %v7049
    %7307 = vmatprep.subr.bf16.mxu0 %v7052
    %7308 = vmatpush1.bf16.msra.mxu0 %v7051
    %7309 = vmatprep.mubr.bf16.mxu0 %v6490
    %7310 = vmatmul.mubr.bf16.gmra.mrb[0].mxu0 %v6489
    %v7311 = vpop.f32.mrb[0].mxu0
    %v7312 = vadd.f32 %v6630, %v7311
    %v7313 = vpop.f32.mrb[0].mxu0
    %v7314 = vadd.f32 %v6634, %v7313
    %v7315 = vpop.f32.mrb[0].mxu0
    %v7316 = vpop.f32.mrb[0].mxu0
    %7317 = vdwg.mxu0
    %7318 = vmatprep.subr.bf16.mxu0 %v7054
    %7319 = vmatpush1.bf16.msra.mxu0 %v7053
    %7320 = vmatprep.subr.bf16.mxu0 %v7056
    %7321 = vmatpush1.bf16.msra.mxu0 %v7055
    %7322 = vmatprep.subr.bf16.mxu0 %v7058
    %7323 = vmatpush1.bf16.msra.mxu0 %v7057
    %7324 = vmatprep.subr.bf16.mxu0 %v7060
    %7325 = vmatpush1.bf16.msra.mxu0 %v7059
    %7326 = vmatprep.subr.bf16.mxu0 %v7062
    %7327 = vmatpush1.bf16.msra.mxu0 %v7061
    %7328 = vmatprep.subr.bf16.mxu0 %v7064
    %7329 = vmatpush1.bf16.msra.mxu0 %v7063
    %7330 = vmatprep.subr.bf16.mxu0 %v7066
    %7331 = vmatpush1.bf16.msra.mxu0 %v7065
    %7332 = vmatprep.subr.bf16.mxu0 %v7068
    %7333 = vmatpush1.bf16.msra.mxu0 %v7067
    %7334 = vmatprep.subr.bf16.mxu0 %v7070
    %7335 = vmatpush1.bf16.msra.mxu0 %v7069
    %7336 = vmatprep.subr.bf16.mxu0 %v7072
    %7337 = vmatpush1.bf16.msra.mxu0 %v7071
    %7338 = vmatprep.subr.bf16.mxu0 %v7074
    %7339 = vmatpush1.bf16.msra.mxu0 %v7073
    %7340 = vmatprep.subr.bf16.mxu0 %v7076
    %7341 = vmatpush1.bf16.msra.mxu0 %v7075
    %7342 = vmatprep.subr.bf16.mxu0 %v7078
    %7343 = vmatpush1.bf16.msra.mxu0 %v7077
    %7344 = vmatprep.subr.bf16.mxu0 %v7080
    %7345 = vmatpush1.bf16.msra.mxu0 %v7079
    %7346 = vmatprep.subr.bf16.mxu0 %v7082
    %7347 = vmatpush1.bf16.msra.mxu0 %v7081
    %7348 = vmatprep.subr.bf16.mxu0 %v7084
    %7349 = vmatpush1.bf16.msra.mxu0 %v7083
    %7350 = vmatprep.mubr.bf16.mxu0 %v6492
    %7351 = vmatmul.mubr.bf16.gmra.mrb[0].mxu0 %v6491
    %v7352 = vpop.f32.mrb[0].mxu0
    %v7353 = vadd.f32 %v7312, %v7352
    %v7354 = vpop.f32.mrb[0].mxu0
    %v7355 = vadd.f32 %v7314, %v7354
    %v7356 = vpop.f32.mrb[0].mxu0
    %v7357 = vpop.f32.mrb[0].mxu0
    %7358 = vdwg.mxu0
    %7359 = vmatprep.subr.bf16.mxu0 %v7086
    %7360 = vmatpush1.bf16.msra.mxu0 %v7085
    %7361 = vmatprep.subr.bf16.mxu0 %v7088
    %7362 = vmatpush1.bf16.msra.mxu0 %v7087
    %7363 = vmatprep.subr.bf16.mxu0 %v7090
    %7364 = vmatpush1.bf16.msra.mxu0 %v7089
    %7365 = vmatprep.subr.bf16.mxu0 %v7092
    %7366 = vmatpush1.bf16.msra.mxu0 %v7091
    %7367 = vmatprep.subr.bf16.mxu0 %v7094
    %7368 = vmatpush1.bf16.msra.mxu0 %v7093
    %7369 = vmatprep.subr.bf16.mxu0 %v7096
    %7370 = vmatpush1.bf16.msra.mxu0 %v7095
    %7371 = vmatprep.subr.bf16.mxu0 %v7098
    %7372 = vmatpush1.bf16.msra.mxu0 %v7097
    %7373 = vmatprep.subr.bf16.mxu0 %v7100
    %7374 = vmatpush1.bf16.msra.mxu0 %v7099
    %7375 = vmatprep.subr.bf16.mxu0 %v7102
    %7376 = vmatpush1.bf16.msra.mxu0 %v7101
    %7377 = vmatprep.subr.bf16.mxu0 %v7104
    %7378 = vmatpush1.bf16.msra.mxu0 %v7103
    %7379 = vmatprep.subr.bf16.mxu0 %v7106
    %7380 = vmatpush1.bf16.msra.mxu0 %v7105
    %7381 = vmatprep.subr.bf16.mxu0 %v7108
    %7382 = vmatpush1.bf16.msra.mxu0 %v7107
    %7383 = vmatprep.subr.bf16.mxu0 %v7110
    %7384 = vmatpush1.bf16.msra.mxu0 %v7109
    %7385 = vmatprep.subr.bf16.mxu0 %v7112
    %7386 = vmatpush1.bf16.msra.mxu0 %v7111
    %7387 = vmatprep.subr.bf16.mxu0 %v7114
    %7388 = vmatpush1.bf16.msra.mxu0 %v7113
    %7389 = vmatprep.subr.bf16.mxu0 %v7116
    %7390 = vmatpush1.bf16.msra.mxu0 %v7115
    %7391 = vmatprep.mubr.bf16.mxu0 %v6494
    %7392 = vmatmul.mubr.bf16.gmra.mrb[0].mxu0 %v6493
    %v7393 = vpop.f32.mrb[0].mxu0
    %v7394 = vadd.f32 %v7353, %v7393
    %v7395 = vpop.f32.mrb[0].mxu0
    %v7396 = vadd.f32 %v7355, %v7395
    %v7397 = vpop.f32.mrb[0].mxu0
    %v7398 = vpop.f32.mrb[0].mxu0
    %7399 = vdwg.mxu0
    %7400 = vmatprep.subr.bf16.mxu0 %v7118
    %7401 = vmatpush1.bf16.msra.mxu0 %v7117
    %7402 = vmatprep.subr.bf16.mxu0 %v7120
    %7403 = vmatpush1.bf16.msra.mxu0 %v7119
    %7404 = vmatprep.subr.bf16.mxu0 %v7122
    %7405 = vmatpush1.bf16.msra.mxu0 %v7121
    %7406 = vmatprep.subr.bf16.mxu0 %v7124
    %7407 = vmatpush1.bf16.msra.mxu0 %v7123
    %7408 = vmatprep.subr.bf16.mxu0 %v7126
    %7409 = vmatpush1.bf16.msra.mxu0 %v7125
    %7410 = vmatprep.subr.bf16.mxu0 %v7128
    %7411 = vmatpush1.bf16.msra.mxu0 %v7127
    %7412 = vmatprep.subr.bf16.mxu0 %v7130
    %7413 = vmatpush1.bf16.msra.mxu0 %v7129
    %7414 = vmatprep.subr.bf16.mxu0 %v7132
    %7415 = vmatpush1.bf16.msra.mxu0 %v7131
    %7416 = vmatprep.subr.bf16.mxu0 %v7134
    %7417 = vmatpush1.bf16.msra.mxu0 %v7133
    %7418 = vmatprep.subr.bf16.mxu0 %v7136
    %7419 = vmatpush1.bf16.msra.mxu0 %v7135
    %7420 = vmatprep.subr.bf16.mxu0 %v7138
    %7421 = vmatpush1.bf16.msra.mxu0 %v7137
    %7422 = vmatprep.subr.bf16.mxu0 %v7140
    %7423 = vmatpush1.bf16.msra.mxu0 %v7139
    %7424 = vmatprep.subr.bf16.mxu0 %v7142
    %7425 = vmatpush1.bf16.msra.mxu0 %v7141
    %7426 = vmatprep.subr.bf16.mxu0 %v7144
    %7427 = vmatpush1.bf16.msra.mxu0 %v7143
    %7428 = vmatprep.subr.bf16.mxu0 %v7146
    %7429 = vmatpush1.bf16.msra.mxu0 %v7145
    %7430 = vmatprep.subr.bf16.mxu0 %v7148
    %7431 = vmatpush1.bf16.msra.mxu0 %v7147
    %7432 = vmatprep.mubr.bf16.mxu0 %v6496
    %7433 = vmatmul.mubr.bf16.gmra.mrb[0].mxu0 %v6495
    %v7434 = vpop.f32.mrb[0].mxu0
    %v7435 = vadd.f32 %v7394, %v7434
    %v7436 = vpop.f32.mrb[0].mxu0
    %v7437 = vadd.f32 %v7396, %v7436
    %v7438 = vpop.f32.mrb[0].mxu0
    %v7439 = vpop.f32.mrb[0].mxu0
    %7440 = vdwg.mxu0
    %v7441 = vld [vmem:[%s12] sm:$0xff]
    %v7442 = vld [vmem:[%s12 + $0x8] sm:$0xff]
    %v7443 = vld [vmem:[%s12 + $0x10] sm:$0xff]
    %v7444 = vld [vmem:[%s12 + $0x18] sm:$0xff]
    %v7445 = vld [vmem:[%s12 + $0x20] sm:$0xff]
    %v7446 = vld [vmem:[%s12 + $0x28] sm:$0xff]
    %v7447 = vld [vmem:[%s12 + $0x30] sm:$0xff]
    %v7448 = vld [vmem:[%s12 + $0x38] sm:$0xff]
    %v7449 = vld [vmem:[%s12 + $0x40] sm:$0xff]
    %v7450 = vld [vmem:[%s12 + $0x48] sm:$0xff]
    %v7451 = vld [vmem:[%s12 + $0x50] sm:$0xff]
    %v7452 = vld [vmem:[%s12 + $0x58] sm:$0xff]
    %v7453 = vld [vmem:[%s12 + $0x60] sm:$0xff]
    %v7454 = vld [vmem:[%s12 + $0x68] sm:$0xff]
    %v7455 = vld [vmem:[%s12 + $0x70] sm:$0xff]
    %v7456 = vld [vmem:[%s12 + $0x78] sm:$0xff]
    %v7457 = vld [vmem:[%s12 + $0x80] sm:$0xff]
    %v7458 = vld [vmem:[%s12 + $0x88] sm:$0xff]
    %v7459 = vld [vmem:[%s12 + $0x90] sm:$0xff]
    %v7460 = vld [vmem:[%s12 + $0x98] sm:$0xff]
    %v7461 = vld [vmem:[%s12 + $0xa0] sm:$0xff]
    %v7462 = vld [vmem:[%s12 + $0xa8] sm:$0xff]
    %v7463 = vld [vmem:[%s12 + $0xb0] sm:$0xff]
    %v7464 = vld [vmem:[%s12 + $0xb8] sm:$0xff]
    %v7465 = vld [vmem:[%s12 + $0xc0] sm:$0xff]
    %v7466 = vld [vmem:[%s12 + $0xc8] sm:$0xff]
    %v7467 = vld [vmem:[%s12 + $0xd0] sm:$0xff]
    %v7468 = vld [vmem:[%s12 + $0xd8] sm:$0xff]
    %v7469 = vld [vmem:[%s12 + $0xe0] sm:$0xff]
    %v7470 = vld [vmem:[%s12 + $0xe8] sm:$0xff]
    %v7471 = vld [vmem:[%s12 + $0xf0] sm:$0xff]
    %v7472 = vld [vmem:[%s12 + $0xf8] sm:$0xff]
    %7473 = vmatprep.subr.mxu0 0.0
    %7474 = vmatpush1.msra.mxu0 %v7441
    %7475 = vmatprep.subr.mxu0 0.0
    %7476 = vmatpush1.msra.mxu0 %v7442
    %7477 = vmatprep.subr.mxu0 0.0
    %7478 = vmatpush1.msra.mxu0 %v7443
    %7479 = vmatprep.subr.mxu0 0.0
    %7480 = vmatpush1.msra.mxu0 %v7444
    %7481 = vmatprep.subr.mxu0 0.0
    %7482 = vmatpush1.msra.mxu0 %v7445
    %7483 = vmatprep.subr.mxu0 0.0
    %7484 = vmatpush1.msra.mxu0 %v7446
    %7485 = vmatprep.subr.mxu0 0.0
    %7486 = vmatpush1.msra.mxu0 %v7447
    %7487 = vmatprep.subr.mxu0 0.0
    %7488 = vmatpush1.msra.mxu0 %v7448
    %7489 = vmatprep.subr.mxu0 0.0
    %7490 = vmatpush1.msra.mxu0 %v7449
    %7491 = vmatprep.subr.mxu0 0.0
    %7492 = vmatpush1.msra.mxu0 %v7450
    %7493 = vmatprep.subr.mxu0 0.0
    %7494 = vmatpush1.msra.mxu0 %v7451
    %7495 = vmatprep.subr.mxu0 0.0
    %7496 = vmatpush1.msra.mxu0 %v7452
    %7497 = vmatprep.subr.mxu0 0.0
    %7498 = vmatpush1.msra.mxu0 %v7453
    %7499 = vmatprep.subr.mxu0 0.0
    %7500 = vmatpush1.msra.mxu0 %v7454
    %7501 = vmatprep.subr.mxu0 0.0
    %7502 = vmatpush1.msra.mxu0 %v7455
    %7503 = vmatprep.subr.mxu0 0.0
    %7504 = vmatpush1.msra.mxu0 %v7456
    %7505 = vmatprep.subr.mxu0 0.0
    %7506 = vmatpush1.msra.mxu0 %v7457
    %7507 = vmatprep.subr.mxu0 0.0
    %7508 = vmatpush1.msra.mxu0 %v7458
    %7509 = vmatprep.subr.mxu0 0.0
    %7510 = vmatpush1.msra.mxu0 %v7459
    %7511 = vmatprep.subr.mxu0 0.0
    %7512 = vmatpush1.msra.mxu0 %v7460
    %7513 = vmatprep.subr.mxu0 0.0
    %7514 = vmatpush1.msra.mxu0 %v7461
    %7515 = vmatprep.subr.mxu0 0.0
    %7516 = vmatpush1.msra.mxu0 %v7462
    %7517 = vmatprep.subr.mxu0 0.0
    %7518 = vmatpush1.msra.mxu0 %v7463
    %7519 = vmatprep.subr.mxu0 0.0
    %7520 = vmatpush1.msra.mxu0 %v7464
    %7521 = vmatprep.subr.mxu0 0.0
    %7522 = vmatpush1.msra.mxu0 %v7465
    %7523 = vmatprep.subr.mxu0 0.0
    %7524 = vmatpush1.msra.mxu0 %v7466
    %7525 = vmatprep.subr.mxu0 0.0
    %7526 = vmatpush1.msra.mxu0 %v7467
    %7527 = vmatprep.subr.mxu0 0.0
    %7528 = vmatpush1.msra.mxu0 %v7468
    %7529 = vmatprep.subr.mxu0 0.0
    %7530 = vmatpush1.msra.mxu0 %v7469
    %7531 = vmatprep.subr.mxu0 0.0
    %7532 = vmatpush1.msra.mxu0 %v7470
    %7533 = vmatprep.subr.mxu0 0.0
    %7534 = vmatpush1.msra.mxu0 %v7471
    %7535 = vmatprep.subr.mxu0 0.0
    %7536 = vmatpush1.msra.mxu0 %v7472
    %7537 = vmatprep.mubr.f32.mxu0 %v7437
    %7538 = vmatmul.mubr.f32.gmra.mrb[0].mxu0 %v7435
    %v7539 = vpop.f32.mrb[0].mxu0
    %v7540 = vadd.f32 0.0, %v7539
    %v7541 = vpop.f32.mrb[0].mxu0
    %7542 = vdwg.mxu0
    %v7543 = vsel %vm5451, %v7540, 0.0
    %v7544 = vrot.slane %v7543, 4
    %v7545 = vadd.f32 %v7543, %v7544
    %v7546 = vrot.slane %v7545, 2
    %v7547 = vadd.f32 %v7545, %v7546
    %v7548 = vrot.slane %v7547, 1
    %v7549 = vadd.f32 %v7547, %v7548
    %v7550 = vmul.f32 %v7549, 0.015625
    %v7551 = vld [vmem:[#allocation18] sm:$0xff]
    %v7552 = vld [vmem:[#allocation18 + $0x8] sm:$0xff]
    %v7553 = vld [vmem:[#allocation18 + $0x10] sm:$0xff]
    %v7554 = vld [vmem:[#allocation18 + $0x18] sm:$0xff]
    %v7556 = vsel %vm5476, %v7550, 0
    %7558 = vmatprep.subr.mxu0 %v7552
    %7559 = vmatpush1.msra.mxu0 %v7551
    %7560 = vmatprep.subr.mxu0 %v7554
    %7561 = vmatpush1.msra.mxu0 %v7553
    %7562 = vmatprep.subr.mxu0 0.0
    %7563 = vmatpush1.msra.mxu0 0.0
    %7564 = vmatprep.subr.mxu0 0.0
    %7565 = vmatpush1.msra.mxu0 0.0
    %7566 = vmatprep.subr.mxu0 0.0
    %7567 = vmatpush1.msra.mxu0 0.0
    %7568 = vmatprep.subr.mxu0 0.0
    %7569 = vmatpush1.msra.mxu0 0.0
    %7570 = vmatprep.subr.mxu0 0.0
    %7571 = vmatpush1.msra.mxu0 0.0
    %7572 = vmatprep.subr.mxu0 0.0
    %7573 = vmatpush1.msra.mxu0 0.0
    %7574 = vmatprep.subr.mxu0 0.0
    %7575 = vmatpush1.msra.mxu0 0.0
    %7576 = vmatprep.subr.mxu0 0.0
    %7577 = vmatpush1.msra.mxu0 0.0
    %7578 = vmatprep.subr.mxu0 0.0
    %7579 = vmatpush1.msra.mxu0 0.0
    %7580 = vmatprep.subr.mxu0 0.0
    %7581 = vmatpush1.msra.mxu0 0.0
    %7582 = vmatprep.subr.mxu0 0.0
    %7583 = vmatpush1.msra.mxu0 0.0
    %7584 = vmatprep.subr.mxu0 0.0
    %7585 = vmatpush1.msra.mxu0 0.0
    %7586 = vmatprep.subr.mxu0 0.0
    %7587 = vmatpush1.msra.mxu0 0.0
    %7588 = vmatprep.subr.mxu0 0.0
    %7589 = vmatpush1.msra.mxu0 0.0
    %7590 = vmatprep.subr.mxu0 0.0
    %7591 = vmatpush1.msra.mxu0 0.0
    %7592 = vmatprep.subr.mxu0 0.0
    %7593 = vmatpush1.msra.mxu0 0.0
    %7594 = vmatprep.subr.mxu0 0.0
    %7595 = vmatpush1.msra.mxu0 0.0
    %7596 = vmatprep.subr.mxu0 0.0
    %7597 = vmatpush1.msra.mxu0 0.0
    %7598 = vmatprep.subr.mxu0 0.0
    %7599 = vmatpush1.msra.mxu0 0.0
    %7600 = vmatprep.subr.mxu0 0.0
    %7601 = vmatpush1.msra.mxu0 0.0
    %7602 = vmatprep.subr.mxu0 0.0
    %7603 = vmatpush1.msra.mxu0 0.0
    %7604 = vmatprep.subr.mxu0 0.0
    %7605 = vmatpush1.msra.mxu0 0.0
    %7606 = vmatprep.subr.mxu0 0.0
    %7607 = vmatpush1.msra.mxu0 0.0
    %7608 = vmatprep.subr.mxu0 0.0
    %7609 = vmatpush1.msra.mxu0 0.0
    %7610 = vmatprep.subr.mxu0 0.0
    %7611 = vmatpush1.msra.mxu0 0.0
    %7612 = vmatprep.subr.mxu0 0.0
    %7613 = vmatpush1.msra.mxu0 0.0
    %7614 = vmatprep.subr.mxu0 0.0
    %7615 = vmatpush1.msra.mxu0 0.0
    %7616 = vmatprep.subr.mxu0 0.0
    %7617 = vmatpush1.msra.mxu0 0.0
    %7618 = vmatprep.subr.mxu0 0.0
    %7619 = vmatpush1.msra.mxu0 0.0
    %7620 = vmatprep.subr.mxu0 0.0
    %7621 = vmatpush1.msra.mxu0 0.0
    %7622 = vmatprep.mubr.f32.mxu0 0.0
    %7623 = vmatmul.mubr.f32.gmra.mrb[0].mxu0 %v7556
    %v7624 = vpop.f32.mrb[0].mxu0
    %v7625 = vadd.f32 0.0, %v7624
    %v7626 = vpop.f32.mrb[0].mxu0
    %v7627 = vadd.f32 0.0, %v7626
    %7628 = vdwg.mxu0
    %v7629 = vlaneseq
    %v7630 = vshrl.u32 %v7629, 7
    %v7631 = vsub.s32 0, %v7630
    %v7632 = vrot.slane %v7625, %v7631
    %v7633 = vlaneseq
    %v7634 = vshrl.u32 %v7633, 7
    %v7635 = vsub.s32 0, %v7634
    %v7636 = vrot.slane %v7627, %v7635
    %v7637 = vsub.f32 %v7435, %v7632
    %v7638 = vsub.f32 %v7437, %v7636
    %v7639 = vmul.f32 %v7637, %v7637
    %v7640 = vmul.f32 %v7638, %v7638
    %7641 = vmatprep.subr.mxu0 0.0
    %7642 = vmatpush1.msra.mxu0 %v7441
    %7643 = vmatprep.subr.mxu0 0.0
    %7644 = vmatpush1.msra.mxu0 %v7442
    %7645 = vmatprep.subr.mxu0 0.0
    %7646 = vmatpush1.msra.mxu0 %v7443
    %7647 = vmatprep.subr.mxu0 0.0
    %7648 = vmatpush1.msra.mxu0 %v7444
    %7649 = vmatprep.subr.mxu0 0.0
    %7650 = vmatpush1.msra.mxu0 %v7445
    %7651 = vmatprep.subr.mxu0 0.0
    %7652 = vmatpush1.msra.mxu0 %v7446
    %7653 = vmatprep.subr.mxu0 0.0
    %7654 = vmatpush1.msra.mxu0 %v7447
    %7655 = vmatprep.subr.mxu0 0.0
    %7656 = vmatpush1.msra.mxu0 %v7448
    %7657 = vmatprep.subr.mxu0 0.0
    %7658 = vmatpush1.msra.mxu0 %v7449
    %7659 = vmatprep.subr.mxu0 0.0
    %7660 = vmatpush1.msra.mxu0 %v7450
    %7661 = vmatprep.subr.mxu0 0.0
    %7662 = vmatpush1.msra.mxu0 %v7451
    %7663 = vmatprep.subr.mxu0 0.0
    %7664 = vmatpush1.msra.mxu0 %v7452
    %7665 = vmatprep.subr.mxu0 0.0
    %7666 = vmatpush1.msra.mxu0 %v7453
    %7667 = vmatprep.subr.mxu0 0.0
    %7668 = vmatpush1.msra.mxu0 %v7454
    %7669 = vmatprep.subr.mxu0 0.0
    %7670 = vmatpush1.msra.mxu0 %v7455
    %7671 = vmatprep.subr.mxu0 0.0
    %7672 = vmatpush1.msra.mxu0 %v7456
    %7673 = vmatprep.subr.mxu0 0.0
    %7674 = vmatpush1.msra.mxu0 %v7457
    %7675 = vmatprep.subr.mxu0 0.0
    %7676 = vmatpush1.msra.mxu0 %v7458
    %7677 = vmatprep.subr.mxu0 0.0
    %7678 = vmatpush1.msra.mxu0 %v7459
    %7679 = vmatprep.subr.mxu0 0.0
    %7680 = vmatpush1.msra.mxu0 %v7460
    %7681 = vmatprep.subr.mxu0 0.0
    %7682 = vmatpush1.msra.mxu0 %v7461
    %7683 = vmatprep.subr.mxu0 0.0
    %7684 = vmatpush1.msra.mxu0 %v7462
    %7685 = vmatprep.subr.mxu0 0.0
    %7686 = vmatpush1.msra.mxu0 %v7463
    %7687 = vmatprep.subr.mxu0 0.0
    %7688 = vmatpush1.msra.mxu0 %v7464
    %7689 = vmatprep.subr.mxu0 0.0
    %7690 = vmatpush1.msra.mxu0 %v7465
    %7691 = vmatprep.subr.mxu0 0.0
    %7692 = vmatpush1.msra.mxu0 %v7466
    %7693 = vmatprep.subr.mxu0 0.0
    %7694 = vmatpush1.msra.mxu0 %v7467
    %7695 = vmatprep.subr.mxu0 0.0
    %7696 = vmatpush1.msra.mxu0 %v7468
    %7697 = vmatprep.subr.mxu0 0.0
    %7698 = vmatpush1.msra.mxu0 %v7469
    %7699 = vmatprep.subr.mxu0 0.0
    %7700 = vmatpush1.msra.mxu0 %v7470
    %7701 = vmatprep.subr.mxu0 0.0
    %7702 = vmatpush1.msra.mxu0 %v7471
    %7703 = vmatprep.subr.mxu0 0.0
    %7704 = vmatpush1.msra.mxu0 %v7472
    %7705 = vmatprep.mubr.f32.mxu0 %v7640
    %7706 = vmatmul.mubr.f32.gmra.mrb[0].mxu0 %v7639
    %v7707 = vpop.f32.mrb[0].mxu0
    %v7708 = vadd.f32 0.0, %v7707
    %v7709 = vpop.f32.mrb[0].mxu0
    %7710 = vdwg.mxu0
    %v7711 = vsel %vm5451, %v7708, 0.0
    %v7712 = vrot.slane %v7711, 4
    %v7713 = vadd.f32 %v7711, %v7712
    %v7714 = vrot.slane %v7713, 2
    %v7715 = vadd.f32 %v7713, %v7714
    %v7716 = vrot.slane %v7715, 1
    %v7717 = vadd.f32 %v7715, %v7716
    %v7718 = vmul.f32 %v7717, 0.015625
    %v7719 = vld [vmem:[#allocation20] sm:$0x1]
    %v7720 = vadd.f32 %v7718, 1e-05
    %v7721 = vrsqrt.pop %v7720
    %v7722 = vmul.f32 %v7719, %v7721
    %v7724 = vsel %vm5476, %v7722, 0
    %7726 = vmatprep.subr.mxu0 %v7552
    %7727 = vmatpush1.msra.mxu0 %v7551
    %7728 = vmatprep.subr.mxu0 %v7554
    %7729 = vmatpush1.msra.mxu0 %v7553
    %7730 = vmatprep.subr.mxu0 0.0
    %7731 = vmatpush1.msra.mxu0 0.0
    %7732 = vmatprep.subr.mxu0 0.0
    %7733 = vmatpush1.msra.mxu0 0.0
    %7734 = vmatprep.subr.mxu0 0.0
    %7735 = vmatpush1.msra.mxu0 0.0
    %7736 = vmatprep.subr.mxu0 0.0
    %7737 = vmatpush1.msra.mxu0 0.0
    %7738 = vmatprep.subr.mxu0 0.0
    %7739 = vmatpush1.msra.mxu0 0.0
    %7740 = vmatprep.subr.mxu0 0.0
    %7741 = vmatpush1.msra.mxu0 0.0
    %7742 = vmatprep.subr.mxu0 0.0
    %7743 = vmatpush1.msra.mxu0 0.0
    %7744 = vmatprep.subr.mxu0 0.0
    %7745 = vmatpush1.msra.mxu0 0.0
    %7746 = vmatprep.subr.mxu0 0.0
    %7747 = vmatpush1.msra.mxu0 0.0
    %7748 = vmatprep.subr.mxu0 0.0
    %7749 = vmatpush1.msra.mxu0 0.0
    %7750 = vmatprep.subr.mxu0 0.0
    %7751 = vmatpush1.msra.mxu0 0.0
    %7752 = vmatprep.subr.mxu0 0.0
    %7753 = vmatpush1.msra.mxu0 0.0
    %7754 = vmatprep.subr.mxu0 0.0
    %7755 = vmatpush1.msra.mxu0 0.0
    %7756 = vmatprep.subr.mxu0 0.0
    %7757 = vmatpush1.msra.mxu0 0.0
    %7758 = vmatprep.subr.mxu0 0.0
    %7759 = vmatpush1.msra.mxu0 0.0
    %7760 = vmatprep.subr.mxu0 0.0
    %7761 = vmatpush1.msra.mxu0 0.0
    %7762 = vmatprep.subr.mxu0 0.0
    %7763 = vmatpush1.msra.mxu0 0.0
    %7764 = vmatprep.subr.mxu0 0.0
    %7765 = vmatpush1.msra.mxu0 0.0
    %7766 = vmatprep.subr.mxu0 0.0
    %7767 = vmatpush1.msra.mxu0 0.0
    %7768 = vmatprep.subr.mxu0 0.0
    %7769 = vmatpush1.msra.mxu0 0.0
    %7770 = vmatprep.subr.mxu0 0.0
    %7771 = vmatpush1.msra.mxu0 0.0
    %7772 = vmatprep.subr.mxu0 0.0
    %7773 = vmatpush1.msra.mxu0 0.0
    %7774 = vmatprep.subr.mxu0 0.0
    %7775 = vmatpush1.msra.mxu0 0.0
    %7776 = vmatprep.subr.mxu0 0.0
    %7777 = vmatpush1.msra.mxu0 0.0
    %7778 = vmatprep.subr.mxu0 0.0
    %7779 = vmatpush1.msra.mxu0 0.0
    %7780 = vmatprep.subr.mxu0 0.0
    %7781 = vmatpush1.msra.mxu0 0.0
    %7782 = vmatprep.subr.mxu0 0.0
    %7783 = vmatpush1.msra.mxu0 0.0
    %7784 = vmatprep.subr.mxu0 0.0
    %7785 = vmatpush1.msra.mxu0 0.0
    %7786 = vmatprep.subr.mxu0 0.0
    %7787 = vmatpush1.msra.mxu0 0.0
    %7788 = vmatprep.subr.mxu0 0.0
    %7789 = vmatpush1.msra.mxu0 0.0
    %7790 = vmatprep.mubr.f32.mxu0 0.0
    %7791 = vmatmul.mubr.f32.gmra.mrb[0].mxu0 %v7724
    %v7792 = vpop.f32.mrb[0].mxu0
    %v7793 = vadd.f32 0.0, %v7792
    %v7794 = vpop.f32.mrb[0].mxu0
    %v7795 = vadd.f32 0.0, %v7794
    %7796 = vdwg.mxu0
    %v7797 = vlaneseq
    %v7798 = vshrl.u32 %v7797, 7
    %v7799 = vsub.s32 0, %v7798
    %v7800 = vrot.slane %v7793, %v7799
    %v7801 = vlaneseq
    %v7802 = vshrl.u32 %v7801, 7
    %v7803 = vsub.s32 0, %v7802
    %v7804 = vrot.slane %v7795, %v7803
    %v7805 = vmul.f32 %v7637, %v7800
    %v7806 = vmul.f32 %v7638, %v7804
    %v7807 = vld [vmem:[#allocation21] sm:$0x3]
    %v7809 = vlaneseq
    %v7810 = vshrl.u32 %v7809, 7
    %v7811 = vsub.s32 0, %v7810
    %v7812 = vrot.slane %v7807, %v7811
    %v7813 = vlaneseq
    %v7814 = vshrl.u32 %v7813, 7
    %v7815 = vsub.s32 1, %v7814
    %v7816 = vrot.slane %v7807, %v7815
    %v7819 = vadd.f32 %v7805, %v7812
    %v7820 = vadd.f32 %v7806, %v7816
    %v7821 = vmax.f32 %v7819, 0.0
    %v7822 = vmax.f32 %v7820, 0.0
    %v7823 = vpack.c.bf16 %v7821, %v7821
    %v7824 = vpack.c.bf16 %v7822, %v7822
    %v7825 = vld [vmem:[%s16] sm:$0xf]
    %v7826 = vld [vmem:[%s16 + $0x4] sm:$0xf]
    %v7827 = vld [vmem:[%s16 + $0x8] sm:$0xf]
    %v7828 = vld [vmem:[%s16 + $0xc] sm:$0xf]
    %v7829 = vld [vmem:[%s16 + $0x10] sm:$0xf]
    %v7830 = vld [vmem:[%s16 + $0x14] sm:$0xf]
    %v7831 = vld [vmem:[%s16 + $0x18] sm:$0xf]
    %v7832 = vld [vmem:[%s16 + $0x1c] sm:$0xf]
    %v7833 = vld [vmem:[%s16 + $0x20] sm:$0xf]
    %v7834 = vld [vmem:[%s16 + $0x24] sm:$0xf]
    %v7835 = vld [vmem:[%s16 + $0x28] sm:$0xf]
    %v7836 = vld [vmem:[%s16 + $0x2c] sm:$0xf]
    %v7837 = vld [vmem:[%s16 + $0x30] sm:$0xf]
    %v7838 = vld [vmem:[%s16 + $0x34] sm:$0xf]
    %v7839 = vld [vmem:[%s16 + $0x38] sm:$0xf]
    %v7840 = vld [vmem:[%s16 + $0x3c] sm:$0xf]
    %v7841 = vld [vmem:[%s16 + $0x40] sm:$0xf]
    %v7842 = vld [vmem:[%s16 + $0x44] sm:$0xf]
    %v7843 = vld [vmem:[%s16 + $0x48] sm:$0xf]
    %v7844 = vld [vmem:[%s16 + $0x4c] sm:$0xf]
    %v7845 = vld [vmem:[%s16 + $0x50] sm:$0xf]
    %v7846 = vld [vmem:[%s16 + $0x54] sm:$0xf]
    %v7847 = vld [vmem:[%s16 + $0x58] sm:$0xf]
    %v7848 = vld [vmem:[%s16 + $0x5c] sm:$0xf]
    %v7849 = vld [vmem:[%s16 + $0x60] sm:$0xf]
    %v7850 = vld [vmem:[%s16 + $0x64] sm:$0xf]
    %v7851 = vld [vmem:[%s16 + $0x68] sm:$0xf]
    %v7852 = vld [vmem:[%s16 + $0x6c] sm:$0xf]
    %v7853 = vld [vmem:[%s16 + $0x70] sm:$0xf]
    %v7854 = vld [vmem:[%s16 + $0x74] sm:$0xf]
    %v7855 = vld [vmem:[%s16 + $0x78] sm:$0xf]
    %v7856 = vld [vmem:[%s16 + $0x7c] sm:$0xf]
    %v7889 = vunpack.c.l.b16 %v7825
    %v7890 = vunpack.c.l.b16 %v7826
    %v7891 = vunpack.c.l.b16 %v7827
    %v7892 = vunpack.c.l.b16 %v7828
    %v7893 = vunpack.c.l.b16 %v7829
    %v7894 = vunpack.c.l.b16 %v7830
    %v7895 = vunpack.c.l.b16 %v7831
    %v7896 = vunpack.c.l.b16 %v7832
    %v7897 = vunpack.c.l.b16 %v7833
    %v7898 = vunpack.c.l.b16 %v7834
    %v7899 = vunpack.c.l.b16 %v7835
    %v7900 = vunpack.c.l.b16 %v7836
    %v7901 = vunpack.c.l.b16 %v7837
    %v7902 = vunpack.c.l.b16 %v7838
    %v7903 = vunpack.c.l.b16 %v7839
    %v7904 = vunpack.c.l.b16 %v7840
    %v7905 = vunpack.c.l.b16 %v7841
    %v7906 = vunpack.c.l.b16 %v7842
    %v7907 = vunpack.c.l.b16 %v7843
    %v7908 = vunpack.c.l.b16 %v7844
    %v7909 = vunpack.c.l.b16 %v7845
    %v7910 = vunpack.c.l.b16 %v7846
    %v7911 = vunpack.c.l.b16 %v7847
    %v7912 = vunpack.c.l.b16 %v7848
    %v7913 = vunpack.c.l.b16 %v7849
    %v7914 = vunpack.c.l.b16 %v7850
    %v7915 = vunpack.c.l.b16 %v7851
    %v7916 = vunpack.c.l.b16 %v7852
    %v7917 = vunpack.c.l.b16 %v7853
    %v7918 = vunpack.c.l.b16 %v7854
    %v7919 = vunpack.c.l.b16 %v7855
    %v7920 = vunpack.c.l.b16 %v7856
    %v7921 = vpack.c.b16 %v7890, %v7889
    %v7922 = vpack.c.b16 %v7892, %v7891
    %v7923 = vpack.c.b16 %v7894, %v7893
    %v7924 = vpack.c.b16 %v7896, %v7895
    %v7925 = vpack.c.b16 %v7898, %v7897
    %v7926 = vpack.c.b16 %v7900, %v7899
    %v7927 = vpack.c.b16 %v7902, %v7901
    %v7928 = vpack.c.b16 %v7904, %v7903
    %v7929 = vpack.c.b16 %v7906, %v7905
    %v7930 = vpack.c.b16 %v7908, %v7907
    %v7931 = vpack.c.b16 %v7910, %v7909
    %v7932 = vpack.c.b16 %v7912, %v7911
    %v7933 = vpack.c.b16 %v7914, %v7913
    %v7934 = vpack.c.b16 %v7916, %v7915
    %v7935 = vpack.c.b16 %v7918, %v7917
    %v7936 = vpack.c.b16 %v7920, %v7919
    %7953 = vmatprep.subr.bf16.mxu0 0
    %7954 = vmatpush1.bf16.msra.mxu0 %v7921
    %7955 = vmatprep.subr.bf16.mxu0 0
    %7956 = vmatpush1.bf16.msra.mxu0 %v7922
    %7957 = vmatprep.subr.bf16.mxu0 0
    %7958 = vmatpush1.bf16.msra.mxu0 %v7923
    %7959 = vmatprep.subr.bf16.mxu0 0
    %7960 = vmatpush1.bf16.msra.mxu0 %v7924
    %7961 = vmatprep.subr.bf16.mxu0 0
    %7962 = vmatpush1.bf16.msra.mxu0 %v7925
    %7963 = vmatprep.subr.bf16.mxu0 0
    %7964 = vmatpush1.bf16.msra.mxu0 %v7926
    %7965 = vmatprep.subr.bf16.mxu0 0
    %7966 = vmatpush1.bf16.msra.mxu0 %v7927
    %7967 = vmatprep.subr.bf16.mxu0 0
    %7968 = vmatpush1.bf16.msra.mxu0 %v7928
    %7969 = vmatprep.subr.bf16.mxu0 0
    %7970 = vmatpush1.bf16.msra.mxu0 %v7929
    %7971 = vmatprep.subr.bf16.mxu0 0
    %7972 = vmatpush1.bf16.msra.mxu0 %v7930
    %7973 = vmatprep.subr.bf16.mxu0 0
    %7974 = vmatpush1.bf16.msra.mxu0 %v7931
    %7975 = vmatprep.subr.bf16.mxu0 0
    %7976 = vmatpush1.bf16.msra.mxu0 %v7932
    %7977 = vmatprep.subr.bf16.mxu0 0
    %7978 = vmatpush1.bf16.msra.mxu0 %v7933
    %7979 = vmatprep.subr.bf16.mxu0 0
    %7980 = vmatpush1.bf16.msra.mxu0 %v7934
    %7981 = vmatprep.subr.bf16.mxu0 0
    %7982 = vmatpush1.bf16.msra.mxu0 %v7935
    %7983 = vmatprep.subr.bf16.mxu0 0
    %7984 = vmatpush1.bf16.msra.mxu0 %v7936
    %7985 = vmatprep.mubr.bf16.mxu0 %v7824
    %7986 = vmatmul.mubr.bf16.gmra.mrb[0].mxu0 %v7823
    %v7987 = vpop.f32.mrb[0].mxu0
    %v7988 = vadd.f32 0.0, %v7987
    %v7989 = vpop.f32.mrb[0].mxu0
    %v7990 = vpop.f32.mrb[0].mxu0
    %v7991 = vpop.f32.mrb[0].mxu0
    %7992 = vdwg.mxu0
    %v7993 = vsel %vm5451, %v7988, 0.0
    %v7994 = vrot.slane %v7993, 4
    %v7995 = vadd.f32 %v7993, %v7994
    %v7996 = vrot.slane %v7995, 2
    %v7997 = vadd.f32 %v7995, %v7996
    %v7998 = vrot.slane %v7997, 1
    %v7999 = vadd.f32 %v7997, %v7998
    %v8000 = vrcp.pop 4.0
    %v8001 = vmul.f32 %v7999, %v8000
    %v8002 = vsub.f32 %v7988, %v8001
    %v8003 = vmul.f32 %v8002, %v8002
    %v8004 = vsel %vm5451, %v8003, 0.0
    %v8005 = vrot.slane %v8004, 4
    %v8006 = vadd.f32 %v8004, %v8005
    %v8007 = vrot.slane %v8006, 2
    %v8008 = vadd.f32 %v8006, %v8007
    %v8009 = vrot.slane %v8008, 1
    %v8010 = vadd.f32 %v8008, %v8009
    %v8011 = vmul.f32 %v8010, %v8000
    %v8012 = vadd.f32 %v8011, 1e-05
    %v8013 = vrsqrt.pop %v8012
    %v8014 = vmul.f32 %v8002, %v8013
    %v8015 = vld [vmem:[#allocation23] sm:$0x1]
    %v8017 = vlaneseq
    %v8018 = vshrl.u32 %v8017, 7
    %v8019 = vsub.s32 0, %v8018
    %v8020 = vrot.slane %v8015, %v8019
    %v8022 = vmul.f32 %v8014, %v8020
    %v8023 = vld [vmem:[#allocation24] sm:$0x1]
    %v8025 = vlaneseq
    %v8026 = vshrl.u32 %v8025, 7
    %v8027 = vsub.s32 0, %v8026
    %v8028 = vrot.slane %v8023, %v8027
    %v8030 = vadd.f32 %v8022, %v8028
    %v8031 = vmax.f32 %v8030, 0.0
    %v8032 = vld [vmem:[#allocation26] sm:$0x1]
    %v8034 = vlaneseq
    %v8035 = vshrl.u32 %v8034, 7
    %v8036 = vsub.s32 0, %v8035
    %v8037 = vrot.slane %v8032, %v8036
    %v8039 = vmul.f32 %v8031, %v8037
    %v8040 = vsel %vm5451, %v8039, 0.0
    %8041 = vadd.xlane.f32.xlu0 %v8040
    %v8042 = vpop.xlane.xlu0 %8041
    %v8043 = vld [vmem:[#allocation3] sm:$0x1]
    %v8045 = vlaneseq
    %v8046 = vshrl.u32 %v8045, 7
    %v8047 = vsub.s32 0, %v8046
    %v8048 = vrot.slane %v8043, %v8047
    %v8050 = vadd.f32 %v8042, %v8048
    %v8051 = vsub.f32 0.0, %v8050
    %v8052 = vmul.f32 %v8051, 1.442695
    %v8053 = vpow.pop %v8052
    %v8054 = vadd.f32 %v8053, 1.0
    %v8055 = vrcp.pop %v8054
    %v8056 = vmul.f32 1.0, %v8055
    %vm8057 = vcmask 3072
    %8058 = vst.msk [vmem:[%s21] sm:$0xf] %vm8057, %v8056
    // Predicated region
    $region146: #{discriminator_forward.1} parent=1 // pred_check
      _
    $region147: #{discriminator_forward.1} parent=1 // pred_check_branch
      %8060 = sbr.rel (0) target = $region149
    $region148: #{discriminator_forward.1} parent=1 // pred_region
      _
    $region149: #{discriminator_forward.1} parent=1 // pred_fallthru
      _
    // Predicated region
    $region150: #{discriminator_forward.1} parent=1 // pred_check
      _
    $region151: #{discriminator_forward.1} parent=1 // pred_check_branch
      %8062 = sbr.rel (0) target = $region153
    $region152: #{discriminator_forward.1} parent=1 // pred_region
      _
    $region153: #{discriminator_forward.1} parent=1 // pred_fallthru
      _
    %8063 = vsyncpa [#allocation5], 1
    %8064 = vsyncpa [#allocation7], 1
    %8065 = vsyncpa [#allocation10], 1
    %8066 = vsyncpa [#allocation13], 1
    %8067 = vsyncpa [#allocation16], 1
    %8068 = vsyncpa [#allocation19], 1
    %8069 = vsyncpa [#allocation22], 1
    %8070 = vsyncpa [#allocation25], 1

</llo_original>
